<compile_context>
chip_gen: v7x
topology: tpu7x:2x2x1
jax: 0.10.0
libtpu: 0.0.40
codegen_flags: <defaults>
</compile_context>

<pallas_src>
import numpy as np
import jax
import jax.numpy as jnp
from jax import lax
from jax.experimental import pallas as pl
from jax.experimental.pallas import tpu as pltpu

BN_EPS = 1e-5
LANE = 128


def _round_up(x, m):
    return (x + m - 1) // m * m


def _choose_tile_l(L, per_row_bytes, *, max_tile=1024,
                   budget_bytes=12 * 1024 * 1024, min_tiles=1):
    """Largest L-tile that is a multiple of 8, divides L and fits the budget."""
    if L % 8 != 0:
        # TODO(synk): remainder-tile handling for L not a multiple of 8;
        #             fall back to a single full-length tile.
        return L
    cap = budget_bytes // max(per_row_bytes, 1)
    cap = min(max_tile, cap, L)
    if min_tiles > 1:
        cap = min(cap, max(L // min_tiles, 8))
    cap = max(8, (cap // 8) * 8)
    t = cap
    while t >= 8:
        if L % t == 0:
            return t
        t -= 8
    return L


# ---------------------------------------------------------------------------
# Shared in-kernel compute helpers
# ---------------------------------------------------------------------------
def _conv1(x, w1, b1, cdt):
    """Pointwise (1x1) conv: (rows, Cin) @ (Cin, Cp) + b1, f32 accumulation."""
    return jnp.dot(x.astype(cdt), w1, preferred_element_type=jnp.float32) + b1


def _conv_3tap(a_m1, a_c, a_p1, w_ref):
    """k=3 'same' conv as three accumulating MXU dots (no lane-concat temp)."""
    return (jnp.dot(a_m1, w_ref[0], preferred_element_type=jnp.float32)
            + jnp.dot(a_c, w_ref[1], preferred_element_type=jnp.float32)
            + jnp.dot(a_p1, w_ref[2], preferred_element_type=jnp.float32))


def _conv1_conv2(xc_ref, xp_ref, xn_ref, w1_ref, b1_ref, w2_ref, cdt,
                 need_halo_r):
    """conv1 + conv2 for one (T, Cin) row tile.

    Returns (h, r, r_prev, r_next):
      h       (T, Cp) f32  conv1 output (residual branch)
      r       (T, Cp) f32  conv2(h), WITHOUT conv2's bias (BN absorbs it exactly)
      r_prev  (1, Cp) f32  r at tile row -1 (only if need_halo_r; caller masks)
      r_next  (1, Cp) f32  r at tile row  T (only if need_halo_r; caller masks)
    """
    w1 = w1_ref[...]
    b1 = b1_ref[...]
    h = _conv1(xc_ref[...], w1, b1, cdt)                        # (T, Cp) f32
    cp = h.shape[1]

    if xp_ref is not None:
        j = pl.program_id(1)
        n_j = pl.num_programs(1)
        prev_ok = (j > 0).astype(jnp.float32)
        next_ok = (j < n_j - 1).astype(jnp.float32)
        # conv2 zero-pads at the true sequence edges -> mask boundary halos.
        hp = _conv1(xp_ref[6:8, :], w1, b1, cdt) * prev_ok      # rows -2, -1
        hn = _conv1(xn_ref[0:2, :], w1, b1, cdt) * next_ok      # rows  T, T+1
    else:
        hp = jnp.zeros((2, cp), jnp.float32)
        hn = jnp.zeros((2, cp), jnp.float32)

    hc = h.astype(cdt)
    hpc = hp.astype(cdt)
    hnc = hn.astype(cdt)
    h_m1 = jnp.concatenate([hpc[1:2], hc[:-1]], axis=0)         # h[l-1]
    h_p1 = jnp.concatenate([hc[1:], hnc[0:1]], axis=0)          # h[l+1]
    r = _conv_3tap(h_m1, hc, h_p1, w2_ref)                      # (T, Cp) f32

    if not need_halo_r:
        return h, r, None, None
    # r at tile rows -1 and T (needed by conv3's halo in pass 2); one (2, Cp)
    # three-tap dot covers both rows.
    a_m1 = jnp.concatenate([hpc[0:1], hc[-1:]], axis=0)
    a_c = jnp.concatenate([hpc[1:2], hnc[0:1]], axis=0)
    a_p1 = jnp.concatenate([hc[0:1], hnc[1:2]], axis=0)
    r_halo = _conv_3tap(a_m1, a_c, a_p1, w2_ref)                # (2, Cp) f32
    return h, r, r_halo[0:1], r_halo[1:2]


# ---------------------------------------------------------------------------
# Pass 1: stats only (per-tile sum / sum-of-squares of conv2(conv1(x)))
# ---------------------------------------------------------------------------
def _make_pass1_kernel(has_halo, cdt):
    def body(xc_ref, xp_ref, xn_ref, w1_ref, b1_ref, w2_ref, stats_ref):
        _, r, _, _ = _conv1_conv2(xc_ref, xp_ref, xn_ref, w1_ref, b1_ref,
                                  w2_ref, cdt, need_halo_r=False)
        cp = r.shape[1]
        # (8, Cp) block so the store is a full unmasked vst; rows 2..7 are zero.
        stats_ref[...] = jnp.concatenate(
            [jnp.sum(r, axis=0, keepdims=True),
             jnp.sum(r * r, axis=0, keepdims=True),
             jnp.zeros((6, cp), jnp.float32)], axis=0)

    if has_halo:
        def kernel(xc, xp, xn, w1, b1, w2, stats):
            body(xc, xp, xn, w1, b1, w2, stats)
    else:
        def kernel(xc, w1, b1, w2, stats):
            body(xc, None, None, w1, b1, w2, stats)
    return kernel


# ---------------------------------------------------------------------------
# Pass 2: recompute conv1/conv2, BN (folded scale/shift) + ReLU, conv3,
#         residual add, ReLU.
# ---------------------------------------------------------------------------
def _make_pass2_kernel(has_halo, cdt):
    def body(xc_ref, xp_ref, xn_ref, w1_ref, b1_ref, w2_ref,
             scale_ref, shift_ref, w3_ref, b3_ref, o_ref):
        h, r, r_prev, r_next = _conv1_conv2(
            xc_ref, xp_ref, xn_ref, w1_ref, b1_ref, w2_ref, cdt,
            need_halo_r=xp_ref is not None)

        scale = scale_ref[...]                                  # (1, Cp) f32
        shift = shift_ref[...]                                  # (1, Cp) f32
        rnorm = jnp.maximum(r * scale + shift, 0.0)             # BN + ReLU
        cp = rnorm.shape[1]

        if xp_ref is not None:
            j = pl.program_id(1)
            n_j = pl.num_programs(1)
            prev_ok = (j > 0).astype(jnp.float32)
            next_ok = (j < n_j - 1).astype(jnp.float32)
            # conv3 zero-pads its *input* at the true sequence edges.
            rn_prev = jnp.maximum(r_prev * scale + shift, 0.0) * prev_ok
            rn_next = jnp.maximum(r_next * scale + shift, 0.0) * next_ok
        else:
            rn_prev = jnp.zeros((1, cp), jnp.float32)
            rn_next = jnp.zeros((1, cp), jnp.float32)

        rc = rnorm.astype(cdt)
        rn_m1 = jnp.concatenate([rn_prev.astype(cdt), rc[:-1]], axis=0)
        rn_p1 = jnp.concatenate([rc[1:], rn_next.astype(cdt)], axis=0)
        res3 = _conv_3tap(rn_m1, rc, rn_p1, w3_ref) + b3_ref[...]

        o_ref[...] = jnp.maximum(h + res3, 0.0).astype(o_ref.dtype)

    if has_halo:
        def kernel(xc, xp, xn, w1, b1, w2, sc, sh, w3, b3, o):
            body(xc, xp, xn, w1, b1, w2, sc, sh, w3, b3, o)
    else:
        def kernel(xc, w1, b1, w2, sc, sh, w3, b3, o):
            body(xc, None, None, w1, b1, w2, sc, sh, w3, b3, o)
    return kernel


# ---------------------------------------------------------------------------
# Parameter packing
# ---------------------------------------------------------------------------
def _pad_params(params, cin, cout, cp, cdt):
    """Zero-pad channels to cp; weights cast to the MXU compute dtype."""
    w1, b1, w2, b2, w3, b3, gamma, beta = params
    del b2  # exactly absorbed by training-mode BatchNorm (mean subtracts it)

    w1p = jnp.zeros((cin, cp), jnp.float32).at[:, :cout].set(w1).astype(cdt)
    b1p = jnp.zeros((1, cp), jnp.float32).at[:, :cout].set(b1.reshape(1, -1))
    w2p = jnp.zeros((3, cp, cp), jnp.float32).at[:, :cout, :cout].set(w2).astype(cdt)
    w3p = jnp.zeros((3, cp, cp), jnp.float32).at[:, :cout, :cout].set(w3).astype(cdt)
    b3p = jnp.zeros((1, cp), jnp.float32).at[:, :cout].set(b3.reshape(1, -1))
    gp = jnp.zeros((cp,), jnp.float32).at[:cout].set(gamma.reshape(-1))
    bp = jnp.zeros((cp,), jnp.float32).at[:cout].set(beta.reshape(-1))
    return w1p, b1p, w2p, w3p, b3p, gp, bp


# ---------------------------------------------------------------------------
# Wrapper
# ---------------------------------------------------------------------------
def rrb_forward_nlc(x_nlc, params, *, compute_dtype=jnp.bfloat16,
                    max_tile_l=1024, return_padded=False):
    """x_nlc: (B, L, C_in) channels-last.  Returns (B, L, C_out) float32.

    `return_padded=True` returns (B, L, Cp) with zero-padded channels >= C_out,
    skipping the output-slice copy for consumers that can handle the padding.
    """
    B, L, Cin = x_nlc.shape
    Cout = params[0].shape[1]
    Cp = _round_up(Cout, LANE)

    cdt_size = np.dtype(compute_dtype).itemsize
    # Per-row VMEM estimate for the heavier pass-2 working set: double-buffered
    # x / out tiles plus in-kernel temps (h, r, rnorm, res3 in f32 + compute-
    # dtype shifted copies).
    per_row = (2 * Cin * x_nlc.dtype.itemsize
               + 2 * Cp * 4
               + 4 * Cp * 4
               + 4 * Cp * cdt_size)
    min_tiles = 2 if B == 1 else 1            # keep both v7x TensorCores busy
    T = _choose_tile_l(L, per_row, max_tile=max_tile_l, min_tiles=min_tiles)
    nL = max(L // T, 1) if L % T == 0 else 1
    has_halo = nL > 1

    w1p, b1p, w2p, w3p, b3p, gp, bp = _pad_params(params, Cin, Cout, Cp,
                                                  compute_dtype)
    x = x_nlc  # no wrapper-level cast: the kernel casts each tile on load

    ctr_idx = lambda b, j: (b, j, 0)
    vec_idx = lambda b, j: (0, 0)
    w3d_idx = lambda b, j: (0, 0, 0)

    common_specs = [
        pl.BlockSpec((Cin, Cp), vec_idx),      # w1
        pl.BlockSpec((1, Cp), vec_idx),        # b1
        pl.BlockSpec((3, Cp, Cp), w3d_idx),    # w2 taps
    ]
    if has_halo:
        T8 = T // 8
        nb8 = L // 8
        prev_idx = lambda b, j: (b, jnp.maximum(j * T8 - 1, 0), 0)
        next_idx = lambda b, j: (b, jnp.minimum((j + 1) * T8, nb8 - 1), 0)
        x_specs = [pl.BlockSpec((None, T, Cin), ctr_idx),
                   pl.BlockSpec((None, 8, Cin), prev_idx),
                   pl.BlockSpec((None, 8, Cin), next_idx)]
        x_args = (x, x, x)
    else:
        x_specs = [pl.BlockSpec((None, T, Cin), ctr_idx)]
        x_args = (x,)

    # NOTE: constants are small at Cp<=512; single-buffering them (and raising
    # this limit) would be needed for very large C_out.
    cparams = pltpu.CompilerParams(
        dimension_semantics=("parallel", "parallel"),
        vmem_limit_bytes=32 * 1024 * 1024)

    # ---------------- pass 1: BN statistics only (no intermediates to HBM) --
    stats = pl.pallas_call(
        _make_pass1_kernel(has_halo, compute_dtype),
        grid=(B, nL),
        in_specs=x_specs + common_specs,
        out_specs=pl.BlockSpec((None, None, 8, Cp), lambda b, j: (b, j, 0, 0)),
        out_shape=jax.ShapeDtypeStruct((B, nL, 8, Cp), jnp.float32),
        compiler_params=cparams,
        cost_estimate=pl.CostEstimate(
            flops=2 * B * L * Cp * (Cin + 3 * Cp),
            transcendentals=0,
            bytes_accessed=(B * L * Cin * x.dtype.itemsize
                            + B * nL * 8 * Cp * 4
                            + (Cin + 3 * Cp) * Cp * cdt_size)),
    )(*x_args, w1p, b1p, w2p)

    # Global training-mode BatchNorm statistics (biased variance), folded with
    # gamma/beta into a single per-channel scale/shift.
    # TODO(synk): single-pass E[r^2]-mean^2 in f32; switch to a shifted/Welford
    #             reduction if activations ever have |mean| >> spread.
    sums = jnp.sum(stats, axis=(0, 1))                     # (8, Cp)
    n = jnp.float32(B * L)
    mean = sums[0] / n
    var = jnp.maximum(sums[1] / n - mean * mean, 0.0)
    scale = gp * lax.rsqrt(var + BN_EPS)
    shift = bp - mean * scale
    scale2d = scale.reshape(1, Cp)
    shift2d = shift.reshape(1, Cp)

    # ---------------- pass 2: recompute + BN + conv3 + residual -------------
    out_p = pl.pallas_call(
        _make_pass2_kernel(has_halo, compute_dtype),
        grid=(B, nL),
        in_specs=x_specs + common_specs + [
            pl.BlockSpec((1, Cp), vec_idx),     # BN scale
            pl.BlockSpec((1, Cp), vec_idx),     # BN shift
            pl.BlockSpec((3, Cp, Cp), w3d_idx), # w3 taps
            pl.BlockSpec((1, Cp), vec_idx),     # b3
        ],
        out_specs=pl.BlockSpec((None, T, Cp), ctr_idx),
        out_shape=jax.ShapeDtypeStruct((B, L, Cp), jnp.float32),
        compiler_params=cparams,
        cost_estimate=pl.CostEstimate(
            flops=2 * B * L * Cp * (Cin + 6 * Cp),
            transcendentals=0,
            bytes_accessed=(B * L * Cin * x.dtype.itemsize
                            + B * L * Cp * 4
                            + 2 * (Cin + 3 * Cp) * Cp * cdt_size)),
    )(*x_args, w1p, b1p, w2p, scale2d, shift2d, w3p, b3p)

    if return_padded:
        return out_p            # (B, L, Cp); channels >= C_out are zero padding
    return out_p[:, :, :Cout]


def rrb_forward(x_ncl, params, *, compute_dtype=jnp.bfloat16, max_tile_l=1024):
    """PyTorch-compatible NCL interface: (B, C_in, L) -> (B, C_out, L).

    Producers that can supply NLC directly should call `rrb_forward_nlc` to
    skip the transpose HBM round trips (and may request the padded output).
    """
    out_nlc = rrb_forward_nlc(jnp.transpose(x_ncl, (0, 2, 1)), params,
                              compute_dtype=compute_dtype,
                              max_tile_l=max_tile_l)
    return jnp.transpose(out_nlc, (0, 2, 1))


# ---------------------------------------------------------------------------
# Parameters + pure-JAX reference (PyTorch math, for verification)
# ---------------------------------------------------------------------------
def init_params(key, in_channels, out_channels):
    """Deterministic synthetic parameters (not a checkpoint load).

    Layouts (already transposed for channels-last matmuls):
      w1: (Cin, Cout)       == PyTorch conv1.weight[:, :, 0].T
      w2: (3, Cout, Cout)   == PyTorch conv2.weight transposed to (k, cin, cout)
      w3: (3, Cout, Cout)
      biases: (1, C)
    """
    ks = jax.random.split(key, 6)
    s1 = 1.0 / np.sqrt(in_channels * 1)
    s3 = 1.0 / np.sqrt(out_channels * 3)
    w1 = jax.random.uniform(ks[0], (in_channels, out_channels), jnp.float32, -s1, s1)
    b1 = jax.random.uniform(ks[1], (1, out_channels), jnp.float32, -s1, s1)
    w2 = jax.random.uniform(ks[2], (3, out_channels, out_channels), jnp.float32, -s3, s3)
    b2 = jax.random.uniform(ks[3], (1, out_channels), jnp.float32, -s3, s3)
    w3 = jax.random.uniform(ks[4], (3, out_channels, out_channels), jnp.float32, -s3, s3)
    b3 = jax.random.uniform(ks[5], (1, out_channels), jnp.float32, -s3, s3)
    gamma = jnp.ones((1, out_channels), jnp.float32)   # BatchNorm1d default init
    beta = jnp.zeros((1, out_channels), jnp.float32)
    return (w1, b1, w2, b2, w3, b3, gamma, beta)


def rrb_reference(x_ncl, params):
    """Pure-JAX reference with the exact PyTorch math (includes conv2 bias)."""
    w1, b1, w2, b2, w3, b3, gamma, beta = params
    x = jnp.transpose(x_ncl, (0, 2, 1)).astype(jnp.float32)
    prec = lax.Precision.HIGHEST

    def mm(h, w):
        return jnp.einsum("blc,cd->bld", h, w, precision=prec)

    def conv3(h, w, b):
        zero = jnp.zeros_like(h[:, :1, :])
        hm = jnp.concatenate([zero, h[:, :-1, :]], axis=1)
        hp = jnp.concatenate([h[:, 1:, :], zero], axis=1)
        return mm(hm, w[0]) + mm(h, w[1]) + mm(hp, w[2]) + b.reshape(1, 1, -1)

    h = mm(x, w1) + b1.reshape(1, 1, -1)
    res = conv3(h, w2, b2)
    mean = jnp.mean(res, axis=(0, 1), keepdims=True)
    var = jnp.mean((res - mean) ** 2, axis=(0, 1), keepdims=True)
    resn = (res - mean) / jnp.sqrt(var + BN_EPS) * gamma.reshape(1, 1, -1) \
        + beta.reshape(1, 1, -1)
    resn = jnp.maximum(resn, 0.0)
    out = jnp.maximum(h + conv3(resn, w3, b3), 0.0)
    return jnp.transpose(out, (0, 2, 1))


if __name__ == "__main__":
    # Accurate matmuls for the reference (and for kernel dots in interpret mode).
    jax.config.update("jax_default_matmul_precision", "highest")

    key = jax.random.PRNGKey(0)
    kp, kx1, kx2 = jax.random.split(key, 3)

    B, C_IN, C_OUT = 2, 4, 64
    params = init_params(kp, C_IN, C_OUT)

    # Case 1: short sequence -> single L-tile (no halo path), f32 MXU operands.
    x1 = jax.random.normal(kx1, (B, C_IN, 16), jnp.float32)   # NCL, like PyTorch
    out1 = jax.block_until_ready(jax.jit(
        lambda x: rrb_forward(x, params, compute_dtype=jnp.float32))(x1))
    ref1 = rrb_reference(x1, params)
    assert out1.shape == (B, C_OUT, 16)
    np.testing.assert_allclose(np.asarray(out1), np.asarray(ref1),
                               rtol=1e-3, atol=1e-3)

    # Case 2: longer sequence tiled along L (exercises the cross-tile halo
    #         path) with f32 operands — tight structural check.
    x2 = jax.random.normal(kx2, (B, C_IN, 48), jnp.float32)
    out2f = jax.block_until_ready(jax.jit(
        lambda x: rrb_forward(x, params, compute_dtype=jnp.float32,
                              max_tile_l=16))(x2))
    ref2 = rrb_reference(x2, params)
    assert out2f.shape == (B, C_OUT, 48)
    np.testing.assert_allclose(np.asarray(out2f), np.asarray(ref2),
                               rtol=1e-3, atol=1e-3)

    # Case 3: same tiling with the default bf16 MXU operands (v6e/v7x fast
    #         path); tolerance loosened for bf16 operand rounding.
    out2b = jax.block_until_ready(jax.jit(
        lambda x: rrb_forward(x, params, max_tile_l=16))(x2))
    np.testing.assert_allclose(np.asarray(out2b), np.asarray(ref2),
                               rtol=5e-2, atol=5e-2)

    print("KERNEL_OK")
</pallas_src>

<mosaic_0001>
module attributes {stable_mosaic.version = 11 : i64} {
  func.func @kernel(%arg0: i32, %arg1: i32, %arg2: memref<1x16x4xf32, #tpu.memory_space<vmem>>, %arg3: memref<4x128xf32, #tpu.memory_space<vmem>>, %arg4: memref<1x128xf32, #tpu.memory_space<vmem>>, %arg5: memref<3x128x128xf32, #tpu.memory_space<vmem>>, %arg6: memref<1x1x8x128xf32, #tpu.memory_space<vmem>>) attributes {dimension_semantics = [#tpu.dimension_semantics<parallel>, #tpu.dimension_semantics<parallel>], iteration_bounds = array<i64: 2, 1>, scalar_prefetch = 0 : i64, scratch_operands = 0 : i64, tpu.core_type = #tpu.core_type<tc>, window_params = [{transform_indices = @transform_0, window_bounds = array<i64: 1, 16, 4>}, {pipeline_mode = #tpu.pipeline_mode<synchronous>, transform_indices = @transform_1, window_bounds = array<i64: 4, 128>}, {pipeline_mode = #tpu.pipeline_mode<synchronous>, transform_indices = @transform_2, window_bounds = array<i64: 1, 128>}, {pipeline_mode = #tpu.pipeline_mode<synchronous>, transform_indices = @transform_3, window_bounds = array<i64: 3, 128, 128>}, {transform_indices = @transform_4, window_bounds = array<i64: 1, 1, 8, 128>}]} {
    %c0 = arith.constant 0 : index
    %c0_0 = arith.constant 0 : index
    %0 = vector.load %arg3[%c0, %c0_0] : memref<4x128xf32, #tpu.memory_space<vmem>>, vector<4x128xf32>
    %c0_1 = arith.constant 0 : index
    %c0_2 = arith.constant 0 : index
    %1 = vector.load %arg4[%c0_1, %c0_2] : memref<1x128xf32, #tpu.memory_space<vmem>>, vector<1x128xf32>
    %c0_3 = arith.constant 0 : index
    %c0_4 = arith.constant 0 : index
    %c0_5 = arith.constant 0 : index
    %2 = vector.load %arg2[%c0_3, %c0_4, %c0_5] : memref<1x16x4xf32, #tpu.memory_space<vmem>>, vector<1x16x4xf32>
    %3 = vector.shape_cast %2 : vector<1x16x4xf32> to vector<16x4xf32>
    %cst = arith.constant dense<0.000000e+00> : vector<16x128xf32>
    %4 = tpu.matmul %3, %0, %cst {dimension_numbers = #tpu.dot_dimension_numbers<[1], [0], [0], [1], [0, 0, 1, 1], [], []>, precision = #tpu.contract_precision<fp32>} : vector<16x4xf32>, vector<4x128xf32>, vector<16x128xf32> -> vector<16x128xf32>
    %5 = vector.broadcast %1 : vector<1x128xf32> to vector<16x128xf32>
    %6 = arith.addf %4, %5 : vector<16x128xf32>
    %cst_6 = arith.constant 0.000000e+00 : f32
    %7 = vector.broadcast %cst_6 : f32 to vector<2x128xf32>
    %cst_7 = arith.constant 0.000000e+00 : f32
    %8 = vector.broadcast %cst_7 : f32 to vector<2x128xf32>
    %9 = vector.extract_strided_slice %7 {offsets = [1, 0], sizes = [1, 128], strides = [1, 1]} : vector<2x128xf32> to vector<1x128xf32>
    %10 = vector.extract_strided_slice %6 {offsets = [0, 0], sizes = [15, 128], strides = [1, 1]} : vector<16x128xf32> to vector<15x128xf32>
    %11 = tpu.concatenate %9, %10 in 0 : vector<1x128xf32>, vector<15x128xf32> -> vector<16x128xf32>
    %12 = vector.extract_strided_slice %6 {offsets = [1, 0], sizes = [15, 128], strides = [1, 1]} : vector<16x128xf32> to vector<15x128xf32>
    %13 = vector.extract_strided_slice %8 {offsets = [0, 0], sizes = [1, 128], strides = [1, 1]} : vector<2x128xf32> to vector<1x128xf32>
    %14 = tpu.concatenate %12, %13 in 0 : vector<15x128xf32>, vector<1x128xf32> -> vector<16x128xf32>
    %c0_8 = arith.constant 0 : index
    %c0_9 = arith.constant 0 : index
    %c0_10 = arith.constant 0 : index
    %15 = vector.load %arg5[%c0_8, %c0_9, %c0_10] : memref<3x128x128xf32, #tpu.memory_space<vmem>>, vector<1x128x128xf32>
    %16 = vector.shape_cast %15 : vector<1x128x128xf32> to vector<128x128xf32>
    %cst_11 = arith.constant dense<0.000000e+00> : vector<16x128xf32>
    %17 = tpu.matmul %11, %16, %cst_11 {dimension_numbers = #tpu.dot_dimension_numbers<[1], [0], [0], [1], [0, 0, 1, 1], [], []>, precision = #tpu.contract_precision<fp32>} : vector<16x128xf32>, vector<128x128xf32>, vector<16x128xf32> -> vector<16x128xf32>
    %c1 = arith.constant 1 : index
    %c0_12 = arith.constant 0 : index
    %c0_13 = arith.constant 0 : index
    %18 = vector.load %arg5[%c1, %c0_12, %c0_13] : memref<3x128x128xf32, #tpu.memory_space<vmem>>, vector<1x128x128xf32>
    %19 = vector.shape_cast %18 : vector<1x128x128xf32> to vector<128x128xf32>
    %cst_14 = arith.constant dense<0.000000e+00> : vector<16x128xf32>
    %20 = tpu.matmul %6, %19, %cst_14 {dimension_numbers = #tpu.dot_dimension_numbers<[1], [0], [0], [1], [0, 0, 1, 1], [], []>, precision = #tpu.contract_precision<fp32>} : vector<16x128xf32>, vector<128x128xf32>, vector<16x128xf32> -> vector<16x128xf32>
    %21 = arith.addf %17, %20 : vector<16x128xf32>
    %c2 = arith.constant 2 : index
    %c0_15 = arith.constant 0 : index
    %c0_16 = arith.constant 0 : index
    %22 = vector.load %arg5[%c2, %c0_15, %c0_16] : memref<3x128x128xf32, #tpu.memory_space<vmem>>, vector<1x128x128xf32>
    %23 = vector.shape_cast %22 : vector<1x128x128xf32> to vector<128x128xf32>
    %cst_17 = arith.constant dense<0.000000e+00> : vector<16x128xf32>
    %24 = tpu.matmul %14, %23, %cst_17 {dimension_numbers = #tpu.dot_dimension_numbers<[1], [0], [0], [1], [0, 0, 1, 1], [], []>, precision = #tpu.contract_precision<fp32>} : vector<16x128xf32>, vector<128x128xf32>, vector<16x128xf32> -> vector<16x128xf32>
    %25 = arith.addf %21, %24 : vector<16x128xf32>
    %cst_18 = arith.constant dense<0.000000e+00> : vector<128xf32>
    %26 = vector.multi_reduction <add>, %25, %cst_18 [0] : vector<16x128xf32> to vector<128xf32>
    %27 = vector.shape_cast %26 : vector<128xf32> to vector<1x128xf32>
    %28 = arith.mulf %25, %25 : vector<16x128xf32>
    %cst_19 = arith.constant dense<0.000000e+00> : vector<128xf32>
    %29 = vector.multi_reduction <add>, %28, %cst_19 [0] : vector<16x128xf32> to vector<128xf32>
    %30 = vector.shape_cast %29 : vector<128xf32> to vector<1x128xf32>
    %cst_20 = arith.constant 0.000000e+00 : f32
    %31 = vector.broadcast %cst_20 : f32 to vector<6x128xf32>
    %32 = tpu.concatenate %27, %30, %31 in 0 : vector<1x128xf32>, vector<1x128xf32>, vector<6x128xf32> -> vector<8x128xf32>
    %c0_21 = arith.constant 0 : index
    %c0_22 = arith.constant 0 : index
    %c0_23 = arith.constant 0 : index
    %c0_24 = arith.constant 0 : index
    %33 = vector.load %arg6[%c0_21, %c0_22, %c0_23, %c0_24] : memref<1x1x8x128xf32, #tpu.memory_space<vmem>>, vector<1x1x8x128xf32>
    %34 = vector.shape_cast %33 : vector<1x1x8x128xf32> to vector<8x128xf32>
    %35 = vector.shape_cast %32 : vector<8x128xf32> to vector<1x1x8x128xf32>
    tpu.vector_store %arg6[%c0_21, %c0_22, %c0_23, %c0_24], %35 {strides = array<i32>} : memref<1x1x8x128xf32, #tpu.memory_space<vmem>>, vector<1x1x8x128xf32>,
    return
  }
  func.func @transform_0(%arg0: i32, %arg1: i32) -> (i32, i32, i32) {
    %c0_i32 = arith.constant 0 : i32
    %c0_i32_0 = arith.constant 0 : i32
    return %arg0, %arg1, %c0_i32 : i32, i32, i32
  }
  func.func @transform_1(%arg0: i32, %arg1: i32) -> (i32, i32) {
    %c0_i32 = arith.constant 0 : i32
    %c0_i32_0 = arith.constant 0 : i32
    %c0_i32_1 = arith.constant 0 : i32
    return %c0_i32, %c0_i32_0 : i32, i32
  }
  func.func @transform_2(%arg0: i32, %arg1: i32) -> (i32, i32) {
    %c0_i32 = arith.constant 0 : i32
    %c0_i32_0 = arith.constant 0 : i32
    %c0_i32_1 = arith.constant 0 : i32
    return %c0_i32, %c0_i32_0 : i32, i32
  }
  func.func @transform_3(%arg0: i32, %arg1: i32) -> (i32, i32, i32) {
    %c0_i32 = arith.constant 0 : i32
    %c0_i32_0 = arith.constant 0 : i32
    %c0_i32_1 = arith.constant 0 : i32
    %c0_i32_2 = arith.constant 0 : i32
    return %c0_i32, %c0_i32_0, %c0_i32_1 : i32, i32, i32
  }
  func.func @transform_4(%arg0: i32, %arg1: i32) -> (i32, i32, i32, i32) {
    %c0_i32 = arith.constant 0 : i32
    %c0_i32_0 = arith.constant 0 : i32
    %c0_i32_1 = arith.constant 0 : i32
    return %arg0, %arg1, %c0_i32, %c0_i32_0 : i32, i32, i32, i32
  }
}

module attributes {stable_mosaic.version = 11 : i64} {
  func.func @kernel(%arg0: i32, %arg1: i32, %arg2: memref<1x16x4xf32, #tpu.memory_space<vmem>>, %arg3: memref<4x128xf32, #tpu.memory_space<vmem>>, %arg4: memref<1x128xf32, #tpu.memory_space<vmem>>, %arg5: memref<3x128x128xf32, #tpu.memory_space<vmem>>, %arg6: memref<1x128xf32, #tpu.memory_space<vmem>>, %arg7: memref<1x128xf32, #tpu.memory_space<vmem>>, %arg8: memref<3x128x128xf32, #tpu.memory_space<vmem>>, %arg9: memref<1x128xf32, #tpu.memory_space<vmem>>, %arg10: memref<1x16x128xf32, #tpu.memory_space<vmem>>) attributes {dimension_semantics = [#tpu.dimension_semantics<parallel>, #tpu.dimension_semantics<parallel>], iteration_bounds = array<i64: 2, 1>, scalar_prefetch = 0 : i64, scratch_operands = 0 : i64, tpu.core_type = #tpu.core_type<tc>, window_params = [{transform_indices = @transform_0, window_bounds = array<i64: 1, 16, 4>}, {pipeline_mode = #tpu.pipeline_mode<synchronous>, transform_indices = @transform_1, window_bounds = array<i64: 4, 128>}, {pipeline_mode = #tpu.pipeline_mode<synchronous>, transform_indices = @transform_2, window_bounds = array<i64: 1, 128>}, {pipeline_mode = #tpu.pipeline_mode<synchronous>, transform_indices = @transform_3, window_bounds = array<i64: 3, 128, 128>}, {pipeline_mode = #tpu.pipeline_mode<synchronous>, transform_indices = @transform_4, window_bounds = array<i64: 1, 128>}, {pipeline_mode = #tpu.pipeline_mode<synchronous>, transform_indices = @transform_5, window_bounds = array<i64: 1, 128>}, {pipeline_mode = #tpu.pipeline_mode<synchronous>, transform_indices = @transform_6, window_bounds = array<i64: 3, 128, 128>}, {pipeline_mode = #tpu.pipeline_mode<synchronous>, transform_indices = @transform_7, window_bounds = array<i64: 1, 128>}, {transform_indices = @transform_8, window_bounds = array<i64: 1, 16, 128>}]} {
    %c0 = arith.constant 0 : index
    %c0_0 = arith.constant 0 : index
    %0 = vector.load %arg3[%c0, %c0_0] : memref<4x128xf32, #tpu.memory_space<vmem>>, vector<4x128xf32>
    %c0_1 = arith.constant 0 : index
    %c0_2 = arith.constant 0 : index
    %1 = vector.load %arg4[%c0_1, %c0_2] : memref<1x128xf32, #tpu.memory_space<vmem>>, vector<1x128xf32>
    %c0_3 = arith.constant 0 : index
    %c0_4 = arith.constant 0 : index
    %c0_5 = arith.constant 0 : index
    %2 = vector.load %arg2[%c0_3, %c0_4, %c0_5] : memref<1x16x4xf32, #tpu.memory_space<vmem>>, vector<1x16x4xf32>
    %3 = vector.shape_cast %2 : vector<1x16x4xf32> to vector<16x4xf32>
    %cst = arith.constant dense<0.000000e+00> : vector<16x128xf32>
    %4 = tpu.matmul %3, %0, %cst {dimension_numbers = #tpu.dot_dimension_numbers<[1], [0], [0], [1], [0, 0, 1, 1], [], []>, precision = #tpu.contract_precision<fp32>} : vector<16x4xf32>, vector<4x128xf32>, vector<16x128xf32> -> vector<16x128xf32>
    %5 = vector.broadcast %1 : vector<1x128xf32> to vector<16x128xf32>
    %6 = arith.addf %4, %5 : vector<16x128xf32>
    %cst_6 = arith.constant 0.000000e+00 : f32
    %7 = vector.broadcast %cst_6 : f32 to vector<2x128xf32>
    %cst_7 = arith.constant 0.000000e+00 : f32
    %8 = vector.broadcast %cst_7 : f32 to vector<2x128xf32>
    %9 = vector.extract_strided_slice %7 {offsets = [1, 0], sizes = [1, 128], strides = [1, 1]} : vector<2x128xf32> to vector<1x128xf32>
    %10 = vector.extract_strided_slice %6 {offsets = [0, 0], sizes = [15, 128], strides = [1, 1]} : vector<16x128xf32> to vector<15x128xf32>
    %11 = tpu.concatenate %9, %10 in 0 : vector<1x128xf32>, vector<15x128xf32> -> vector<16x128xf32>
    %12 = vector.extract_strided_slice %6 {offsets = [1, 0], sizes = [15, 128], strides = [1, 1]} : vector<16x128xf32> to vector<15x128xf32>
    %13 = vector.extract_strided_slice %8 {offsets = [0, 0], sizes = [1, 128], strides = [1, 1]} : vector<2x128xf32> to vector<1x128xf32>
    %14 = tpu.concatenate %12, %13 in 0 : vector<15x128xf32>, vector<1x128xf32> -> vector<16x128xf32>
    %c0_8 = arith.constant 0 : index
    %c0_9 = arith.constant 0 : index
    %c0_10 = arith.constant 0 : index
    %15 = vector.load %arg5[%c0_8, %c0_9, %c0_10] : memref<3x128x128xf32, #tpu.memory_space<vmem>>, vector<1x128x128xf32>
    %16 = vector.shape_cast %15 : vector<1x128x128xf32> to vector<128x128xf32>
    %cst_11 = arith.constant dense<0.000000e+00> : vector<16x128xf32>
    %17 = tpu.matmul %11, %16, %cst_11 {dimension_numbers = #tpu.dot_dimension_numbers<[1], [0], [0], [1], [0, 0, 1, 1], [], []>, precision = #tpu.contract_precision<fp32>} : vector<16x128xf32>, vector<128x128xf32>, vector<16x128xf32> -> vector<16x128xf32>
    %c1 = arith.constant 1 : index
    %c0_12 = arith.constant 0 : index
    %c0_13 = arith.constant 0 : index
    %18 = vector.load %arg5[%c1, %c0_12, %c0_13] : memref<3x128x128xf32, #tpu.memory_space<vmem>>, vector<1x128x128xf32>
    %19 = vector.shape_cast %18 : vector<1x128x128xf32> to vector<128x128xf32>
    %cst_14 = arith.constant dense<0.000000e+00> : vector<16x128xf32>
    %20 = tpu.matmul %6, %19, %cst_14 {dimension_numbers = #tpu.dot_dimension_numbers<[1], [0], [0], [1], [0, 0, 1, 1], [], []>, precision = #tpu.contract_precision<fp32>} : vector<16x128xf32>, vector<128x128xf32>, vector<16x128xf32> -> vector<16x128xf32>
    %21 = arith.addf %17, %20 : vector<16x128xf32>
    %c2 = arith.constant 2 : index
    %c0_15 = arith.constant 0 : index
    %c0_16 = arith.constant 0 : index
    %22 = vector.load %arg5[%c2, %c0_15, %c0_16] : memref<3x128x128xf32, #tpu.memory_space<vmem>>, vector<1x128x128xf32>
    %23 = vector.shape_cast %22 : vector<1x128x128xf32> to vector<128x128xf32>
    %cst_17 = arith.constant dense<0.000000e+00> : vector<16x128xf32>
    %24 = tpu.matmul %14, %23, %cst_17 {dimension_numbers = #tpu.dot_dimension_numbers<[1], [0], [0], [1], [0, 0, 1, 1], [], []>, precision = #tpu.contract_precision<fp32>} : vector<16x128xf32>, vector<128x128xf32>, vector<16x128xf32> -> vector<16x128xf32>
    %25 = arith.addf %21, %24 : vector<16x128xf32>
    %c0_18 = arith.constant 0 : index
    %c0_19 = arith.constant 0 : index
    %26 = vector.load %arg6[%c0_18, %c0_19] : memref<1x128xf32, #tpu.memory_space<vmem>>, vector<1x128xf32>
    %c0_20 = arith.constant 0 : index
    %c0_21 = arith.constant 0 : index
    %27 = vector.load %arg7[%c0_20, %c0_21] : memref<1x128xf32, #tpu.memory_space<vmem>>, vector<1x128xf32>
    %28 = vector.broadcast %26 : vector<1x128xf32> to vector<16x128xf32>
    %29 = arith.mulf %25, %28 : vector<16x128xf32>
    %30 = vector.broadcast %27 : vector<1x128xf32> to vector<16x128xf32>
    %31 = arith.addf %29, %30 : vector<16x128xf32>
    %cst_22 = arith.constant 0.000000e+00 : f32
    %32 = vector.broadcast %cst_22 : f32 to vector<16x128xf32>
    %33 = arith.maximumf %31, %32 : vector<16x128xf32>
    %cst_23 = arith.constant 0.000000e+00 : f32
    %34 = vector.broadcast %cst_23 : f32 to vector<1x128xf32>
    %cst_24 = arith.constant 0.000000e+00 : f32
    %35 = vector.broadcast %cst_24 : f32 to vector<1x128xf32>
    %36 = vector.extract_strided_slice %33 {offsets = [0, 0], sizes = [15, 128], strides = [1, 1]} : vector<16x128xf32> to vector<15x128xf32>
    %37 = tpu.concatenate %34, %36 in 0 : vector<1x128xf32>, vector<15x128xf32> -> vector<16x128xf32>
    %38 = vector.extract_strided_slice %33 {offsets = [1, 0], sizes = [15, 128], strides = [1, 1]} : vector<16x128xf32> to vector<15x128xf32>
    %39 = tpu.concatenate %38, %35 in 0 : vector<15x128xf32>, vector<1x128xf32> -> vector<16x128xf32>
    %c0_25 = arith.constant 0 : index
    %c0_26 = arith.constant 0 : index
    %c0_27 = arith.constant 0 : index
    %40 = vector.load %arg8[%c0_25, %c0_26, %c0_27] : memref<3x128x128xf32, #tpu.memory_space<vmem>>, vector<1x128x128xf32>
    %41 = vector.shape_cast %40 : vector<1x128x128xf32> to vector<128x128xf32>
    %cst_28 = arith.constant dense<0.000000e+00> : vector<16x128xf32>
    %42 = tpu.matmul %37, %41, %cst_28 {dimension_numbers = #tpu.dot_dimension_numbers<[1], [0], [0], [1], [0, 0, 1, 1], [], []>, precision = #tpu.contract_precision<fp32>} : vector<16x128xf32>, vector<128x128xf32>, vector<16x128xf32> -> vector<16x128xf32>
    %c1_29 = arith.constant 1 : index
    %c0_30 = arith.constant 0 : index
    %c0_31 = arith.constant 0 : index
    %43 = vector.load %arg8[%c1_29, %c0_30, %c0_31] : memref<3x128x128xf32, #tpu.memory_space<vmem>>, vector<1x128x128xf32>
    %44 = vector.shape_cast %43 : vector<1x128x128xf32> to vector<128x128xf32>
    %cst_32 = arith.constant dense<0.000000e+00> : vector<16x128xf32>
    %45 = tpu.matmul %33, %44, %cst_32 {dimension_numbers = #tpu.dot_dimension_numbers<[1], [0], [0], [1], [0, 0, 1, 1], [], []>, precision = #tpu.contract_precision<fp32>} : vector<16x128xf32>, vector<128x128xf32>, vector<16x128xf32> -> vector<16x128xf32>
    %46 = arith.addf %42, %45 : vector<16x128xf32>
    %c2_33 = arith.constant 2 : index
    %c0_34 = arith.constant 0 : index
    %c0_35 = arith.constant 0 : index
    %47 = vector.load %arg8[%c2_33, %c0_34, %c0_35] : memref<3x128x128xf32, #tpu.memory_space<vmem>>, vector<1x128x128xf32>
    %48 = vector.shape_cast %47 : vector<1x128x128xf32> to vector<128x128xf32>
    %cst_36 = arith.constant dense<0.000000e+00> : vector<16x128xf32>
    %49 = tpu.matmul %39, %48, %cst_36 {dimension_numbers = #tpu.dot_dimension_numbers<[1], [0], [0], [1], [0, 0, 1, 1], [], []>, precision = #tpu.contract_precision<fp32>} : vector<16x128xf32>, vector<128x128xf32>, vector<16x128xf32> -> vector<16x128xf32>
    %50 = arith.addf %46, %49 : vector<16x128xf32>
    %c0_37 = arith.constant 0 : index
    %c0_38 = arith.constant 0 : index
    %51 = vector.load %arg9[%c0_37, %c0_38] : memref<1x128xf32, #tpu.memory_space<vmem>>, vector<1x128xf32>
    %52 = vector.broadcast %51 : vector<1x128xf32> to vector<16x128xf32>
    %53 = arith.addf %50, %52 : vector<16x128xf32>
    %54 = arith.addf %6, %53 : vector<16x128xf32>
    %cst_39 = arith.constant 0.000000e+00 : f32
    %55 = vector.broadcast %cst_39 : f32 to vector<16x128xf32>
    %56 = arith.maximumf %54, %55 : vector<16x128xf32>
    %c0_40 = arith.constant 0 : index
    %c0_41 = arith.constant 0 : index
    %c0_42 = arith.constant 0 : index
    %57 = vector.load %arg10[%c0_40, %c0_41, %c0_42] : memref<1x16x128xf32, #tpu.memory_space<vmem>>, vector<1x16x128xf32>
    %58 = vector.shape_cast %57 : vector<1x16x128xf32> to vector<16x128xf32>
    %59 = vector.shape_cast %56 : vector<16x128xf32> to vector<1x16x128xf32>
    tpu.vector_store %arg10[%c0_40, %c0_41, %c0_42], %59 {strides = array<i32>} : memref<1x16x128xf32, #tpu.memory_space<vmem>>, vector<1x16x128xf32>,
    return
  }
  func.func @transform_0(%arg0: i32, %arg1: i32) -> (i32, i32, i32) {
    %c0_i32 = arith.constant 0 : i32
    %c0_i32_0 = arith.constant 0 : i32
    return %arg0, %arg1, %c0_i32 : i32, i32, i32
  }
  func.func @transform_1(%arg0: i32, %arg1: i32) -> (i32, i32) {
    %c0_i32 = arith.constant 0 : i32
    %c0_i32_0 = arith.constant 0 : i32
    %c0_i32_1 = arith.constant 0 : i32
    return %c0_i32, %c0_i32_0 : i32, i32
  }
  func.func @transform_2(%arg0: i32, %arg1: i32) -> (i32, i32) {
    %c0_i32 = arith.constant 0 : i32
    %c0_i32_0 = arith.constant 0 : i32
    %c0_i32_1 = arith.constant 0 : i32
    return %c0_i32, %c0_i32_0 : i32, i32
  }
  func.func @transform_3(%arg0: i32, %arg1: i32) -> (i32, i32, i32) {
    %c0_i32 = arith.constant 0 : i32
    %c0_i32_0 = arith.constant 0 : i32
    %c0_i32_1 = arith.constant 0 : i32
    %c0_i32_2 = arith.constant 0 : i32
    return %c0_i32, %c0_i32_0, %c0_i32_1 : i32, i32, i32
  }
  func.func @transform_4(%arg0: i32, %arg1: i32) -> (i32, i32) {
    %c0_i32 = arith.constant 0 : i32
    %c0_i32_0 = arith.constant 0 : i32
    %c0_i32_1 = arith.constant 0 : i32
    return %c0_i32, %c0_i32_0 : i32, i32
  }
  func.func @transform_5(%arg0: i32, %arg1: i32) -> (i32, i32) {
    %c0_i32 = arith.constant 0 : i32
    %c0_i32_0 = arith.constant 0 : i32
    %c0_i32_1 = arith.constant 0 : i32
    return %c0_i32, %c0_i32_0 : i32, i32
  }
  func.func @transform_6(%arg0: i32, %arg1: i32) -> (i32, i32, i32) {
    %c0_i32 = arith.constant 0 : i32
    %c0_i32_0 = arith.constant 0 : i32
    %c0_i32_1 = arith.constant 0 : i32
    %c0_i32_2 = arith.constant 0 : i32
    return %c0_i32, %c0_i32_0, %c0_i32_1 : i32, i32, i32
  }
  func.func @transform_7(%arg0: i32, %arg1: i32) -> (i32, i32) {
    %c0_i32 = arith.constant 0 : i32
    %c0_i32_0 = arith.constant 0 : i32
    %c0_i32_1 = arith.constant 0 : i32
    return %c0_i32, %c0_i32_0 : i32, i32
  }
  func.func @transform_8(%arg0: i32, %arg1: i32) -> (i32, i32, i32) {
    %c0_i32 = arith.constant 0 : i32
    %c0_i32_0 = arith.constant 0 : i32
    return %arg0, %arg1, %c0_i32 : i32, i32, i32
  }
}

</mosaic_0001>

<llo_original>
// kernel: _lambda_.2
$region0: #{_lambda_.2}
  #allocation0 [shape = 'u32[]', space=smem, size = 0x4, offset = 0x4, fixed_abs, tag = 'smem constant byte address 0x4 - core index']
  #allocation1 [shape = 'u32[144,128]{1,0:T(1,128)}', space=vmem, size = 0x12000, scoped, tag = 'internal scratch']
  %s0 = inlined_call_operand.vmem [shape: f32[2,16,4], index: 0, kind: input, shape index: {}]
  %s1 = inlined_call_operand.vmem [shape: f32[4,128], index: 1, kind: input, shape index: {}]
  %s2 = inlined_call_operand.vmem [shape: f32[1,128], index: 2, kind: input, shape index: {}]
  %s3 = inlined_call_operand.hbm [shape: f32[3,128,128], index: 3, kind: input, shape index: {}]
  %s4 = inlined_call_operand.vmem [shape: f32[2,1,8,128], index: 4, kind: output, shape index: {}]
  %s5 = sld [smem:[#allocation0]]
  $region53: #{_lambda_.2} parent=0
    _
  %s7 = ssub.s32 1, %s5
  %s8 = scalar_select 0, %s7, %s5
  $region1: #{_lambda_.2} parent=0
    #allocation2 [shape = 'u8[196608]{0}', space=vmem, size = 0x30000, scoped, tag = 'input window, operand 3, single buffered']
    #allocation3 [shape = 's32[2]{0}', space=sflag, size = 0x8, scoped, tag = 'scoped memory for _lambda_.2']
    %9 = vsyncpa [#allocation3], 0
    loop: start=0, step=1, limit=4
    $region2: #{_lambda_.2} parent=1 // loop_pre_header
      _
    $region3: #{_lambda_.2} parent=1 // loop_header
      %s11 = sphi 0, %s15
      %p12 = scmp.ge.s32.totalorder %s11, 4
      %s18 = sphi 0, %s30
      %s19 = sphi 0, %s26
      %s20 = sphi 0, %s18
      %s21 = sphi 0, %s19
      %s22 = sphi 0, %s20
      %s23 = sphi 0, %s21
      %s35 = sphi 0, %s37
      %s38 = sphi 0, %s35
      %s39 = sphi 0, %s38
      %s55 = sphi 0, %s39
      %s59 = sphi 0, %s59
      %s61 = sphi 0, %s59
      %s62 = sphi 0, %s61
      %s76 = sphi 0, %s62
      %s80 = sphi 0, %s80
      %s82 = sphi 0, %s80
      %s83 = sphi 0, %s82
      %s97 = sphi 0, %s83
      %s101 = sphi 0, %s101
      %s103 = sphi 0, %s101
      %s104 = sphi 0, %s103
      %s118 = sphi 0, %s104
      %s126 = sphi 0, %s128
      %s129 = sphi 0, %s126
      %s130 = sphi 0, %s129
      %s146 = sphi 0, %s130
    $region4: #{_lambda_.2} parent=1 // loop_header_branch
      %14 = sbr.rel (%p12) target = $region8
    $region5: #{_lambda_.2} parent=1 // loop_body
      %s16 = ssub.s32 %s11, 1
      %s17 = ssub.s32 %s11, 2
      %s24 = sadd.s32 1, %s19
      %p25 = scmp.ge.s32.totalorder %s24, 1
      %s26 = scalar_select %p25, 0, %s24
      %s27 = sadd.s32 1, %s18
      %s28 = scalar_select %p25, %s27, %s18
      %p29 = scmp.ge.s32.totalorder %s28, 2
      %s30 = scalar_select %p29, 0, %s28
      %s31 = ssub.s32 %s18, %s30
      %s32 = ssub.s32 %s19, %s26
      %s33 = sor.u32 %s31, %s32
      %p34 = scmp.eq.s32.totalorder %s33, 0
      %s36 = sadd.s32 %s35, 1
      %s37 = scalar_select %p34, %s35, %s36
      %p40 = pneg %p34
      %p41 = scmp.eq.s32.totalorder %s11, 1
      %p42 = por %p40, %p41
      %p43 = scmp.ne.s32.totalorder %s35, %s38
      %p44 = scmp.eq.s32.totalorder %s11, 0
      %p45 = por %p43, %p44
      %p46 = scmp.ne.s32.totalorder %s35, %s38
      %p47 = scmp.eq.s32.totalorder %s16, 1
      %p48 = por %p46, %p47
      %p49 = scmp.ne.s32.totalorder %s38, %s39
      %p50 = scmp.eq.s32.totalorder %s16, 0
      %p51 = por %p49, %p50
      %p52 = scmp.ne.s32.totalorder %s38, %s39
      %p53 = scmp.eq.s32.totalorder %s17, 1
      %p54 = por %p52, %p53
      %p56 = scmp.ne.s32.totalorder %s39, %s55
      %p57 = scmp.eq.s32.totalorder %s17, 0
      %p58 = por %p56, %p57
      %s60 = sadd.s32 %s59, 1
      %p63 = scmp.eq.s32.totalorder %s11, 1
      %p64 = scmp.ne.s32.totalorder %s59, %s61
      %p65 = scmp.eq.s32.totalorder %s11, 0
      %p66 = por %p64, %p65
      %p67 = scmp.ne.s32.totalorder %s59, %s61
      %p68 = scmp.eq.s32.totalorder %s16, 1
      %p69 = por %p67, %p68
      %p70 = scmp.ne.s32.totalorder %s61, %s62
      %p71 = scmp.eq.s32.totalorder %s16, 0
      %p72 = por %p70, %p71
      %p73 = scmp.ne.s32.totalorder %s61, %s62
      %p74 = scmp.eq.s32.totalorder %s17, 1
      %p75 = por %p73, %p74
      %p77 = scmp.ne.s32.totalorder %s62, %s76
      %p78 = scmp.eq.s32.totalorder %s17, 0
      %p79 = por %p77, %p78
      %s81 = sadd.s32 %s80, 1
      %p84 = scmp.eq.s32.totalorder %s11, 1
      %p85 = scmp.ne.s32.totalorder %s80, %s82
      %p86 = scmp.eq.s32.totalorder %s11, 0
      %p87 = por %p85, %p86
      %p88 = scmp.ne.s32.totalorder %s80, %s82
      %p89 = scmp.eq.s32.totalorder %s16, 1
      %p90 = por %p88, %p89
      %p91 = scmp.ne.s32.totalorder %s82, %s83
      %p92 = scmp.eq.s32.totalorder %s16, 0
      %p93 = por %p91, %p92
      %p94 = scmp.ne.s32.totalorder %s82, %s83
      %p95 = scmp.eq.s32.totalorder %s17, 1
      %p96 = por %p94, %p95
      %p98 = scmp.ne.s32.totalorder %s83, %s97
      %p99 = scmp.eq.s32.totalorder %s17, 0
      %p100 = por %p98, %p99
      %s102 = sadd.s32 %s101, 1
      %p105 = scmp.eq.s32.totalorder %s11, 1
      %p106 = scmp.ne.s32.totalorder %s101, %s103
      %p107 = scmp.eq.s32.totalorder %s11, 0
      %p108 = por %p106, %p107
      %p109 = scmp.ne.s32.totalorder %s101, %s103
      %p110 = scmp.eq.s32.totalorder %s16, 1
      %p111 = por %p109, %p110
      %p112 = scmp.ne.s32.totalorder %s103, %s104
      %p113 = scmp.eq.s32.totalorder %s16, 0
      %p114 = por %p112, %p113
      %p115 = scmp.ne.s32.totalorder %s103, %s104
      %p116 = scmp.eq.s32.totalorder %s17, 1
      %p117 = por %p115, %p116
      %p119 = scmp.ne.s32.totalorder %s104, %s118
      %p120 = scmp.eq.s32.totalorder %s17, 0
      %p121 = por %p119, %p120
      %s122 = ssub.s32 %s18, %s30
      %s123 = ssub.s32 %s19, %s26
      %s124 = sor.u32 %s122, %s123
      %p125 = scmp.eq.s32.totalorder %s124, 0
      %s127 = sadd.s32 %s126, 1
      %s128 = scalar_select %p125, %s126, %s127
      %p131 = pneg %p125
      %p132 = scmp.eq.s32.totalorder %s11, 1
      %p133 = por %p131, %p132
      %p134 = scmp.ne.s32.totalorder %s126, %s129
      %p135 = scmp.eq.s32.totalorder %s11, 0
      %p136 = por %p134, %p135
      %p137 = scmp.ne.s32.totalorder %s126, %s129
      %p138 = scmp.eq.s32.totalorder %s16, 1
      %p139 = por %p137, %p138
      %p140 = scmp.ne.s32.totalorder %s129, %s130
      %p141 = scmp.eq.s32.totalorder %s16, 0
      %p142 = por %p140, %p141
      %p143 = scmp.ne.s32.totalorder %s129, %s130
      %p144 = scmp.eq.s32.totalorder %s17, 1
      %p145 = por %p143, %p144
      %p147 = scmp.ne.s32.totalorder %s130, %s146
      %p148 = scmp.eq.s32.totalorder %s17, 0
      %p149 = por %p147, %p148
      %p150 = scmp.le.s32.totalorder 1, %s11
      %p151 = scmp.lt.s32.totalorder %s11, 3
      %p152 = pnand %p150, %p151
      %p153 = pneg %p152
      // Predicated region
      $region9: #{_lambda_.2} parent=5 // pred_check
        _
      $region10: #{_lambda_.2} parent=5 // pred_check_branch
        %155 = sbr.rel (%p152) target = $region12
      $region11: #{_lambda_.2} parent=5 // pred_region
        %s156 = ssub.s32 %s11, 1
        // Predicated region
        $region13: #{_lambda_.2} parent=11 // pred_check
          %p157 = pneg %p72
        $region14: #{_lambda_.2} parent=11 // pred_check_branch
          %159 = sbr.rel (%p157) target = $region16
        $region15: #{_lambda_.2} parent=11 // pred_region
          _
        $region16: #{_lambda_.2} parent=11 // pred_fallthru
          _
        // Predicated region
        $region17: #{_lambda_.2} parent=11 // pred_check
          %p160 = pneg %p93
        $region18: #{_lambda_.2} parent=11 // pred_check_branch
          %162 = sbr.rel (%p160) target = $region20
        $region19: #{_lambda_.2} parent=11 // pred_region
          _
        $region20: #{_lambda_.2} parent=11 // pred_fallthru
          _
        // Predicated region
        $region21: #{_lambda_.2} parent=11 // pred_check
          %p163 = pneg %p114
        $region22: #{_lambda_.2} parent=11 // pred_check_branch
          %165 = sbr.rel (%p163) target = $region24
        $region23: #{_lambda_.2} parent=11 // pred_region
          %s167 = ssub.s32 6144, 6144
          %168 = vsyncadd [#allocation3], %s167
          %s169 = sshll.u32 [#allocation2], 4
          %s170 = int_to_ptr.vmem [resolvable:$true] %s169
          %175 = dma.hbm_to_vmem [thread:$0]  %s3, 6144, %s170, [#allocation3], 128, 128, 8
        $region24: #{_lambda_.2} parent=11 // pred_fallthru
          _
      $region12: #{_lambda_.2} parent=5 // pred_fallthru
        _
      %p176 = scmp.lt.s32.totalorder %s11, 2
      // Predicated region
      $region25: #{_lambda_.2} parent=5 // pred_check
        %p177 = pneg %p176
      $region26: #{_lambda_.2} parent=5 // pred_check_branch
        %179 = sbr.rel (%p177) target = $region28
      $region27: #{_lambda_.2} parent=5 // pred_region
        // Predicated region
        $region29: #{_lambda_.2} parent=27 // pred_check
          %p180 = pneg %p45
        $region30: #{_lambda_.2} parent=27 // pred_check_branch
          %182 = sbr.rel (%p180) target = $region32
        $region31: #{_lambda_.2} parent=27 // pred_region
          %s183 = smul.u32 2, %s19
          %p184 = scmp.lt.s32.totalorder %s18, 1
          %s185 = scalar_select %p184, %s18, 1
          %p186 = scmp.lt.s32.totalorder %s183, 1
          %s187 = scalar_select %p186, %s183, 1
          %s188 = smul.addr %s185, 2
          %s189 = sadd.s32 %s187, %s188
          %s190 = smul.addr %s189, 8
          %s191 = scalar_lea.vmem %s0, %s190
          %s192 = smul.u32 2, %s19
        $region32: #{_lambda_.2} parent=27 // pred_fallthru
          _
      $region28: #{_lambda_.2} parent=5 // pred_fallthru
        _
      %p193 = scmp.le.s32.totalorder 1, %s11
      %p194 = scmp.lt.s32.totalorder %s11, 3
      %p195 = pnand %p193, %p194
      %p196 = pneg %p195
      // Predicated region
      $region33: #{_lambda_.2} parent=5 // pred_check
        _
      $region34: #{_lambda_.2} parent=5 // pred_check_branch
        %198 = sbr.rel (%p195) target = $region36
      $region35: #{_lambda_.2} parent=5 // pred_region
        %s199 = ssub.s32 %s11, 1
        // Predicated region
        $region37: #{_lambda_.2} parent=35 // pred_check
          %p200 = pneg %p114
        $region38: #{_lambda_.2} parent=35 // pred_check_branch
          %202 = sbr.rel (%p200) target = $region40
        $region39: #{_lambda_.2} parent=35 // pred_region
          %203 = dma.done [#allocation3], 6144
        $region40: #{_lambda_.2} parent=35 // pred_fallthru
          _
        %s204 = smul.u32 2, %s21
        %p205 = scmp.lt.s32.totalorder %s20, 1
        %s206 = scalar_select %p205, %s20, 1
        %p207 = scmp.lt.s32.totalorder %s204, 1
        %s208 = scalar_select %p207, %s204, 1
        %s209 = smul.addr %s206, 2
        %s210 = sadd.s32 %s208, %s209
        %s211 = smul.addr %s210, 8
        %s212 = scalar_lea.vmem %s0, %s211
        %p213 = pneg %p51
        %p214 = pneg %p48
        %p215 = pneg %p72
        %p216 = pneg %p69
        %p217 = pneg %p93
        %p218 = pneg %p90
        %p219 = pneg %p114
        %p220 = pneg %p111
        %p221 = pneg %p142
        %p222 = pneg %p139
        %p223 = scmp.lt.s32.totalorder %s20, 1
        %s224 = scalar_select %p223, %s20, 1
        %p225 = scmp.lt.s32.totalorder %s21, 0
        %s226 = scalar_select %p225, %s21, 0
        %s227 = sadd.s32 %s226, %s224
        %s228 = smul.addr %s227, 8
        %s229 = scalar_lea.vmem %s4, %s228
        %s230 = smul.u32 2, %s21
        %p231 = scmp.lt.s32.totalorder %s20, 1
        %s232 = scalar_select %p231, %s20, 1
        %p233 = scmp.lt.s32.totalorder %s230, 1
        %s234 = scalar_select %p233, %s230, 1
        %s235 = smul.addr %s232, 2
        %s236 = sadd.s32 %s234, %s235
        %s237 = smul.addr %s236, 8
        %s238 = scalar_lea.vmem %s0, %s237
        %s239 = smul.u32 2, %s21
        %p240 = scmp.lt.s32.totalorder %s20, 1
        %s241 = scalar_select %p240, %s20, 1
        %p242 = scmp.lt.s32.totalorder %s21, 0
        %s243 = scalar_select %p242, %s21, 0
        %s244 = sadd.s32 %s243, %s241
        %s245 = smul.addr %s244, 8
        %s246 = scalar_lea.vmem %s4, %s245
        %v247 = vld [vmem:[%s1] sm:$0xf]
        %v248 = vld [vmem:[%s2] sm:$0x1]
        %v249 = vld [vmem:[%s238] sm:$0xff]
        %v250 = vld [vmem:[%s238 + $0x8] sm:$0xff]
        %v252 = vlaneseq
        %v253 = vshrl.u32 %v252, 7
        %v254 = vsub.s32 0, %v253
        %v255 = vrot.slane %v248, %v254
        %vm257 = vcmask 31744
        %v259 = vsel %vm257, %v249, 0
        %v262 = vsel %vm257, %v250, 0
        %vm264 = vcmask 1043456
        %v266 = vsel %vm264, %v247, 0
        %268 = vmatprep.subr.mxu0 0.0
        %v269 = vand.u32 %v266, 4294901760
        %270 = vmatpush1.msra.mxu0 %v269
        %271 = vmatprep.subr.mxu0 0.0
        %272 = vmatpush1.msra.mxu0 0.0
        %273 = vmatprep.subr.mxu0 0.0
        %274 = vmatpush1.msra.mxu0 0.0
        %275 = vmatprep.subr.mxu0 0.0
        %276 = vmatpush1.msra.mxu0 0.0
        %277 = vmatprep.subr.mxu0 0.0
        %278 = vmatpush1.msra.mxu0 0.0
        %279 = vmatprep.subr.mxu0 0.0
        %280 = vmatpush1.msra.mxu0 0.0
        %281 = vmatprep.subr.mxu0 0.0
        %282 = vmatpush1.msra.mxu0 0.0
        %283 = vmatprep.subr.mxu0 0.0
        %284 = vmatpush1.msra.mxu0 0.0
        %285 = vmatprep.subr.mxu0 0.0
        %286 = vmatpush1.msra.mxu0 0.0
        %287 = vmatprep.subr.mxu0 0.0
        %288 = vmatpush1.msra.mxu0 0.0
        %289 = vmatprep.subr.mxu0 0.0
        %290 = vmatpush1.msra.mxu0 0.0
        %291 = vmatprep.subr.mxu0 0.0
        %292 = vmatpush1.msra.mxu0 0.0
        %293 = vmatprep.subr.mxu0 0.0
        %294 = vmatpush1.msra.mxu0 0.0
        %295 = vmatprep.subr.mxu0 0.0
        %296 = vmatpush1.msra.mxu0 0.0
        %297 = vmatprep.subr.mxu0 0.0
        %298 = vmatpush1.msra.mxu0 0.0
        %299 = vmatprep.subr.mxu0 0.0
        %300 = vmatpush1.msra.mxu0 0.0
        %301 = vmatprep.subr.mxu0 0.0
        %302 = vmatpush1.msra.mxu0 0.0
        %303 = vmatprep.subr.mxu0 0.0
        %304 = vmatpush1.msra.mxu0 0.0
        %305 = vmatprep.subr.mxu0 0.0
        %306 = vmatpush1.msra.mxu0 0.0
        %307 = vmatprep.subr.mxu0 0.0
        %308 = vmatpush1.msra.mxu0 0.0
        %309 = vmatprep.subr.mxu0 0.0
        %310 = vmatpush1.msra.mxu0 0.0
        %311 = vmatprep.subr.mxu0 0.0
        %312 = vmatpush1.msra.mxu0 0.0
        %313 = vmatprep.subr.mxu0 0.0
        %314 = vmatpush1.msra.mxu0 0.0
        %315 = vmatprep.subr.mxu0 0.0
        %316 = vmatpush1.msra.mxu0 0.0
        %317 = vmatprep.subr.mxu0 0.0
        %318 = vmatpush1.msra.mxu0 0.0
        %319 = vmatprep.subr.mxu0 0.0
        %320 = vmatpush1.msra.mxu0 0.0
        %321 = vmatprep.subr.mxu0 0.0
        %322 = vmatpush1.msra.mxu0 0.0
        %323 = vmatprep.subr.mxu0 0.0
        %324 = vmatpush1.msra.mxu0 0.0
        %325 = vmatprep.subr.mxu0 0.0
        %326 = vmatpush1.msra.mxu0 0.0
        %327 = vmatprep.subr.mxu0 0.0
        %328 = vmatpush1.msra.mxu0 0.0
        %329 = vmatprep.subr.mxu0 0.0
        %330 = vmatpush1.msra.mxu0 0.0
        %331 = vmatprep.subr.mxu0 0.0
        %332 = vmatpush1.msra.mxu0 0.0
        %333 = vmatprep.mubr.f32.mxu0 0.0
        %v334 = vand.u32 %v259, 4294901760
        %v335 = vsub.f32 %v259, %v334
        %v336 = vand.u32 %v335, 4294901760
        %v337 = vsub.f32 %v335, %v336
        %v338 = vand.u32 %v337, 4294901760
        %339 = vmatmul.mubr.f32.gmra.mrb[0].mxu0 %v338
        %v340 = vpop.f32.mrb[0].mxu0
        %v341 = vadd.f32 %v255, %v340
        %v342 = vpop.f32.mrb[0].mxu0
        %343 = vmatprep.mubr.f32.mxu0 0.0
        %v344 = vand.u32 %v262, 4294901760
        %v345 = vsub.f32 %v262, %v344
        %v346 = vand.u32 %v345, 4294901760
        %v347 = vsub.f32 %v345, %v346
        %v348 = vand.u32 %v347, 4294901760
        %349 = vmatmul.mubr.f32.gmra.mrb[0].mxu0 %v348
        %v350 = vpop.f32.mrb[0].mxu0
        %v351 = vadd.f32 %v255, %v350
        %v352 = vpop.f32.mrb[0].mxu0
        %353 = vdwg.mxu0
        %354 = vmatprep.subr.mxu0 0.0
        %v355 = vand.u32 %v266, 4294901760
        %v356 = vsub.f32 %v266, %v355
        %v357 = vand.u32 %v356, 4294901760
        %v358 = vsub.f32 %v356, %v357
        %v359 = vand.u32 %v358, 4294901760
        %360 = vmatpush1.msra.mxu0 %v359
        %361 = vmatprep.subr.mxu0 0.0
        %362 = vmatpush1.msra.mxu0 0.0
        %363 = vmatprep.subr.mxu0 0.0
        %364 = vmatpush1.msra.mxu0 0.0
        %365 = vmatprep.subr.mxu0 0.0
        %366 = vmatpush1.msra.mxu0 0.0
        %367 = vmatprep.subr.mxu0 0.0
        %368 = vmatpush1.msra.mxu0 0.0
        %369 = vmatprep.subr.mxu0 0.0
        %370 = vmatpush1.msra.mxu0 0.0
        %371 = vmatprep.subr.mxu0 0.0
        %372 = vmatpush1.msra.mxu0 0.0
        %373 = vmatprep.subr.mxu0 0.0
        %374 = vmatpush1.msra.mxu0 0.0
        %375 = vmatprep.subr.mxu0 0.0
        %376 = vmatpush1.msra.mxu0 0.0
        %377 = vmatprep.subr.mxu0 0.0
        %378 = vmatpush1.msra.mxu0 0.0
        %379 = vmatprep.subr.mxu0 0.0
        %380 = vmatpush1.msra.mxu0 0.0
        %381 = vmatprep.subr.mxu0 0.0
        %382 = vmatpush1.msra.mxu0 0.0
        %383 = vmatprep.subr.mxu0 0.0
        %384 = vmatpush1.msra.mxu0 0.0
        %385 = vmatprep.subr.mxu0 0.0
        %386 = vmatpush1.msra.mxu0 0.0
        %387 = vmatprep.subr.mxu0 0.0
        %388 = vmatpush1.msra.mxu0 0.0
        %389 = vmatprep.subr.mxu0 0.0
        %390 = vmatpush1.msra.mxu0 0.0
        %391 = vmatprep.subr.mxu0 0.0
        %392 = vmatpush1.msra.mxu0 0.0
        %393 = vmatprep.subr.mxu0 0.0
        %394 = vmatpush1.msra.mxu0 0.0
        %395 = vmatprep.subr.mxu0 0.0
        %396 = vmatpush1.msra.mxu0 0.0
        %397 = vmatprep.subr.mxu0 0.0
        %398 = vmatpush1.msra.mxu0 0.0
        %399 = vmatprep.subr.mxu0 0.0
        %400 = vmatpush1.msra.mxu0 0.0
        %401 = vmatprep.subr.mxu0 0.0
        %402 = vmatpush1.msra.mxu0 0.0
        %403 = vmatprep.subr.mxu0 0.0
        %404 = vmatpush1.msra.mxu0 0.0
        %405 = vmatprep.subr.mxu0 0.0
        %406 = vmatpush1.msra.mxu0 0.0
        %407 = vmatprep.subr.mxu0 0.0
        %408 = vmatpush1.msra.mxu0 0.0
        %409 = vmatprep.subr.mxu0 0.0
        %410 = vmatpush1.msra.mxu0 0.0
        %411 = vmatprep.subr.mxu0 0.0
        %412 = vmatpush1.msra.mxu0 0.0
        %413 = vmatprep.subr.mxu0 0.0
        %414 = vmatpush1.msra.mxu0 0.0
        %415 = vmatprep.subr.mxu0 0.0
        %416 = vmatpush1.msra.mxu0 0.0
        %417 = vmatprep.subr.mxu0 0.0
        %418 = vmatpush1.msra.mxu0 0.0
        %419 = vmatprep.subr.mxu0 0.0
        %420 = vmatpush1.msra.mxu0 0.0
        %421 = vmatprep.subr.mxu0 0.0
        %422 = vmatpush1.msra.mxu0 0.0
        %423 = vmatprep.mubr.f32.mxu0 0.0
        %v424 = vand.u32 %v259, 4294901760
        %425 = vmatmul.mubr.f32.gmra.mrb[0].mxu0 %v424
        %v426 = vpop.f32.mrb[0].mxu0
        %v427 = vadd.f32 %v341, %v426
        %v428 = vpop.f32.mrb[0].mxu0
        %429 = vmatprep.mubr.f32.mxu0 0.0
        %v430 = vand.u32 %v262, 4294901760
        %431 = vmatmul.mubr.f32.gmra.mrb[0].mxu0 %v430
        %v432 = vpop.f32.mrb[0].mxu0
        %v433 = vadd.f32 %v351, %v432
        %v434 = vpop.f32.mrb[0].mxu0
        %435 = vdwg.mxu0
        %436 = vmatprep.subr.mxu0 0.0
        %v437 = vand.u32 %v266, 4294901760
        %v438 = vsub.f32 %v266, %v437
        %439 = vmatpush1.msra.mxu0 %v438
        %440 = vmatprep.subr.mxu0 0.0
        %441 = vmatpush1.msra.mxu0 0.0
        %442 = vmatprep.subr.mxu0 0.0
        %443 = vmatpush1.msra.mxu0 0.0
        %444 = vmatprep.subr.mxu0 0.0
        %445 = vmatpush1.msra.mxu0 0.0
        %446 = vmatprep.subr.mxu0 0.0
        %447 = vmatpush1.msra.mxu0 0.0
        %448 = vmatprep.subr.mxu0 0.0
        %449 = vmatpush1.msra.mxu0 0.0
        %450 = vmatprep.subr.mxu0 0.0
        %451 = vmatpush1.msra.mxu0 0.0
        %452 = vmatprep.subr.mxu0 0.0
        %453 = vmatpush1.msra.mxu0 0.0
        %454 = vmatprep.subr.mxu0 0.0
        %455 = vmatpush1.msra.mxu0 0.0
        %456 = vmatprep.subr.mxu0 0.0
        %457 = vmatpush1.msra.mxu0 0.0
        %458 = vmatprep.subr.mxu0 0.0
        %459 = vmatpush1.msra.mxu0 0.0
        %460 = vmatprep.subr.mxu0 0.0
        %461 = vmatpush1.msra.mxu0 0.0
        %462 = vmatprep.subr.mxu0 0.0
        %463 = vmatpush1.msra.mxu0 0.0
        %464 = vmatprep.subr.mxu0 0.0
        %465 = vmatpush1.msra.mxu0 0.0
        %466 = vmatprep.subr.mxu0 0.0
        %467 = vmatpush1.msra.mxu0 0.0
        %468 = vmatprep.subr.mxu0 0.0
        %469 = vmatpush1.msra.mxu0 0.0
        %470 = vmatprep.subr.mxu0 0.0
        %471 = vmatpush1.msra.mxu0 0.0
        %472 = vmatprep.subr.mxu0 0.0
        %473 = vmatpush1.msra.mxu0 0.0
        %474 = vmatprep.subr.mxu0 0.0
        %475 = vmatpush1.msra.mxu0 0.0
        %476 = vmatprep.subr.mxu0 0.0
        %477 = vmatpush1.msra.mxu0 0.0
        %478 = vmatprep.subr.mxu0 0.0
        %479 = vmatpush1.msra.mxu0 0.0
        %480 = vmatprep.subr.mxu0 0.0
        %481 = vmatpush1.msra.mxu0 0.0
        %482 = vmatprep.subr.mxu0 0.0
        %483 = vmatpush1.msra.mxu0 0.0
        %484 = vmatprep.subr.mxu0 0.0
        %485 = vmatpush1.msra.mxu0 0.0
        %486 = vmatprep.subr.mxu0 0.0
        %487 = vmatpush1.msra.mxu0 0.0
        %488 = vmatprep.subr.mxu0 0.0
        %489 = vmatpush1.msra.mxu0 0.0
        %490 = vmatprep.subr.mxu0 0.0
        %491 = vmatpush1.msra.mxu0 0.0
        %492 = vmatprep.subr.mxu0 0.0
        %493 = vmatpush1.msra.mxu0 0.0
        %494 = vmatprep.subr.mxu0 0.0
        %495 = vmatpush1.msra.mxu0 0.0
        %496 = vmatprep.subr.mxu0 0.0
        %497 = vmatpush1.msra.mxu0 0.0
        %498 = vmatprep.subr.mxu0 0.0
        %499 = vmatpush1.msra.mxu0 0.0
        %500 = vmatprep.subr.mxu0 0.0
        %501 = vmatpush1.msra.mxu0 0.0
        %502 = vmatprep.mubr.f32.mxu0 0.0
        %v503 = vand.u32 %v259, 4294901760
        %v504 = vsub.f32 %v259, %v503
        %505 = vmatmul.mubr.f32.gmra.mrb[0].mxu0 %v504
        %v506 = vpop.f32.mrb[0].mxu0
        %v507 = vadd.f32 %v427, %v506
        %v508 = vpop.f32.mrb[0].mxu0
        %509 = vmatprep.mubr.f32.mxu0 0.0
        %v510 = vand.u32 %v262, 4294901760
        %v511 = vsub.f32 %v262, %v510
        %512 = vmatmul.mubr.f32.gmra.mrb[0].mxu0 %v511
        %v513 = vpop.f32.mrb[0].mxu0
        %v514 = vadd.f32 %v433, %v513
        %v515 = vpop.f32.mrb[0].mxu0
        %516 = vdwg.mxu0
        %517 = vmatprep.subr.mxu0 0.0
        %v518 = vand.u32 %v266, 4294901760
        %519 = vmatpush1.msra.mxu0 %v518
        %520 = vmatprep.subr.mxu0 0.0
        %521 = vmatpush1.msra.mxu0 0.0
        %522 = vmatprep.subr.mxu0 0.0
        %523 = vmatpush1.msra.mxu0 0.0
        %524 = vmatprep.subr.mxu0 0.0
        %525 = vmatpush1.msra.mxu0 0.0
        %526 = vmatprep.subr.mxu0 0.0
        %527 = vmatpush1.msra.mxu0 0.0
        %528 = vmatprep.subr.mxu0 0.0
        %529 = vmatpush1.msra.mxu0 0.0
        %530 = vmatprep.subr.mxu0 0.0
        %531 = vmatpush1.msra.mxu0 0.0
        %532 = vmatprep.subr.mxu0 0.0
        %533 = vmatpush1.msra.mxu0 0.0
        %534 = vmatprep.subr.mxu0 0.0
        %535 = vmatpush1.msra.mxu0 0.0
        %536 = vmatprep.subr.mxu0 0.0
        %537 = vmatpush1.msra.mxu0 0.0
        %538 = vmatprep.subr.mxu0 0.0
        %539 = vmatpush1.msra.mxu0 0.0
        %540 = vmatprep.subr.mxu0 0.0
        %541 = vmatpush1.msra.mxu0 0.0
        %542 = vmatprep.subr.mxu0 0.0
        %543 = vmatpush1.msra.mxu0 0.0
        %544 = vmatprep.subr.mxu0 0.0
        %545 = vmatpush1.msra.mxu0 0.0
        %546 = vmatprep.subr.mxu0 0.0
        %547 = vmatpush1.msra.mxu0 0.0
        %548 = vmatprep.subr.mxu0 0.0
        %549 = vmatpush1.msra.mxu0 0.0
        %550 = vmatprep.subr.mxu0 0.0
        %551 = vmatpush1.msra.mxu0 0.0
        %552 = vmatprep.subr.mxu0 0.0
        %553 = vmatpush1.msra.mxu0 0.0
        %554 = vmatprep.subr.mxu0 0.0
        %555 = vmatpush1.msra.mxu0 0.0
        %556 = vmatprep.subr.mxu0 0.0
        %557 = vmatpush1.msra.mxu0 0.0
        %558 = vmatprep.subr.mxu0 0.0
        %559 = vmatpush1.msra.mxu0 0.0
        %560 = vmatprep.subr.mxu0 0.0
        %561 = vmatpush1.msra.mxu0 0.0
        %562 = vmatprep.subr.mxu0 0.0
        %563 = vmatpush1.msra.mxu0 0.0
        %564 = vmatprep.subr.mxu0 0.0
        %565 = vmatpush1.msra.mxu0 0.0
        %566 = vmatprep.subr.mxu0 0.0
        %567 = vmatpush1.msra.mxu0 0.0
        %568 = vmatprep.subr.mxu0 0.0
        %569 = vmatpush1.msra.mxu0 0.0
        %570 = vmatprep.subr.mxu0 0.0
        %571 = vmatpush1.msra.mxu0 0.0
        %572 = vmatprep.subr.mxu0 0.0
        %573 = vmatpush1.msra.mxu0 0.0
        %574 = vmatprep.subr.mxu0 0.0
        %575 = vmatpush1.msra.mxu0 0.0
        %576 = vmatprep.subr.mxu0 0.0
        %577 = vmatpush1.msra.mxu0 0.0
        %578 = vmatprep.subr.mxu0 0.0
        %579 = vmatpush1.msra.mxu0 0.0
        %580 = vmatprep.subr.mxu0 0.0
        %581 = vmatpush1.msra.mxu0 0.0
        %582 = vmatprep.mubr.f32.mxu0 0.0
        %v583 = vand.u32 %v259, 4294901760
        %v584 = vsub.f32 %v259, %v583
        %v585 = vand.u32 %v584, 4294901760
        %586 = vmatmul.mubr.f32.gmra.mrb[0].mxu0 %v585
        %v587 = vpop.f32.mrb[0].mxu0
        %v588 = vadd.f32 %v507, %v587
        %v589 = vpop.f32.mrb[0].mxu0
        %590 = vmatprep.mubr.f32.mxu0 0.0
        %v591 = vand.u32 %v262, 4294901760
        %v592 = vsub.f32 %v262, %v591
        %v593 = vand.u32 %v592, 4294901760
        %594 = vmatmul.mubr.f32.gmra.mrb[0].mxu0 %v593
        %v595 = vpop.f32.mrb[0].mxu0
        %v596 = vadd.f32 %v514, %v595
        %v597 = vpop.f32.mrb[0].mxu0
        %598 = vdwg.mxu0
        %599 = vmatprep.subr.mxu0 0.0
        %v600 = vand.u32 %v266, 4294901760
        %v601 = vsub.f32 %v266, %v600
        %v602 = vand.u32 %v601, 4294901760
        %603 = vmatpush1.msra.mxu0 %v602
        %604 = vmatprep.subr.mxu0 0.0
        %605 = vmatpush1.msra.mxu0 0.0
        %606 = vmatprep.subr.mxu0 0.0
        %607 = vmatpush1.msra.mxu0 0.0
        %608 = vmatprep.subr.mxu0 0.0
        %609 = vmatpush1.msra.mxu0 0.0
        %610 = vmatprep.subr.mxu0 0.0
        %611 = vmatpush1.msra.mxu0 0.0
        %612 = vmatprep.subr.mxu0 0.0
        %613 = vmatpush1.msra.mxu0 0.0
        %614 = vmatprep.subr.mxu0 0.0
        %615 = vmatpush1.msra.mxu0 0.0
        %616 = vmatprep.subr.mxu0 0.0
        %617 = vmatpush1.msra.mxu0 0.0
        %618 = vmatprep.subr.mxu0 0.0
        %619 = vmatpush1.msra.mxu0 0.0
        %620 = vmatprep.subr.mxu0 0.0
        %621 = vmatpush1.msra.mxu0 0.0
        %622 = vmatprep.subr.mxu0 0.0
        %623 = vmatpush1.msra.mxu0 0.0
        %624 = vmatprep.subr.mxu0 0.0
        %625 = vmatpush1.msra.mxu0 0.0
        %626 = vmatprep.subr.mxu0 0.0
        %627 = vmatpush1.msra.mxu0 0.0
        %628 = vmatprep.subr.mxu0 0.0
        %629 = vmatpush1.msra.mxu0 0.0
        %630 = vmatprep.subr.mxu0 0.0
        %631 = vmatpush1.msra.mxu0 0.0
        %632 = vmatprep.subr.mxu0 0.0
        %633 = vmatpush1.msra.mxu0 0.0
        %634 = vmatprep.subr.mxu0 0.0
        %635 = vmatpush1.msra.mxu0 0.0
        %636 = vmatprep.subr.mxu0 0.0
        %637 = vmatpush1.msra.mxu0 0.0
        %638 = vmatprep.subr.mxu0 0.0
        %639 = vmatpush1.msra.mxu0 0.0
        %640 = vmatprep.subr.mxu0 0.0
        %641 = vmatpush1.msra.mxu0 0.0
        %642 = vmatprep.subr.mxu0 0.0
        %643 = vmatpush1.msra.mxu0 0.0
        %644 = vmatprep.subr.mxu0 0.0
        %645 = vmatpush1.msra.mxu0 0.0
        %646 = vmatprep.subr.mxu0 0.0
        %647 = vmatpush1.msra.mxu0 0.0
        %648 = vmatprep.subr.mxu0 0.0
        %649 = vmatpush1.msra.mxu0 0.0
        %650 = vmatprep.subr.mxu0 0.0
        %651 = vmatpush1.msra.mxu0 0.0
        %652 = vmatprep.subr.mxu0 0.0
        %653 = vmatpush1.msra.mxu0 0.0
        %654 = vmatprep.subr.mxu0 0.0
        %655 = vmatpush1.msra.mxu0 0.0
        %656 = vmatprep.subr.mxu0 0.0
        %657 = vmatpush1.msra.mxu0 0.0
        %658 = vmatprep.subr.mxu0 0.0
        %659 = vmatpush1.msra.mxu0 0.0
        %660 = vmatprep.subr.mxu0 0.0
        %661 = vmatpush1.msra.mxu0 0.0
        %662 = vmatprep.subr.mxu0 0.0
        %663 = vmatpush1.msra.mxu0 0.0
        %664 = vmatprep.subr.mxu0 0.0
        %665 = vmatpush1.msra.mxu0 0.0
        %666 = vmatprep.mubr.f32.mxu0 0.0
        %v667 = vand.u32 %v259, 4294901760
        %668 = vmatmul.mubr.f32.gmra.mrb[0].mxu0 %v667
        %v669 = vpop.f32.mrb[0].mxu0
        %v670 = vadd.f32 %v588, %v669
        %v671 = vpop.f32.mrb[0].mxu0
        %672 = vmatprep.mubr.f32.mxu0 0.0
        %v673 = vand.u32 %v262, 4294901760
        %674 = vmatmul.mubr.f32.gmra.mrb[0].mxu0 %v673
        %v675 = vpop.f32.mrb[0].mxu0
        %v676 = vadd.f32 %v596, %v675
        %v677 = vpop.f32.mrb[0].mxu0
        %678 = vdwg.mxu0
        %679 = vmatprep.subr.mxu0 0.0
        %v680 = vand.u32 %v266, 4294901760
        %681 = vmatpush1.msra.mxu0 %v680
        %682 = vmatprep.subr.mxu0 0.0
        %683 = vmatpush1.msra.mxu0 0.0
        %684 = vmatprep.subr.mxu0 0.0
        %685 = vmatpush1.msra.mxu0 0.0
        %686 = vmatprep.subr.mxu0 0.0
        %687 = vmatpush1.msra.mxu0 0.0
        %688 = vmatprep.subr.mxu0 0.0
        %689 = vmatpush1.msra.mxu0 0.0
        %690 = vmatprep.subr.mxu0 0.0
        %691 = vmatpush1.msra.mxu0 0.0
        %692 = vmatprep.subr.mxu0 0.0
        %693 = vmatpush1.msra.mxu0 0.0
        %694 = vmatprep.subr.mxu0 0.0
        %695 = vmatpush1.msra.mxu0 0.0
        %696 = vmatprep.subr.mxu0 0.0
        %697 = vmatpush1.msra.mxu0 0.0
        %698 = vmatprep.subr.mxu0 0.0
        %699 = vmatpush1.msra.mxu0 0.0
        %700 = vmatprep.subr.mxu0 0.0
        %701 = vmatpush1.msra.mxu0 0.0
        %702 = vmatprep.subr.mxu0 0.0
        %703 = vmatpush1.msra.mxu0 0.0
        %704 = vmatprep.subr.mxu0 0.0
        %705 = vmatpush1.msra.mxu0 0.0
        %706 = vmatprep.subr.mxu0 0.0
        %707 = vmatpush1.msra.mxu0 0.0
        %708 = vmatprep.subr.mxu0 0.0
        %709 = vmatpush1.msra.mxu0 0.0
        %710 = vmatprep.subr.mxu0 0.0
        %711 = vmatpush1.msra.mxu0 0.0
        %712 = vmatprep.subr.mxu0 0.0
        %713 = vmatpush1.msra.mxu0 0.0
        %714 = vmatprep.subr.mxu0 0.0
        %715 = vmatpush1.msra.mxu0 0.0
        %716 = vmatprep.subr.mxu0 0.0
        %717 = vmatpush1.msra.mxu0 0.0
        %718 = vmatprep.subr.mxu0 0.0
        %719 = vmatpush1.msra.mxu0 0.0
        %720 = vmatprep.subr.mxu0 0.0
        %721 = vmatpush1.msra.mxu0 0.0
        %722 = vmatprep.subr.mxu0 0.0
        %723 = vmatpush1.msra.mxu0 0.0
        %724 = vmatprep.subr.mxu0 0.0
        %725 = vmatpush1.msra.mxu0 0.0
        %726 = vmatprep.subr.mxu0 0.0
        %727 = vmatpush1.msra.mxu0 0.0
        %728 = vmatprep.subr.mxu0 0.0
        %729 = vmatpush1.msra.mxu0 0.0
        %730 = vmatprep.subr.mxu0 0.0
        %731 = vmatpush1.msra.mxu0 0.0
        %732 = vmatprep.subr.mxu0 0.0
        %733 = vmatpush1.msra.mxu0 0.0
        %734 = vmatprep.subr.mxu0 0.0
        %735 = vmatpush1.msra.mxu0 0.0
        %736 = vmatprep.subr.mxu0 0.0
        %737 = vmatpush1.msra.mxu0 0.0
        %738 = vmatprep.subr.mxu0 0.0
        %739 = vmatpush1.msra.mxu0 0.0
        %740 = vmatprep.subr.mxu0 0.0
        %741 = vmatpush1.msra.mxu0 0.0
        %742 = vmatprep.subr.mxu0 0.0
        %743 = vmatpush1.msra.mxu0 0.0
        %744 = vmatprep.mubr.f32.mxu0 0.0
        %v745 = vand.u32 %v259, 4294901760
        %746 = vmatmul.mubr.f32.gmra.mrb[0].mxu0 %v745
        %v747 = vpop.f32.mrb[0].mxu0
        %v748 = vadd.f32 %v670, %v747
        %v749 = vpop.f32.mrb[0].mxu0
        %750 = vmatprep.mubr.f32.mxu0 0.0
        %v751 = vand.u32 %v262, 4294901760
        %752 = vmatmul.mubr.f32.gmra.mrb[0].mxu0 %v751
        %v753 = vpop.f32.mrb[0].mxu0
        %v754 = vadd.f32 %v676, %v753
        %v755 = vpop.f32.mrb[0].mxu0
        %756 = vdwg.mxu0
        %vm759 = vcmask 1040384
        %v760 = vrot.slane %v748, 7
        %v761 = vrot.slane %v754, 7
        %v762 = vsel %vm759, %v760, %v761
        %v765 = vsel %vm759, 0.0, %v760
        %vm766 = vcmask 1046528
        %v767 = vrot.slane %v748, 1
        %v768 = vrot.slane %v754, 1
        %v769 = vsel %vm766, %v767, %v768
        %v772 = vsel %vm766, %v768, 0.0
        %v773 = vld [vmem:[#allocation2] sm:$0xff]
        %v774 = vld [vmem:[#allocation2 + $0x8] sm:$0xff]
        %v775 = vld [vmem:[#allocation2 + $0x10] sm:$0xff]
        %v776 = vld [vmem:[#allocation2 + $0x18] sm:$0xff]
        %v777 = vld [vmem:[#allocation2 + $0x20] sm:$0xff]
        %v778 = vld [vmem:[#allocation2 + $0x28] sm:$0xff]
        %v779 = vld [vmem:[#allocation2 + $0x30] sm:$0xff]
        %v780 = vld [vmem:[#allocation2 + $0x38] sm:$0xff]
        %v781 = vld [vmem:[#allocation2 + $0x40] sm:$0xff]
        %v782 = vld [vmem:[#allocation2 + $0x48] sm:$0xff]
        %v783 = vld [vmem:[#allocation2 + $0x50] sm:$0xff]
        %v784 = vld [vmem:[#allocation2 + $0x58] sm:$0xff]
        %v785 = vld [vmem:[#allocation2 + $0x60] sm:$0xff]
        %v786 = vld [vmem:[#allocation2 + $0x68] sm:$0xff]
        %v787 = vld [vmem:[#allocation2 + $0x70] sm:$0xff]
        %v788 = vld [vmem:[#allocation2 + $0x78] sm:$0xff]
        %s789 = scalar_lea.vmem [#allocation2], 128
        %v790 = vld [vmem:[%s789] sm:$0xff]
        %v791 = vld [vmem:[%s789 + $0x8] sm:$0xff]
        %v792 = vld [vmem:[%s789 + $0x10] sm:$0xff]
        %v793 = vld [vmem:[%s789 + $0x18] sm:$0xff]
        %v794 = vld [vmem:[%s789 + $0x20] sm:$0xff]
        %v795 = vld [vmem:[%s789 + $0x28] sm:$0xff]
        %v796 = vld [vmem:[%s789 + $0x30] sm:$0xff]
        %v797 = vld [vmem:[%s789 + $0x38] sm:$0xff]
        %v798 = vld [vmem:[%s789 + $0x40] sm:$0xff]
        %v799 = vld [vmem:[%s789 + $0x48] sm:$0xff]
        %v800 = vld [vmem:[%s789 + $0x50] sm:$0xff]
        %v801 = vld [vmem:[%s789 + $0x58] sm:$0xff]
        %v802 = vld [vmem:[%s789 + $0x60] sm:$0xff]
        %v803 = vld [vmem:[%s789 + $0x68] sm:$0xff]
        %v804 = vld [vmem:[%s789 + $0x70] sm:$0xff]
        %v805 = vld [vmem:[%s789 + $0x78] sm:$0xff]
        %806 = vmatprep.subr.mxu0 0.0
        %v807 = vand.u32 %v790, 4294901760
        %808 = vmatpush1.msra.mxu0 %v807
        %809 = vmatprep.subr.mxu0 0.0
        %v810 = vand.u32 %v791, 4294901760
        %811 = vmatpush1.msra.mxu0 %v810
        %812 = vmatprep.subr.mxu0 0.0
        %v813 = vand.u32 %v792, 4294901760
        %814 = vmatpush1.msra.mxu0 %v813
        %815 = vmatprep.subr.mxu0 0.0
        %v816 = vand.u32 %v793, 4294901760
        %817 = vmatpush1.msra.mxu0 %v816
        %818 = vmatprep.subr.mxu0 0.0
        %v819 = vand.u32 %v794, 4294901760
        %820 = vmatpush1.msra.mxu0 %v819
        %821 = vmatprep.subr.mxu0 0.0
        %v822 = vand.u32 %v795, 4294901760
        %823 = vmatpush1.msra.mxu0 %v822
        %824 = vmatprep.subr.mxu0 0.0
        %v825 = vand.u32 %v796, 4294901760
        %826 = vmatpush1.msra.mxu0 %v825
        %827 = vmatprep.subr.mxu0 0.0
        %v828 = vand.u32 %v797, 4294901760
        %829 = vmatpush1.msra.mxu0 %v828
        %830 = vmatprep.subr.mxu0 0.0
        %v831 = vand.u32 %v798, 4294901760
        %832 = vmatpush1.msra.mxu0 %v831
        %833 = vmatprep.subr.mxu0 0.0
        %v834 = vand.u32 %v799, 4294901760
        %835 = vmatpush1.msra.mxu0 %v834
        %836 = vmatprep.subr.mxu0 0.0
        %v837 = vand.u32 %v800, 4294901760
        %838 = vmatpush1.msra.mxu0 %v837
        %839 = vmatprep.subr.mxu0 0.0
        %v840 = vand.u32 %v801, 4294901760
        %841 = vmatpush1.msra.mxu0 %v840
        %842 = vmatprep.subr.mxu0 0.0
        %v843 = vand.u32 %v802, 4294901760
        %844 = vmatpush1.msra.mxu0 %v843
        %845 = vmatprep.subr.mxu0 0.0
        %v846 = vand.u32 %v803, 4294901760
        %847 = vmatpush1.msra.mxu0 %v846
        %848 = vmatprep.subr.mxu0 0.0
        %v849 = vand.u32 %v804, 4294901760
        %850 = vmatpush1.msra.mxu0 %v849
        %851 = vmatprep.subr.mxu0 0.0
        %v852 = vand.u32 %v805, 4294901760
        %853 = vmatpush1.msra.mxu0 %v852
        %854 = vmatprep.subr.mxu0 0.0
        %855 = vmatpush1.msra.mxu0 0.0
        %856 = vmatprep.subr.mxu0 0.0
        %857 = vmatpush1.msra.mxu0 0.0
        %858 = vmatprep.subr.mxu0 0.0
        %859 = vmatpush1.msra.mxu0 0.0
        %860 = vmatprep.subr.mxu0 0.0
        %861 = vmatpush1.msra.mxu0 0.0
        %862 = vmatprep.subr.mxu0 0.0
        %863 = vmatpush1.msra.mxu0 0.0
        %864 = vmatprep.subr.mxu0 0.0
        %865 = vmatpush1.msra.mxu0 0.0
        %866 = vmatprep.subr.mxu0 0.0
        %867 = vmatpush1.msra.mxu0 0.0
        %868 = vmatprep.subr.mxu0 0.0
        %869 = vmatpush1.msra.mxu0 0.0
        %870 = vmatprep.subr.mxu0 0.0
        %871 = vmatpush1.msra.mxu0 0.0
        %872 = vmatprep.subr.mxu0 0.0
        %873 = vmatpush1.msra.mxu0 0.0
        %874 = vmatprep.subr.mxu0 0.0
        %875 = vmatpush1.msra.mxu0 0.0
        %876 = vmatprep.subr.mxu0 0.0
        %877 = vmatpush1.msra.mxu0 0.0
        %878 = vmatprep.subr.mxu0 0.0
        %879 = vmatpush1.msra.mxu0 0.0
        %880 = vmatprep.subr.mxu0 0.0
        %881 = vmatpush1.msra.mxu0 0.0
        %882 = vmatprep.subr.mxu0 0.0
        %883 = vmatpush1.msra.mxu0 0.0
        %884 = vmatprep.subr.mxu0 0.0
        %885 = vmatpush1.msra.mxu0 0.0
        %886 = vmatprep.mubr.f32.mxu0 0.0
        %v887 = vand.u32 %v748, 4294901760
        %v888 = vsub.f32 %v748, %v887
        %v889 = vand.u32 %v888, 4294901760
        %v890 = vsub.f32 %v888, %v889
        %v891 = vand.u32 %v890, 4294901760
        %892 = vmatmul.mubr.f32.gmra.mrb[0].mxu0 %v891
        %v893 = vpop.f32.mrb[0].mxu0
        %v894 = vadd.f32 0.0, %v893
        %v895 = vpop.f32.mrb[0].mxu0
        %896 = vmatprep.mubr.f32.mxu0 0.0
        %v897 = vand.u32 %v754, 4294901760
        %v898 = vsub.f32 %v754, %v897
        %v899 = vand.u32 %v898, 4294901760
        %v900 = vsub.f32 %v898, %v899
        %v901 = vand.u32 %v900, 4294901760
        %902 = vmatmul.mubr.f32.gmra.mrb[0].mxu0 %v901
        %v903 = vpop.f32.mrb[0].mxu0
        %v904 = vadd.f32 0.0, %v903
        %v905 = vpop.f32.mrb[0].mxu0
        %906 = vdwg.mxu0
        %907 = vmatprep.subr.mxu0 0.0
        %v908 = vand.u32 %v790, 4294901760
        %v909 = vsub.f32 %v790, %v908
        %v910 = vand.u32 %v909, 4294901760
        %v911 = vsub.f32 %v909, %v910
        %v912 = vand.u32 %v911, 4294901760
        %913 = vmatpush1.msra.mxu0 %v912
        %914 = vmatprep.subr.mxu0 0.0
        %v915 = vand.u32 %v791, 4294901760
        %v916 = vsub.f32 %v791, %v915
        %v917 = vand.u32 %v916, 4294901760
        %v918 = vsub.f32 %v916, %v917
        %v919 = vand.u32 %v918, 4294901760
        %920 = vmatpush1.msra.mxu0 %v919
        %921 = vmatprep.subr.mxu0 0.0
        %v922 = vand.u32 %v792, 4294901760
        %v923 = vsub.f32 %v792, %v922
        %v924 = vand.u32 %v923, 4294901760
        %v925 = vsub.f32 %v923, %v924
        %v926 = vand.u32 %v925, 4294901760
        %927 = vmatpush1.msra.mxu0 %v926
        %928 = vmatprep.subr.mxu0 0.0
        %v929 = vand.u32 %v793, 4294901760
        %v930 = vsub.f32 %v793, %v929
        %v931 = vand.u32 %v930, 4294901760
        %v932 = vsub.f32 %v930, %v931
        %v933 = vand.u32 %v932, 4294901760
        %934 = vmatpush1.msra.mxu0 %v933
        %935 = vmatprep.subr.mxu0 0.0
        %v936 = vand.u32 %v794, 4294901760
        %v937 = vsub.f32 %v794, %v936
        %v938 = vand.u32 %v937, 4294901760
        %v939 = vsub.f32 %v937, %v938
        %v940 = vand.u32 %v939, 4294901760
        %941 = vmatpush1.msra.mxu0 %v940
        %942 = vmatprep.subr.mxu0 0.0
        %v943 = vand.u32 %v795, 4294901760
        %v944 = vsub.f32 %v795, %v943
        %v945 = vand.u32 %v944, 4294901760
        %v946 = vsub.f32 %v944, %v945
        %v947 = vand.u32 %v946, 4294901760
        %948 = vmatpush1.msra.mxu0 %v947
        %949 = vmatprep.subr.mxu0 0.0
        %v950 = vand.u32 %v796, 4294901760
        %v951 = vsub.f32 %v796, %v950
        %v952 = vand.u32 %v951, 4294901760
        %v953 = vsub.f32 %v951, %v952
        %v954 = vand.u32 %v953, 4294901760
        %955 = vmatpush1.msra.mxu0 %v954
        %956 = vmatprep.subr.mxu0 0.0
        %v957 = vand.u32 %v797, 4294901760
        %v958 = vsub.f32 %v797, %v957
        %v959 = vand.u32 %v958, 4294901760
        %v960 = vsub.f32 %v958, %v959
        %v961 = vand.u32 %v960, 4294901760
        %962 = vmatpush1.msra.mxu0 %v961
        %963 = vmatprep.subr.mxu0 0.0
        %v964 = vand.u32 %v798, 4294901760
        %v965 = vsub.f32 %v798, %v964
        %v966 = vand.u32 %v965, 4294901760
        %v967 = vsub.f32 %v965, %v966
        %v968 = vand.u32 %v967, 4294901760
        %969 = vmatpush1.msra.mxu0 %v968
        %970 = vmatprep.subr.mxu0 0.0
        %v971 = vand.u32 %v799, 4294901760
        %v972 = vsub.f32 %v799, %v971
        %v973 = vand.u32 %v972, 4294901760
        %v974 = vsub.f32 %v972, %v973
        %v975 = vand.u32 %v974, 4294901760
        %976 = vmatpush1.msra.mxu0 %v975
        %977 = vmatprep.subr.mxu0 0.0
        %v978 = vand.u32 %v800, 4294901760
        %v979 = vsub.f32 %v800, %v978
        %v980 = vand.u32 %v979, 4294901760
        %v981 = vsub.f32 %v979, %v980
        %v982 = vand.u32 %v981, 4294901760
        %983 = vmatpush1.msra.mxu0 %v982
        %984 = vmatprep.subr.mxu0 0.0
        %v985 = vand.u32 %v801, 4294901760
        %v986 = vsub.f32 %v801, %v985
        %v987 = vand.u32 %v986, 4294901760
        %v988 = vsub.f32 %v986, %v987
        %v989 = vand.u32 %v988, 4294901760
        %990 = vmatpush1.msra.mxu0 %v989
        %991 = vmatprep.subr.mxu0 0.0
        %v992 = vand.u32 %v802, 4294901760
        %v993 = vsub.f32 %v802, %v992
        %v994 = vand.u32 %v993, 4294901760
        %v995 = vsub.f32 %v993, %v994
        %v996 = vand.u32 %v995, 4294901760
        %997 = vmatpush1.msra.mxu0 %v996
        %998 = vmatprep.subr.mxu0 0.0
        %v999 = vand.u32 %v803, 4294901760
        %v1000 = vsub.f32 %v803, %v999
        %v1001 = vand.u32 %v1000, 4294901760
        %v1002 = vsub.f32 %v1000, %v1001
        %v1003 = vand.u32 %v1002, 4294901760
        %1004 = vmatpush1.msra.mxu0 %v1003
        %1005 = vmatprep.subr.mxu0 0.0
        %v1006 = vand.u32 %v804, 4294901760
        %v1007 = vsub.f32 %v804, %v1006
        %v1008 = vand.u32 %v1007, 4294901760
        %v1009 = vsub.f32 %v1007, %v1008
        %v1010 = vand.u32 %v1009, 4294901760
        %1011 = vmatpush1.msra.mxu0 %v1010
        %1012 = vmatprep.subr.mxu0 0.0
        %v1013 = vand.u32 %v805, 4294901760
        %v1014 = vsub.f32 %v805, %v1013
        %v1015 = vand.u32 %v1014, 4294901760
        %v1016 = vsub.f32 %v1014, %v1015
        %v1017 = vand.u32 %v1016, 4294901760
        %1018 = vmatpush1.msra.mxu0 %v1017
        %1019 = vmatprep.subr.mxu0 0.0
        %1020 = vmatpush1.msra.mxu0 0.0
        %1021 = vmatprep.subr.mxu0 0.0
        %1022 = vmatpush1.msra.mxu0 0.0
        %1023 = vmatprep.subr.mxu0 0.0
        %1024 = vmatpush1.msra.mxu0 0.0
        %1025 = vmatprep.subr.mxu0 0.0
        %1026 = vmatpush1.msra.mxu0 0.0
        %1027 = vmatprep.subr.mxu0 0.0
        %1028 = vmatpush1.msra.mxu0 0.0
        %1029 = vmatprep.subr.mxu0 0.0
        %1030 = vmatpush1.msra.mxu0 0.0
        %1031 = vmatprep.subr.mxu0 0.0
        %1032 = vmatpush1.msra.mxu0 0.0
        %1033 = vmatprep.subr.mxu0 0.0
        %1034 = vmatpush1.msra.mxu0 0.0
        %1035 = vmatprep.subr.mxu0 0.0
        %1036 = vmatpush1.msra.mxu0 0.0
        %1037 = vmatprep.subr.mxu0 0.0
        %1038 = vmatpush1.msra.mxu0 0.0
        %1039 = vmatprep.subr.mxu0 0.0
        %1040 = vmatpush1.msra.mxu0 0.0
        %1041 = vmatprep.subr.mxu0 0.0
        %1042 = vmatpush1.msra.mxu0 0.0
        %1043 = vmatprep.subr.mxu0 0.0
        %1044 = vmatpush1.msra.mxu0 0.0
        %1045 = vmatprep.subr.mxu0 0.0
        %1046 = vmatpush1.msra.mxu0 0.0
        %1047 = vmatprep.subr.mxu0 0.0
        %1048 = vmatpush1.msra.mxu0 0.0
        %1049 = vmatprep.subr.mxu0 0.0
        %1050 = vmatpush1.msra.mxu0 0.0
        %1051 = vmatprep.mubr.f32.mxu0 0.0
        %v1052 = vand.u32 %v748, 4294901760
        %1053 = vmatmul.mubr.f32.gmra.mrb[0].mxu0 %v1052
        %v1054 = vpop.f32.mrb[0].mxu0
        %v1055 = vadd.f32 %v894, %v1054
        %v1056 = vpop.f32.mrb[0].mxu0
        %1057 = vmatprep.mubr.f32.mxu0 0.0
        %v1058 = vand.u32 %v754, 4294901760
        %1059 = vmatmul.mubr.f32.gmra.mrb[0].mxu0 %v1058
        %v1060 = vpop.f32.mrb[0].mxu0
        %v1061 = vadd.f32 %v904, %v1060
        %v1062 = vpop.f32.mrb[0].mxu0
        %1063 = vdwg.mxu0
        %1064 = vmatprep.subr.mxu0 0.0
        %v1065 = vand.u32 %v790, 4294901760
        %v1066 = vsub.f32 %v790, %v1065
        %1067 = vmatpush1.msra.mxu0 %v1066
        %1068 = vmatprep.subr.mxu0 0.0
        %v1069 = vand.u32 %v791, 4294901760
        %v1070 = vsub.f32 %v791, %v1069
        %1071 = vmatpush1.msra.mxu0 %v1070
        %1072 = vmatprep.subr.mxu0 0.0
        %v1073 = vand.u32 %v792, 4294901760
        %v1074 = vsub.f32 %v792, %v1073
        %1075 = vmatpush1.msra.mxu0 %v1074
        %1076 = vmatprep.subr.mxu0 0.0
        %v1077 = vand.u32 %v793, 4294901760
        %v1078 = vsub.f32 %v793, %v1077
        %1079 = vmatpush1.msra.mxu0 %v1078
        %1080 = vmatprep.subr.mxu0 0.0
        %v1081 = vand.u32 %v794, 4294901760
        %v1082 = vsub.f32 %v794, %v1081
        %1083 = vmatpush1.msra.mxu0 %v1082
        %1084 = vmatprep.subr.mxu0 0.0
        %v1085 = vand.u32 %v795, 4294901760
        %v1086 = vsub.f32 %v795, %v1085
        %1087 = vmatpush1.msra.mxu0 %v1086
        %1088 = vmatprep.subr.mxu0 0.0
        %v1089 = vand.u32 %v796, 4294901760
        %v1090 = vsub.f32 %v796, %v1089
        %1091 = vmatpush1.msra.mxu0 %v1090
        %1092 = vmatprep.subr.mxu0 0.0
        %v1093 = vand.u32 %v797, 4294901760
        %v1094 = vsub.f32 %v797, %v1093
        %1095 = vmatpush1.msra.mxu0 %v1094
        %1096 = vmatprep.subr.mxu0 0.0
        %v1097 = vand.u32 %v798, 4294901760
        %v1098 = vsub.f32 %v798, %v1097
        %1099 = vmatpush1.msra.mxu0 %v1098
        %1100 = vmatprep.subr.mxu0 0.0
        %v1101 = vand.u32 %v799, 4294901760
        %v1102 = vsub.f32 %v799, %v1101
        %1103 = vmatpush1.msra.mxu0 %v1102
        %1104 = vmatprep.subr.mxu0 0.0
        %v1105 = vand.u32 %v800, 4294901760
        %v1106 = vsub.f32 %v800, %v1105
        %1107 = vmatpush1.msra.mxu0 %v1106
        %1108 = vmatprep.subr.mxu0 0.0
        %v1109 = vand.u32 %v801, 4294901760
        %v1110 = vsub.f32 %v801, %v1109
        %1111 = vmatpush1.msra.mxu0 %v1110
        %1112 = vmatprep.subr.mxu0 0.0
        %v1113 = vand.u32 %v802, 4294901760
        %v1114 = vsub.f32 %v802, %v1113
        %1115 = vmatpush1.msra.mxu0 %v1114
        %1116 = vmatprep.subr.mxu0 0.0
        %v1117 = vand.u32 %v803, 4294901760
        %v1118 = vsub.f32 %v803, %v1117
        %1119 = vmatpush1.msra.mxu0 %v1118
        %1120 = vmatprep.subr.mxu0 0.0
        %v1121 = vand.u32 %v804, 4294901760
        %v1122 = vsub.f32 %v804, %v1121
        %1123 = vmatpush1.msra.mxu0 %v1122
        %1124 = vmatprep.subr.mxu0 0.0
        %v1125 = vand.u32 %v805, 4294901760
        %v1126 = vsub.f32 %v805, %v1125
        %1127 = vmatpush1.msra.mxu0 %v1126
        %1128 = vmatprep.subr.mxu0 0.0
        %1129 = vmatpush1.msra.mxu0 0.0
        %1130 = vmatprep.subr.mxu0 0.0
        %1131 = vmatpush1.msra.mxu0 0.0
        %1132 = vmatprep.subr.mxu0 0.0
        %1133 = vmatpush1.msra.mxu0 0.0
        %1134 = vmatprep.subr.mxu0 0.0
        %1135 = vmatpush1.msra.mxu0 0.0
        %1136 = vmatprep.subr.mxu0 0.0
        %1137 = vmatpush1.msra.mxu0 0.0
        %1138 = vmatprep.subr.mxu0 0.0
        %1139 = vmatpush1.msra.mxu0 0.0
        %1140 = vmatprep.subr.mxu0 0.0
        %1141 = vmatpush1.msra.mxu0 0.0
        %1142 = vmatprep.subr.mxu0 0.0
        %1143 = vmatpush1.msra.mxu0 0.0
        %1144 = vmatprep.subr.mxu0 0.0
        %1145 = vmatpush1.msra.mxu0 0.0
        %1146 = vmatprep.subr.mxu0 0.0
        %1147 = vmatpush1.msra.mxu0 0.0
        %1148 = vmatprep.subr.mxu0 0.0
        %1149 = vmatpush1.msra.mxu0 0.0
        %1150 = vmatprep.subr.mxu0 0.0
        %1151 = vmatpush1.msra.mxu0 0.0
        %1152 = vmatprep.subr.mxu0 0.0
        %1153 = vmatpush1.msra.mxu0 0.0
        %1154 = vmatprep.subr.mxu0 0.0
        %1155 = vmatpush1.msra.mxu0 0.0
        %1156 = vmatprep.subr.mxu0 0.0
        %1157 = vmatpush1.msra.mxu0 0.0
        %1158 = vmatprep.subr.mxu0 0.0
        %1159 = vmatpush1.msra.mxu0 0.0
        %1160 = vmatprep.mubr.f32.mxu0 0.0
        %v1161 = vand.u32 %v748, 4294901760
        %v1162 = vsub.f32 %v748, %v1161
        %1163 = vmatmul.mubr.f32.gmra.mrb[0].mxu0 %v1162
        %v1164 = vpop.f32.mrb[0].mxu0
        %v1165 = vadd.f32 %v1055, %v1164
        %v1166 = vpop.f32.mrb[0].mxu0
        %1167 = vmatprep.mubr.f32.mxu0 0.0
        %v1168 = vand.u32 %v754, 4294901760
        %v1169 = vsub.f32 %v754, %v1168
        %1170 = vmatmul.mubr.f32.gmra.mrb[0].mxu0 %v1169
        %v1171 = vpop.f32.mrb[0].mxu0
        %v1172 = vadd.f32 %v1061, %v1171
        %v1173 = vpop.f32.mrb[0].mxu0
        %1174 = vdwg.mxu0
        %1175 = vmatprep.subr.mxu0 0.0
        %v1176 = vand.u32 %v790, 4294901760
        %1177 = vmatpush1.msra.mxu0 %v1176
        %1178 = vmatprep.subr.mxu0 0.0
        %v1179 = vand.u32 %v791, 4294901760
        %1180 = vmatpush1.msra.mxu0 %v1179
        %1181 = vmatprep.subr.mxu0 0.0
        %v1182 = vand.u32 %v792, 4294901760
        %1183 = vmatpush1.msra.mxu0 %v1182
        %1184 = vmatprep.subr.mxu0 0.0
        %v1185 = vand.u32 %v793, 4294901760
        %1186 = vmatpush1.msra.mxu0 %v1185
        %1187 = vmatprep.subr.mxu0 0.0
        %v1188 = vand.u32 %v794, 4294901760
        %1189 = vmatpush1.msra.mxu0 %v1188
        %1190 = vmatprep.subr.mxu0 0.0
        %v1191 = vand.u32 %v795, 4294901760
        %1192 = vmatpush1.msra.mxu0 %v1191
        %1193 = vmatprep.subr.mxu0 0.0
        %v1194 = vand.u32 %v796, 4294901760
        %1195 = vmatpush1.msra.mxu0 %v1194
        %1196 = vmatprep.subr.mxu0 0.0
        %v1197 = vand.u32 %v797, 4294901760
        %1198 = vmatpush1.msra.mxu0 %v1197
        %1199 = vmatprep.subr.mxu0 0.0
        %v1200 = vand.u32 %v798, 4294901760
        %1201 = vmatpush1.msra.mxu0 %v1200
        %1202 = vmatprep.subr.mxu0 0.0
        %v1203 = vand.u32 %v799, 4294901760
        %1204 = vmatpush1.msra.mxu0 %v1203
        %1205 = vmatprep.subr.mxu0 0.0
        %v1206 = vand.u32 %v800, 4294901760
        %1207 = vmatpush1.msra.mxu0 %v1206
        %1208 = vmatprep.subr.mxu0 0.0
        %v1209 = vand.u32 %v801, 4294901760
        %1210 = vmatpush1.msra.mxu0 %v1209
        %1211 = vmatprep.subr.mxu0 0.0
        %v1212 = vand.u32 %v802, 4294901760
        %1213 = vmatpush1.msra.mxu0 %v1212
        %1214 = vmatprep.subr.mxu0 0.0
        %v1215 = vand.u32 %v803, 4294901760
        %1216 = vmatpush1.msra.mxu0 %v1215
        %1217 = vmatprep.subr.mxu0 0.0
        %v1218 = vand.u32 %v804, 4294901760
        %1219 = vmatpush1.msra.mxu0 %v1218
        %1220 = vmatprep.subr.mxu0 0.0
        %v1221 = vand.u32 %v805, 4294901760
        %1222 = vmatpush1.msra.mxu0 %v1221
        %1223 = vmatprep.subr.mxu0 0.0
        %1224 = vmatpush1.msra.mxu0 0.0
        %1225 = vmatprep.subr.mxu0 0.0
        %1226 = vmatpush1.msra.mxu0 0.0
        %1227 = vmatprep.subr.mxu0 0.0
        %1228 = vmatpush1.msra.mxu0 0.0
        %1229 = vmatprep.subr.mxu0 0.0
        %1230 = vmatpush1.msra.mxu0 0.0
        %1231 = vmatprep.subr.mxu0 0.0
        %1232 = vmatpush1.msra.mxu0 0.0
        %1233 = vmatprep.subr.mxu0 0.0
        %1234 = vmatpush1.msra.mxu0 0.0
        %1235 = vmatprep.subr.mxu0 0.0
        %1236 = vmatpush1.msra.mxu0 0.0
        %1237 = vmatprep.subr.mxu0 0.0
        %1238 = vmatpush1.msra.mxu0 0.0
        %1239 = vmatprep.subr.mxu0 0.0
        %1240 = vmatpush1.msra.mxu0 0.0
        %1241 = vmatprep.subr.mxu0 0.0
        %1242 = vmatpush1.msra.mxu0 0.0
        %1243 = vmatprep.subr.mxu0 0.0
        %1244 = vmatpush1.msra.mxu0 0.0
        %1245 = vmatprep.subr.mxu0 0.0
        %1246 = vmatpush1.msra.mxu0 0.0
        %1247 = vmatprep.subr.mxu0 0.0
        %1248 = vmatpush1.msra.mxu0 0.0
        %1249 = vmatprep.subr.mxu0 0.0
        %1250 = vmatpush1.msra.mxu0 0.0
        %1251 = vmatprep.subr.mxu0 0.0
        %1252 = vmatpush1.msra.mxu0 0.0
        %1253 = vmatprep.subr.mxu0 0.0
        %1254 = vmatpush1.msra.mxu0 0.0
        %1255 = vmatprep.mubr.f32.mxu0 0.0
        %v1256 = vand.u32 %v748, 4294901760
        %v1257 = vsub.f32 %v748, %v1256
        %v1258 = vand.u32 %v1257, 4294901760
        %1259 = vmatmul.mubr.f32.gmra.mrb[0].mxu0 %v1258
        %v1260 = vpop.f32.mrb[0].mxu0
        %v1261 = vadd.f32 %v1165, %v1260
        %v1262 = vpop.f32.mrb[0].mxu0
        %1263 = vmatprep.mubr.f32.mxu0 0.0
        %v1264 = vand.u32 %v754, 4294901760
        %v1265 = vsub.f32 %v754, %v1264
        %v1266 = vand.u32 %v1265, 4294901760
        %1267 = vmatmul.mubr.f32.gmra.mrb[0].mxu0 %v1266
        %v1268 = vpop.f32.mrb[0].mxu0
        %v1269 = vadd.f32 %v1172, %v1268
        %v1270 = vpop.f32.mrb[0].mxu0
        %1271 = vdwg.mxu0
        %1272 = vmatprep.subr.mxu0 0.0
        %v1273 = vand.u32 %v790, 4294901760
        %v1274 = vsub.f32 %v790, %v1273
        %v1275 = vand.u32 %v1274, 4294901760
        %1276 = vmatpush1.msra.mxu0 %v1275
        %1277 = vmatprep.subr.mxu0 0.0
        %v1278 = vand.u32 %v791, 4294901760
        %v1279 = vsub.f32 %v791, %v1278
        %v1280 = vand.u32 %v1279, 4294901760
        %1281 = vmatpush1.msra.mxu0 %v1280
        %1282 = vmatprep.subr.mxu0 0.0
        %v1283 = vand.u32 %v792, 4294901760
        %v1284 = vsub.f32 %v792, %v1283
        %v1285 = vand.u32 %v1284, 4294901760
        %1286 = vmatpush1.msra.mxu0 %v1285
        %1287 = vmatprep.subr.mxu0 0.0
        %v1288 = vand.u32 %v793, 4294901760
        %v1289 = vsub.f32 %v793, %v1288
        %v1290 = vand.u32 %v1289, 4294901760
        %1291 = vmatpush1.msra.mxu0 %v1290
        %1292 = vmatprep.subr.mxu0 0.0
        %v1293 = vand.u32 %v794, 4294901760
        %v1294 = vsub.f32 %v794, %v1293
        %v1295 = vand.u32 %v1294, 4294901760
        %1296 = vmatpush1.msra.mxu0 %v1295
        %1297 = vmatprep.subr.mxu0 0.0
        %v1298 = vand.u32 %v795, 4294901760
        %v1299 = vsub.f32 %v795, %v1298
        %v1300 = vand.u32 %v1299, 4294901760
        %1301 = vmatpush1.msra.mxu0 %v1300
        %1302 = vmatprep.subr.mxu0 0.0
        %v1303 = vand.u32 %v796, 4294901760
        %v1304 = vsub.f32 %v796, %v1303
        %v1305 = vand.u32 %v1304, 4294901760
        %1306 = vmatpush1.msra.mxu0 %v1305
        %1307 = vmatprep.subr.mxu0 0.0
        %v1308 = vand.u32 %v797, 4294901760
        %v1309 = vsub.f32 %v797, %v1308
        %v1310 = vand.u32 %v1309, 4294901760
        %1311 = vmatpush1.msra.mxu0 %v1310
        %1312 = vmatprep.subr.mxu0 0.0
        %v1313 = vand.u32 %v798, 4294901760
        %v1314 = vsub.f32 %v798, %v1313
        %v1315 = vand.u32 %v1314, 4294901760
        %1316 = vmatpush1.msra.mxu0 %v1315
        %1317 = vmatprep.subr.mxu0 0.0
        %v1318 = vand.u32 %v799, 4294901760
        %v1319 = vsub.f32 %v799, %v1318
        %v1320 = vand.u32 %v1319, 4294901760
        %1321 = vmatpush1.msra.mxu0 %v1320
        %1322 = vmatprep.subr.mxu0 0.0
        %v1323 = vand.u32 %v800, 4294901760
        %v1324 = vsub.f32 %v800, %v1323
        %v1325 = vand.u32 %v1324, 4294901760
        %1326 = vmatpush1.msra.mxu0 %v1325
        %1327 = vmatprep.subr.mxu0 0.0
        %v1328 = vand.u32 %v801, 4294901760
        %v1329 = vsub.f32 %v801, %v1328
        %v1330 = vand.u32 %v1329, 4294901760
        %1331 = vmatpush1.msra.mxu0 %v1330
        %1332 = vmatprep.subr.mxu0 0.0
        %v1333 = vand.u32 %v802, 4294901760
        %v1334 = vsub.f32 %v802, %v1333
        %v1335 = vand.u32 %v1334, 4294901760
        %1336 = vmatpush1.msra.mxu0 %v1335
        %1337 = vmatprep.subr.mxu0 0.0
        %v1338 = vand.u32 %v803, 4294901760
        %v1339 = vsub.f32 %v803, %v1338
        %v1340 = vand.u32 %v1339, 4294901760
        %1341 = vmatpush1.msra.mxu0 %v1340
        %1342 = vmatprep.subr.mxu0 0.0
        %v1343 = vand.u32 %v804, 4294901760
        %v1344 = vsub.f32 %v804, %v1343
        %v1345 = vand.u32 %v1344, 4294901760
        %1346 = vmatpush1.msra.mxu0 %v1345
        %1347 = vmatprep.subr.mxu0 0.0
        %v1348 = vand.u32 %v805, 4294901760
        %v1349 = vsub.f32 %v805, %v1348
        %v1350 = vand.u32 %v1349, 4294901760
        %1351 = vmatpush1.msra.mxu0 %v1350
        %1352 = vmatprep.subr.mxu0 0.0
        %1353 = vmatpush1.msra.mxu0 0.0
        %1354 = vmatprep.subr.mxu0 0.0
        %1355 = vmatpush1.msra.mxu0 0.0
        %1356 = vmatprep.subr.mxu0 0.0
        %1357 = vmatpush1.msra.mxu0 0.0
        %1358 = vmatprep.subr.mxu0 0.0
        %1359 = vmatpush1.msra.mxu0 0.0
        %1360 = vmatprep.subr.mxu0 0.0
        %1361 = vmatpush1.msra.mxu0 0.0
        %1362 = vmatprep.subr.mxu0 0.0
        %1363 = vmatpush1.msra.mxu0 0.0
        %1364 = vmatprep.subr.mxu0 0.0
        %1365 = vmatpush1.msra.mxu0 0.0
        %1366 = vmatprep.subr.mxu0 0.0
        %1367 = vmatpush1.msra.mxu0 0.0
        %1368 = vmatprep.subr.mxu0 0.0
        %1369 = vmatpush1.msra.mxu0 0.0
        %1370 = vmatprep.subr.mxu0 0.0
        %1371 = vmatpush1.msra.mxu0 0.0
        %1372 = vmatprep.subr.mxu0 0.0
        %1373 = vmatpush1.msra.mxu0 0.0
        %1374 = vmatprep.subr.mxu0 0.0
        %1375 = vmatpush1.msra.mxu0 0.0
        %1376 = vmatprep.subr.mxu0 0.0
        %1377 = vmatpush1.msra.mxu0 0.0
        %1378 = vmatprep.subr.mxu0 0.0
        %1379 = vmatpush1.msra.mxu0 0.0
        %1380 = vmatprep.subr.mxu0 0.0
        %1381 = vmatpush1.msra.mxu0 0.0
        %1382 = vmatprep.subr.mxu0 0.0
        %1383 = vmatpush1.msra.mxu0 0.0
        %1384 = vmatprep.mubr.f32.mxu0 0.0
        %v1385 = vand.u32 %v748, 4294901760
        %1386 = vmatmul.mubr.f32.gmra.mrb[0].mxu0 %v1385
        %v1387 = vpop.f32.mrb[0].mxu0
        %v1388 = vadd.f32 %v1261, %v1387
        %v1389 = vpop.f32.mrb[0].mxu0
        %1390 = vmatprep.mubr.f32.mxu0 0.0
        %v1391 = vand.u32 %v754, 4294901760
        %1392 = vmatmul.mubr.f32.gmra.mrb[0].mxu0 %v1391
        %v1393 = vpop.f32.mrb[0].mxu0
        %v1394 = vadd.f32 %v1269, %v1393
        %v1395 = vpop.f32.mrb[0].mxu0
        %1396 = vdwg.mxu0
        %1397 = vmatprep.subr.mxu0 0.0
        %v1398 = vand.u32 %v790, 4294901760
        %1399 = vmatpush1.msra.mxu0 %v1398
        %1400 = vmatprep.subr.mxu0 0.0
        %v1401 = vand.u32 %v791, 4294901760
        %1402 = vmatpush1.msra.mxu0 %v1401
        %1403 = vmatprep.subr.mxu0 0.0
        %v1404 = vand.u32 %v792, 4294901760
        %1405 = vmatpush1.msra.mxu0 %v1404
        %1406 = vmatprep.subr.mxu0 0.0
        %v1407 = vand.u32 %v793, 4294901760
        %1408 = vmatpush1.msra.mxu0 %v1407
        %1409 = vmatprep.subr.mxu0 0.0
        %v1410 = vand.u32 %v794, 4294901760
        %1411 = vmatpush1.msra.mxu0 %v1410
        %1412 = vmatprep.subr.mxu0 0.0
        %v1413 = vand.u32 %v795, 4294901760
        %1414 = vmatpush1.msra.mxu0 %v1413
        %1415 = vmatprep.subr.mxu0 0.0
        %v1416 = vand.u32 %v796, 4294901760
        %1417 = vmatpush1.msra.mxu0 %v1416
        %1418 = vmatprep.subr.mxu0 0.0
        %v1419 = vand.u32 %v797, 4294901760
        %1420 = vmatpush1.msra.mxu0 %v1419
        %1421 = vmatprep.subr.mxu0 0.0
        %v1422 = vand.u32 %v798, 4294901760
        %1423 = vmatpush1.msra.mxu0 %v1422
        %1424 = vmatprep.subr.mxu0 0.0
        %v1425 = vand.u32 %v799, 4294901760
        %1426 = vmatpush1.msra.mxu0 %v1425
        %1427 = vmatprep.subr.mxu0 0.0
        %v1428 = vand.u32 %v800, 4294901760
        %1429 = vmatpush1.msra.mxu0 %v1428
        %1430 = vmatprep.subr.mxu0 0.0
        %v1431 = vand.u32 %v801, 4294901760
        %1432 = vmatpush1.msra.mxu0 %v1431
        %1433 = vmatprep.subr.mxu0 0.0
        %v1434 = vand.u32 %v802, 4294901760
        %1435 = vmatpush1.msra.mxu0 %v1434
        %1436 = vmatprep.subr.mxu0 0.0
        %v1437 = vand.u32 %v803, 4294901760
        %1438 = vmatpush1.msra.mxu0 %v1437
        %1439 = vmatprep.subr.mxu0 0.0
        %v1440 = vand.u32 %v804, 4294901760
        %1441 = vmatpush1.msra.mxu0 %v1440
        %1442 = vmatprep.subr.mxu0 0.0
        %v1443 = vand.u32 %v805, 4294901760
        %1444 = vmatpush1.msra.mxu0 %v1443
        %1445 = vmatprep.subr.mxu0 0.0
        %1446 = vmatpush1.msra.mxu0 0.0
        %1447 = vmatprep.subr.mxu0 0.0
        %1448 = vmatpush1.msra.mxu0 0.0
        %1449 = vmatprep.subr.mxu0 0.0
        %1450 = vmatpush1.msra.mxu0 0.0
        %1451 = vmatprep.subr.mxu0 0.0
        %1452 = vmatpush1.msra.mxu0 0.0
        %1453 = vmatprep.subr.mxu0 0.0
        %1454 = vmatpush1.msra.mxu0 0.0
        %1455 = vmatprep.subr.mxu0 0.0
        %1456 = vmatpush1.msra.mxu0 0.0
        %1457 = vmatprep.subr.mxu0 0.0
        %1458 = vmatpush1.msra.mxu0 0.0
        %1459 = vmatprep.subr.mxu0 0.0
        %1460 = vmatpush1.msra.mxu0 0.0
        %1461 = vmatprep.subr.mxu0 0.0
        %1462 = vmatpush1.msra.mxu0 0.0
        %1463 = vmatprep.subr.mxu0 0.0
        %1464 = vmatpush1.msra.mxu0 0.0
        %1465 = vmatprep.subr.mxu0 0.0
        %1466 = vmatpush1.msra.mxu0 0.0
        %1467 = vmatprep.subr.mxu0 0.0
        %1468 = vmatpush1.msra.mxu0 0.0
        %1469 = vmatprep.subr.mxu0 0.0
        %1470 = vmatpush1.msra.mxu0 0.0
        %1471 = vmatprep.subr.mxu0 0.0
        %1472 = vmatpush1.msra.mxu0 0.0
        %1473 = vmatprep.subr.mxu0 0.0
        %1474 = vmatpush1.msra.mxu0 0.0
        %1475 = vmatprep.subr.mxu0 0.0
        %1476 = vmatpush1.msra.mxu0 0.0
        %1477 = vmatprep.mubr.f32.mxu0 0.0
        %v1478 = vand.u32 %v748, 4294901760
        %1479 = vmatmul.mubr.f32.gmra.mrb[0].mxu0 %v1478
        %v1480 = vpop.f32.mrb[0].mxu0
        %v1481 = vadd.f32 %v1388, %v1480
        %v1482 = vpop.f32.mrb[0].mxu0
        %1483 = vmatprep.mubr.f32.mxu0 0.0
        %v1484 = vand.u32 %v754, 4294901760
        %1485 = vmatmul.mubr.f32.gmra.mrb[0].mxu0 %v1484
        %v1486 = vpop.f32.mrb[0].mxu0
        %v1487 = vadd.f32 %v1394, %v1486
        %v1488 = vpop.f32.mrb[0].mxu0
        %1489 = vdwg.mxu0
        %1490 = vmatprep.subr.mxu0 0.0
        %v1491 = vand.u32 %v773, 4294901760
        %1492 = vmatpush1.msra.mxu0 %v1491
        %1493 = vmatprep.subr.mxu0 0.0
        %v1494 = vand.u32 %v774, 4294901760
        %1495 = vmatpush1.msra.mxu0 %v1494
        %1496 = vmatprep.subr.mxu0 0.0
        %v1497 = vand.u32 %v775, 4294901760
        %1498 = vmatpush1.msra.mxu0 %v1497
        %1499 = vmatprep.subr.mxu0 0.0
        %v1500 = vand.u32 %v776, 4294901760
        %1501 = vmatpush1.msra.mxu0 %v1500
        %1502 = vmatprep.subr.mxu0 0.0
        %v1503 = vand.u32 %v777, 4294901760
        %1504 = vmatpush1.msra.mxu0 %v1503
        %1505 = vmatprep.subr.mxu0 0.0
        %v1506 = vand.u32 %v778, 4294901760
        %1507 = vmatpush1.msra.mxu0 %v1506
        %1508 = vmatprep.subr.mxu0 0.0
        %v1509 = vand.u32 %v779, 4294901760
        %1510 = vmatpush1.msra.mxu0 %v1509
        %1511 = vmatprep.subr.mxu0 0.0
        %v1512 = vand.u32 %v780, 4294901760
        %1513 = vmatpush1.msra.mxu0 %v1512
        %1514 = vmatprep.subr.mxu0 0.0
        %v1515 = vand.u32 %v781, 4294901760
        %1516 = vmatpush1.msra.mxu0 %v1515
        %1517 = vmatprep.subr.mxu0 0.0
        %v1518 = vand.u32 %v782, 4294901760
        %1519 = vmatpush1.msra.mxu0 %v1518
        %1520 = vmatprep.subr.mxu0 0.0
        %v1521 = vand.u32 %v783, 4294901760
        %1522 = vmatpush1.msra.mxu0 %v1521
        %1523 = vmatprep.subr.mxu0 0.0
        %v1524 = vand.u32 %v784, 4294901760
        %1525 = vmatpush1.msra.mxu0 %v1524
        %1526 = vmatprep.subr.mxu0 0.0
        %v1527 = vand.u32 %v785, 4294901760
        %1528 = vmatpush1.msra.mxu0 %v1527
        %1529 = vmatprep.subr.mxu0 0.0
        %v1530 = vand.u32 %v786, 4294901760
        %1531 = vmatpush1.msra.mxu0 %v1530
        %1532 = vmatprep.subr.mxu0 0.0
        %v1533 = vand.u32 %v787, 4294901760
        %1534 = vmatpush1.msra.mxu0 %v1533
        %1535 = vmatprep.subr.mxu0 0.0
        %v1536 = vand.u32 %v788, 4294901760
        %1537 = vmatpush1.msra.mxu0 %v1536
        %1538 = vmatprep.subr.mxu0 0.0
        %1539 = vmatpush1.msra.mxu0 0.0
        %1540 = vmatprep.subr.mxu0 0.0
        %1541 = vmatpush1.msra.mxu0 0.0
        %1542 = vmatprep.subr.mxu0 0.0
        %1543 = vmatpush1.msra.mxu0 0.0
        %1544 = vmatprep.subr.mxu0 0.0
        %1545 = vmatpush1.msra.mxu0 0.0
        %1546 = vmatprep.subr.mxu0 0.0
        %1547 = vmatpush1.msra.mxu0 0.0
        %1548 = vmatprep.subr.mxu0 0.0
        %1549 = vmatpush1.msra.mxu0 0.0
        %1550 = vmatprep.subr.mxu0 0.0
        %1551 = vmatpush1.msra.mxu0 0.0
        %1552 = vmatprep.subr.mxu0 0.0
        %1553 = vmatpush1.msra.mxu0 0.0
        %1554 = vmatprep.subr.mxu0 0.0
        %1555 = vmatpush1.msra.mxu0 0.0
        %1556 = vmatprep.subr.mxu0 0.0
        %1557 = vmatpush1.msra.mxu0 0.0
        %1558 = vmatprep.subr.mxu0 0.0
        %1559 = vmatpush1.msra.mxu0 0.0
        %1560 = vmatprep.subr.mxu0 0.0
        %1561 = vmatpush1.msra.mxu0 0.0
        %1562 = vmatprep.subr.mxu0 0.0
        %1563 = vmatpush1.msra.mxu0 0.0
        %1564 = vmatprep.subr.mxu0 0.0
        %1565 = vmatpush1.msra.mxu0 0.0
        %1566 = vmatprep.subr.mxu0 0.0
        %1567 = vmatpush1.msra.mxu0 0.0
        %1568 = vmatprep.subr.mxu0 0.0
        %1569 = vmatpush1.msra.mxu0 0.0
        %1570 = vmatprep.mubr.f32.mxu0 0.0
        %v1571 = vand.u32 %v765, 4294901760
        %v1572 = vsub.f32 %v765, %v1571
        %v1573 = vand.u32 %v1572, 4294901760
        %v1574 = vsub.f32 %v1572, %v1573
        %v1575 = vand.u32 %v1574, 4294901760
        %1576 = vmatmul.mubr.f32.gmra.mrb[0].mxu0 %v1575
        %v1577 = vpop.f32.mrb[0].mxu0
        %v1578 = vadd.f32 %v1481, %v1577
        %v1579 = vpop.f32.mrb[0].mxu0
        %1580 = vmatprep.mubr.f32.mxu0 0.0
        %v1581 = vand.u32 %v762, 4294901760
        %v1582 = vsub.f32 %v762, %v1581
        %v1583 = vand.u32 %v1582, 4294901760
        %v1584 = vsub.f32 %v1582, %v1583
        %v1585 = vand.u32 %v1584, 4294901760
        %1586 = vmatmul.mubr.f32.gmra.mrb[0].mxu0 %v1585
        %v1587 = vpop.f32.mrb[0].mxu0
        %v1588 = vadd.f32 %v1487, %v1587
        %v1589 = vpop.f32.mrb[0].mxu0
        %1590 = vdwg.mxu0
        %1591 = vmatprep.subr.mxu0 0.0
        %v1592 = vand.u32 %v773, 4294901760
        %v1593 = vsub.f32 %v773, %v1592
        %v1594 = vand.u32 %v1593, 4294901760
        %v1595 = vsub.f32 %v1593, %v1594
        %v1596 = vand.u32 %v1595, 4294901760
        %1597 = vmatpush1.msra.mxu0 %v1596
        %1598 = vmatprep.subr.mxu0 0.0
        %v1599 = vand.u32 %v774, 4294901760
        %v1600 = vsub.f32 %v774, %v1599
        %v1601 = vand.u32 %v1600, 4294901760
        %v1602 = vsub.f32 %v1600, %v1601
        %v1603 = vand.u32 %v1602, 4294901760
        %1604 = vmatpush1.msra.mxu0 %v1603
        %1605 = vmatprep.subr.mxu0 0.0
        %v1606 = vand.u32 %v775, 4294901760
        %v1607 = vsub.f32 %v775, %v1606
        %v1608 = vand.u32 %v1607, 4294901760
        %v1609 = vsub.f32 %v1607, %v1608
        %v1610 = vand.u32 %v1609, 4294901760
        %1611 = vmatpush1.msra.mxu0 %v1610
        %1612 = vmatprep.subr.mxu0 0.0
        %v1613 = vand.u32 %v776, 4294901760
        %v1614 = vsub.f32 %v776, %v1613
        %v1615 = vand.u32 %v1614, 4294901760
        %v1616 = vsub.f32 %v1614, %v1615
        %v1617 = vand.u32 %v1616, 4294901760
        %1618 = vmatpush1.msra.mxu0 %v1617
        %1619 = vmatprep.subr.mxu0 0.0
        %v1620 = vand.u32 %v777, 4294901760
        %v1621 = vsub.f32 %v777, %v1620
        %v1622 = vand.u32 %v1621, 4294901760
        %v1623 = vsub.f32 %v1621, %v1622
        %v1624 = vand.u32 %v1623, 4294901760
        %1625 = vmatpush1.msra.mxu0 %v1624
        %1626 = vmatprep.subr.mxu0 0.0
        %v1627 = vand.u32 %v778, 4294901760
        %v1628 = vsub.f32 %v778, %v1627
        %v1629 = vand.u32 %v1628, 4294901760
        %v1630 = vsub.f32 %v1628, %v1629
        %v1631 = vand.u32 %v1630, 4294901760
        %1632 = vmatpush1.msra.mxu0 %v1631
        %1633 = vmatprep.subr.mxu0 0.0
        %v1634 = vand.u32 %v779, 4294901760
        %v1635 = vsub.f32 %v779, %v1634
        %v1636 = vand.u32 %v1635, 4294901760
        %v1637 = vsub.f32 %v1635, %v1636
        %v1638 = vand.u32 %v1637, 4294901760
        %1639 = vmatpush1.msra.mxu0 %v1638
        %1640 = vmatprep.subr.mxu0 0.0
        %v1641 = vand.u32 %v780, 4294901760
        %v1642 = vsub.f32 %v780, %v1641
        %v1643 = vand.u32 %v1642, 4294901760
        %v1644 = vsub.f32 %v1642, %v1643
        %v1645 = vand.u32 %v1644, 4294901760
        %1646 = vmatpush1.msra.mxu0 %v1645
        %1647 = vmatprep.subr.mxu0 0.0
        %v1648 = vand.u32 %v781, 4294901760
        %v1649 = vsub.f32 %v781, %v1648
        %v1650 = vand.u32 %v1649, 4294901760
        %v1651 = vsub.f32 %v1649, %v1650
        %v1652 = vand.u32 %v1651, 4294901760
        %1653 = vmatpush1.msra.mxu0 %v1652
        %1654 = vmatprep.subr.mxu0 0.0
        %v1655 = vand.u32 %v782, 4294901760
        %v1656 = vsub.f32 %v782, %v1655
        %v1657 = vand.u32 %v1656, 4294901760
        %v1658 = vsub.f32 %v1656, %v1657
        %v1659 = vand.u32 %v1658, 4294901760
        %1660 = vmatpush1.msra.mxu0 %v1659
        %1661 = vmatprep.subr.mxu0 0.0
        %v1662 = vand.u32 %v783, 4294901760
        %v1663 = vsub.f32 %v783, %v1662
        %v1664 = vand.u32 %v1663, 4294901760
        %v1665 = vsub.f32 %v1663, %v1664
        %v1666 = vand.u32 %v1665, 4294901760
        %1667 = vmatpush1.msra.mxu0 %v1666
        %1668 = vmatprep.subr.mxu0 0.0
        %v1669 = vand.u32 %v784, 4294901760
        %v1670 = vsub.f32 %v784, %v1669
        %v1671 = vand.u32 %v1670, 4294901760
        %v1672 = vsub.f32 %v1670, %v1671
        %v1673 = vand.u32 %v1672, 4294901760
        %1674 = vmatpush1.msra.mxu0 %v1673
        %1675 = vmatprep.subr.mxu0 0.0
        %v1676 = vand.u32 %v785, 4294901760
        %v1677 = vsub.f32 %v785, %v1676
        %v1678 = vand.u32 %v1677, 4294901760
        %v1679 = vsub.f32 %v1677, %v1678
        %v1680 = vand.u32 %v1679, 4294901760
        %1681 = vmatpush1.msra.mxu0 %v1680
        %1682 = vmatprep.subr.mxu0 0.0
        %v1683 = vand.u32 %v786, 4294901760
        %v1684 = vsub.f32 %v786, %v1683
        %v1685 = vand.u32 %v1684, 4294901760
        %v1686 = vsub.f32 %v1684, %v1685
        %v1687 = vand.u32 %v1686, 4294901760
        %1688 = vmatpush1.msra.mxu0 %v1687
        %1689 = vmatprep.subr.mxu0 0.0
        %v1690 = vand.u32 %v787, 4294901760
        %v1691 = vsub.f32 %v787, %v1690
        %v1692 = vand.u32 %v1691, 4294901760
        %v1693 = vsub.f32 %v1691, %v1692
        %v1694 = vand.u32 %v1693, 4294901760
        %1695 = vmatpush1.msra.mxu0 %v1694
        %1696 = vmatprep.subr.mxu0 0.0
        %v1697 = vand.u32 %v788, 4294901760
        %v1698 = vsub.f32 %v788, %v1697
        %v1699 = vand.u32 %v1698, 4294901760
        %v1700 = vsub.f32 %v1698, %v1699
        %v1701 = vand.u32 %v1700, 4294901760
        %1702 = vmatpush1.msra.mxu0 %v1701
        %1703 = vmatprep.subr.mxu0 0.0
        %1704 = vmatpush1.msra.mxu0 0.0
        %1705 = vmatprep.subr.mxu0 0.0
        %1706 = vmatpush1.msra.mxu0 0.0
        %1707 = vmatprep.subr.mxu0 0.0
        %1708 = vmatpush1.msra.mxu0 0.0
        %1709 = vmatprep.subr.mxu0 0.0
        %1710 = vmatpush1.msra.mxu0 0.0
        %1711 = vmatprep.subr.mxu0 0.0
        %1712 = vmatpush1.msra.mxu0 0.0
        %1713 = vmatprep.subr.mxu0 0.0
        %1714 = vmatpush1.msra.mxu0 0.0
        %1715 = vmatprep.subr.mxu0 0.0
        %1716 = vmatpush1.msra.mxu0 0.0
        %1717 = vmatprep.subr.mxu0 0.0
        %1718 = vmatpush1.msra.mxu0 0.0
        %1719 = vmatprep.subr.mxu0 0.0
        %1720 = vmatpush1.msra.mxu0 0.0
        %1721 = vmatprep.subr.mxu0 0.0
        %1722 = vmatpush1.msra.mxu0 0.0
        %1723 = vmatprep.subr.mxu0 0.0
        %1724 = vmatpush1.msra.mxu0 0.0
        %1725 = vmatprep.subr.mxu0 0.0
        %1726 = vmatpush1.msra.mxu0 0.0
        %1727 = vmatprep.subr.mxu0 0.0
        %1728 = vmatpush1.msra.mxu0 0.0
        %1729 = vmatprep.subr.mxu0 0.0
        %1730 = vmatpush1.msra.mxu0 0.0
        %1731 = vmatprep.subr.mxu0 0.0
        %1732 = vmatpush1.msra.mxu0 0.0
        %1733 = vmatprep.subr.mxu0 0.0
        %1734 = vmatpush1.msra.mxu0 0.0
        %1735 = vmatprep.mubr.f32.mxu0 0.0
        %v1736 = vand.u32 %v765, 4294901760
        %1737 = vmatmul.mubr.f32.gmra.mrb[0].mxu0 %v1736
        %v1738 = vpop.f32.mrb[0].mxu0
        %v1739 = vadd.f32 %v1578, %v1738
        %v1740 = vpop.f32.mrb[0].mxu0
        %1741 = vmatprep.mubr.f32.mxu0 0.0
        %v1742 = vand.u32 %v762, 4294901760
        %1743 = vmatmul.mubr.f32.gmra.mrb[0].mxu0 %v1742
        %v1744 = vpop.f32.mrb[0].mxu0
        %v1745 = vadd.f32 %v1588, %v1744
        %v1746 = vpop.f32.mrb[0].mxu0
        %1747 = vdwg.mxu0
        %1748 = vmatprep.subr.mxu0 0.0
        %v1749 = vand.u32 %v773, 4294901760
        %v1750 = vsub.f32 %v773, %v1749
        %1751 = vmatpush1.msra.mxu0 %v1750
        %1752 = vmatprep.subr.mxu0 0.0
        %v1753 = vand.u32 %v774, 4294901760
        %v1754 = vsub.f32 %v774, %v1753
        %1755 = vmatpush1.msra.mxu0 %v1754
        %1756 = vmatprep.subr.mxu0 0.0
        %v1757 = vand.u32 %v775, 4294901760
        %v1758 = vsub.f32 %v775, %v1757
        %1759 = vmatpush1.msra.mxu0 %v1758
        %1760 = vmatprep.subr.mxu0 0.0
        %v1761 = vand.u32 %v776, 4294901760
        %v1762 = vsub.f32 %v776, %v1761
        %1763 = vmatpush1.msra.mxu0 %v1762
        %1764 = vmatprep.subr.mxu0 0.0
        %v1765 = vand.u32 %v777, 4294901760
        %v1766 = vsub.f32 %v777, %v1765
        %1767 = vmatpush1.msra.mxu0 %v1766
        %1768 = vmatprep.subr.mxu0 0.0
        %v1769 = vand.u32 %v778, 4294901760
        %v1770 = vsub.f32 %v778, %v1769
        %1771 = vmatpush1.msra.mxu0 %v1770
        %1772 = vmatprep.subr.mxu0 0.0
        %v1773 = vand.u32 %v779, 4294901760
        %v1774 = vsub.f32 %v779, %v1773
        %1775 = vmatpush1.msra.mxu0 %v1774
        %1776 = vmatprep.subr.mxu0 0.0
        %v1777 = vand.u32 %v780, 4294901760
        %v1778 = vsub.f32 %v780, %v1777
        %1779 = vmatpush1.msra.mxu0 %v1778
        %1780 = vmatprep.subr.mxu0 0.0
        %v1781 = vand.u32 %v781, 4294901760
        %v1782 = vsub.f32 %v781, %v1781
        %1783 = vmatpush1.msra.mxu0 %v1782
        %1784 = vmatprep.subr.mxu0 0.0
        %v1785 = vand.u32 %v782, 4294901760
        %v1786 = vsub.f32 %v782, %v1785
        %1787 = vmatpush1.msra.mxu0 %v1786
        %1788 = vmatprep.subr.mxu0 0.0
        %v1789 = vand.u32 %v783, 4294901760
        %v1790 = vsub.f32 %v783, %v1789
        %1791 = vmatpush1.msra.mxu0 %v1790
        %1792 = vmatprep.subr.mxu0 0.0
        %v1793 = vand.u32 %v784, 4294901760
        %v1794 = vsub.f32 %v784, %v1793
        %1795 = vmatpush1.msra.mxu0 %v1794
        %1796 = vmatprep.subr.mxu0 0.0
        %v1797 = vand.u32 %v785, 4294901760
        %v1798 = vsub.f32 %v785, %v1797
        %1799 = vmatpush1.msra.mxu0 %v1798
        %1800 = vmatprep.subr.mxu0 0.0
        %v1801 = vand.u32 %v786, 4294901760
        %v1802 = vsub.f32 %v786, %v1801
        %1803 = vmatpush1.msra.mxu0 %v1802
        %1804 = vmatprep.subr.mxu0 0.0
        %v1805 = vand.u32 %v787, 4294901760
        %v1806 = vsub.f32 %v787, %v1805
        %1807 = vmatpush1.msra.mxu0 %v1806
        %1808 = vmatprep.subr.mxu0 0.0
        %v1809 = vand.u32 %v788, 4294901760
        %v1810 = vsub.f32 %v788, %v1809
        %1811 = vmatpush1.msra.mxu0 %v1810
        %1812 = vmatprep.subr.mxu0 0.0
        %1813 = vmatpush1.msra.mxu0 0.0
        %1814 = vmatprep.subr.mxu0 0.0
        %1815 = vmatpush1.msra.mxu0 0.0
        %1816 = vmatprep.subr.mxu0 0.0
        %1817 = vmatpush1.msra.mxu0 0.0
        %1818 = vmatprep.subr.mxu0 0.0
        %1819 = vmatpush1.msra.mxu0 0.0
        %1820 = vmatprep.subr.mxu0 0.0
        %1821 = vmatpush1.msra.mxu0 0.0
        %1822 = vmatprep.subr.mxu0 0.0
        %1823 = vmatpush1.msra.mxu0 0.0
        %1824 = vmatprep.subr.mxu0 0.0
        %1825 = vmatpush1.msra.mxu0 0.0
        %1826 = vmatprep.subr.mxu0 0.0
        %1827 = vmatpush1.msra.mxu0 0.0
        %1828 = vmatprep.subr.mxu0 0.0
        %1829 = vmatpush1.msra.mxu0 0.0
        %1830 = vmatprep.subr.mxu0 0.0
        %1831 = vmatpush1.msra.mxu0 0.0
        %1832 = vmatprep.subr.mxu0 0.0
        %1833 = vmatpush1.msra.mxu0 0.0
        %1834 = vmatprep.subr.mxu0 0.0
        %1835 = vmatpush1.msra.mxu0 0.0
        %1836 = vmatprep.subr.mxu0 0.0
        %1837 = vmatpush1.msra.mxu0 0.0
        %1838 = vmatprep.subr.mxu0 0.0
        %1839 = vmatpush1.msra.mxu0 0.0
        %1840 = vmatprep.subr.mxu0 0.0
        %1841 = vmatpush1.msra.mxu0 0.0
        %1842 = vmatprep.subr.mxu0 0.0
        %1843 = vmatpush1.msra.mxu0 0.0
        %1844 = vmatprep.mubr.f32.mxu0 0.0
        %v1845 = vand.u32 %v765, 4294901760
        %v1846 = vsub.f32 %v765, %v1845
        %1847 = vmatmul.mubr.f32.gmra.mrb[0].mxu0 %v1846
        %v1848 = vpop.f32.mrb[0].mxu0
        %v1849 = vadd.f32 %v1739, %v1848
        %v1850 = vpop.f32.mrb[0].mxu0
        %1851 = vmatprep.mubr.f32.mxu0 0.0
        %v1852 = vand.u32 %v762, 4294901760
        %v1853 = vsub.f32 %v762, %v1852
        %1854 = vmatmul.mubr.f32.gmra.mrb[0].mxu0 %v1853
        %v1855 = vpop.f32.mrb[0].mxu0
        %v1856 = vadd.f32 %v1745, %v1855
        %v1857 = vpop.f32.mrb[0].mxu0
        %1858 = vdwg.mxu0
        %1859 = vmatprep.subr.mxu0 0.0
        %v1860 = vand.u32 %v773, 4294901760
        %1861 = vmatpush1.msra.mxu0 %v1860
        %1862 = vmatprep.subr.mxu0 0.0
        %v1863 = vand.u32 %v774, 4294901760
        %1864 = vmatpush1.msra.mxu0 %v1863
        %1865 = vmatprep.subr.mxu0 0.0
        %v1866 = vand.u32 %v775, 4294901760
        %1867 = vmatpush1.msra.mxu0 %v1866
        %1868 = vmatprep.subr.mxu0 0.0
        %v1869 = vand.u32 %v776, 4294901760
        %1870 = vmatpush1.msra.mxu0 %v1869
        %1871 = vmatprep.subr.mxu0 0.0
        %v1872 = vand.u32 %v777, 4294901760
        %1873 = vmatpush1.msra.mxu0 %v1872
        %1874 = vmatprep.subr.mxu0 0.0
        %v1875 = vand.u32 %v778, 4294901760
        %1876 = vmatpush1.msra.mxu0 %v1875
        %1877 = vmatprep.subr.mxu0 0.0
        %v1878 = vand.u32 %v779, 4294901760
        %1879 = vmatpush1.msra.mxu0 %v1878
        %1880 = vmatprep.subr.mxu0 0.0
        %v1881 = vand.u32 %v780, 4294901760
        %1882 = vmatpush1.msra.mxu0 %v1881
        %1883 = vmatprep.subr.mxu0 0.0
        %v1884 = vand.u32 %v781, 4294901760
        %1885 = vmatpush1.msra.mxu0 %v1884
        %1886 = vmatprep.subr.mxu0 0.0
        %v1887 = vand.u32 %v782, 4294901760
        %1888 = vmatpush1.msra.mxu0 %v1887
        %1889 = vmatprep.subr.mxu0 0.0
        %v1890 = vand.u32 %v783, 4294901760
        %1891 = vmatpush1.msra.mxu0 %v1890
        %1892 = vmatprep.subr.mxu0 0.0
        %v1893 = vand.u32 %v784, 4294901760
        %1894 = vmatpush1.msra.mxu0 %v1893
        %1895 = vmatprep.subr.mxu0 0.0
        %v1896 = vand.u32 %v785, 4294901760
        %1897 = vmatpush1.msra.mxu0 %v1896
        %1898 = vmatprep.subr.mxu0 0.0
        %v1899 = vand.u32 %v786, 4294901760
        %1900 = vmatpush1.msra.mxu0 %v1899
        %1901 = vmatprep.subr.mxu0 0.0
        %v1902 = vand.u32 %v787, 4294901760
        %1903 = vmatpush1.msra.mxu0 %v1902
        %1904 = vmatprep.subr.mxu0 0.0
        %v1905 = vand.u32 %v788, 4294901760
        %1906 = vmatpush1.msra.mxu0 %v1905
        %1907 = vmatprep.subr.mxu0 0.0
        %1908 = vmatpush1.msra.mxu0 0.0
        %1909 = vmatprep.subr.mxu0 0.0
        %1910 = vmatpush1.msra.mxu0 0.0
        %1911 = vmatprep.subr.mxu0 0.0
        %1912 = vmatpush1.msra.mxu0 0.0
        %1913 = vmatprep.subr.mxu0 0.0
        %1914 = vmatpush1.msra.mxu0 0.0
        %1915 = vmatprep.subr.mxu0 0.0
        %1916 = vmatpush1.msra.mxu0 0.0
        %1917 = vmatprep.subr.mxu0 0.0
        %1918 = vmatpush1.msra.mxu0 0.0
        %1919 = vmatprep.subr.mxu0 0.0
        %1920 = vmatpush1.msra.mxu0 0.0
        %1921 = vmatprep.subr.mxu0 0.0
        %1922 = vmatpush1.msra.mxu0 0.0
        %1923 = vmatprep.subr.mxu0 0.0
        %1924 = vmatpush1.msra.mxu0 0.0
        %1925 = vmatprep.subr.mxu0 0.0
        %1926 = vmatpush1.msra.mxu0 0.0
        %1927 = vmatprep.subr.mxu0 0.0
        %1928 = vmatpush1.msra.mxu0 0.0
        %1929 = vmatprep.subr.mxu0 0.0
        %1930 = vmatpush1.msra.mxu0 0.0
        %1931 = vmatprep.subr.mxu0 0.0
        %1932 = vmatpush1.msra.mxu0 0.0
        %1933 = vmatprep.subr.mxu0 0.0
        %1934 = vmatpush1.msra.mxu0 0.0
        %1935 = vmatprep.subr.mxu0 0.0
        %1936 = vmatpush1.msra.mxu0 0.0
        %1937 = vmatprep.subr.mxu0 0.0
        %1938 = vmatpush1.msra.mxu0 0.0
        %1939 = vmatprep.mubr.f32.mxu0 0.0
        %v1940 = vand.u32 %v765, 4294901760
        %v1941 = vsub.f32 %v765, %v1940
        %v1942 = vand.u32 %v1941, 4294901760
        %1943 = vmatmul.mubr.f32.gmra.mrb[0].mxu0 %v1942
        %v1944 = vpop.f32.mrb[0].mxu0
        %v1945 = vadd.f32 %v1849, %v1944
        %v1946 = vpop.f32.mrb[0].mxu0
        %1947 = vmatprep.mubr.f32.mxu0 0.0
        %v1948 = vand.u32 %v762, 4294901760
        %v1949 = vsub.f32 %v762, %v1948
        %v1950 = vand.u32 %v1949, 4294901760
        %1951 = vmatmul.mubr.f32.gmra.mrb[0].mxu0 %v1950
        %v1952 = vpop.f32.mrb[0].mxu0
        %v1953 = vadd.f32 %v1856, %v1952
        %v1954 = vpop.f32.mrb[0].mxu0
        %1955 = vdwg.mxu0
        %1956 = vmatprep.subr.mxu0 0.0
        %v1957 = vand.u32 %v773, 4294901760
        %v1958 = vsub.f32 %v773, %v1957
        %v1959 = vand.u32 %v1958, 4294901760
        %1960 = vmatpush1.msra.mxu0 %v1959
        %1961 = vmatprep.subr.mxu0 0.0
        %v1962 = vand.u32 %v774, 4294901760
        %v1963 = vsub.f32 %v774, %v1962
        %v1964 = vand.u32 %v1963, 4294901760
        %1965 = vmatpush1.msra.mxu0 %v1964
        %1966 = vmatprep.subr.mxu0 0.0
        %v1967 = vand.u32 %v775, 4294901760
        %v1968 = vsub.f32 %v775, %v1967
        %v1969 = vand.u32 %v1968, 4294901760
        %1970 = vmatpush1.msra.mxu0 %v1969
        %1971 = vmatprep.subr.mxu0 0.0
        %v1972 = vand.u32 %v776, 4294901760
        %v1973 = vsub.f32 %v776, %v1972
        %v1974 = vand.u32 %v1973, 4294901760
        %1975 = vmatpush1.msra.mxu0 %v1974
        %1976 = vmatprep.subr.mxu0 0.0
        %v1977 = vand.u32 %v777, 4294901760
        %v1978 = vsub.f32 %v777, %v1977
        %v1979 = vand.u32 %v1978, 4294901760
        %1980 = vmatpush1.msra.mxu0 %v1979
        %1981 = vmatprep.subr.mxu0 0.0
        %v1982 = vand.u32 %v778, 4294901760
        %v1983 = vsub.f32 %v778, %v1982
        %v1984 = vand.u32 %v1983, 4294901760
        %1985 = vmatpush1.msra.mxu0 %v1984
        %1986 = vmatprep.subr.mxu0 0.0
        %v1987 = vand.u32 %v779, 4294901760
        %v1988 = vsub.f32 %v779, %v1987
        %v1989 = vand.u32 %v1988, 4294901760
        %1990 = vmatpush1.msra.mxu0 %v1989
        %1991 = vmatprep.subr.mxu0 0.0
        %v1992 = vand.u32 %v780, 4294901760
        %v1993 = vsub.f32 %v780, %v1992
        %v1994 = vand.u32 %v1993, 4294901760
        %1995 = vmatpush1.msra.mxu0 %v1994
        %1996 = vmatprep.subr.mxu0 0.0
        %v1997 = vand.u32 %v781, 4294901760
        %v1998 = vsub.f32 %v781, %v1997
        %v1999 = vand.u32 %v1998, 4294901760
        %2000 = vmatpush1.msra.mxu0 %v1999
        %2001 = vmatprep.subr.mxu0 0.0
        %v2002 = vand.u32 %v782, 4294901760
        %v2003 = vsub.f32 %v782, %v2002
        %v2004 = vand.u32 %v2003, 4294901760
        %2005 = vmatpush1.msra.mxu0 %v2004
        %2006 = vmatprep.subr.mxu0 0.0
        %v2007 = vand.u32 %v783, 4294901760
        %v2008 = vsub.f32 %v783, %v2007
        %v2009 = vand.u32 %v2008, 4294901760
        %2010 = vmatpush1.msra.mxu0 %v2009
        %2011 = vmatprep.subr.mxu0 0.0
        %v2012 = vand.u32 %v784, 4294901760
        %v2013 = vsub.f32 %v784, %v2012
        %v2014 = vand.u32 %v2013, 4294901760
        %2015 = vmatpush1.msra.mxu0 %v2014
        %2016 = vmatprep.subr.mxu0 0.0
        %v2017 = vand.u32 %v785, 4294901760
        %v2018 = vsub.f32 %v785, %v2017
        %v2019 = vand.u32 %v2018, 4294901760
        %2020 = vmatpush1.msra.mxu0 %v2019
        %2021 = vmatprep.subr.mxu0 0.0
        %v2022 = vand.u32 %v786, 4294901760
        %v2023 = vsub.f32 %v786, %v2022
        %v2024 = vand.u32 %v2023, 4294901760
        %2025 = vmatpush1.msra.mxu0 %v2024
        %2026 = vmatprep.subr.mxu0 0.0
        %v2027 = vand.u32 %v787, 4294901760
        %v2028 = vsub.f32 %v787, %v2027
        %v2029 = vand.u32 %v2028, 4294901760
        %2030 = vmatpush1.msra.mxu0 %v2029
        %2031 = vmatprep.subr.mxu0 0.0
        %v2032 = vand.u32 %v788, 4294901760
        %v2033 = vsub.f32 %v788, %v2032
        %v2034 = vand.u32 %v2033, 4294901760
        %2035 = vmatpush1.msra.mxu0 %v2034
        %2036 = vmatprep.subr.mxu0 0.0
        %2037 = vmatpush1.msra.mxu0 0.0
        %2038 = vmatprep.subr.mxu0 0.0
        %2039 = vmatpush1.msra.mxu0 0.0
        %2040 = vmatprep.subr.mxu0 0.0
        %2041 = vmatpush1.msra.mxu0 0.0
        %2042 = vmatprep.subr.mxu0 0.0
        %2043 = vmatpush1.msra.mxu0 0.0
        %2044 = vmatprep.subr.mxu0 0.0
        %2045 = vmatpush1.msra.mxu0 0.0
        %2046 = vmatprep.subr.mxu0 0.0
        %2047 = vmatpush1.msra.mxu0 0.0
        %2048 = vmatprep.subr.mxu0 0.0
        %2049 = vmatpush1.msra.mxu0 0.0
        %2050 = vmatprep.subr.mxu0 0.0
        %2051 = vmatpush1.msra.mxu0 0.0
        %2052 = vmatprep.subr.mxu0 0.0
        %2053 = vmatpush1.msra.mxu0 0.0
        %2054 = vmatprep.subr.mxu0 0.0
        %2055 = vmatpush1.msra.mxu0 0.0
        %2056 = vmatprep.subr.mxu0 0.0
        %2057 = vmatpush1.msra.mxu0 0.0
        %2058 = vmatprep.subr.mxu0 0.0
        %2059 = vmatpush1.msra.mxu0 0.0
        %2060 = vmatprep.subr.mxu0 0.0
        %2061 = vmatpush1.msra.mxu0 0.0
        %2062 = vmatprep.subr.mxu0 0.0
        %2063 = vmatpush1.msra.mxu0 0.0
        %2064 = vmatprep.subr.mxu0 0.0
        %2065 = vmatpush1.msra.mxu0 0.0
        %2066 = vmatprep.subr.mxu0 0.0
        %2067 = vmatpush1.msra.mxu0 0.0
        %2068 = vmatprep.mubr.f32.mxu0 0.0
        %v2069 = vand.u32 %v765, 4294901760
        %2070 = vmatmul.mubr.f32.gmra.mrb[0].mxu0 %v2069
        %v2071 = vpop.f32.mrb[0].mxu0
        %v2072 = vadd.f32 %v1945, %v2071
        %v2073 = vpop.f32.mrb[0].mxu0
        %2074 = vmatprep.mubr.f32.mxu0 0.0
        %v2075 = vand.u32 %v762, 4294901760
        %2076 = vmatmul.mubr.f32.gmra.mrb[0].mxu0 %v2075
        %v2077 = vpop.f32.mrb[0].mxu0
        %v2078 = vadd.f32 %v1953, %v2077
        %v2079 = vpop.f32.mrb[0].mxu0
        %2080 = vdwg.mxu0
        %2081 = vmatprep.subr.mxu0 0.0
        %v2082 = vand.u32 %v773, 4294901760
        %2083 = vmatpush1.msra.mxu0 %v2082
        %2084 = vmatprep.subr.mxu0 0.0
        %v2085 = vand.u32 %v774, 4294901760
        %2086 = vmatpush1.msra.mxu0 %v2085
        %2087 = vmatprep.subr.mxu0 0.0
        %v2088 = vand.u32 %v775, 4294901760
        %2089 = vmatpush1.msra.mxu0 %v2088
        %2090 = vmatprep.subr.mxu0 0.0
        %v2091 = vand.u32 %v776, 4294901760
        %2092 = vmatpush1.msra.mxu0 %v2091
        %2093 = vmatprep.subr.mxu0 0.0
        %v2094 = vand.u32 %v777, 4294901760
        %2095 = vmatpush1.msra.mxu0 %v2094
        %2096 = vmatprep.subr.mxu0 0.0
        %v2097 = vand.u32 %v778, 4294901760
        %2098 = vmatpush1.msra.mxu0 %v2097
        %2099 = vmatprep.subr.mxu0 0.0
        %v2100 = vand.u32 %v779, 4294901760
        %2101 = vmatpush1.msra.mxu0 %v2100
        %2102 = vmatprep.subr.mxu0 0.0
        %v2103 = vand.u32 %v780, 4294901760
        %2104 = vmatpush1.msra.mxu0 %v2103
        %2105 = vmatprep.subr.mxu0 0.0
        %v2106 = vand.u32 %v781, 4294901760
        %2107 = vmatpush1.msra.mxu0 %v2106
        %2108 = vmatprep.subr.mxu0 0.0
        %v2109 = vand.u32 %v782, 4294901760
        %2110 = vmatpush1.msra.mxu0 %v2109
        %2111 = vmatprep.subr.mxu0 0.0
        %v2112 = vand.u32 %v783, 4294901760
        %2113 = vmatpush1.msra.mxu0 %v2112
        %2114 = vmatprep.subr.mxu0 0.0
        %v2115 = vand.u32 %v784, 4294901760
        %2116 = vmatpush1.msra.mxu0 %v2115
        %2117 = vmatprep.subr.mxu0 0.0
        %v2118 = vand.u32 %v785, 4294901760
        %2119 = vmatpush1.msra.mxu0 %v2118
        %2120 = vmatprep.subr.mxu0 0.0
        %v2121 = vand.u32 %v786, 4294901760
        %2122 = vmatpush1.msra.mxu0 %v2121
        %2123 = vmatprep.subr.mxu0 0.0
        %v2124 = vand.u32 %v787, 4294901760
        %2125 = vmatpush1.msra.mxu0 %v2124
        %2126 = vmatprep.subr.mxu0 0.0
        %v2127 = vand.u32 %v788, 4294901760
        %2128 = vmatpush1.msra.mxu0 %v2127
        %2129 = vmatprep.subr.mxu0 0.0
        %2130 = vmatpush1.msra.mxu0 0.0
        %2131 = vmatprep.subr.mxu0 0.0
        %2132 = vmatpush1.msra.mxu0 0.0
        %2133 = vmatprep.subr.mxu0 0.0
        %2134 = vmatpush1.msra.mxu0 0.0
        %2135 = vmatprep.subr.mxu0 0.0
        %2136 = vmatpush1.msra.mxu0 0.0
        %2137 = vmatprep.subr.mxu0 0.0
        %2138 = vmatpush1.msra.mxu0 0.0
        %2139 = vmatprep.subr.mxu0 0.0
        %2140 = vmatpush1.msra.mxu0 0.0
        %2141 = vmatprep.subr.mxu0 0.0
        %2142 = vmatpush1.msra.mxu0 0.0
        %2143 = vmatprep.subr.mxu0 0.0
        %2144 = vmatpush1.msra.mxu0 0.0
        %2145 = vmatprep.subr.mxu0 0.0
        %2146 = vmatpush1.msra.mxu0 0.0
        %2147 = vmatprep.subr.mxu0 0.0
        %2148 = vmatpush1.msra.mxu0 0.0
        %2149 = vmatprep.subr.mxu0 0.0
        %2150 = vmatpush1.msra.mxu0 0.0
        %2151 = vmatprep.subr.mxu0 0.0
        %2152 = vmatpush1.msra.mxu0 0.0
        %2153 = vmatprep.subr.mxu0 0.0
        %2154 = vmatpush1.msra.mxu0 0.0
        %2155 = vmatprep.subr.mxu0 0.0
        %2156 = vmatpush1.msra.mxu0 0.0
        %2157 = vmatprep.subr.mxu0 0.0
        %2158 = vmatpush1.msra.mxu0 0.0
        %2159 = vmatprep.subr.mxu0 0.0
        %2160 = vmatpush1.msra.mxu0 0.0
        %2161 = vmatprep.mubr.f32.mxu0 0.0
        %v2162 = vand.u32 %v765, 4294901760
        %2163 = vmatmul.mubr.f32.gmra.mrb[0].mxu0 %v2162
        %v2164 = vpop.f32.mrb[0].mxu0
        %v2165 = vadd.f32 %v2072, %v2164
        %v2166 = vpop.f32.mrb[0].mxu0
        %2167 = vmatprep.mubr.f32.mxu0 0.0
        %v2168 = vand.u32 %v762, 4294901760
        %2169 = vmatmul.mubr.f32.gmra.mrb[0].mxu0 %v2168
        %v2170 = vpop.f32.mrb[0].mxu0
        %v2171 = vadd.f32 %v2078, %v2170
        %v2172 = vpop.f32.mrb[0].mxu0
        %2173 = vdwg.mxu0
        %s2174 = scalar_lea.vmem [#allocation2], 256
        %v2175 = vld [vmem:[%s2174] sm:$0xff]
        %v2176 = vld [vmem:[%s2174 + $0x8] sm:$0xff]
        %v2177 = vld [vmem:[%s2174 + $0x10] sm:$0xff]
        %v2178 = vld [vmem:[%s2174 + $0x18] sm:$0xff]
        %v2179 = vld [vmem:[%s2174 + $0x20] sm:$0xff]
        %v2180 = vld [vmem:[%s2174 + $0x28] sm:$0xff]
        %v2181 = vld [vmem:[%s2174 + $0x30] sm:$0xff]
        %v2182 = vld [vmem:[%s2174 + $0x38] sm:$0xff]
        %v2183 = vld [vmem:[%s2174 + $0x40] sm:$0xff]
        %v2184 = vld [vmem:[%s2174 + $0x48] sm:$0xff]
        %v2185 = vld [vmem:[%s2174 + $0x50] sm:$0xff]
        %v2186 = vld [vmem:[%s2174 + $0x58] sm:$0xff]
        %v2187 = vld [vmem:[%s2174 + $0x60] sm:$0xff]
        %v2188 = vld [vmem:[%s2174 + $0x68] sm:$0xff]
        %v2189 = vld [vmem:[%s2174 + $0x70] sm:$0xff]
        %v2190 = vld [vmem:[%s2174 + $0x78] sm:$0xff]
        %2191 = vmatprep.subr.mxu0 0.0
        %v2192 = vand.u32 %v2175, 4294901760
        %2193 = vmatpush1.msra.mxu0 %v2192
        %2194 = vmatprep.subr.mxu0 0.0
        %v2195 = vand.u32 %v2176, 4294901760
        %2196 = vmatpush1.msra.mxu0 %v2195
        %2197 = vmatprep.subr.mxu0 0.0
        %v2198 = vand.u32 %v2177, 4294901760
        %2199 = vmatpush1.msra.mxu0 %v2198
        %2200 = vmatprep.subr.mxu0 0.0
        %v2201 = vand.u32 %v2178, 4294901760
        %2202 = vmatpush1.msra.mxu0 %v2201
        %2203 = vmatprep.subr.mxu0 0.0
        %v2204 = vand.u32 %v2179, 4294901760
        %2205 = vmatpush1.msra.mxu0 %v2204
        %2206 = vmatprep.subr.mxu0 0.0
        %v2207 = vand.u32 %v2180, 4294901760
        %2208 = vmatpush1.msra.mxu0 %v2207
        %2209 = vmatprep.subr.mxu0 0.0
        %v2210 = vand.u32 %v2181, 4294901760
        %2211 = vmatpush1.msra.mxu0 %v2210
        %2212 = vmatprep.subr.mxu0 0.0
        %v2213 = vand.u32 %v2182, 4294901760
        %2214 = vmatpush1.msra.mxu0 %v2213
        %2215 = vmatprep.subr.mxu0 0.0
        %v2216 = vand.u32 %v2183, 4294901760
        %2217 = vmatpush1.msra.mxu0 %v2216
        %2218 = vmatprep.subr.mxu0 0.0
        %v2219 = vand.u32 %v2184, 4294901760
        %2220 = vmatpush1.msra.mxu0 %v2219
        %2221 = vmatprep.subr.mxu0 0.0
        %v2222 = vand.u32 %v2185, 4294901760
        %2223 = vmatpush1.msra.mxu0 %v2222
        %2224 = vmatprep.subr.mxu0 0.0
        %v2225 = vand.u32 %v2186, 4294901760
        %2226 = vmatpush1.msra.mxu0 %v2225
        %2227 = vmatprep.subr.mxu0 0.0
        %v2228 = vand.u32 %v2187, 4294901760
        %2229 = vmatpush1.msra.mxu0 %v2228
        %2230 = vmatprep.subr.mxu0 0.0
        %v2231 = vand.u32 %v2188, 4294901760
        %2232 = vmatpush1.msra.mxu0 %v2231
        %2233 = vmatprep.subr.mxu0 0.0
        %v2234 = vand.u32 %v2189, 4294901760
        %2235 = vmatpush1.msra.mxu0 %v2234
        %2236 = vmatprep.subr.mxu0 0.0
        %v2237 = vand.u32 %v2190, 4294901760
        %2238 = vmatpush1.msra.mxu0 %v2237
        %2239 = vmatprep.subr.mxu0 0.0
        %2240 = vmatpush1.msra.mxu0 0.0
        %2241 = vmatprep.subr.mxu0 0.0
        %2242 = vmatpush1.msra.mxu0 0.0
        %2243 = vmatprep.subr.mxu0 0.0
        %2244 = vmatpush1.msra.mxu0 0.0
        %2245 = vmatprep.subr.mxu0 0.0
        %2246 = vmatpush1.msra.mxu0 0.0
        %2247 = vmatprep.subr.mxu0 0.0
        %2248 = vmatpush1.msra.mxu0 0.0
        %2249 = vmatprep.subr.mxu0 0.0
        %2250 = vmatpush1.msra.mxu0 0.0
        %2251 = vmatprep.subr.mxu0 0.0
        %2252 = vmatpush1.msra.mxu0 0.0
        %2253 = vmatprep.subr.mxu0 0.0
        %2254 = vmatpush1.msra.mxu0 0.0
        %2255 = vmatprep.subr.mxu0 0.0
        %2256 = vmatpush1.msra.mxu0 0.0
        %2257 = vmatprep.subr.mxu0 0.0
        %2258 = vmatpush1.msra.mxu0 0.0
        %2259 = vmatprep.subr.mxu0 0.0
        %2260 = vmatpush1.msra.mxu0 0.0
        %2261 = vmatprep.subr.mxu0 0.0
        %2262 = vmatpush1.msra.mxu0 0.0
        %2263 = vmatprep.subr.mxu0 0.0
        %2264 = vmatpush1.msra.mxu0 0.0
        %2265 = vmatprep.subr.mxu0 0.0
        %2266 = vmatpush1.msra.mxu0 0.0
        %2267 = vmatprep.subr.mxu0 0.0
        %2268 = vmatpush1.msra.mxu0 0.0
        %2269 = vmatprep.subr.mxu0 0.0
        %2270 = vmatpush1.msra.mxu0 0.0
        %2271 = vmatprep.mubr.f32.mxu0 0.0
        %v2272 = vand.u32 %v769, 4294901760
        %v2273 = vsub.f32 %v769, %v2272
        %v2274 = vand.u32 %v2273, 4294901760
        %v2275 = vsub.f32 %v2273, %v2274
        %v2276 = vand.u32 %v2275, 4294901760
        %2277 = vmatmul.mubr.f32.gmra.mrb[0].mxu0 %v2276
        %v2278 = vpop.f32.mrb[0].mxu0
        %v2279 = vadd.f32 0.0, %v2278
        %v2280 = vpop.f32.mrb[0].mxu0
        %2281 = vmatprep.mubr.f32.mxu0 0.0
        %v2282 = vand.u32 %v772, 4294901760
        %v2283 = vsub.f32 %v772, %v2282
        %v2284 = vand.u32 %v2283, 4294901760
        %v2285 = vsub.f32 %v2283, %v2284
        %v2286 = vand.u32 %v2285, 4294901760
        %2287 = vmatmul.mubr.f32.gmra.mrb[0].mxu0 %v2286
        %v2288 = vpop.f32.mrb[0].mxu0
        %v2289 = vadd.f32 0.0, %v2288
        %v2290 = vpop.f32.mrb[0].mxu0
        %2291 = vdwg.mxu0
        %2292 = vmatprep.subr.mxu0 0.0
        %v2293 = vand.u32 %v2175, 4294901760
        %v2294 = vsub.f32 %v2175, %v2293
        %v2295 = vand.u32 %v2294, 4294901760
        %v2296 = vsub.f32 %v2294, %v2295
        %v2297 = vand.u32 %v2296, 4294901760
        %2298 = vmatpush1.msra.mxu0 %v2297
        %2299 = vmatprep.subr.mxu0 0.0
        %v2300 = vand.u32 %v2176, 4294901760
        %v2301 = vsub.f32 %v2176, %v2300
        %v2302 = vand.u32 %v2301, 4294901760
        %v2303 = vsub.f32 %v2301, %v2302
        %v2304 = vand.u32 %v2303, 4294901760
        %2305 = vmatpush1.msra.mxu0 %v2304
        %2306 = vmatprep.subr.mxu0 0.0
        %v2307 = vand.u32 %v2177, 4294901760
        %v2308 = vsub.f32 %v2177, %v2307
        %v2309 = vand.u32 %v2308, 4294901760
        %v2310 = vsub.f32 %v2308, %v2309
        %v2311 = vand.u32 %v2310, 4294901760
        %2312 = vmatpush1.msra.mxu0 %v2311
        %2313 = vmatprep.subr.mxu0 0.0
        %v2314 = vand.u32 %v2178, 4294901760
        %v2315 = vsub.f32 %v2178, %v2314
        %v2316 = vand.u32 %v2315, 4294901760
        %v2317 = vsub.f32 %v2315, %v2316
        %v2318 = vand.u32 %v2317, 4294901760
        %2319 = vmatpush1.msra.mxu0 %v2318
        %2320 = vmatprep.subr.mxu0 0.0
        %v2321 = vand.u32 %v2179, 4294901760
        %v2322 = vsub.f32 %v2179, %v2321
        %v2323 = vand.u32 %v2322, 4294901760
        %v2324 = vsub.f32 %v2322, %v2323
        %v2325 = vand.u32 %v2324, 4294901760
        %2326 = vmatpush1.msra.mxu0 %v2325
        %2327 = vmatprep.subr.mxu0 0.0
        %v2328 = vand.u32 %v2180, 4294901760
        %v2329 = vsub.f32 %v2180, %v2328
        %v2330 = vand.u32 %v2329, 4294901760
        %v2331 = vsub.f32 %v2329, %v2330
        %v2332 = vand.u32 %v2331, 4294901760
        %2333 = vmatpush1.msra.mxu0 %v2332
        %2334 = vmatprep.subr.mxu0 0.0
        %v2335 = vand.u32 %v2181, 4294901760
        %v2336 = vsub.f32 %v2181, %v2335
        %v2337 = vand.u32 %v2336, 4294901760
        %v2338 = vsub.f32 %v2336, %v2337
        %v2339 = vand.u32 %v2338, 4294901760
        %2340 = vmatpush1.msra.mxu0 %v2339
        %2341 = vmatprep.subr.mxu0 0.0
        %v2342 = vand.u32 %v2182, 4294901760
        %v2343 = vsub.f32 %v2182, %v2342
        %v2344 = vand.u32 %v2343, 4294901760
        %v2345 = vsub.f32 %v2343, %v2344
        %v2346 = vand.u32 %v2345, 4294901760
        %2347 = vmatpush1.msra.mxu0 %v2346
        %2348 = vmatprep.subr.mxu0 0.0
        %v2349 = vand.u32 %v2183, 4294901760
        %v2350 = vsub.f32 %v2183, %v2349
        %v2351 = vand.u32 %v2350, 4294901760
        %v2352 = vsub.f32 %v2350, %v2351
        %v2353 = vand.u32 %v2352, 4294901760
        %2354 = vmatpush1.msra.mxu0 %v2353
        %2355 = vmatprep.subr.mxu0 0.0
        %v2356 = vand.u32 %v2184, 4294901760
        %v2357 = vsub.f32 %v2184, %v2356
        %v2358 = vand.u32 %v2357, 4294901760
        %v2359 = vsub.f32 %v2357, %v2358
        %v2360 = vand.u32 %v2359, 4294901760
        %2361 = vmatpush1.msra.mxu0 %v2360
        %2362 = vmatprep.subr.mxu0 0.0
        %v2363 = vand.u32 %v2185, 4294901760
        %v2364 = vsub.f32 %v2185, %v2363
        %v2365 = vand.u32 %v2364, 4294901760
        %v2366 = vsub.f32 %v2364, %v2365
        %v2367 = vand.u32 %v2366, 4294901760
        %2368 = vmatpush1.msra.mxu0 %v2367
        %2369 = vmatprep.subr.mxu0 0.0
        %v2370 = vand.u32 %v2186, 4294901760
        %v2371 = vsub.f32 %v2186, %v2370
        %v2372 = vand.u32 %v2371, 4294901760
        %v2373 = vsub.f32 %v2371, %v2372
        %v2374 = vand.u32 %v2373, 4294901760
        %2375 = vmatpush1.msra.mxu0 %v2374
        %2376 = vmatprep.subr.mxu0 0.0
        %v2377 = vand.u32 %v2187, 4294901760
        %v2378 = vsub.f32 %v2187, %v2377
        %v2379 = vand.u32 %v2378, 4294901760
        %v2380 = vsub.f32 %v2378, %v2379
        %v2381 = vand.u32 %v2380, 4294901760
        %2382 = vmatpush1.msra.mxu0 %v2381
        %2383 = vmatprep.subr.mxu0 0.0
        %v2384 = vand.u32 %v2188, 4294901760
        %v2385 = vsub.f32 %v2188, %v2384
        %v2386 = vand.u32 %v2385, 4294901760
        %v2387 = vsub.f32 %v2385, %v2386
        %v2388 = vand.u32 %v2387, 4294901760
        %2389 = vmatpush1.msra.mxu0 %v2388
        %2390 = vmatprep.subr.mxu0 0.0
        %v2391 = vand.u32 %v2189, 4294901760
        %v2392 = vsub.f32 %v2189, %v2391
        %v2393 = vand.u32 %v2392, 4294901760
        %v2394 = vsub.f32 %v2392, %v2393
        %v2395 = vand.u32 %v2394, 4294901760
        %2396 = vmatpush1.msra.mxu0 %v2395
        %2397 = vmatprep.subr.mxu0 0.0
        %v2398 = vand.u32 %v2190, 4294901760
        %v2399 = vsub.f32 %v2190, %v2398
        %v2400 = vand.u32 %v2399, 4294901760
        %v2401 = vsub.f32 %v2399, %v2400
        %v2402 = vand.u32 %v2401, 4294901760
        %2403 = vmatpush1.msra.mxu0 %v2402
        %2404 = vmatprep.subr.mxu0 0.0
        %2405 = vmatpush1.msra.mxu0 0.0
        %2406 = vmatprep.subr.mxu0 0.0
        %2407 = vmatpush1.msra.mxu0 0.0
        %2408 = vmatprep.subr.mxu0 0.0
        %2409 = vmatpush1.msra.mxu0 0.0
        %2410 = vmatprep.subr.mxu0 0.0
        %2411 = vmatpush1.msra.mxu0 0.0
        %2412 = vmatprep.subr.mxu0 0.0
        %2413 = vmatpush1.msra.mxu0 0.0
        %2414 = vmatprep.subr.mxu0 0.0
        %2415 = vmatpush1.msra.mxu0 0.0
        %2416 = vmatprep.subr.mxu0 0.0
        %2417 = vmatpush1.msra.mxu0 0.0
        %2418 = vmatprep.subr.mxu0 0.0
        %2419 = vmatpush1.msra.mxu0 0.0
        %2420 = vmatprep.subr.mxu0 0.0
        %2421 = vmatpush1.msra.mxu0 0.0
        %2422 = vmatprep.subr.mxu0 0.0
        %2423 = vmatpush1.msra.mxu0 0.0
        %2424 = vmatprep.subr.mxu0 0.0
        %2425 = vmatpush1.msra.mxu0 0.0
        %2426 = vmatprep.subr.mxu0 0.0
        %2427 = vmatpush1.msra.mxu0 0.0
        %2428 = vmatprep.subr.mxu0 0.0
        %2429 = vmatpush1.msra.mxu0 0.0
        %2430 = vmatprep.subr.mxu0 0.0
        %2431 = vmatpush1.msra.mxu0 0.0
        %2432 = vmatprep.subr.mxu0 0.0
        %2433 = vmatpush1.msra.mxu0 0.0
        %2434 = vmatprep.subr.mxu0 0.0
        %2435 = vmatpush1.msra.mxu0 0.0
        %2436 = vmatprep.mubr.f32.mxu0 0.0
        %v2437 = vand.u32 %v769, 4294901760
        %2438 = vmatmul.mubr.f32.gmra.mrb[0].mxu0 %v2437
        %v2439 = vpop.f32.mrb[0].mxu0
        %v2440 = vadd.f32 %v2279, %v2439
        %v2441 = vpop.f32.mrb[0].mxu0
        %2442 = vmatprep.mubr.f32.mxu0 0.0
        %v2443 = vand.u32 %v772, 4294901760
        %2444 = vmatmul.mubr.f32.gmra.mrb[0].mxu0 %v2443
        %v2445 = vpop.f32.mrb[0].mxu0
        %v2446 = vadd.f32 %v2289, %v2445
        %v2447 = vpop.f32.mrb[0].mxu0
        %2448 = vdwg.mxu0
        %2449 = vmatprep.subr.mxu0 0.0
        %v2450 = vand.u32 %v2175, 4294901760
        %v2451 = vsub.f32 %v2175, %v2450
        %2452 = vmatpush1.msra.mxu0 %v2451
        %2453 = vmatprep.subr.mxu0 0.0
        %v2454 = vand.u32 %v2176, 4294901760
        %v2455 = vsub.f32 %v2176, %v2454
        %2456 = vmatpush1.msra.mxu0 %v2455
        %2457 = vmatprep.subr.mxu0 0.0
        %v2458 = vand.u32 %v2177, 4294901760
        %v2459 = vsub.f32 %v2177, %v2458
        %2460 = vmatpush1.msra.mxu0 %v2459
        %2461 = vmatprep.subr.mxu0 0.0
        %v2462 = vand.u32 %v2178, 4294901760
        %v2463 = vsub.f32 %v2178, %v2462
        %2464 = vmatpush1.msra.mxu0 %v2463
        %2465 = vmatprep.subr.mxu0 0.0
        %v2466 = vand.u32 %v2179, 4294901760
        %v2467 = vsub.f32 %v2179, %v2466
        %2468 = vmatpush1.msra.mxu0 %v2467
        %2469 = vmatprep.subr.mxu0 0.0
        %v2470 = vand.u32 %v2180, 4294901760
        %v2471 = vsub.f32 %v2180, %v2470
        %2472 = vmatpush1.msra.mxu0 %v2471
        %2473 = vmatprep.subr.mxu0 0.0
        %v2474 = vand.u32 %v2181, 4294901760
        %v2475 = vsub.f32 %v2181, %v2474
        %2476 = vmatpush1.msra.mxu0 %v2475
        %2477 = vmatprep.subr.mxu0 0.0
        %v2478 = vand.u32 %v2182, 4294901760
        %v2479 = vsub.f32 %v2182, %v2478
        %2480 = vmatpush1.msra.mxu0 %v2479
        %2481 = vmatprep.subr.mxu0 0.0
        %v2482 = vand.u32 %v2183, 4294901760
        %v2483 = vsub.f32 %v2183, %v2482
        %2484 = vmatpush1.msra.mxu0 %v2483
        %2485 = vmatprep.subr.mxu0 0.0
        %v2486 = vand.u32 %v2184, 4294901760
        %v2487 = vsub.f32 %v2184, %v2486
        %2488 = vmatpush1.msra.mxu0 %v2487
        %2489 = vmatprep.subr.mxu0 0.0
        %v2490 = vand.u32 %v2185, 4294901760
        %v2491 = vsub.f32 %v2185, %v2490
        %2492 = vmatpush1.msra.mxu0 %v2491
        %2493 = vmatprep.subr.mxu0 0.0
        %v2494 = vand.u32 %v2186, 4294901760
        %v2495 = vsub.f32 %v2186, %v2494
        %2496 = vmatpush1.msra.mxu0 %v2495
        %2497 = vmatprep.subr.mxu0 0.0
        %v2498 = vand.u32 %v2187, 4294901760
        %v2499 = vsub.f32 %v2187, %v2498
        %2500 = vmatpush1.msra.mxu0 %v2499
        %2501 = vmatprep.subr.mxu0 0.0
        %v2502 = vand.u32 %v2188, 4294901760
        %v2503 = vsub.f32 %v2188, %v2502
        %2504 = vmatpush1.msra.mxu0 %v2503
        %2505 = vmatprep.subr.mxu0 0.0
        %v2506 = vand.u32 %v2189, 4294901760
        %v2507 = vsub.f32 %v2189, %v2506
        %2508 = vmatpush1.msra.mxu0 %v2507
        %2509 = vmatprep.subr.mxu0 0.0
        %v2510 = vand.u32 %v2190, 4294901760
        %v2511 = vsub.f32 %v2190, %v2510
        %2512 = vmatpush1.msra.mxu0 %v2511
        %2513 = vmatprep.subr.mxu0 0.0
        %2514 = vmatpush1.msra.mxu0 0.0
        %2515 = vmatprep.subr.mxu0 0.0
        %2516 = vmatpush1.msra.mxu0 0.0
        %2517 = vmatprep.subr.mxu0 0.0
        %2518 = vmatpush1.msra.mxu0 0.0
        %2519 = vmatprep.subr.mxu0 0.0
        %2520 = vmatpush1.msra.mxu0 0.0
        %2521 = vmatprep.subr.mxu0 0.0
        %2522 = vmatpush1.msra.mxu0 0.0
        %2523 = vmatprep.subr.mxu0 0.0
        %2524 = vmatpush1.msra.mxu0 0.0
        %2525 = vmatprep.subr.mxu0 0.0
        %2526 = vmatpush1.msra.mxu0 0.0
        %2527 = vmatprep.subr.mxu0 0.0
        %2528 = vmatpush1.msra.mxu0 0.0
        %2529 = vmatprep.subr.mxu0 0.0
        %2530 = vmatpush1.msra.mxu0 0.0
        %2531 = vmatprep.subr.mxu0 0.0
        %2532 = vmatpush1.msra.mxu0 0.0
        %2533 = vmatprep.subr.mxu0 0.0
        %2534 = vmatpush1.msra.mxu0 0.0
        %2535 = vmatprep.subr.mxu0 0.0
        %2536 = vmatpush1.msra.mxu0 0.0
        %2537 = vmatprep.subr.mxu0 0.0
        %2538 = vmatpush1.msra.mxu0 0.0
        %2539 = vmatprep.subr.mxu0 0.0
        %2540 = vmatpush1.msra.mxu0 0.0
        %2541 = vmatprep.subr.mxu0 0.0
        %2542 = vmatpush1.msra.mxu0 0.0
        %2543 = vmatprep.subr.mxu0 0.0
        %2544 = vmatpush1.msra.mxu0 0.0
        %2545 = vmatprep.mubr.f32.mxu0 0.0
        %v2546 = vand.u32 %v769, 4294901760
        %v2547 = vsub.f32 %v769, %v2546
        %2548 = vmatmul.mubr.f32.gmra.mrb[0].mxu0 %v2547
        %v2549 = vpop.f32.mrb[0].mxu0
        %v2550 = vadd.f32 %v2440, %v2549
        %v2551 = vpop.f32.mrb[0].mxu0
        %2552 = vmatprep.mubr.f32.mxu0 0.0
        %v2553 = vand.u32 %v772, 4294901760
        %v2554 = vsub.f32 %v772, %v2553
        %2555 = vmatmul.mubr.f32.gmra.mrb[0].mxu0 %v2554
        %v2556 = vpop.f32.mrb[0].mxu0
        %v2557 = vadd.f32 %v2446, %v2556
        %v2558 = vpop.f32.mrb[0].mxu0
        %2559 = vdwg.mxu0
        %2560 = vmatprep.subr.mxu0 0.0
        %v2561 = vand.u32 %v2175, 4294901760
        %2562 = vmatpush1.msra.mxu0 %v2561
        %2563 = vmatprep.subr.mxu0 0.0
        %v2564 = vand.u32 %v2176, 4294901760
        %2565 = vmatpush1.msra.mxu0 %v2564
        %2566 = vmatprep.subr.mxu0 0.0
        %v2567 = vand.u32 %v2177, 4294901760
        %2568 = vmatpush1.msra.mxu0 %v2567
        %2569 = vmatprep.subr.mxu0 0.0
        %v2570 = vand.u32 %v2178, 4294901760
        %2571 = vmatpush1.msra.mxu0 %v2570
        %2572 = vmatprep.subr.mxu0 0.0
        %v2573 = vand.u32 %v2179, 4294901760
        %2574 = vmatpush1.msra.mxu0 %v2573
        %2575 = vmatprep.subr.mxu0 0.0
        %v2576 = vand.u32 %v2180, 4294901760
        %2577 = vmatpush1.msra.mxu0 %v2576
        %2578 = vmatprep.subr.mxu0 0.0
        %v2579 = vand.u32 %v2181, 4294901760
        %2580 = vmatpush1.msra.mxu0 %v2579
        %2581 = vmatprep.subr.mxu0 0.0
        %v2582 = vand.u32 %v2182, 4294901760
        %2583 = vmatpush1.msra.mxu0 %v2582
        %2584 = vmatprep.subr.mxu0 0.0
        %v2585 = vand.u32 %v2183, 4294901760
        %2586 = vmatpush1.msra.mxu0 %v2585
        %2587 = vmatprep.subr.mxu0 0.0
        %v2588 = vand.u32 %v2184, 4294901760
        %2589 = vmatpush1.msra.mxu0 %v2588
        %2590 = vmatprep.subr.mxu0 0.0
        %v2591 = vand.u32 %v2185, 4294901760
        %2592 = vmatpush1.msra.mxu0 %v2591
        %2593 = vmatprep.subr.mxu0 0.0
        %v2594 = vand.u32 %v2186, 4294901760
        %2595 = vmatpush1.msra.mxu0 %v2594
        %2596 = vmatprep.subr.mxu0 0.0
        %v2597 = vand.u32 %v2187, 4294901760
        %2598 = vmatpush1.msra.mxu0 %v2597
        %2599 = vmatprep.subr.mxu0 0.0
        %v2600 = vand.u32 %v2188, 4294901760
        %2601 = vmatpush1.msra.mxu0 %v2600
        %2602 = vmatprep.subr.mxu0 0.0
        %v2603 = vand.u32 %v2189, 4294901760
        %2604 = vmatpush1.msra.mxu0 %v2603
        %2605 = vmatprep.subr.mxu0 0.0
        %v2606 = vand.u32 %v2190, 4294901760
        %2607 = vmatpush1.msra.mxu0 %v2606
        %2608 = vmatprep.subr.mxu0 0.0
        %2609 = vmatpush1.msra.mxu0 0.0
        %2610 = vmatprep.subr.mxu0 0.0
        %2611 = vmatpush1.msra.mxu0 0.0
        %2612 = vmatprep.subr.mxu0 0.0
        %2613 = vmatpush1.msra.mxu0 0.0
        %2614 = vmatprep.subr.mxu0 0.0
        %2615 = vmatpush1.msra.mxu0 0.0
        %2616 = vmatprep.subr.mxu0 0.0
        %2617 = vmatpush1.msra.mxu0 0.0
        %2618 = vmatprep.subr.mxu0 0.0
        %2619 = vmatpush1.msra.mxu0 0.0
        %2620 = vmatprep.subr.mxu0 0.0
        %2621 = vmatpush1.msra.mxu0 0.0
        %2622 = vmatprep.subr.mxu0 0.0
        %2623 = vmatpush1.msra.mxu0 0.0
        %2624 = vmatprep.subr.mxu0 0.0
        %2625 = vmatpush1.msra.mxu0 0.0
        %2626 = vmatprep.subr.mxu0 0.0
        %2627 = vmatpush1.msra.mxu0 0.0
        %2628 = vmatprep.subr.mxu0 0.0
        %2629 = vmatpush1.msra.mxu0 0.0
        %2630 = vmatprep.subr.mxu0 0.0
        %2631 = vmatpush1.msra.mxu0 0.0
        %2632 = vmatprep.subr.mxu0 0.0
        %2633 = vmatpush1.msra.mxu0 0.0
        %2634 = vmatprep.subr.mxu0 0.0
        %2635 = vmatpush1.msra.mxu0 0.0
        %2636 = vmatprep.subr.mxu0 0.0
        %2637 = vmatpush1.msra.mxu0 0.0
        %2638 = vmatprep.subr.mxu0 0.0
        %2639 = vmatpush1.msra.mxu0 0.0
        %2640 = vmatprep.mubr.f32.mxu0 0.0
        %v2641 = vand.u32 %v769, 4294901760
        %v2642 = vsub.f32 %v769, %v2641
        %v2643 = vand.u32 %v2642, 4294901760
        %2644 = vmatmul.mubr.f32.gmra.mrb[0].mxu0 %v2643
        %v2645 = vpop.f32.mrb[0].mxu0
        %v2646 = vadd.f32 %v2550, %v2645
        %v2647 = vpop.f32.mrb[0].mxu0
        %2648 = vmatprep.mubr.f32.mxu0 0.0
        %v2649 = vand.u32 %v772, 4294901760
        %v2650 = vsub.f32 %v772, %v2649
        %v2651 = vand.u32 %v2650, 4294901760
        %2652 = vmatmul.mubr.f32.gmra.mrb[0].mxu0 %v2651
        %v2653 = vpop.f32.mrb[0].mxu0
        %v2654 = vadd.f32 %v2557, %v2653
        %v2655 = vpop.f32.mrb[0].mxu0
        %2656 = vdwg.mxu0
        %2657 = vmatprep.subr.mxu0 0.0
        %v2658 = vand.u32 %v2175, 4294901760
        %v2659 = vsub.f32 %v2175, %v2658
        %v2660 = vand.u32 %v2659, 4294901760
        %2661 = vmatpush1.msra.mxu0 %v2660
        %2662 = vmatprep.subr.mxu0 0.0
        %v2663 = vand.u32 %v2176, 4294901760
        %v2664 = vsub.f32 %v2176, %v2663
        %v2665 = vand.u32 %v2664, 4294901760
        %2666 = vmatpush1.msra.mxu0 %v2665
        %2667 = vmatprep.subr.mxu0 0.0
        %v2668 = vand.u32 %v2177, 4294901760
        %v2669 = vsub.f32 %v2177, %v2668
        %v2670 = vand.u32 %v2669, 4294901760
        %2671 = vmatpush1.msra.mxu0 %v2670
        %2672 = vmatprep.subr.mxu0 0.0
        %v2673 = vand.u32 %v2178, 4294901760
        %v2674 = vsub.f32 %v2178, %v2673
        %v2675 = vand.u32 %v2674, 4294901760
        %2676 = vmatpush1.msra.mxu0 %v2675
        %2677 = vmatprep.subr.mxu0 0.0
        %v2678 = vand.u32 %v2179, 4294901760
        %v2679 = vsub.f32 %v2179, %v2678
        %v2680 = vand.u32 %v2679, 4294901760
        %2681 = vmatpush1.msra.mxu0 %v2680
        %2682 = vmatprep.subr.mxu0 0.0
        %v2683 = vand.u32 %v2180, 4294901760
        %v2684 = vsub.f32 %v2180, %v2683
        %v2685 = vand.u32 %v2684, 4294901760
        %2686 = vmatpush1.msra.mxu0 %v2685
        %2687 = vmatprep.subr.mxu0 0.0
        %v2688 = vand.u32 %v2181, 4294901760
        %v2689 = vsub.f32 %v2181, %v2688
        %v2690 = vand.u32 %v2689, 4294901760
        %2691 = vmatpush1.msra.mxu0 %v2690
        %2692 = vmatprep.subr.mxu0 0.0
        %v2693 = vand.u32 %v2182, 4294901760
        %v2694 = vsub.f32 %v2182, %v2693
        %v2695 = vand.u32 %v2694, 4294901760
        %2696 = vmatpush1.msra.mxu0 %v2695
        %2697 = vmatprep.subr.mxu0 0.0
        %v2698 = vand.u32 %v2183, 4294901760
        %v2699 = vsub.f32 %v2183, %v2698
        %v2700 = vand.u32 %v2699, 4294901760
        %2701 = vmatpush1.msra.mxu0 %v2700
        %2702 = vmatprep.subr.mxu0 0.0
        %v2703 = vand.u32 %v2184, 4294901760
        %v2704 = vsub.f32 %v2184, %v2703
        %v2705 = vand.u32 %v2704, 4294901760
        %2706 = vmatpush1.msra.mxu0 %v2705
        %2707 = vmatprep.subr.mxu0 0.0
        %v2708 = vand.u32 %v2185, 4294901760
        %v2709 = vsub.f32 %v2185, %v2708
        %v2710 = vand.u32 %v2709, 4294901760
        %2711 = vmatpush1.msra.mxu0 %v2710
        %2712 = vmatprep.subr.mxu0 0.0
        %v2713 = vand.u32 %v2186, 4294901760
        %v2714 = vsub.f32 %v2186, %v2713
        %v2715 = vand.u32 %v2714, 4294901760
        %2716 = vmatpush1.msra.mxu0 %v2715
        %2717 = vmatprep.subr.mxu0 0.0
        %v2718 = vand.u32 %v2187, 4294901760
        %v2719 = vsub.f32 %v2187, %v2718
        %v2720 = vand.u32 %v2719, 4294901760
        %2721 = vmatpush1.msra.mxu0 %v2720
        %2722 = vmatprep.subr.mxu0 0.0
        %v2723 = vand.u32 %v2188, 4294901760
        %v2724 = vsub.f32 %v2188, %v2723
        %v2725 = vand.u32 %v2724, 4294901760
        %2726 = vmatpush1.msra.mxu0 %v2725
        %2727 = vmatprep.subr.mxu0 0.0
        %v2728 = vand.u32 %v2189, 4294901760
        %v2729 = vsub.f32 %v2189, %v2728
        %v2730 = vand.u32 %v2729, 4294901760
        %2731 = vmatpush1.msra.mxu0 %v2730
        %2732 = vmatprep.subr.mxu0 0.0
        %v2733 = vand.u32 %v2190, 4294901760
        %v2734 = vsub.f32 %v2190, %v2733
        %v2735 = vand.u32 %v2734, 4294901760
        %2736 = vmatpush1.msra.mxu0 %v2735
        %2737 = vmatprep.subr.mxu0 0.0
        %2738 = vmatpush1.msra.mxu0 0.0
        %2739 = vmatprep.subr.mxu0 0.0
        %2740 = vmatpush1.msra.mxu0 0.0
        %2741 = vmatprep.subr.mxu0 0.0
        %2742 = vmatpush1.msra.mxu0 0.0
        %2743 = vmatprep.subr.mxu0 0.0
        %2744 = vmatpush1.msra.mxu0 0.0
        %2745 = vmatprep.subr.mxu0 0.0
        %2746 = vmatpush1.msra.mxu0 0.0
        %2747 = vmatprep.subr.mxu0 0.0
        %2748 = vmatpush1.msra.mxu0 0.0
        %2749 = vmatprep.subr.mxu0 0.0
        %2750 = vmatpush1.msra.mxu0 0.0
        %2751 = vmatprep.subr.mxu0 0.0
        %2752 = vmatpush1.msra.mxu0 0.0
        %2753 = vmatprep.subr.mxu0 0.0
        %2754 = vmatpush1.msra.mxu0 0.0
        %2755 = vmatprep.subr.mxu0 0.0
        %2756 = vmatpush1.msra.mxu0 0.0
        %2757 = vmatprep.subr.mxu0 0.0
        %2758 = vmatpush1.msra.mxu0 0.0
        %2759 = vmatprep.subr.mxu0 0.0
        %2760 = vmatpush1.msra.mxu0 0.0
        %2761 = vmatprep.subr.mxu0 0.0
        %2762 = vmatpush1.msra.mxu0 0.0
        %2763 = vmatprep.subr.mxu0 0.0
        %2764 = vmatpush1.msra.mxu0 0.0
        %2765 = vmatprep.subr.mxu0 0.0
        %2766 = vmatpush1.msra.mxu0 0.0
        %2767 = vmatprep.subr.mxu0 0.0
        %2768 = vmatpush1.msra.mxu0 0.0
        %2769 = vmatprep.mubr.f32.mxu0 0.0
        %v2770 = vand.u32 %v769, 4294901760
        %2771 = vmatmul.mubr.f32.gmra.mrb[0].mxu0 %v2770
        %v2772 = vpop.f32.mrb[0].mxu0
        %v2773 = vadd.f32 %v2646, %v2772
        %v2774 = vpop.f32.mrb[0].mxu0
        %2775 = vmatprep.mubr.f32.mxu0 0.0
        %v2776 = vand.u32 %v772, 4294901760
        %2777 = vmatmul.mubr.f32.gmra.mrb[0].mxu0 %v2776
        %v2778 = vpop.f32.mrb[0].mxu0
        %v2779 = vadd.f32 %v2654, %v2778
        %v2780 = vpop.f32.mrb[0].mxu0
        %2781 = vdwg.mxu0
        %2782 = vmatprep.subr.mxu0 0.0
        %v2783 = vand.u32 %v2175, 4294901760
        %2784 = vmatpush1.msra.mxu0 %v2783
        %2785 = vmatprep.subr.mxu0 0.0
        %v2786 = vand.u32 %v2176, 4294901760
        %2787 = vmatpush1.msra.mxu0 %v2786
        %2788 = vmatprep.subr.mxu0 0.0
        %v2789 = vand.u32 %v2177, 4294901760
        %2790 = vmatpush1.msra.mxu0 %v2789
        %2791 = vmatprep.subr.mxu0 0.0
        %v2792 = vand.u32 %v2178, 4294901760
        %2793 = vmatpush1.msra.mxu0 %v2792
        %2794 = vmatprep.subr.mxu0 0.0
        %v2795 = vand.u32 %v2179, 4294901760
        %2796 = vmatpush1.msra.mxu0 %v2795
        %2797 = vmatprep.subr.mxu0 0.0
        %v2798 = vand.u32 %v2180, 4294901760
        %2799 = vmatpush1.msra.mxu0 %v2798
        %2800 = vmatprep.subr.mxu0 0.0
        %v2801 = vand.u32 %v2181, 4294901760
        %2802 = vmatpush1.msra.mxu0 %v2801
        %2803 = vmatprep.subr.mxu0 0.0
        %v2804 = vand.u32 %v2182, 4294901760
        %2805 = vmatpush1.msra.mxu0 %v2804
        %2806 = vmatprep.subr.mxu0 0.0
        %v2807 = vand.u32 %v2183, 4294901760
        %2808 = vmatpush1.msra.mxu0 %v2807
        %2809 = vmatprep.subr.mxu0 0.0
        %v2810 = vand.u32 %v2184, 4294901760
        %2811 = vmatpush1.msra.mxu0 %v2810
        %2812 = vmatprep.subr.mxu0 0.0
        %v2813 = vand.u32 %v2185, 4294901760
        %2814 = vmatpush1.msra.mxu0 %v2813
        %2815 = vmatprep.subr.mxu0 0.0
        %v2816 = vand.u32 %v2186, 4294901760
        %2817 = vmatpush1.msra.mxu0 %v2816
        %2818 = vmatprep.subr.mxu0 0.0
        %v2819 = vand.u32 %v2187, 4294901760
        %2820 = vmatpush1.msra.mxu0 %v2819
        %2821 = vmatprep.subr.mxu0 0.0
        %v2822 = vand.u32 %v2188, 4294901760
        %2823 = vmatpush1.msra.mxu0 %v2822
        %2824 = vmatprep.subr.mxu0 0.0
        %v2825 = vand.u32 %v2189, 4294901760
        %2826 = vmatpush1.msra.mxu0 %v2825
        %2827 = vmatprep.subr.mxu0 0.0
        %v2828 = vand.u32 %v2190, 4294901760
        %2829 = vmatpush1.msra.mxu0 %v2828
        %2830 = vmatprep.subr.mxu0 0.0
        %2831 = vmatpush1.msra.mxu0 0.0
        %2832 = vmatprep.subr.mxu0 0.0
        %2833 = vmatpush1.msra.mxu0 0.0
        %2834 = vmatprep.subr.mxu0 0.0
        %2835 = vmatpush1.msra.mxu0 0.0
        %2836 = vmatprep.subr.mxu0 0.0
        %2837 = vmatpush1.msra.mxu0 0.0
        %2838 = vmatprep.subr.mxu0 0.0
        %2839 = vmatpush1.msra.mxu0 0.0
        %2840 = vmatprep.subr.mxu0 0.0
        %2841 = vmatpush1.msra.mxu0 0.0
        %2842 = vmatprep.subr.mxu0 0.0
        %2843 = vmatpush1.msra.mxu0 0.0
        %2844 = vmatprep.subr.mxu0 0.0
        %2845 = vmatpush1.msra.mxu0 0.0
        %2846 = vmatprep.subr.mxu0 0.0
        %2847 = vmatpush1.msra.mxu0 0.0
        %2848 = vmatprep.subr.mxu0 0.0
        %2849 = vmatpush1.msra.mxu0 0.0
        %2850 = vmatprep.subr.mxu0 0.0
        %2851 = vmatpush1.msra.mxu0 0.0
        %2852 = vmatprep.subr.mxu0 0.0
        %2853 = vmatpush1.msra.mxu0 0.0
        %2854 = vmatprep.subr.mxu0 0.0
        %2855 = vmatpush1.msra.mxu0 0.0
        %2856 = vmatprep.subr.mxu0 0.0
        %2857 = vmatpush1.msra.mxu0 0.0
        %2858 = vmatprep.subr.mxu0 0.0
        %2859 = vmatpush1.msra.mxu0 0.0
        %2860 = vmatprep.subr.mxu0 0.0
        %2861 = vmatpush1.msra.mxu0 0.0
        %2862 = vmatprep.mubr.f32.mxu0 0.0
        %v2863 = vand.u32 %v769, 4294901760
        %2864 = vmatmul.mubr.f32.gmra.mrb[0].mxu0 %v2863
        %v2865 = vpop.f32.mrb[0].mxu0
        %v2866 = vadd.f32 %v2773, %v2865
        %v2867 = vpop.f32.mrb[0].mxu0
        %2868 = vmatprep.mubr.f32.mxu0 0.0
        %v2869 = vand.u32 %v772, 4294901760
        %2870 = vmatmul.mubr.f32.gmra.mrb[0].mxu0 %v2869
        %v2871 = vpop.f32.mrb[0].mxu0
        %v2872 = vadd.f32 %v2779, %v2871
        %v2873 = vpop.f32.mrb[0].mxu0
        %2874 = vdwg.mxu0
        %v2875 = vadd.f32 %v2165, %v2866
        %v2876 = vadd.f32 %v2171, %v2872
        %v2877 = vadd.f32 %v2875, %v2876
        %v2878 = vrot.slane %v2877, 4
        %v2879 = vadd.f32 %v2877, %v2878
        %v2880 = vrot.slane %v2879, 2
        %v2881 = vadd.f32 %v2879, %v2880
        %v2882 = vrot.slane %v2881, 1
        %v2883 = vadd.f32 %v2881, %v2882
        %v2884 = vmul.f32 %v2875, %v2875
        %v2885 = vmul.f32 %v2876, %v2876
        %v2886 = vadd.f32 %v2884, %v2885
        %v2887 = vrot.slane %v2886, 4
        %v2888 = vadd.f32 %v2886, %v2887
        %v2889 = vrot.slane %v2888, 2
        %v2890 = vadd.f32 %v2888, %v2889
        %v2891 = vrot.slane %v2890, 1
        %v2892 = vadd.f32 %v2890, %v2891
        %v2893 = vsel %vm759, %v2883, %v2892
        %vm2894 = vcmask 1041408
        %v2895 = vsel %vm2894, %v2893, 0.0
        %2896 = vst [vmem:[%s246] sm:$0xff] %v2895
        %p2897 = scmp.lt.s32.totalorder %s20, 1
        %s2898 = scalar_select %p2897, %s20, 1
        %p2899 = scmp.lt.s32.totalorder %s21, 0
        %s2900 = scalar_select %p2899, %s21, 0
        %s2901 = sadd.s32 %s2900, %s2898
        %s2902 = smul.addr %s2901, 8
        %s2903 = scalar_lea.vmem %s4, %s2902
        // Predicated region
        $region41: #{_lambda_.2} parent=35 // pred_check
          %p2904 = pneg %p139
        $region42: #{_lambda_.2} parent=35 // pred_check_branch
          %2906 = sbr.rel (%p2904) target = $region44
        $region43: #{_lambda_.2} parent=35 // pred_region
          _
        $region44: #{_lambda_.2} parent=35 // pred_fallthru
          _
      $region36: #{_lambda_.2} parent=5 // pred_fallthru
        _
      %p2907 = scmp.le.s32.totalorder 2, %s11
      // Predicated region
      $region45: #{_lambda_.2} parent=5 // pred_check
        %p2908 = pneg %p2907
      $region46: #{_lambda_.2} parent=5 // pred_check_branch
        %2910 = sbr.rel (%p2908) target = $region48
      $region47: #{_lambda_.2} parent=5 // pred_region
        %s2911 = ssub.s32 %s11, 2
        // Predicated region
        $region49: #{_lambda_.2} parent=47 // pred_check
          %p2912 = pneg %p145
        $region50: #{_lambda_.2} parent=47 // pred_check_branch
          %2914 = sbr.rel (%p2912) target = $region52
        $region51: #{_lambda_.2} parent=47 // pred_region
          %p2915 = scmp.lt.s32.totalorder %s22, 1
          %s2916 = scalar_select %p2915, %s22, 1
          %p2917 = scmp.lt.s32.totalorder %s23, 0
          %s2918 = scalar_select %p2917, %s23, 0
          %s2919 = sadd.s32 %s2918, %s2916
          %s2920 = smul.addr %s2919, 8
          %s2921 = scalar_lea.vmem %s4, %s2920
        $region52: #{_lambda_.2} parent=47 // pred_fallthru
          _
      $region48: #{_lambda_.2} parent=5 // pred_fallthru
        _
    $region6: #{_lambda_.2} parent=1 // loop_footer
      %s15 = sadd.s32 1, %s11
    $region7: #{_lambda_.2} parent=1 // loop_footer_branch
      %10 = sbr.rel target = $region3
    $region8: #{_lambda_.2} parent=1 // loop_exit
      _
    %2922 = vsyncpa [#allocation3], 1
    %s2923 = scalar_lea.sflag [#allocation3], 1
    %2924 = vsyncpa %s2923, 1

// kernel: _lambda_.3
$region0: #{_lambda_.3}
  #allocation0 [shape = 'u32[]', space=smem, size = 0x4, offset = 0x4, fixed_abs, tag = 'smem constant byte address 0x4 - core index']
  #allocation1 [shape = 'u32[144,128]{1,0:T(1,128)}', space=vmem, size = 0x12000, scoped, tag = 'internal scratch']
  %s0 = inlined_call_operand.vmem [shape: f32[2,16,4], index: 0, kind: input, shape index: {}]
  %s1 = inlined_call_operand.vmem [shape: f32[4,128], index: 1, kind: input, shape index: {}]
  %s2 = inlined_call_operand.vmem [shape: f32[1,128], index: 2, kind: input, shape index: {}]
  %s3 = inlined_call_operand.vmem [shape: f32[3,128,128], index: 3, kind: input, shape index: {}]
  %s4 = inlined_call_operand.vmem [shape: f32[1,128], index: 4, kind: input, shape index: {}]
  %s5 = inlined_call_operand.vmem [shape: f32[1,128], index: 5, kind: input, shape index: {}]
  %s6 = inlined_call_operand.hbm [shape: f32[3,128,128], index: 6, kind: input, shape index: {}]
  %s7 = inlined_call_operand.vmem [shape: f32[1,128], index: 7, kind: input, shape index: {}]
  %s8 = inlined_call_operand.vmem [shape: f32[2,16,128], index: 8, kind: output, shape index: {}]
  %s9 = sld [smem:[#allocation0]]
  $region69: #{_lambda_.3} parent=0
    _
  %s11 = ssub.s32 1, %s9
  %s12 = scalar_select 0, %s11, %s9
  $region1: #{_lambda_.3} parent=0
    #allocation2 [shape = 'u8[196608]{0}', space=vmem, size = 0x30000, scoped, tag = 'input window, operand 6, single buffered']
    #allocation3 [shape = 's32[2]{0}', space=sflag, size = 0x8, scoped, tag = 'scoped memory for _lambda_.3']
    %13 = vsyncpa [#allocation3], 0
    loop: start=0, step=1, limit=4
    $region2: #{_lambda_.3} parent=1 // loop_pre_header
      _
    $region3: #{_lambda_.3} parent=1 // loop_header
      %s15 = sphi 0, %s19
      %p16 = scmp.ge.s32.totalorder %s15, 4
      %s22 = sphi 0, %s34
      %s23 = sphi 0, %s30
      %s24 = sphi 0, %s22
      %s25 = sphi 0, %s23
      %s26 = sphi 0, %s24
      %s27 = sphi 0, %s25
      %s39 = sphi 0, %s41
      %s42 = sphi 0, %s39
      %s43 = sphi 0, %s42
      %s59 = sphi 0, %s43
      %s63 = sphi 0, %s63
      %s65 = sphi 0, %s63
      %s66 = sphi 0, %s65
      %s80 = sphi 0, %s66
      %s84 = sphi 0, %s84
      %s86 = sphi 0, %s84
      %s87 = sphi 0, %s86
      %s101 = sphi 0, %s87
      %s105 = sphi 0, %s105
      %s107 = sphi 0, %s105
      %s108 = sphi 0, %s107
      %s122 = sphi 0, %s108
      %s126 = sphi 0, %s126
      %s128 = sphi 0, %s126
      %s129 = sphi 0, %s128
      %s143 = sphi 0, %s129
      %s147 = sphi 0, %s147
      %s149 = sphi 0, %s147
      %s150 = sphi 0, %s149
      %s164 = sphi 0, %s150
      %s168 = sphi 0, %s168
      %s170 = sphi 0, %s168
      %s171 = sphi 0, %s170
      %s185 = sphi 0, %s171
      %s189 = sphi 0, %s189
      %s191 = sphi 0, %s189
      %s192 = sphi 0, %s191
      %s206 = sphi 0, %s192
      %s214 = sphi 0, %s216
      %s217 = sphi 0, %s214
      %s218 = sphi 0, %s217
      %s234 = sphi 0, %s218
    $region4: #{_lambda_.3} parent=1 // loop_header_branch
      %18 = sbr.rel (%p16) target = $region8
    $region5: #{_lambda_.3} parent=1 // loop_body
      %s20 = ssub.s32 %s15, 1
      %s21 = ssub.s32 %s15, 2
      %s28 = sadd.s32 1, %s23
      %p29 = scmp.ge.s32.totalorder %s28, 1
      %s30 = scalar_select %p29, 0, %s28
      %s31 = sadd.s32 1, %s22
      %s32 = scalar_select %p29, %s31, %s22
      %p33 = scmp.ge.s32.totalorder %s32, 2
      %s34 = scalar_select %p33, 0, %s32
      %s35 = ssub.s32 %s22, %s34
      %s36 = ssub.s32 %s23, %s30
      %s37 = sor.u32 %s35, %s36
      %p38 = scmp.eq.s32.totalorder %s37, 0
      %s40 = sadd.s32 %s39, 1
      %s41 = scalar_select %p38, %s39, %s40
      %p44 = pneg %p38
      %p45 = scmp.eq.s32.totalorder %s15, 1
      %p46 = por %p44, %p45
      %p47 = scmp.ne.s32.totalorder %s39, %s42
      %p48 = scmp.eq.s32.totalorder %s15, 0
      %p49 = por %p47, %p48
      %p50 = scmp.ne.s32.totalorder %s39, %s42
      %p51 = scmp.eq.s32.totalorder %s20, 1
      %p52 = por %p50, %p51
      %p53 = scmp.ne.s32.totalorder %s42, %s43
      %p54 = scmp.eq.s32.totalorder %s20, 0
      %p55 = por %p53, %p54
      %p56 = scmp.ne.s32.totalorder %s42, %s43
      %p57 = scmp.eq.s32.totalorder %s21, 1
      %p58 = por %p56, %p57
      %p60 = scmp.ne.s32.totalorder %s43, %s59
      %p61 = scmp.eq.s32.totalorder %s21, 0
      %p62 = por %p60, %p61
      %s64 = sadd.s32 %s63, 1
      %p67 = scmp.eq.s32.totalorder %s15, 1
      %p68 = scmp.ne.s32.totalorder %s63, %s65
      %p69 = scmp.eq.s32.totalorder %s15, 0
      %p70 = por %p68, %p69
      %p71 = scmp.ne.s32.totalorder %s63, %s65
      %p72 = scmp.eq.s32.totalorder %s20, 1
      %p73 = por %p71, %p72
      %p74 = scmp.ne.s32.totalorder %s65, %s66
      %p75 = scmp.eq.s32.totalorder %s20, 0
      %p76 = por %p74, %p75
      %p77 = scmp.ne.s32.totalorder %s65, %s66
      %p78 = scmp.eq.s32.totalorder %s21, 1
      %p79 = por %p77, %p78
      %p81 = scmp.ne.s32.totalorder %s66, %s80
      %p82 = scmp.eq.s32.totalorder %s21, 0
      %p83 = por %p81, %p82
      %s85 = sadd.s32 %s84, 1
      %p88 = scmp.eq.s32.totalorder %s15, 1
      %p89 = scmp.ne.s32.totalorder %s84, %s86
      %p90 = scmp.eq.s32.totalorder %s15, 0
      %p91 = por %p89, %p90
      %p92 = scmp.ne.s32.totalorder %s84, %s86
      %p93 = scmp.eq.s32.totalorder %s20, 1
      %p94 = por %p92, %p93
      %p95 = scmp.ne.s32.totalorder %s86, %s87
      %p96 = scmp.eq.s32.totalorder %s20, 0
      %p97 = por %p95, %p96
      %p98 = scmp.ne.s32.totalorder %s86, %s87
      %p99 = scmp.eq.s32.totalorder %s21, 1
      %p100 = por %p98, %p99
      %p102 = scmp.ne.s32.totalorder %s87, %s101
      %p103 = scmp.eq.s32.totalorder %s21, 0
      %p104 = por %p102, %p103
      %s106 = sadd.s32 %s105, 1
      %p109 = scmp.eq.s32.totalorder %s15, 1
      %p110 = scmp.ne.s32.totalorder %s105, %s107
      %p111 = scmp.eq.s32.totalorder %s15, 0
      %p112 = por %p110, %p111
      %p113 = scmp.ne.s32.totalorder %s105, %s107
      %p114 = scmp.eq.s32.totalorder %s20, 1
      %p115 = por %p113, %p114
      %p116 = scmp.ne.s32.totalorder %s107, %s108
      %p117 = scmp.eq.s32.totalorder %s20, 0
      %p118 = por %p116, %p117
      %p119 = scmp.ne.s32.totalorder %s107, %s108
      %p120 = scmp.eq.s32.totalorder %s21, 1
      %p121 = por %p119, %p120
      %p123 = scmp.ne.s32.totalorder %s108, %s122
      %p124 = scmp.eq.s32.totalorder %s21, 0
      %p125 = por %p123, %p124
      %s127 = sadd.s32 %s126, 1
      %p130 = scmp.eq.s32.totalorder %s15, 1
      %p131 = scmp.ne.s32.totalorder %s126, %s128
      %p132 = scmp.eq.s32.totalorder %s15, 0
      %p133 = por %p131, %p132
      %p134 = scmp.ne.s32.totalorder %s126, %s128
      %p135 = scmp.eq.s32.totalorder %s20, 1
      %p136 = por %p134, %p135
      %p137 = scmp.ne.s32.totalorder %s128, %s129
      %p138 = scmp.eq.s32.totalorder %s20, 0
      %p139 = por %p137, %p138
      %p140 = scmp.ne.s32.totalorder %s128, %s129
      %p141 = scmp.eq.s32.totalorder %s21, 1
      %p142 = por %p140, %p141
      %p144 = scmp.ne.s32.totalorder %s129, %s143
      %p145 = scmp.eq.s32.totalorder %s21, 0
      %p146 = por %p144, %p145
      %s148 = sadd.s32 %s147, 1
      %p151 = scmp.eq.s32.totalorder %s15, 1
      %p152 = scmp.ne.s32.totalorder %s147, %s149
      %p153 = scmp.eq.s32.totalorder %s15, 0
      %p154 = por %p152, %p153
      %p155 = scmp.ne.s32.totalorder %s147, %s149
      %p156 = scmp.eq.s32.totalorder %s20, 1
      %p157 = por %p155, %p156
      %p158 = scmp.ne.s32.totalorder %s149, %s150
      %p159 = scmp.eq.s32.totalorder %s20, 0
      %p160 = por %p158, %p159
      %p161 = scmp.ne.s32.totalorder %s149, %s150
      %p162 = scmp.eq.s32.totalorder %s21, 1
      %p163 = por %p161, %p162
      %p165 = scmp.ne.s32.totalorder %s150, %s164
      %p166 = scmp.eq.s32.totalorder %s21, 0
      %p167 = por %p165, %p166
      %s169 = sadd.s32 %s168, 1
      %p172 = scmp.eq.s32.totalorder %s15, 1
      %p173 = scmp.ne.s32.totalorder %s168, %s170
      %p174 = scmp.eq.s32.totalorder %s15, 0
      %p175 = por %p173, %p174
      %p176 = scmp.ne.s32.totalorder %s168, %s170
      %p177 = scmp.eq.s32.totalorder %s20, 1
      %p178 = por %p176, %p177
      %p179 = scmp.ne.s32.totalorder %s170, %s171
      %p180 = scmp.eq.s32.totalorder %s20, 0
      %p181 = por %p179, %p180
      %p182 = scmp.ne.s32.totalorder %s170, %s171
      %p183 = scmp.eq.s32.totalorder %s21, 1
      %p184 = por %p182, %p183
      %p186 = scmp.ne.s32.totalorder %s171, %s185
      %p187 = scmp.eq.s32.totalorder %s21, 0
      %p188 = por %p186, %p187
      %s190 = sadd.s32 %s189, 1
      %p193 = scmp.eq.s32.totalorder %s15, 1
      %p194 = scmp.ne.s32.totalorder %s189, %s191
      %p195 = scmp.eq.s32.totalorder %s15, 0
      %p196 = por %p194, %p195
      %p197 = scmp.ne.s32.totalorder %s189, %s191
      %p198 = scmp.eq.s32.totalorder %s20, 1
      %p199 = por %p197, %p198
      %p200 = scmp.ne.s32.totalorder %s191, %s192
      %p201 = scmp.eq.s32.totalorder %s20, 0
      %p202 = por %p200, %p201
      %p203 = scmp.ne.s32.totalorder %s191, %s192
      %p204 = scmp.eq.s32.totalorder %s21, 1
      %p205 = por %p203, %p204
      %p207 = scmp.ne.s32.totalorder %s192, %s206
      %p208 = scmp.eq.s32.totalorder %s21, 0
      %p209 = por %p207, %p208
      %s210 = ssub.s32 %s22, %s34
      %s211 = ssub.s32 %s23, %s30
      %s212 = sor.u32 %s210, %s211
      %p213 = scmp.eq.s32.totalorder %s212, 0
      %s215 = sadd.s32 %s214, 1
      %s216 = scalar_select %p213, %s214, %s215
      %p219 = pneg %p213
      %p220 = scmp.eq.s32.totalorder %s15, 1
      %p221 = por %p219, %p220
      %p222 = scmp.ne.s32.totalorder %s214, %s217
      %p223 = scmp.eq.s32.totalorder %s15, 0
      %p224 = por %p222, %p223
      %p225 = scmp.ne.s32.totalorder %s214, %s217
      %p226 = scmp.eq.s32.totalorder %s20, 1
      %p227 = por %p225, %p226
      %p228 = scmp.ne.s32.totalorder %s217, %s218
      %p229 = scmp.eq.s32.totalorder %s20, 0
      %p230 = por %p228, %p229
      %p231 = scmp.ne.s32.totalorder %s217, %s218
      %p232 = scmp.eq.s32.totalorder %s21, 1
      %p233 = por %p231, %p232
      %p235 = scmp.ne.s32.totalorder %s218, %s234
      %p236 = scmp.eq.s32.totalorder %s21, 0
      %p237 = por %p235, %p236
      %p238 = scmp.le.s32.totalorder 1, %s15
      %p239 = scmp.lt.s32.totalorder %s15, 3
      %p240 = pnand %p238, %p239
      %p241 = pneg %p240
      // Predicated region
      $region9: #{_lambda_.3} parent=5 // pred_check
        _
      $region10: #{_lambda_.3} parent=5 // pred_check_branch
        %243 = sbr.rel (%p240) target = $region12
      $region11: #{_lambda_.3} parent=5 // pred_region
        %s244 = ssub.s32 %s15, 1
        // Predicated region
        $region13: #{_lambda_.3} parent=11 // pred_check
          %p245 = pneg %p76
        $region14: #{_lambda_.3} parent=11 // pred_check_branch
          %247 = sbr.rel (%p245) target = $region16
        $region15: #{_lambda_.3} parent=11 // pred_region
          _
        $region16: #{_lambda_.3} parent=11 // pred_fallthru
          _
        // Predicated region
        $region17: #{_lambda_.3} parent=11 // pred_check
          %p248 = pneg %p97
        $region18: #{_lambda_.3} parent=11 // pred_check_branch
          %250 = sbr.rel (%p248) target = $region20
        $region19: #{_lambda_.3} parent=11 // pred_region
          _
        $region20: #{_lambda_.3} parent=11 // pred_fallthru
          _
        // Predicated region
        $region21: #{_lambda_.3} parent=11 // pred_check
          %p251 = pneg %p118
        $region22: #{_lambda_.3} parent=11 // pred_check_branch
          %253 = sbr.rel (%p251) target = $region24
        $region23: #{_lambda_.3} parent=11 // pred_region
          _
        $region24: #{_lambda_.3} parent=11 // pred_fallthru
          _
        // Predicated region
        $region25: #{_lambda_.3} parent=11 // pred_check
          %p254 = pneg %p139
        $region26: #{_lambda_.3} parent=11 // pred_check_branch
          %256 = sbr.rel (%p254) target = $region28
        $region27: #{_lambda_.3} parent=11 // pred_region
          _
        $region28: #{_lambda_.3} parent=11 // pred_fallthru
          _
        // Predicated region
        $region29: #{_lambda_.3} parent=11 // pred_check
          %p257 = pneg %p160
        $region30: #{_lambda_.3} parent=11 // pred_check_branch
          %259 = sbr.rel (%p257) target = $region32
        $region31: #{_lambda_.3} parent=11 // pred_region
          _
        $region32: #{_lambda_.3} parent=11 // pred_fallthru
          _
        // Predicated region
        $region33: #{_lambda_.3} parent=11 // pred_check
          %p260 = pneg %p181
        $region34: #{_lambda_.3} parent=11 // pred_check_branch
          %262 = sbr.rel (%p260) target = $region36
        $region35: #{_lambda_.3} parent=11 // pred_region
          %s264 = ssub.s32 6144, 6144
          %265 = vsyncadd [#allocation3], %s264
          %s266 = sshll.u32 [#allocation2], 4
          %s267 = int_to_ptr.vmem [resolvable:$true] %s266
          %272 = dma.hbm_to_vmem [thread:$0]  %s6, 6144, %s267, [#allocation3], 128, 128, 8
        $region36: #{_lambda_.3} parent=11 // pred_fallthru
          _
        // Predicated region
        $region37: #{_lambda_.3} parent=11 // pred_check
          %p273 = pneg %p202
        $region38: #{_lambda_.3} parent=11 // pred_check_branch
          %275 = sbr.rel (%p273) target = $region40
        $region39: #{_lambda_.3} parent=11 // pred_region
          _
        $region40: #{_lambda_.3} parent=11 // pred_fallthru
          _
      $region12: #{_lambda_.3} parent=5 // pred_fallthru
        _
      %p276 = scmp.lt.s32.totalorder %s15, 2
      // Predicated region
      $region41: #{_lambda_.3} parent=5 // pred_check
        %p277 = pneg %p276
      $region42: #{_lambda_.3} parent=5 // pred_check_branch
        %279 = sbr.rel (%p277) target = $region44
      $region43: #{_lambda_.3} parent=5 // pred_region
        // Predicated region
        $region45: #{_lambda_.3} parent=43 // pred_check
          %p280 = pneg %p49
        $region46: #{_lambda_.3} parent=43 // pred_check_branch
          %282 = sbr.rel (%p280) target = $region48
        $region47: #{_lambda_.3} parent=43 // pred_region
          %s283 = smul.u32 2, %s23
          %p284 = scmp.lt.s32.totalorder %s22, 1
          %s285 = scalar_select %p284, %s22, 1
          %p286 = scmp.lt.s32.totalorder %s283, 1
          %s287 = scalar_select %p286, %s283, 1
          %s288 = smul.addr %s285, 2
          %s289 = sadd.s32 %s287, %s288
          %s290 = smul.addr %s289, 8
          %s291 = scalar_lea.vmem %s0, %s290
          %s292 = smul.u32 2, %s23
        $region48: #{_lambda_.3} parent=43 // pred_fallthru
          _
      $region44: #{_lambda_.3} parent=5 // pred_fallthru
        _
      %p293 = scmp.le.s32.totalorder 1, %s15
      %p294 = scmp.lt.s32.totalorder %s15, 3
      %p295 = pnand %p293, %p294
      %p296 = pneg %p295
      // Predicated region
      $region49: #{_lambda_.3} parent=5 // pred_check
        _
      $region50: #{_lambda_.3} parent=5 // pred_check_branch
        %298 = sbr.rel (%p295) target = $region52
      $region51: #{_lambda_.3} parent=5 // pred_region
        %s299 = ssub.s32 %s15, 1
        // Predicated region
        $region53: #{_lambda_.3} parent=51 // pred_check
          %p300 = pneg %p181
        $region54: #{_lambda_.3} parent=51 // pred_check_branch
          %302 = sbr.rel (%p300) target = $region56
        $region55: #{_lambda_.3} parent=51 // pred_region
          %303 = dma.done [#allocation3], 6144
        $region56: #{_lambda_.3} parent=51 // pred_fallthru
          _
        %s304 = smul.u32 2, %s25
        %p305 = scmp.lt.s32.totalorder %s24, 1
        %s306 = scalar_select %p305, %s24, 1
        %p307 = scmp.lt.s32.totalorder %s304, 1
        %s308 = scalar_select %p307, %s304, 1
        %s309 = smul.addr %s306, 2
        %s310 = sadd.s32 %s308, %s309
        %s311 = smul.addr %s310, 8
        %s312 = scalar_lea.vmem %s0, %s311
        %p313 = pneg %p55
        %p314 = pneg %p52
        %p315 = pneg %p76
        %p316 = pneg %p73
        %p317 = pneg %p97
        %p318 = pneg %p94
        %p319 = pneg %p118
        %p320 = pneg %p115
        %p321 = pneg %p139
        %p322 = pneg %p136
        %p323 = pneg %p160
        %p324 = pneg %p157
        %p325 = pneg %p181
        %p326 = pneg %p178
        %p327 = pneg %p202
        %p328 = pneg %p199
        %p329 = pneg %p230
        %p330 = pneg %p227
        %s331 = smul.u32 2, %s25
        %p332 = scmp.lt.s32.totalorder %s24, 1
        %s333 = scalar_select %p332, %s24, 1
        %p334 = scmp.lt.s32.totalorder %s331, 1
        %s335 = scalar_select %p334, %s331, 1
        %s336 = smul.addr %s333, 2
        %s337 = sadd.s32 %s335, %s336
        %s338 = smul.addr %s337, 8
        %s339 = scalar_lea.vmem %s8, %s338
        %s340 = smul.u32 2, %s25
        %p341 = scmp.lt.s32.totalorder %s24, 1
        %s342 = scalar_select %p341, %s24, 1
        %p343 = scmp.lt.s32.totalorder %s340, 1
        %s344 = scalar_select %p343, %s340, 1
        %s345 = smul.addr %s342, 2
        %s346 = sadd.s32 %s344, %s345
        %s347 = smul.addr %s346, 8
        %s348 = scalar_lea.vmem %s0, %s347
        %s349 = smul.u32 2, %s25
        %s350 = smul.u32 2, %s25
        %p351 = scmp.lt.s32.totalorder %s24, 1
        %s352 = scalar_select %p351, %s24, 1
        %p353 = scmp.lt.s32.totalorder %s350, 1
        %s354 = scalar_select %p353, %s350, 1
        %s355 = smul.addr %s352, 2
        %s356 = sadd.s32 %s354, %s355
        %s357 = smul.addr %s356, 8
        %s358 = scalar_lea.vmem %s8, %s357
        %s359 = smul.u32 2, %s25
        %v360 = vld [vmem:[%s1] sm:$0xf]
        %v361 = vld [vmem:[%s2] sm:$0x1]
        %v362 = vld [vmem:[%s348] sm:$0xff]
        %v363 = vld [vmem:[%s348 + $0x8] sm:$0xff]
        %v365 = vlaneseq
        %v366 = vshrl.u32 %v365, 7
        %v367 = vsub.s32 0, %v366
        %v368 = vrot.slane %v361, %v367
        %vm370 = vcmask 31744
        %v372 = vsel %vm370, %v362, 0
        %v375 = vsel %vm370, %v363, 0
        %vm377 = vcmask 1043456
        %v379 = vsel %vm377, %v360, 0
        %381 = vmatprep.subr.mxu0 0.0
        %v382 = vand.u32 %v379, 4294901760
        %383 = vmatpush1.msra.mxu0 %v382
        %384 = vmatprep.subr.mxu0 0.0
        %385 = vmatpush1.msra.mxu0 0.0
        %386 = vmatprep.subr.mxu0 0.0
        %387 = vmatpush1.msra.mxu0 0.0
        %388 = vmatprep.subr.mxu0 0.0
        %389 = vmatpush1.msra.mxu0 0.0
        %390 = vmatprep.subr.mxu0 0.0
        %391 = vmatpush1.msra.mxu0 0.0
        %392 = vmatprep.subr.mxu0 0.0
        %393 = vmatpush1.msra.mxu0 0.0
        %394 = vmatprep.subr.mxu0 0.0
        %395 = vmatpush1.msra.mxu0 0.0
        %396 = vmatprep.subr.mxu0 0.0
        %397 = vmatpush1.msra.mxu0 0.0
        %398 = vmatprep.subr.mxu0 0.0
        %399 = vmatpush1.msra.mxu0 0.0
        %400 = vmatprep.subr.mxu0 0.0
        %401 = vmatpush1.msra.mxu0 0.0
        %402 = vmatprep.subr.mxu0 0.0
        %403 = vmatpush1.msra.mxu0 0.0
        %404 = vmatprep.subr.mxu0 0.0
        %405 = vmatpush1.msra.mxu0 0.0
        %406 = vmatprep.subr.mxu0 0.0
        %407 = vmatpush1.msra.mxu0 0.0
        %408 = vmatprep.subr.mxu0 0.0
        %409 = vmatpush1.msra.mxu0 0.0
        %410 = vmatprep.subr.mxu0 0.0
        %411 = vmatpush1.msra.mxu0 0.0
        %412 = vmatprep.subr.mxu0 0.0
        %413 = vmatpush1.msra.mxu0 0.0
        %414 = vmatprep.subr.mxu0 0.0
        %415 = vmatpush1.msra.mxu0 0.0
        %416 = vmatprep.subr.mxu0 0.0
        %417 = vmatpush1.msra.mxu0 0.0
        %418 = vmatprep.subr.mxu0 0.0
        %419 = vmatpush1.msra.mxu0 0.0
        %420 = vmatprep.subr.mxu0 0.0
        %421 = vmatpush1.msra.mxu0 0.0
        %422 = vmatprep.subr.mxu0 0.0
        %423 = vmatpush1.msra.mxu0 0.0
        %424 = vmatprep.subr.mxu0 0.0
        %425 = vmatpush1.msra.mxu0 0.0
        %426 = vmatprep.subr.mxu0 0.0
        %427 = vmatpush1.msra.mxu0 0.0
        %428 = vmatprep.subr.mxu0 0.0
        %429 = vmatpush1.msra.mxu0 0.0
        %430 = vmatprep.subr.mxu0 0.0
        %431 = vmatpush1.msra.mxu0 0.0
        %432 = vmatprep.subr.mxu0 0.0
        %433 = vmatpush1.msra.mxu0 0.0
        %434 = vmatprep.subr.mxu0 0.0
        %435 = vmatpush1.msra.mxu0 0.0
        %436 = vmatprep.subr.mxu0 0.0
        %437 = vmatpush1.msra.mxu0 0.0
        %438 = vmatprep.subr.mxu0 0.0
        %439 = vmatpush1.msra.mxu0 0.0
        %440 = vmatprep.subr.mxu0 0.0
        %441 = vmatpush1.msra.mxu0 0.0
        %442 = vmatprep.subr.mxu0 0.0
        %443 = vmatpush1.msra.mxu0 0.0
        %444 = vmatprep.subr.mxu0 0.0
        %445 = vmatpush1.msra.mxu0 0.0
        %446 = vmatprep.mubr.f32.mxu0 0.0
        %v447 = vand.u32 %v372, 4294901760
        %v448 = vsub.f32 %v372, %v447
        %v449 = vand.u32 %v448, 4294901760
        %v450 = vsub.f32 %v448, %v449
        %v451 = vand.u32 %v450, 4294901760
        %452 = vmatmul.mubr.f32.gmra.mrb[0].mxu0 %v451
        %v453 = vpop.f32.mrb[0].mxu0
        %v454 = vadd.f32 %v368, %v453
        %v455 = vpop.f32.mrb[0].mxu0
        %456 = vmatprep.mubr.f32.mxu0 0.0
        %v457 = vand.u32 %v375, 4294901760
        %v458 = vsub.f32 %v375, %v457
        %v459 = vand.u32 %v458, 4294901760
        %v460 = vsub.f32 %v458, %v459
        %v461 = vand.u32 %v460, 4294901760
        %462 = vmatmul.mubr.f32.gmra.mrb[0].mxu0 %v461
        %v463 = vpop.f32.mrb[0].mxu0
        %v464 = vadd.f32 %v368, %v463
        %v465 = vpop.f32.mrb[0].mxu0
        %466 = vdwg.mxu0
        %467 = vmatprep.subr.mxu0 0.0
        %v468 = vand.u32 %v379, 4294901760
        %v469 = vsub.f32 %v379, %v468
        %v470 = vand.u32 %v469, 4294901760
        %v471 = vsub.f32 %v469, %v470
        %v472 = vand.u32 %v471, 4294901760
        %473 = vmatpush1.msra.mxu0 %v472
        %474 = vmatprep.subr.mxu0 0.0
        %475 = vmatpush1.msra.mxu0 0.0
        %476 = vmatprep.subr.mxu0 0.0
        %477 = vmatpush1.msra.mxu0 0.0
        %478 = vmatprep.subr.mxu0 0.0
        %479 = vmatpush1.msra.mxu0 0.0
        %480 = vmatprep.subr.mxu0 0.0
        %481 = vmatpush1.msra.mxu0 0.0
        %482 = vmatprep.subr.mxu0 0.0
        %483 = vmatpush1.msra.mxu0 0.0
        %484 = vmatprep.subr.mxu0 0.0
        %485 = vmatpush1.msra.mxu0 0.0
        %486 = vmatprep.subr.mxu0 0.0
        %487 = vmatpush1.msra.mxu0 0.0
        %488 = vmatprep.subr.mxu0 0.0
        %489 = vmatpush1.msra.mxu0 0.0
        %490 = vmatprep.subr.mxu0 0.0
        %491 = vmatpush1.msra.mxu0 0.0
        %492 = vmatprep.subr.mxu0 0.0
        %493 = vmatpush1.msra.mxu0 0.0
        %494 = vmatprep.subr.mxu0 0.0
        %495 = vmatpush1.msra.mxu0 0.0
        %496 = vmatprep.subr.mxu0 0.0
        %497 = vmatpush1.msra.mxu0 0.0
        %498 = vmatprep.subr.mxu0 0.0
        %499 = vmatpush1.msra.mxu0 0.0
        %500 = vmatprep.subr.mxu0 0.0
        %501 = vmatpush1.msra.mxu0 0.0
        %502 = vmatprep.subr.mxu0 0.0
        %503 = vmatpush1.msra.mxu0 0.0
        %504 = vmatprep.subr.mxu0 0.0
        %505 = vmatpush1.msra.mxu0 0.0
        %506 = vmatprep.subr.mxu0 0.0
        %507 = vmatpush1.msra.mxu0 0.0
        %508 = vmatprep.subr.mxu0 0.0
        %509 = vmatpush1.msra.mxu0 0.0
        %510 = vmatprep.subr.mxu0 0.0
        %511 = vmatpush1.msra.mxu0 0.0
        %512 = vmatprep.subr.mxu0 0.0
        %513 = vmatpush1.msra.mxu0 0.0
        %514 = vmatprep.subr.mxu0 0.0
        %515 = vmatpush1.msra.mxu0 0.0
        %516 = vmatprep.subr.mxu0 0.0
        %517 = vmatpush1.msra.mxu0 0.0
        %518 = vmatprep.subr.mxu0 0.0
        %519 = vmatpush1.msra.mxu0 0.0
        %520 = vmatprep.subr.mxu0 0.0
        %521 = vmatpush1.msra.mxu0 0.0
        %522 = vmatprep.subr.mxu0 0.0
        %523 = vmatpush1.msra.mxu0 0.0
        %524 = vmatprep.subr.mxu0 0.0
        %525 = vmatpush1.msra.mxu0 0.0
        %526 = vmatprep.subr.mxu0 0.0
        %527 = vmatpush1.msra.mxu0 0.0
        %528 = vmatprep.subr.mxu0 0.0
        %529 = vmatpush1.msra.mxu0 0.0
        %530 = vmatprep.subr.mxu0 0.0
        %531 = vmatpush1.msra.mxu0 0.0
        %532 = vmatprep.subr.mxu0 0.0
        %533 = vmatpush1.msra.mxu0 0.0
        %534 = vmatprep.subr.mxu0 0.0
        %535 = vmatpush1.msra.mxu0 0.0
        %536 = vmatprep.mubr.f32.mxu0 0.0
        %v537 = vand.u32 %v372, 4294901760
        %538 = vmatmul.mubr.f32.gmra.mrb[0].mxu0 %v537
        %v539 = vpop.f32.mrb[0].mxu0
        %v540 = vadd.f32 %v454, %v539
        %v541 = vpop.f32.mrb[0].mxu0
        %542 = vmatprep.mubr.f32.mxu0 0.0
        %v543 = vand.u32 %v375, 4294901760
        %544 = vmatmul.mubr.f32.gmra.mrb[0].mxu0 %v543
        %v545 = vpop.f32.mrb[0].mxu0
        %v546 = vadd.f32 %v464, %v545
        %v547 = vpop.f32.mrb[0].mxu0
        %548 = vdwg.mxu0
        %549 = vmatprep.subr.mxu0 0.0
        %v550 = vand.u32 %v379, 4294901760
        %v551 = vsub.f32 %v379, %v550
        %552 = vmatpush1.msra.mxu0 %v551
        %553 = vmatprep.subr.mxu0 0.0
        %554 = vmatpush1.msra.mxu0 0.0
        %555 = vmatprep.subr.mxu0 0.0
        %556 = vmatpush1.msra.mxu0 0.0
        %557 = vmatprep.subr.mxu0 0.0
        %558 = vmatpush1.msra.mxu0 0.0
        %559 = vmatprep.subr.mxu0 0.0
        %560 = vmatpush1.msra.mxu0 0.0
        %561 = vmatprep.subr.mxu0 0.0
        %562 = vmatpush1.msra.mxu0 0.0
        %563 = vmatprep.subr.mxu0 0.0
        %564 = vmatpush1.msra.mxu0 0.0
        %565 = vmatprep.subr.mxu0 0.0
        %566 = vmatpush1.msra.mxu0 0.0
        %567 = vmatprep.subr.mxu0 0.0
        %568 = vmatpush1.msra.mxu0 0.0
        %569 = vmatprep.subr.mxu0 0.0
        %570 = vmatpush1.msra.mxu0 0.0
        %571 = vmatprep.subr.mxu0 0.0
        %572 = vmatpush1.msra.mxu0 0.0
        %573 = vmatprep.subr.mxu0 0.0
        %574 = vmatpush1.msra.mxu0 0.0
        %575 = vmatprep.subr.mxu0 0.0
        %576 = vmatpush1.msra.mxu0 0.0
        %577 = vmatprep.subr.mxu0 0.0
        %578 = vmatpush1.msra.mxu0 0.0
        %579 = vmatprep.subr.mxu0 0.0
        %580 = vmatpush1.msra.mxu0 0.0
        %581 = vmatprep.subr.mxu0 0.0
        %582 = vmatpush1.msra.mxu0 0.0
        %583 = vmatprep.subr.mxu0 0.0
        %584 = vmatpush1.msra.mxu0 0.0
        %585 = vmatprep.subr.mxu0 0.0
        %586 = vmatpush1.msra.mxu0 0.0
        %587 = vmatprep.subr.mxu0 0.0
        %588 = vmatpush1.msra.mxu0 0.0
        %589 = vmatprep.subr.mxu0 0.0
        %590 = vmatpush1.msra.mxu0 0.0
        %591 = vmatprep.subr.mxu0 0.0
        %592 = vmatpush1.msra.mxu0 0.0
        %593 = vmatprep.subr.mxu0 0.0
        %594 = vmatpush1.msra.mxu0 0.0
        %595 = vmatprep.subr.mxu0 0.0
        %596 = vmatpush1.msra.mxu0 0.0
        %597 = vmatprep.subr.mxu0 0.0
        %598 = vmatpush1.msra.mxu0 0.0
        %599 = vmatprep.subr.mxu0 0.0
        %600 = vmatpush1.msra.mxu0 0.0
        %601 = vmatprep.subr.mxu0 0.0
        %602 = vmatpush1.msra.mxu0 0.0
        %603 = vmatprep.subr.mxu0 0.0
        %604 = vmatpush1.msra.mxu0 0.0
        %605 = vmatprep.subr.mxu0 0.0
        %606 = vmatpush1.msra.mxu0 0.0
        %607 = vmatprep.subr.mxu0 0.0
        %608 = vmatpush1.msra.mxu0 0.0
        %609 = vmatprep.subr.mxu0 0.0
        %610 = vmatpush1.msra.mxu0 0.0
        %611 = vmatprep.subr.mxu0 0.0
        %612 = vmatpush1.msra.mxu0 0.0
        %613 = vmatprep.subr.mxu0 0.0
        %614 = vmatpush1.msra.mxu0 0.0
        %615 = vmatprep.mubr.f32.mxu0 0.0
        %v616 = vand.u32 %v372, 4294901760
        %v617 = vsub.f32 %v372, %v616
        %618 = vmatmul.mubr.f32.gmra.mrb[0].mxu0 %v617
        %v619 = vpop.f32.mrb[0].mxu0
        %v620 = vadd.f32 %v540, %v619
        %v621 = vpop.f32.mrb[0].mxu0
        %622 = vmatprep.mubr.f32.mxu0 0.0
        %v623 = vand.u32 %v375, 4294901760
        %v624 = vsub.f32 %v375, %v623
        %625 = vmatmul.mubr.f32.gmra.mrb[0].mxu0 %v624
        %v626 = vpop.f32.mrb[0].mxu0
        %v627 = vadd.f32 %v546, %v626
        %v628 = vpop.f32.mrb[0].mxu0
        %629 = vdwg.mxu0
        %630 = vmatprep.subr.mxu0 0.0
        %v631 = vand.u32 %v379, 4294901760
        %632 = vmatpush1.msra.mxu0 %v631
        %633 = vmatprep.subr.mxu0 0.0
        %634 = vmatpush1.msra.mxu0 0.0
        %635 = vmatprep.subr.mxu0 0.0
        %636 = vmatpush1.msra.mxu0 0.0
        %637 = vmatprep.subr.mxu0 0.0
        %638 = vmatpush1.msra.mxu0 0.0
        %639 = vmatprep.subr.mxu0 0.0
        %640 = vmatpush1.msra.mxu0 0.0
        %641 = vmatprep.subr.mxu0 0.0
        %642 = vmatpush1.msra.mxu0 0.0
        %643 = vmatprep.subr.mxu0 0.0
        %644 = vmatpush1.msra.mxu0 0.0
        %645 = vmatprep.subr.mxu0 0.0
        %646 = vmatpush1.msra.mxu0 0.0
        %647 = vmatprep.subr.mxu0 0.0
        %648 = vmatpush1.msra.mxu0 0.0
        %649 = vmatprep.subr.mxu0 0.0
        %650 = vmatpush1.msra.mxu0 0.0
        %651 = vmatprep.subr.mxu0 0.0
        %652 = vmatpush1.msra.mxu0 0.0
        %653 = vmatprep.subr.mxu0 0.0
        %654 = vmatpush1.msra.mxu0 0.0
        %655 = vmatprep.subr.mxu0 0.0
        %656 = vmatpush1.msra.mxu0 0.0
        %657 = vmatprep.subr.mxu0 0.0
        %658 = vmatpush1.msra.mxu0 0.0
        %659 = vmatprep.subr.mxu0 0.0
        %660 = vmatpush1.msra.mxu0 0.0
        %661 = vmatprep.subr.mxu0 0.0
        %662 = vmatpush1.msra.mxu0 0.0
        %663 = vmatprep.subr.mxu0 0.0
        %664 = vmatpush1.msra.mxu0 0.0
        %665 = vmatprep.subr.mxu0 0.0
        %666 = vmatpush1.msra.mxu0 0.0
        %667 = vmatprep.subr.mxu0 0.0
        %668 = vmatpush1.msra.mxu0 0.0
        %669 = vmatprep.subr.mxu0 0.0
        %670 = vmatpush1.msra.mxu0 0.0
        %671 = vmatprep.subr.mxu0 0.0
        %672 = vmatpush1.msra.mxu0 0.0
        %673 = vmatprep.subr.mxu0 0.0
        %674 = vmatpush1.msra.mxu0 0.0
        %675 = vmatprep.subr.mxu0 0.0
        %676 = vmatpush1.msra.mxu0 0.0
        %677 = vmatprep.subr.mxu0 0.0
        %678 = vmatpush1.msra.mxu0 0.0
        %679 = vmatprep.subr.mxu0 0.0
        %680 = vmatpush1.msra.mxu0 0.0
        %681 = vmatprep.subr.mxu0 0.0
        %682 = vmatpush1.msra.mxu0 0.0
        %683 = vmatprep.subr.mxu0 0.0
        %684 = vmatpush1.msra.mxu0 0.0
        %685 = vmatprep.subr.mxu0 0.0
        %686 = vmatpush1.msra.mxu0 0.0
        %687 = vmatprep.subr.mxu0 0.0
        %688 = vmatpush1.msra.mxu0 0.0
        %689 = vmatprep.subr.mxu0 0.0
        %690 = vmatpush1.msra.mxu0 0.0
        %691 = vmatprep.subr.mxu0 0.0
        %692 = vmatpush1.msra.mxu0 0.0
        %693 = vmatprep.subr.mxu0 0.0
        %694 = vmatpush1.msra.mxu0 0.0
        %695 = vmatprep.mubr.f32.mxu0 0.0
        %v696 = vand.u32 %v372, 4294901760
        %v697 = vsub.f32 %v372, %v696
        %v698 = vand.u32 %v697, 4294901760
        %699 = vmatmul.mubr.f32.gmra.mrb[0].mxu0 %v698
        %v700 = vpop.f32.mrb[0].mxu0
        %v701 = vadd.f32 %v620, %v700
        %v702 = vpop.f32.mrb[0].mxu0
        %703 = vmatprep.mubr.f32.mxu0 0.0
        %v704 = vand.u32 %v375, 4294901760
        %v705 = vsub.f32 %v375, %v704
        %v706 = vand.u32 %v705, 4294901760
        %707 = vmatmul.mubr.f32.gmra.mrb[0].mxu0 %v706
        %v708 = vpop.f32.mrb[0].mxu0
        %v709 = vadd.f32 %v627, %v708
        %v710 = vpop.f32.mrb[0].mxu0
        %711 = vdwg.mxu0
        %712 = vmatprep.subr.mxu0 0.0
        %v713 = vand.u32 %v379, 4294901760
        %v714 = vsub.f32 %v379, %v713
        %v715 = vand.u32 %v714, 4294901760
        %716 = vmatpush1.msra.mxu0 %v715
        %717 = vmatprep.subr.mxu0 0.0
        %718 = vmatpush1.msra.mxu0 0.0
        %719 = vmatprep.subr.mxu0 0.0
        %720 = vmatpush1.msra.mxu0 0.0
        %721 = vmatprep.subr.mxu0 0.0
        %722 = vmatpush1.msra.mxu0 0.0
        %723 = vmatprep.subr.mxu0 0.0
        %724 = vmatpush1.msra.mxu0 0.0
        %725 = vmatprep.subr.mxu0 0.0
        %726 = vmatpush1.msra.mxu0 0.0
        %727 = vmatprep.subr.mxu0 0.0
        %728 = vmatpush1.msra.mxu0 0.0
        %729 = vmatprep.subr.mxu0 0.0
        %730 = vmatpush1.msra.mxu0 0.0
        %731 = vmatprep.subr.mxu0 0.0
        %732 = vmatpush1.msra.mxu0 0.0
        %733 = vmatprep.subr.mxu0 0.0
        %734 = vmatpush1.msra.mxu0 0.0
        %735 = vmatprep.subr.mxu0 0.0
        %736 = vmatpush1.msra.mxu0 0.0
        %737 = vmatprep.subr.mxu0 0.0
        %738 = vmatpush1.msra.mxu0 0.0
        %739 = vmatprep.subr.mxu0 0.0
        %740 = vmatpush1.msra.mxu0 0.0
        %741 = vmatprep.subr.mxu0 0.0
        %742 = vmatpush1.msra.mxu0 0.0
        %743 = vmatprep.subr.mxu0 0.0
        %744 = vmatpush1.msra.mxu0 0.0
        %745 = vmatprep.subr.mxu0 0.0
        %746 = vmatpush1.msra.mxu0 0.0
        %747 = vmatprep.subr.mxu0 0.0
        %748 = vmatpush1.msra.mxu0 0.0
        %749 = vmatprep.subr.mxu0 0.0
        %750 = vmatpush1.msra.mxu0 0.0
        %751 = vmatprep.subr.mxu0 0.0
        %752 = vmatpush1.msra.mxu0 0.0
        %753 = vmatprep.subr.mxu0 0.0
        %754 = vmatpush1.msra.mxu0 0.0
        %755 = vmatprep.subr.mxu0 0.0
        %756 = vmatpush1.msra.mxu0 0.0
        %757 = vmatprep.subr.mxu0 0.0
        %758 = vmatpush1.msra.mxu0 0.0
        %759 = vmatprep.subr.mxu0 0.0
        %760 = vmatpush1.msra.mxu0 0.0
        %761 = vmatprep.subr.mxu0 0.0
        %762 = vmatpush1.msra.mxu0 0.0
        %763 = vmatprep.subr.mxu0 0.0
        %764 = vmatpush1.msra.mxu0 0.0
        %765 = vmatprep.subr.mxu0 0.0
        %766 = vmatpush1.msra.mxu0 0.0
        %767 = vmatprep.subr.mxu0 0.0
        %768 = vmatpush1.msra.mxu0 0.0
        %769 = vmatprep.subr.mxu0 0.0
        %770 = vmatpush1.msra.mxu0 0.0
        %771 = vmatprep.subr.mxu0 0.0
        %772 = vmatpush1.msra.mxu0 0.0
        %773 = vmatprep.subr.mxu0 0.0
        %774 = vmatpush1.msra.mxu0 0.0
        %775 = vmatprep.subr.mxu0 0.0
        %776 = vmatpush1.msra.mxu0 0.0
        %777 = vmatprep.subr.mxu0 0.0
        %778 = vmatpush1.msra.mxu0 0.0
        %779 = vmatprep.mubr.f32.mxu0 0.0
        %v780 = vand.u32 %v372, 4294901760
        %781 = vmatmul.mubr.f32.gmra.mrb[0].mxu0 %v780
        %v782 = vpop.f32.mrb[0].mxu0
        %v783 = vadd.f32 %v701, %v782
        %v784 = vpop.f32.mrb[0].mxu0
        %785 = vmatprep.mubr.f32.mxu0 0.0
        %v786 = vand.u32 %v375, 4294901760
        %787 = vmatmul.mubr.f32.gmra.mrb[0].mxu0 %v786
        %v788 = vpop.f32.mrb[0].mxu0
        %v789 = vadd.f32 %v709, %v788
        %v790 = vpop.f32.mrb[0].mxu0
        %791 = vdwg.mxu0
        %792 = vmatprep.subr.mxu0 0.0
        %v793 = vand.u32 %v379, 4294901760
        %794 = vmatpush1.msra.mxu0 %v793
        %795 = vmatprep.subr.mxu0 0.0
        %796 = vmatpush1.msra.mxu0 0.0
        %797 = vmatprep.subr.mxu0 0.0
        %798 = vmatpush1.msra.mxu0 0.0
        %799 = vmatprep.subr.mxu0 0.0
        %800 = vmatpush1.msra.mxu0 0.0
        %801 = vmatprep.subr.mxu0 0.0
        %802 = vmatpush1.msra.mxu0 0.0
        %803 = vmatprep.subr.mxu0 0.0
        %804 = vmatpush1.msra.mxu0 0.0
        %805 = vmatprep.subr.mxu0 0.0
        %806 = vmatpush1.msra.mxu0 0.0
        %807 = vmatprep.subr.mxu0 0.0
        %808 = vmatpush1.msra.mxu0 0.0
        %809 = vmatprep.subr.mxu0 0.0
        %810 = vmatpush1.msra.mxu0 0.0
        %811 = vmatprep.subr.mxu0 0.0
        %812 = vmatpush1.msra.mxu0 0.0
        %813 = vmatprep.subr.mxu0 0.0
        %814 = vmatpush1.msra.mxu0 0.0
        %815 = vmatprep.subr.mxu0 0.0
        %816 = vmatpush1.msra.mxu0 0.0
        %817 = vmatprep.subr.mxu0 0.0
        %818 = vmatpush1.msra.mxu0 0.0
        %819 = vmatprep.subr.mxu0 0.0
        %820 = vmatpush1.msra.mxu0 0.0
        %821 = vmatprep.subr.mxu0 0.0
        %822 = vmatpush1.msra.mxu0 0.0
        %823 = vmatprep.subr.mxu0 0.0
        %824 = vmatpush1.msra.mxu0 0.0
        %825 = vmatprep.subr.mxu0 0.0
        %826 = vmatpush1.msra.mxu0 0.0
        %827 = vmatprep.subr.mxu0 0.0
        %828 = vmatpush1.msra.mxu0 0.0
        %829 = vmatprep.subr.mxu0 0.0
        %830 = vmatpush1.msra.mxu0 0.0
        %831 = vmatprep.subr.mxu0 0.0
        %832 = vmatpush1.msra.mxu0 0.0
        %833 = vmatprep.subr.mxu0 0.0
        %834 = vmatpush1.msra.mxu0 0.0
        %835 = vmatprep.subr.mxu0 0.0
        %836 = vmatpush1.msra.mxu0 0.0
        %837 = vmatprep.subr.mxu0 0.0
        %838 = vmatpush1.msra.mxu0 0.0
        %839 = vmatprep.subr.mxu0 0.0
        %840 = vmatpush1.msra.mxu0 0.0
        %841 = vmatprep.subr.mxu0 0.0
        %842 = vmatpush1.msra.mxu0 0.0
        %843 = vmatprep.subr.mxu0 0.0
        %844 = vmatpush1.msra.mxu0 0.0
        %845 = vmatprep.subr.mxu0 0.0
        %846 = vmatpush1.msra.mxu0 0.0
        %847 = vmatprep.subr.mxu0 0.0
        %848 = vmatpush1.msra.mxu0 0.0
        %849 = vmatprep.subr.mxu0 0.0
        %850 = vmatpush1.msra.mxu0 0.0
        %851 = vmatprep.subr.mxu0 0.0
        %852 = vmatpush1.msra.mxu0 0.0
        %853 = vmatprep.subr.mxu0 0.0
        %854 = vmatpush1.msra.mxu0 0.0
        %855 = vmatprep.subr.mxu0 0.0
        %856 = vmatpush1.msra.mxu0 0.0
        %857 = vmatprep.mubr.f32.mxu0 0.0
        %v858 = vand.u32 %v372, 4294901760
        %859 = vmatmul.mubr.f32.gmra.mrb[0].mxu0 %v858
        %v860 = vpop.f32.mrb[0].mxu0
        %v861 = vadd.f32 %v783, %v860
        %v862 = vpop.f32.mrb[0].mxu0
        %863 = vmatprep.mubr.f32.mxu0 0.0
        %v864 = vand.u32 %v375, 4294901760
        %865 = vmatmul.mubr.f32.gmra.mrb[0].mxu0 %v864
        %v866 = vpop.f32.mrb[0].mxu0
        %v867 = vadd.f32 %v789, %v866
        %v868 = vpop.f32.mrb[0].mxu0
        %869 = vdwg.mxu0
        %vm872 = vcmask 1040384
        %v873 = vrot.slane %v861, 7
        %v874 = vrot.slane %v867, 7
        %v875 = vsel %vm872, %v873, %v874
        %v878 = vsel %vm872, 0.0, %v873
        %vm879 = vcmask 1046528
        %v880 = vrot.slane %v861, 1
        %v881 = vrot.slane %v867, 1
        %v882 = vsel %vm879, %v880, %v881
        %v885 = vsel %vm879, %v881, 0.0
        %v886 = vld [vmem:[%s3] sm:$0xff]
        %v887 = vld [vmem:[%s3 + $0x8] sm:$0xff]
        %v888 = vld [vmem:[%s3 + $0x10] sm:$0xff]
        %v889 = vld [vmem:[%s3 + $0x18] sm:$0xff]
        %v890 = vld [vmem:[%s3 + $0x20] sm:$0xff]
        %v891 = vld [vmem:[%s3 + $0x28] sm:$0xff]
        %v892 = vld [vmem:[%s3 + $0x30] sm:$0xff]
        %v893 = vld [vmem:[%s3 + $0x38] sm:$0xff]
        %v894 = vld [vmem:[%s3 + $0x40] sm:$0xff]
        %v895 = vld [vmem:[%s3 + $0x48] sm:$0xff]
        %v896 = vld [vmem:[%s3 + $0x50] sm:$0xff]
        %v897 = vld [vmem:[%s3 + $0x58] sm:$0xff]
        %v898 = vld [vmem:[%s3 + $0x60] sm:$0xff]
        %v899 = vld [vmem:[%s3 + $0x68] sm:$0xff]
        %v900 = vld [vmem:[%s3 + $0x70] sm:$0xff]
        %v901 = vld [vmem:[%s3 + $0x78] sm:$0xff]
        %s902 = scalar_lea.vmem %s3, 128
        %v903 = vld [vmem:[%s902] sm:$0xff]
        %v904 = vld [vmem:[%s902 + $0x8] sm:$0xff]
        %v905 = vld [vmem:[%s902 + $0x10] sm:$0xff]
        %v906 = vld [vmem:[%s902 + $0x18] sm:$0xff]
        %v907 = vld [vmem:[%s902 + $0x20] sm:$0xff]
        %v908 = vld [vmem:[%s902 + $0x28] sm:$0xff]
        %v909 = vld [vmem:[%s902 + $0x30] sm:$0xff]
        %v910 = vld [vmem:[%s902 + $0x38] sm:$0xff]
        %v911 = vld [vmem:[%s902 + $0x40] sm:$0xff]
        %v912 = vld [vmem:[%s902 + $0x48] sm:$0xff]
        %v913 = vld [vmem:[%s902 + $0x50] sm:$0xff]
        %v914 = vld [vmem:[%s902 + $0x58] sm:$0xff]
        %v915 = vld [vmem:[%s902 + $0x60] sm:$0xff]
        %v916 = vld [vmem:[%s902 + $0x68] sm:$0xff]
        %v917 = vld [vmem:[%s902 + $0x70] sm:$0xff]
        %v918 = vld [vmem:[%s902 + $0x78] sm:$0xff]
        %919 = vmatprep.subr.mxu0 0.0
        %v920 = vand.u32 %v903, 4294901760
        %921 = vmatpush1.msra.mxu0 %v920
        %922 = vmatprep.subr.mxu0 0.0
        %v923 = vand.u32 %v904, 4294901760
        %924 = vmatpush1.msra.mxu0 %v923
        %925 = vmatprep.subr.mxu0 0.0
        %v926 = vand.u32 %v905, 4294901760
        %927 = vmatpush1.msra.mxu0 %v926
        %928 = vmatprep.subr.mxu0 0.0
        %v929 = vand.u32 %v906, 4294901760
        %930 = vmatpush1.msra.mxu0 %v929
        %931 = vmatprep.subr.mxu0 0.0
        %v932 = vand.u32 %v907, 4294901760
        %933 = vmatpush1.msra.mxu0 %v932
        %934 = vmatprep.subr.mxu0 0.0
        %v935 = vand.u32 %v908, 4294901760
        %936 = vmatpush1.msra.mxu0 %v935
        %937 = vmatprep.subr.mxu0 0.0
        %v938 = vand.u32 %v909, 4294901760
        %939 = vmatpush1.msra.mxu0 %v938
        %940 = vmatprep.subr.mxu0 0.0
        %v941 = vand.u32 %v910, 4294901760
        %942 = vmatpush1.msra.mxu0 %v941
        %943 = vmatprep.subr.mxu0 0.0
        %v944 = vand.u32 %v911, 4294901760
        %945 = vmatpush1.msra.mxu0 %v944
        %946 = vmatprep.subr.mxu0 0.0
        %v947 = vand.u32 %v912, 4294901760
        %948 = vmatpush1.msra.mxu0 %v947
        %949 = vmatprep.subr.mxu0 0.0
        %v950 = vand.u32 %v913, 4294901760
        %951 = vmatpush1.msra.mxu0 %v950
        %952 = vmatprep.subr.mxu0 0.0
        %v953 = vand.u32 %v914, 4294901760
        %954 = vmatpush1.msra.mxu0 %v953
        %955 = vmatprep.subr.mxu0 0.0
        %v956 = vand.u32 %v915, 4294901760
        %957 = vmatpush1.msra.mxu0 %v956
        %958 = vmatprep.subr.mxu0 0.0
        %v959 = vand.u32 %v916, 4294901760
        %960 = vmatpush1.msra.mxu0 %v959
        %961 = vmatprep.subr.mxu0 0.0
        %v962 = vand.u32 %v917, 4294901760
        %963 = vmatpush1.msra.mxu0 %v962
        %964 = vmatprep.subr.mxu0 0.0
        %v965 = vand.u32 %v918, 4294901760
        %966 = vmatpush1.msra.mxu0 %v965
        %967 = vmatprep.subr.mxu0 0.0
        %968 = vmatpush1.msra.mxu0 0.0
        %969 = vmatprep.subr.mxu0 0.0
        %970 = vmatpush1.msra.mxu0 0.0
        %971 = vmatprep.subr.mxu0 0.0
        %972 = vmatpush1.msra.mxu0 0.0
        %973 = vmatprep.subr.mxu0 0.0
        %974 = vmatpush1.msra.mxu0 0.0
        %975 = vmatprep.subr.mxu0 0.0
        %976 = vmatpush1.msra.mxu0 0.0
        %977 = vmatprep.subr.mxu0 0.0
        %978 = vmatpush1.msra.mxu0 0.0
        %979 = vmatprep.subr.mxu0 0.0
        %980 = vmatpush1.msra.mxu0 0.0
        %981 = vmatprep.subr.mxu0 0.0
        %982 = vmatpush1.msra.mxu0 0.0
        %983 = vmatprep.subr.mxu0 0.0
        %984 = vmatpush1.msra.mxu0 0.0
        %985 = vmatprep.subr.mxu0 0.0
        %986 = vmatpush1.msra.mxu0 0.0
        %987 = vmatprep.subr.mxu0 0.0
        %988 = vmatpush1.msra.mxu0 0.0
        %989 = vmatprep.subr.mxu0 0.0
        %990 = vmatpush1.msra.mxu0 0.0
        %991 = vmatprep.subr.mxu0 0.0
        %992 = vmatpush1.msra.mxu0 0.0
        %993 = vmatprep.subr.mxu0 0.0
        %994 = vmatpush1.msra.mxu0 0.0
        %995 = vmatprep.subr.mxu0 0.0
        %996 = vmatpush1.msra.mxu0 0.0
        %997 = vmatprep.subr.mxu0 0.0
        %998 = vmatpush1.msra.mxu0 0.0
        %999 = vmatprep.mubr.f32.mxu0 0.0
        %v1000 = vand.u32 %v861, 4294901760
        %v1001 = vsub.f32 %v861, %v1000
        %v1002 = vand.u32 %v1001, 4294901760
        %v1003 = vsub.f32 %v1001, %v1002
        %v1004 = vand.u32 %v1003, 4294901760
        %1005 = vmatmul.mubr.f32.gmra.mrb[0].mxu0 %v1004
        %v1006 = vpop.f32.mrb[0].mxu0
        %v1007 = vadd.f32 0.0, %v1006
        %v1008 = vpop.f32.mrb[0].mxu0
        %1009 = vmatprep.mubr.f32.mxu0 0.0
        %v1010 = vand.u32 %v867, 4294901760
        %v1011 = vsub.f32 %v867, %v1010
        %v1012 = vand.u32 %v1011, 4294901760
        %v1013 = vsub.f32 %v1011, %v1012
        %v1014 = vand.u32 %v1013, 4294901760
        %1015 = vmatmul.mubr.f32.gmra.mrb[0].mxu0 %v1014
        %v1016 = vpop.f32.mrb[0].mxu0
        %v1017 = vadd.f32 0.0, %v1016
        %v1018 = vpop.f32.mrb[0].mxu0
        %1019 = vdwg.mxu0
        %1020 = vmatprep.subr.mxu0 0.0
        %v1021 = vand.u32 %v903, 4294901760
        %v1022 = vsub.f32 %v903, %v1021
        %v1023 = vand.u32 %v1022, 4294901760
        %v1024 = vsub.f32 %v1022, %v1023
        %v1025 = vand.u32 %v1024, 4294901760
        %1026 = vmatpush1.msra.mxu0 %v1025
        %1027 = vmatprep.subr.mxu0 0.0
        %v1028 = vand.u32 %v904, 4294901760
        %v1029 = vsub.f32 %v904, %v1028
        %v1030 = vand.u32 %v1029, 4294901760
        %v1031 = vsub.f32 %v1029, %v1030
        %v1032 = vand.u32 %v1031, 4294901760
        %1033 = vmatpush1.msra.mxu0 %v1032
        %1034 = vmatprep.subr.mxu0 0.0
        %v1035 = vand.u32 %v905, 4294901760
        %v1036 = vsub.f32 %v905, %v1035
        %v1037 = vand.u32 %v1036, 4294901760
        %v1038 = vsub.f32 %v1036, %v1037
        %v1039 = vand.u32 %v1038, 4294901760
        %1040 = vmatpush1.msra.mxu0 %v1039
        %1041 = vmatprep.subr.mxu0 0.0
        %v1042 = vand.u32 %v906, 4294901760
        %v1043 = vsub.f32 %v906, %v1042
        %v1044 = vand.u32 %v1043, 4294901760
        %v1045 = vsub.f32 %v1043, %v1044
        %v1046 = vand.u32 %v1045, 4294901760
        %1047 = vmatpush1.msra.mxu0 %v1046
        %1048 = vmatprep.subr.mxu0 0.0
        %v1049 = vand.u32 %v907, 4294901760
        %v1050 = vsub.f32 %v907, %v1049
        %v1051 = vand.u32 %v1050, 4294901760
        %v1052 = vsub.f32 %v1050, %v1051
        %v1053 = vand.u32 %v1052, 4294901760
        %1054 = vmatpush1.msra.mxu0 %v1053
        %1055 = vmatprep.subr.mxu0 0.0
        %v1056 = vand.u32 %v908, 4294901760
        %v1057 = vsub.f32 %v908, %v1056
        %v1058 = vand.u32 %v1057, 4294901760
        %v1059 = vsub.f32 %v1057, %v1058
        %v1060 = vand.u32 %v1059, 4294901760
        %1061 = vmatpush1.msra.mxu0 %v1060
        %1062 = vmatprep.subr.mxu0 0.0
        %v1063 = vand.u32 %v909, 4294901760
        %v1064 = vsub.f32 %v909, %v1063
        %v1065 = vand.u32 %v1064, 4294901760
        %v1066 = vsub.f32 %v1064, %v1065
        %v1067 = vand.u32 %v1066, 4294901760
        %1068 = vmatpush1.msra.mxu0 %v1067
        %1069 = vmatprep.subr.mxu0 0.0
        %v1070 = vand.u32 %v910, 4294901760
        %v1071 = vsub.f32 %v910, %v1070
        %v1072 = vand.u32 %v1071, 4294901760
        %v1073 = vsub.f32 %v1071, %v1072
        %v1074 = vand.u32 %v1073, 4294901760
        %1075 = vmatpush1.msra.mxu0 %v1074
        %1076 = vmatprep.subr.mxu0 0.0
        %v1077 = vand.u32 %v911, 4294901760
        %v1078 = vsub.f32 %v911, %v1077
        %v1079 = vand.u32 %v1078, 4294901760
        %v1080 = vsub.f32 %v1078, %v1079
        %v1081 = vand.u32 %v1080, 4294901760
        %1082 = vmatpush1.msra.mxu0 %v1081
        %1083 = vmatprep.subr.mxu0 0.0
        %v1084 = vand.u32 %v912, 4294901760
        %v1085 = vsub.f32 %v912, %v1084
        %v1086 = vand.u32 %v1085, 4294901760
        %v1087 = vsub.f32 %v1085, %v1086
        %v1088 = vand.u32 %v1087, 4294901760
        %1089 = vmatpush1.msra.mxu0 %v1088
        %1090 = vmatprep.subr.mxu0 0.0
        %v1091 = vand.u32 %v913, 4294901760
        %v1092 = vsub.f32 %v913, %v1091
        %v1093 = vand.u32 %v1092, 4294901760
        %v1094 = vsub.f32 %v1092, %v1093
        %v1095 = vand.u32 %v1094, 4294901760
        %1096 = vmatpush1.msra.mxu0 %v1095
        %1097 = vmatprep.subr.mxu0 0.0
        %v1098 = vand.u32 %v914, 4294901760
        %v1099 = vsub.f32 %v914, %v1098
        %v1100 = vand.u32 %v1099, 4294901760
        %v1101 = vsub.f32 %v1099, %v1100
        %v1102 = vand.u32 %v1101, 4294901760
        %1103 = vmatpush1.msra.mxu0 %v1102
        %1104 = vmatprep.subr.mxu0 0.0
        %v1105 = vand.u32 %v915, 4294901760
        %v1106 = vsub.f32 %v915, %v1105
        %v1107 = vand.u32 %v1106, 4294901760
        %v1108 = vsub.f32 %v1106, %v1107
        %v1109 = vand.u32 %v1108, 4294901760
        %1110 = vmatpush1.msra.mxu0 %v1109
        %1111 = vmatprep.subr.mxu0 0.0
        %v1112 = vand.u32 %v916, 4294901760
        %v1113 = vsub.f32 %v916, %v1112
        %v1114 = vand.u32 %v1113, 4294901760
        %v1115 = vsub.f32 %v1113, %v1114
        %v1116 = vand.u32 %v1115, 4294901760
        %1117 = vmatpush1.msra.mxu0 %v1116
        %1118 = vmatprep.subr.mxu0 0.0
        %v1119 = vand.u32 %v917, 4294901760
        %v1120 = vsub.f32 %v917, %v1119
        %v1121 = vand.u32 %v1120, 4294901760
        %v1122 = vsub.f32 %v1120, %v1121
        %v1123 = vand.u32 %v1122, 4294901760
        %1124 = vmatpush1.msra.mxu0 %v1123
        %1125 = vmatprep.subr.mxu0 0.0
        %v1126 = vand.u32 %v918, 4294901760
        %v1127 = vsub.f32 %v918, %v1126
        %v1128 = vand.u32 %v1127, 4294901760
        %v1129 = vsub.f32 %v1127, %v1128
        %v1130 = vand.u32 %v1129, 4294901760
        %1131 = vmatpush1.msra.mxu0 %v1130
        %1132 = vmatprep.subr.mxu0 0.0
        %1133 = vmatpush1.msra.mxu0 0.0
        %1134 = vmatprep.subr.mxu0 0.0
        %1135 = vmatpush1.msra.mxu0 0.0
        %1136 = vmatprep.subr.mxu0 0.0
        %1137 = vmatpush1.msra.mxu0 0.0
        %1138 = vmatprep.subr.mxu0 0.0
        %1139 = vmatpush1.msra.mxu0 0.0
        %1140 = vmatprep.subr.mxu0 0.0
        %1141 = vmatpush1.msra.mxu0 0.0
        %1142 = vmatprep.subr.mxu0 0.0
        %1143 = vmatpush1.msra.mxu0 0.0
        %1144 = vmatprep.subr.mxu0 0.0
        %1145 = vmatpush1.msra.mxu0 0.0
        %1146 = vmatprep.subr.mxu0 0.0
        %1147 = vmatpush1.msra.mxu0 0.0
        %1148 = vmatprep.subr.mxu0 0.0
        %1149 = vmatpush1.msra.mxu0 0.0
        %1150 = vmatprep.subr.mxu0 0.0
        %1151 = vmatpush1.msra.mxu0 0.0
        %1152 = vmatprep.subr.mxu0 0.0
        %1153 = vmatpush1.msra.mxu0 0.0
        %1154 = vmatprep.subr.mxu0 0.0
        %1155 = vmatpush1.msra.mxu0 0.0
        %1156 = vmatprep.subr.mxu0 0.0
        %1157 = vmatpush1.msra.mxu0 0.0
        %1158 = vmatprep.subr.mxu0 0.0
        %1159 = vmatpush1.msra.mxu0 0.0
        %1160 = vmatprep.subr.mxu0 0.0
        %1161 = vmatpush1.msra.mxu0 0.0
        %1162 = vmatprep.subr.mxu0 0.0
        %1163 = vmatpush1.msra.mxu0 0.0
        %1164 = vmatprep.mubr.f32.mxu0 0.0
        %v1165 = vand.u32 %v861, 4294901760
        %1166 = vmatmul.mubr.f32.gmra.mrb[0].mxu0 %v1165
        %v1167 = vpop.f32.mrb[0].mxu0
        %v1168 = vadd.f32 %v1007, %v1167
        %v1169 = vpop.f32.mrb[0].mxu0
        %1170 = vmatprep.mubr.f32.mxu0 0.0
        %v1171 = vand.u32 %v867, 4294901760
        %1172 = vmatmul.mubr.f32.gmra.mrb[0].mxu0 %v1171
        %v1173 = vpop.f32.mrb[0].mxu0
        %v1174 = vadd.f32 %v1017, %v1173
        %v1175 = vpop.f32.mrb[0].mxu0
        %1176 = vdwg.mxu0
        %1177 = vmatprep.subr.mxu0 0.0
        %v1178 = vand.u32 %v903, 4294901760
        %v1179 = vsub.f32 %v903, %v1178
        %1180 = vmatpush1.msra.mxu0 %v1179
        %1181 = vmatprep.subr.mxu0 0.0
        %v1182 = vand.u32 %v904, 4294901760
        %v1183 = vsub.f32 %v904, %v1182
        %1184 = vmatpush1.msra.mxu0 %v1183
        %1185 = vmatprep.subr.mxu0 0.0
        %v1186 = vand.u32 %v905, 4294901760
        %v1187 = vsub.f32 %v905, %v1186
        %1188 = vmatpush1.msra.mxu0 %v1187
        %1189 = vmatprep.subr.mxu0 0.0
        %v1190 = vand.u32 %v906, 4294901760
        %v1191 = vsub.f32 %v906, %v1190
        %1192 = vmatpush1.msra.mxu0 %v1191
        %1193 = vmatprep.subr.mxu0 0.0
        %v1194 = vand.u32 %v907, 4294901760
        %v1195 = vsub.f32 %v907, %v1194
        %1196 = vmatpush1.msra.mxu0 %v1195
        %1197 = vmatprep.subr.mxu0 0.0
        %v1198 = vand.u32 %v908, 4294901760
        %v1199 = vsub.f32 %v908, %v1198
        %1200 = vmatpush1.msra.mxu0 %v1199
        %1201 = vmatprep.subr.mxu0 0.0
        %v1202 = vand.u32 %v909, 4294901760
        %v1203 = vsub.f32 %v909, %v1202
        %1204 = vmatpush1.msra.mxu0 %v1203
        %1205 = vmatprep.subr.mxu0 0.0
        %v1206 = vand.u32 %v910, 4294901760
        %v1207 = vsub.f32 %v910, %v1206
        %1208 = vmatpush1.msra.mxu0 %v1207
        %1209 = vmatprep.subr.mxu0 0.0
        %v1210 = vand.u32 %v911, 4294901760
        %v1211 = vsub.f32 %v911, %v1210
        %1212 = vmatpush1.msra.mxu0 %v1211
        %1213 = vmatprep.subr.mxu0 0.0
        %v1214 = vand.u32 %v912, 4294901760
        %v1215 = vsub.f32 %v912, %v1214
        %1216 = vmatpush1.msra.mxu0 %v1215
        %1217 = vmatprep.subr.mxu0 0.0
        %v1218 = vand.u32 %v913, 4294901760
        %v1219 = vsub.f32 %v913, %v1218
        %1220 = vmatpush1.msra.mxu0 %v1219
        %1221 = vmatprep.subr.mxu0 0.0
        %v1222 = vand.u32 %v914, 4294901760
        %v1223 = vsub.f32 %v914, %v1222
        %1224 = vmatpush1.msra.mxu0 %v1223
        %1225 = vmatprep.subr.mxu0 0.0
        %v1226 = vand.u32 %v915, 4294901760
        %v1227 = vsub.f32 %v915, %v1226
        %1228 = vmatpush1.msra.mxu0 %v1227
        %1229 = vmatprep.subr.mxu0 0.0
        %v1230 = vand.u32 %v916, 4294901760
        %v1231 = vsub.f32 %v916, %v1230
        %1232 = vmatpush1.msra.mxu0 %v1231
        %1233 = vmatprep.subr.mxu0 0.0
        %v1234 = vand.u32 %v917, 4294901760
        %v1235 = vsub.f32 %v917, %v1234
        %1236 = vmatpush1.msra.mxu0 %v1235
        %1237 = vmatprep.subr.mxu0 0.0
        %v1238 = vand.u32 %v918, 4294901760
        %v1239 = vsub.f32 %v918, %v1238
        %1240 = vmatpush1.msra.mxu0 %v1239
        %1241 = vmatprep.subr.mxu0 0.0
        %1242 = vmatpush1.msra.mxu0 0.0
        %1243 = vmatprep.subr.mxu0 0.0
        %1244 = vmatpush1.msra.mxu0 0.0
        %1245 = vmatprep.subr.mxu0 0.0
        %1246 = vmatpush1.msra.mxu0 0.0
        %1247 = vmatprep.subr.mxu0 0.0
        %1248 = vmatpush1.msra.mxu0 0.0
        %1249 = vmatprep.subr.mxu0 0.0
        %1250 = vmatpush1.msra.mxu0 0.0
        %1251 = vmatprep.subr.mxu0 0.0
        %1252 = vmatpush1.msra.mxu0 0.0
        %1253 = vmatprep.subr.mxu0 0.0
        %1254 = vmatpush1.msra.mxu0 0.0
        %1255 = vmatprep.subr.mxu0 0.0
        %1256 = vmatpush1.msra.mxu0 0.0
        %1257 = vmatprep.subr.mxu0 0.0
        %1258 = vmatpush1.msra.mxu0 0.0
        %1259 = vmatprep.subr.mxu0 0.0
        %1260 = vmatpush1.msra.mxu0 0.0
        %1261 = vmatprep.subr.mxu0 0.0
        %1262 = vmatpush1.msra.mxu0 0.0
        %1263 = vmatprep.subr.mxu0 0.0
        %1264 = vmatpush1.msra.mxu0 0.0
        %1265 = vmatprep.subr.mxu0 0.0
        %1266 = vmatpush1.msra.mxu0 0.0
        %1267 = vmatprep.subr.mxu0 0.0
        %1268 = vmatpush1.msra.mxu0 0.0
        %1269 = vmatprep.subr.mxu0 0.0
        %1270 = vmatpush1.msra.mxu0 0.0
        %1271 = vmatprep.subr.mxu0 0.0
        %1272 = vmatpush1.msra.mxu0 0.0
        %1273 = vmatprep.mubr.f32.mxu0 0.0
        %v1274 = vand.u32 %v861, 4294901760
        %v1275 = vsub.f32 %v861, %v1274
        %1276 = vmatmul.mubr.f32.gmra.mrb[0].mxu0 %v1275
        %v1277 = vpop.f32.mrb[0].mxu0
        %v1278 = vadd.f32 %v1168, %v1277
        %v1279 = vpop.f32.mrb[0].mxu0
        %1280 = vmatprep.mubr.f32.mxu0 0.0
        %v1281 = vand.u32 %v867, 4294901760
        %v1282 = vsub.f32 %v867, %v1281
        %1283 = vmatmul.mubr.f32.gmra.mrb[0].mxu0 %v1282
        %v1284 = vpop.f32.mrb[0].mxu0
        %v1285 = vadd.f32 %v1174, %v1284
        %v1286 = vpop.f32.mrb[0].mxu0
        %1287 = vdwg.mxu0
        %1288 = vmatprep.subr.mxu0 0.0
        %v1289 = vand.u32 %v903, 4294901760
        %1290 = vmatpush1.msra.mxu0 %v1289
        %1291 = vmatprep.subr.mxu0 0.0
        %v1292 = vand.u32 %v904, 4294901760
        %1293 = vmatpush1.msra.mxu0 %v1292
        %1294 = vmatprep.subr.mxu0 0.0
        %v1295 = vand.u32 %v905, 4294901760
        %1296 = vmatpush1.msra.mxu0 %v1295
        %1297 = vmatprep.subr.mxu0 0.0
        %v1298 = vand.u32 %v906, 4294901760
        %1299 = vmatpush1.msra.mxu0 %v1298
        %1300 = vmatprep.subr.mxu0 0.0
        %v1301 = vand.u32 %v907, 4294901760
        %1302 = vmatpush1.msra.mxu0 %v1301
        %1303 = vmatprep.subr.mxu0 0.0
        %v1304 = vand.u32 %v908, 4294901760
        %1305 = vmatpush1.msra.mxu0 %v1304
        %1306 = vmatprep.subr.mxu0 0.0
        %v1307 = vand.u32 %v909, 4294901760
        %1308 = vmatpush1.msra.mxu0 %v1307
        %1309 = vmatprep.subr.mxu0 0.0
        %v1310 = vand.u32 %v910, 4294901760
        %1311 = vmatpush1.msra.mxu0 %v1310
        %1312 = vmatprep.subr.mxu0 0.0
        %v1313 = vand.u32 %v911, 4294901760
        %1314 = vmatpush1.msra.mxu0 %v1313
        %1315 = vmatprep.subr.mxu0 0.0
        %v1316 = vand.u32 %v912, 4294901760
        %1317 = vmatpush1.msra.mxu0 %v1316
        %1318 = vmatprep.subr.mxu0 0.0
        %v1319 = vand.u32 %v913, 4294901760
        %1320 = vmatpush1.msra.mxu0 %v1319
        %1321 = vmatprep.subr.mxu0 0.0
        %v1322 = vand.u32 %v914, 4294901760
        %1323 = vmatpush1.msra.mxu0 %v1322
        %1324 = vmatprep.subr.mxu0 0.0
        %v1325 = vand.u32 %v915, 4294901760
        %1326 = vmatpush1.msra.mxu0 %v1325
        %1327 = vmatprep.subr.mxu0 0.0
        %v1328 = vand.u32 %v916, 4294901760
        %1329 = vmatpush1.msra.mxu0 %v1328
        %1330 = vmatprep.subr.mxu0 0.0
        %v1331 = vand.u32 %v917, 4294901760
        %1332 = vmatpush1.msra.mxu0 %v1331
        %1333 = vmatprep.subr.mxu0 0.0
        %v1334 = vand.u32 %v918, 4294901760
        %1335 = vmatpush1.msra.mxu0 %v1334
        %1336 = vmatprep.subr.mxu0 0.0
        %1337 = vmatpush1.msra.mxu0 0.0
        %1338 = vmatprep.subr.mxu0 0.0
        %1339 = vmatpush1.msra.mxu0 0.0
        %1340 = vmatprep.subr.mxu0 0.0
        %1341 = vmatpush1.msra.mxu0 0.0
        %1342 = vmatprep.subr.mxu0 0.0
        %1343 = vmatpush1.msra.mxu0 0.0
        %1344 = vmatprep.subr.mxu0 0.0
        %1345 = vmatpush1.msra.mxu0 0.0
        %1346 = vmatprep.subr.mxu0 0.0
        %1347 = vmatpush1.msra.mxu0 0.0
        %1348 = vmatprep.subr.mxu0 0.0
        %1349 = vmatpush1.msra.mxu0 0.0
        %1350 = vmatprep.subr.mxu0 0.0
        %1351 = vmatpush1.msra.mxu0 0.0
        %1352 = vmatprep.subr.mxu0 0.0
        %1353 = vmatpush1.msra.mxu0 0.0
        %1354 = vmatprep.subr.mxu0 0.0
        %1355 = vmatpush1.msra.mxu0 0.0
        %1356 = vmatprep.subr.mxu0 0.0
        %1357 = vmatpush1.msra.mxu0 0.0
        %1358 = vmatprep.subr.mxu0 0.0
        %1359 = vmatpush1.msra.mxu0 0.0
        %1360 = vmatprep.subr.mxu0 0.0
        %1361 = vmatpush1.msra.mxu0 0.0
        %1362 = vmatprep.subr.mxu0 0.0
        %1363 = vmatpush1.msra.mxu0 0.0
        %1364 = vmatprep.subr.mxu0 0.0
        %1365 = vmatpush1.msra.mxu0 0.0
        %1366 = vmatprep.subr.mxu0 0.0
        %1367 = vmatpush1.msra.mxu0 0.0
        %1368 = vmatprep.mubr.f32.mxu0 0.0
        %v1369 = vand.u32 %v861, 4294901760
        %v1370 = vsub.f32 %v861, %v1369
        %v1371 = vand.u32 %v1370, 4294901760
        %1372 = vmatmul.mubr.f32.gmra.mrb[0].mxu0 %v1371
        %v1373 = vpop.f32.mrb[0].mxu0
        %v1374 = vadd.f32 %v1278, %v1373
        %v1375 = vpop.f32.mrb[0].mxu0
        %1376 = vmatprep.mubr.f32.mxu0 0.0
        %v1377 = vand.u32 %v867, 4294901760
        %v1378 = vsub.f32 %v867, %v1377
        %v1379 = vand.u32 %v1378, 4294901760
        %1380 = vmatmul.mubr.f32.gmra.mrb[0].mxu0 %v1379
        %v1381 = vpop.f32.mrb[0].mxu0
        %v1382 = vadd.f32 %v1285, %v1381
        %v1383 = vpop.f32.mrb[0].mxu0
        %1384 = vdwg.mxu0
        %1385 = vmatprep.subr.mxu0 0.0
        %v1386 = vand.u32 %v903, 4294901760
        %v1387 = vsub.f32 %v903, %v1386
        %v1388 = vand.u32 %v1387, 4294901760
        %1389 = vmatpush1.msra.mxu0 %v1388
        %1390 = vmatprep.subr.mxu0 0.0
        %v1391 = vand.u32 %v904, 4294901760
        %v1392 = vsub.f32 %v904, %v1391
        %v1393 = vand.u32 %v1392, 4294901760
        %1394 = vmatpush1.msra.mxu0 %v1393
        %1395 = vmatprep.subr.mxu0 0.0
        %v1396 = vand.u32 %v905, 4294901760
        %v1397 = vsub.f32 %v905, %v1396
        %v1398 = vand.u32 %v1397, 4294901760
        %1399 = vmatpush1.msra.mxu0 %v1398
        %1400 = vmatprep.subr.mxu0 0.0
        %v1401 = vand.u32 %v906, 4294901760
        %v1402 = vsub.f32 %v906, %v1401
        %v1403 = vand.u32 %v1402, 4294901760
        %1404 = vmatpush1.msra.mxu0 %v1403
        %1405 = vmatprep.subr.mxu0 0.0
        %v1406 = vand.u32 %v907, 4294901760
        %v1407 = vsub.f32 %v907, %v1406
        %v1408 = vand.u32 %v1407, 4294901760
        %1409 = vmatpush1.msra.mxu0 %v1408
        %1410 = vmatprep.subr.mxu0 0.0
        %v1411 = vand.u32 %v908, 4294901760
        %v1412 = vsub.f32 %v908, %v1411
        %v1413 = vand.u32 %v1412, 4294901760
        %1414 = vmatpush1.msra.mxu0 %v1413
        %1415 = vmatprep.subr.mxu0 0.0
        %v1416 = vand.u32 %v909, 4294901760
        %v1417 = vsub.f32 %v909, %v1416
        %v1418 = vand.u32 %v1417, 4294901760
        %1419 = vmatpush1.msra.mxu0 %v1418
        %1420 = vmatprep.subr.mxu0 0.0
        %v1421 = vand.u32 %v910, 4294901760
        %v1422 = vsub.f32 %v910, %v1421
        %v1423 = vand.u32 %v1422, 4294901760
        %1424 = vmatpush1.msra.mxu0 %v1423
        %1425 = vmatprep.subr.mxu0 0.0
        %v1426 = vand.u32 %v911, 4294901760
        %v1427 = vsub.f32 %v911, %v1426
        %v1428 = vand.u32 %v1427, 4294901760
        %1429 = vmatpush1.msra.mxu0 %v1428
        %1430 = vmatprep.subr.mxu0 0.0
        %v1431 = vand.u32 %v912, 4294901760
        %v1432 = vsub.f32 %v912, %v1431
        %v1433 = vand.u32 %v1432, 4294901760
        %1434 = vmatpush1.msra.mxu0 %v1433
        %1435 = vmatprep.subr.mxu0 0.0
        %v1436 = vand.u32 %v913, 4294901760
        %v1437 = vsub.f32 %v913, %v1436
        %v1438 = vand.u32 %v1437, 4294901760
        %1439 = vmatpush1.msra.mxu0 %v1438
        %1440 = vmatprep.subr.mxu0 0.0
        %v1441 = vand.u32 %v914, 4294901760
        %v1442 = vsub.f32 %v914, %v1441
        %v1443 = vand.u32 %v1442, 4294901760
        %1444 = vmatpush1.msra.mxu0 %v1443
        %1445 = vmatprep.subr.mxu0 0.0
        %v1446 = vand.u32 %v915, 4294901760
        %v1447 = vsub.f32 %v915, %v1446
        %v1448 = vand.u32 %v1447, 4294901760
        %1449 = vmatpush1.msra.mxu0 %v1448
        %1450 = vmatprep.subr.mxu0 0.0
        %v1451 = vand.u32 %v916, 4294901760
        %v1452 = vsub.f32 %v916, %v1451
        %v1453 = vand.u32 %v1452, 4294901760
        %1454 = vmatpush1.msra.mxu0 %v1453
        %1455 = vmatprep.subr.mxu0 0.0
        %v1456 = vand.u32 %v917, 4294901760
        %v1457 = vsub.f32 %v917, %v1456
        %v1458 = vand.u32 %v1457, 4294901760
        %1459 = vmatpush1.msra.mxu0 %v1458
        %1460 = vmatprep.subr.mxu0 0.0
        %v1461 = vand.u32 %v918, 4294901760
        %v1462 = vsub.f32 %v918, %v1461
        %v1463 = vand.u32 %v1462, 4294901760
        %1464 = vmatpush1.msra.mxu0 %v1463
        %1465 = vmatprep.subr.mxu0 0.0
        %1466 = vmatpush1.msra.mxu0 0.0
        %1467 = vmatprep.subr.mxu0 0.0
        %1468 = vmatpush1.msra.mxu0 0.0
        %1469 = vmatprep.subr.mxu0 0.0
        %1470 = vmatpush1.msra.mxu0 0.0
        %1471 = vmatprep.subr.mxu0 0.0
        %1472 = vmatpush1.msra.mxu0 0.0
        %1473 = vmatprep.subr.mxu0 0.0
        %1474 = vmatpush1.msra.mxu0 0.0
        %1475 = vmatprep.subr.mxu0 0.0
        %1476 = vmatpush1.msra.mxu0 0.0
        %1477 = vmatprep.subr.mxu0 0.0
        %1478 = vmatpush1.msra.mxu0 0.0
        %1479 = vmatprep.subr.mxu0 0.0
        %1480 = vmatpush1.msra.mxu0 0.0
        %1481 = vmatprep.subr.mxu0 0.0
        %1482 = vmatpush1.msra.mxu0 0.0
        %1483 = vmatprep.subr.mxu0 0.0
        %1484 = vmatpush1.msra.mxu0 0.0
        %1485 = vmatprep.subr.mxu0 0.0
        %1486 = vmatpush1.msra.mxu0 0.0
        %1487 = vmatprep.subr.mxu0 0.0
        %1488 = vmatpush1.msra.mxu0 0.0
        %1489 = vmatprep.subr.mxu0 0.0
        %1490 = vmatpush1.msra.mxu0 0.0
        %1491 = vmatprep.subr.mxu0 0.0
        %1492 = vmatpush1.msra.mxu0 0.0
        %1493 = vmatprep.subr.mxu0 0.0
        %1494 = vmatpush1.msra.mxu0 0.0
        %1495 = vmatprep.subr.mxu0 0.0
        %1496 = vmatpush1.msra.mxu0 0.0
        %1497 = vmatprep.mubr.f32.mxu0 0.0
        %v1498 = vand.u32 %v861, 4294901760
        %1499 = vmatmul.mubr.f32.gmra.mrb[0].mxu0 %v1498
        %v1500 = vpop.f32.mrb[0].mxu0
        %v1501 = vadd.f32 %v1374, %v1500
        %v1502 = vpop.f32.mrb[0].mxu0
        %1503 = vmatprep.mubr.f32.mxu0 0.0
        %v1504 = vand.u32 %v867, 4294901760
        %1505 = vmatmul.mubr.f32.gmra.mrb[0].mxu0 %v1504
        %v1506 = vpop.f32.mrb[0].mxu0
        %v1507 = vadd.f32 %v1382, %v1506
        %v1508 = vpop.f32.mrb[0].mxu0
        %1509 = vdwg.mxu0
        %1510 = vmatprep.subr.mxu0 0.0
        %v1511 = vand.u32 %v903, 4294901760
        %1512 = vmatpush1.msra.mxu0 %v1511
        %1513 = vmatprep.subr.mxu0 0.0
        %v1514 = vand.u32 %v904, 4294901760
        %1515 = vmatpush1.msra.mxu0 %v1514
        %1516 = vmatprep.subr.mxu0 0.0
        %v1517 = vand.u32 %v905, 4294901760
        %1518 = vmatpush1.msra.mxu0 %v1517
        %1519 = vmatprep.subr.mxu0 0.0
        %v1520 = vand.u32 %v906, 4294901760
        %1521 = vmatpush1.msra.mxu0 %v1520
        %1522 = vmatprep.subr.mxu0 0.0
        %v1523 = vand.u32 %v907, 4294901760
        %1524 = vmatpush1.msra.mxu0 %v1523
        %1525 = vmatprep.subr.mxu0 0.0
        %v1526 = vand.u32 %v908, 4294901760
        %1527 = vmatpush1.msra.mxu0 %v1526
        %1528 = vmatprep.subr.mxu0 0.0
        %v1529 = vand.u32 %v909, 4294901760
        %1530 = vmatpush1.msra.mxu0 %v1529
        %1531 = vmatprep.subr.mxu0 0.0
        %v1532 = vand.u32 %v910, 4294901760
        %1533 = vmatpush1.msra.mxu0 %v1532
        %1534 = vmatprep.subr.mxu0 0.0
        %v1535 = vand.u32 %v911, 4294901760
        %1536 = vmatpush1.msra.mxu0 %v1535
        %1537 = vmatprep.subr.mxu0 0.0
        %v1538 = vand.u32 %v912, 4294901760
        %1539 = vmatpush1.msra.mxu0 %v1538
        %1540 = vmatprep.subr.mxu0 0.0
        %v1541 = vand.u32 %v913, 4294901760
        %1542 = vmatpush1.msra.mxu0 %v1541
        %1543 = vmatprep.subr.mxu0 0.0
        %v1544 = vand.u32 %v914, 4294901760
        %1545 = vmatpush1.msra.mxu0 %v1544
        %1546 = vmatprep.subr.mxu0 0.0
        %v1547 = vand.u32 %v915, 4294901760
        %1548 = vmatpush1.msra.mxu0 %v1547
        %1549 = vmatprep.subr.mxu0 0.0
        %v1550 = vand.u32 %v916, 4294901760
        %1551 = vmatpush1.msra.mxu0 %v1550
        %1552 = vmatprep.subr.mxu0 0.0
        %v1553 = vand.u32 %v917, 4294901760
        %1554 = vmatpush1.msra.mxu0 %v1553
        %1555 = vmatprep.subr.mxu0 0.0
        %v1556 = vand.u32 %v918, 4294901760
        %1557 = vmatpush1.msra.mxu0 %v1556
        %1558 = vmatprep.subr.mxu0 0.0
        %1559 = vmatpush1.msra.mxu0 0.0
        %1560 = vmatprep.subr.mxu0 0.0
        %1561 = vmatpush1.msra.mxu0 0.0
        %1562 = vmatprep.subr.mxu0 0.0
        %1563 = vmatpush1.msra.mxu0 0.0
        %1564 = vmatprep.subr.mxu0 0.0
        %1565 = vmatpush1.msra.mxu0 0.0
        %1566 = vmatprep.subr.mxu0 0.0
        %1567 = vmatpush1.msra.mxu0 0.0
        %1568 = vmatprep.subr.mxu0 0.0
        %1569 = vmatpush1.msra.mxu0 0.0
        %1570 = vmatprep.subr.mxu0 0.0
        %1571 = vmatpush1.msra.mxu0 0.0
        %1572 = vmatprep.subr.mxu0 0.0
        %1573 = vmatpush1.msra.mxu0 0.0
        %1574 = vmatprep.subr.mxu0 0.0
        %1575 = vmatpush1.msra.mxu0 0.0
        %1576 = vmatprep.subr.mxu0 0.0
        %1577 = vmatpush1.msra.mxu0 0.0
        %1578 = vmatprep.subr.mxu0 0.0
        %1579 = vmatpush1.msra.mxu0 0.0
        %1580 = vmatprep.subr.mxu0 0.0
        %1581 = vmatpush1.msra.mxu0 0.0
        %1582 = vmatprep.subr.mxu0 0.0
        %1583 = vmatpush1.msra.mxu0 0.0
        %1584 = vmatprep.subr.mxu0 0.0
        %1585 = vmatpush1.msra.mxu0 0.0
        %1586 = vmatprep.subr.mxu0 0.0
        %1587 = vmatpush1.msra.mxu0 0.0
        %1588 = vmatprep.subr.mxu0 0.0
        %1589 = vmatpush1.msra.mxu0 0.0
        %1590 = vmatprep.mubr.f32.mxu0 0.0
        %v1591 = vand.u32 %v861, 4294901760
        %1592 = vmatmul.mubr.f32.gmra.mrb[0].mxu0 %v1591
        %v1593 = vpop.f32.mrb[0].mxu0
        %v1594 = vadd.f32 %v1501, %v1593
        %v1595 = vpop.f32.mrb[0].mxu0
        %1596 = vmatprep.mubr.f32.mxu0 0.0
        %v1597 = vand.u32 %v867, 4294901760
        %1598 = vmatmul.mubr.f32.gmra.mrb[0].mxu0 %v1597
        %v1599 = vpop.f32.mrb[0].mxu0
        %v1600 = vadd.f32 %v1507, %v1599
        %v1601 = vpop.f32.mrb[0].mxu0
        %1602 = vdwg.mxu0
        %1603 = vmatprep.subr.mxu0 0.0
        %v1604 = vand.u32 %v886, 4294901760
        %1605 = vmatpush1.msra.mxu0 %v1604
        %1606 = vmatprep.subr.mxu0 0.0
        %v1607 = vand.u32 %v887, 4294901760
        %1608 = vmatpush1.msra.mxu0 %v1607
        %1609 = vmatprep.subr.mxu0 0.0
        %v1610 = vand.u32 %v888, 4294901760
        %1611 = vmatpush1.msra.mxu0 %v1610
        %1612 = vmatprep.subr.mxu0 0.0
        %v1613 = vand.u32 %v889, 4294901760
        %1614 = vmatpush1.msra.mxu0 %v1613
        %1615 = vmatprep.subr.mxu0 0.0
        %v1616 = vand.u32 %v890, 4294901760
        %1617 = vmatpush1.msra.mxu0 %v1616
        %1618 = vmatprep.subr.mxu0 0.0
        %v1619 = vand.u32 %v891, 4294901760
        %1620 = vmatpush1.msra.mxu0 %v1619
        %1621 = vmatprep.subr.mxu0 0.0
        %v1622 = vand.u32 %v892, 4294901760
        %1623 = vmatpush1.msra.mxu0 %v1622
        %1624 = vmatprep.subr.mxu0 0.0
        %v1625 = vand.u32 %v893, 4294901760
        %1626 = vmatpush1.msra.mxu0 %v1625
        %1627 = vmatprep.subr.mxu0 0.0
        %v1628 = vand.u32 %v894, 4294901760
        %1629 = vmatpush1.msra.mxu0 %v1628
        %1630 = vmatprep.subr.mxu0 0.0
        %v1631 = vand.u32 %v895, 4294901760
        %1632 = vmatpush1.msra.mxu0 %v1631
        %1633 = vmatprep.subr.mxu0 0.0
        %v1634 = vand.u32 %v896, 4294901760
        %1635 = vmatpush1.msra.mxu0 %v1634
        %1636 = vmatprep.subr.mxu0 0.0
        %v1637 = vand.u32 %v897, 4294901760
        %1638 = vmatpush1.msra.mxu0 %v1637
        %1639 = vmatprep.subr.mxu0 0.0
        %v1640 = vand.u32 %v898, 4294901760
        %1641 = vmatpush1.msra.mxu0 %v1640
        %1642 = vmatprep.subr.mxu0 0.0
        %v1643 = vand.u32 %v899, 4294901760
        %1644 = vmatpush1.msra.mxu0 %v1643
        %1645 = vmatprep.subr.mxu0 0.0
        %v1646 = vand.u32 %v900, 4294901760
        %1647 = vmatpush1.msra.mxu0 %v1646
        %1648 = vmatprep.subr.mxu0 0.0
        %v1649 = vand.u32 %v901, 4294901760
        %1650 = vmatpush1.msra.mxu0 %v1649
        %1651 = vmatprep.subr.mxu0 0.0
        %1652 = vmatpush1.msra.mxu0 0.0
        %1653 = vmatprep.subr.mxu0 0.0
        %1654 = vmatpush1.msra.mxu0 0.0
        %1655 = vmatprep.subr.mxu0 0.0
        %1656 = vmatpush1.msra.mxu0 0.0
        %1657 = vmatprep.subr.mxu0 0.0
        %1658 = vmatpush1.msra.mxu0 0.0
        %1659 = vmatprep.subr.mxu0 0.0
        %1660 = vmatpush1.msra.mxu0 0.0
        %1661 = vmatprep.subr.mxu0 0.0
        %1662 = vmatpush1.msra.mxu0 0.0
        %1663 = vmatprep.subr.mxu0 0.0
        %1664 = vmatpush1.msra.mxu0 0.0
        %1665 = vmatprep.subr.mxu0 0.0
        %1666 = vmatpush1.msra.mxu0 0.0
        %1667 = vmatprep.subr.mxu0 0.0
        %1668 = vmatpush1.msra.mxu0 0.0
        %1669 = vmatprep.subr.mxu0 0.0
        %1670 = vmatpush1.msra.mxu0 0.0
        %1671 = vmatprep.subr.mxu0 0.0
        %1672 = vmatpush1.msra.mxu0 0.0
        %1673 = vmatprep.subr.mxu0 0.0
        %1674 = vmatpush1.msra.mxu0 0.0
        %1675 = vmatprep.subr.mxu0 0.0
        %1676 = vmatpush1.msra.mxu0 0.0
        %1677 = vmatprep.subr.mxu0 0.0
        %1678 = vmatpush1.msra.mxu0 0.0
        %1679 = vmatprep.subr.mxu0 0.0
        %1680 = vmatpush1.msra.mxu0 0.0
        %1681 = vmatprep.subr.mxu0 0.0
        %1682 = vmatpush1.msra.mxu0 0.0
        %1683 = vmatprep.mubr.f32.mxu0 0.0
        %v1684 = vand.u32 %v878, 4294901760
        %v1685 = vsub.f32 %v878, %v1684
        %v1686 = vand.u32 %v1685, 4294901760
        %v1687 = vsub.f32 %v1685, %v1686
        %v1688 = vand.u32 %v1687, 4294901760
        %1689 = vmatmul.mubr.f32.gmra.mrb[0].mxu0 %v1688
        %v1690 = vpop.f32.mrb[0].mxu0
        %v1691 = vadd.f32 %v1594, %v1690
        %v1692 = vpop.f32.mrb[0].mxu0
        %1693 = vmatprep.mubr.f32.mxu0 0.0
        %v1694 = vand.u32 %v875, 4294901760
        %v1695 = vsub.f32 %v875, %v1694
        %v1696 = vand.u32 %v1695, 4294901760
        %v1697 = vsub.f32 %v1695, %v1696
        %v1698 = vand.u32 %v1697, 4294901760
        %1699 = vmatmul.mubr.f32.gmra.mrb[0].mxu0 %v1698
        %v1700 = vpop.f32.mrb[0].mxu0
        %v1701 = vadd.f32 %v1600, %v1700
        %v1702 = vpop.f32.mrb[0].mxu0
        %1703 = vdwg.mxu0
        %1704 = vmatprep.subr.mxu0 0.0
        %v1705 = vand.u32 %v886, 4294901760
        %v1706 = vsub.f32 %v886, %v1705
        %v1707 = vand.u32 %v1706, 4294901760
        %v1708 = vsub.f32 %v1706, %v1707
        %v1709 = vand.u32 %v1708, 4294901760
        %1710 = vmatpush1.msra.mxu0 %v1709
        %1711 = vmatprep.subr.mxu0 0.0
        %v1712 = vand.u32 %v887, 4294901760
        %v1713 = vsub.f32 %v887, %v1712
        %v1714 = vand.u32 %v1713, 4294901760
        %v1715 = vsub.f32 %v1713, %v1714
        %v1716 = vand.u32 %v1715, 4294901760
        %1717 = vmatpush1.msra.mxu0 %v1716
        %1718 = vmatprep.subr.mxu0 0.0
        %v1719 = vand.u32 %v888, 4294901760
        %v1720 = vsub.f32 %v888, %v1719
        %v1721 = vand.u32 %v1720, 4294901760
        %v1722 = vsub.f32 %v1720, %v1721
        %v1723 = vand.u32 %v1722, 4294901760
        %1724 = vmatpush1.msra.mxu0 %v1723
        %1725 = vmatprep.subr.mxu0 0.0
        %v1726 = vand.u32 %v889, 4294901760
        %v1727 = vsub.f32 %v889, %v1726
        %v1728 = vand.u32 %v1727, 4294901760
        %v1729 = vsub.f32 %v1727, %v1728
        %v1730 = vand.u32 %v1729, 4294901760
        %1731 = vmatpush1.msra.mxu0 %v1730
        %1732 = vmatprep.subr.mxu0 0.0
        %v1733 = vand.u32 %v890, 4294901760
        %v1734 = vsub.f32 %v890, %v1733
        %v1735 = vand.u32 %v1734, 4294901760
        %v1736 = vsub.f32 %v1734, %v1735
        %v1737 = vand.u32 %v1736, 4294901760
        %1738 = vmatpush1.msra.mxu0 %v1737
        %1739 = vmatprep.subr.mxu0 0.0
        %v1740 = vand.u32 %v891, 4294901760
        %v1741 = vsub.f32 %v891, %v1740
        %v1742 = vand.u32 %v1741, 4294901760
        %v1743 = vsub.f32 %v1741, %v1742
        %v1744 = vand.u32 %v1743, 4294901760
        %1745 = vmatpush1.msra.mxu0 %v1744
        %1746 = vmatprep.subr.mxu0 0.0
        %v1747 = vand.u32 %v892, 4294901760
        %v1748 = vsub.f32 %v892, %v1747
        %v1749 = vand.u32 %v1748, 4294901760
        %v1750 = vsub.f32 %v1748, %v1749
        %v1751 = vand.u32 %v1750, 4294901760
        %1752 = vmatpush1.msra.mxu0 %v1751
        %1753 = vmatprep.subr.mxu0 0.0
        %v1754 = vand.u32 %v893, 4294901760
        %v1755 = vsub.f32 %v893, %v1754
        %v1756 = vand.u32 %v1755, 4294901760
        %v1757 = vsub.f32 %v1755, %v1756
        %v1758 = vand.u32 %v1757, 4294901760
        %1759 = vmatpush1.msra.mxu0 %v1758
        %1760 = vmatprep.subr.mxu0 0.0
        %v1761 = vand.u32 %v894, 4294901760
        %v1762 = vsub.f32 %v894, %v1761
        %v1763 = vand.u32 %v1762, 4294901760
        %v1764 = vsub.f32 %v1762, %v1763
        %v1765 = vand.u32 %v1764, 4294901760
        %1766 = vmatpush1.msra.mxu0 %v1765
        %1767 = vmatprep.subr.mxu0 0.0
        %v1768 = vand.u32 %v895, 4294901760
        %v1769 = vsub.f32 %v895, %v1768
        %v1770 = vand.u32 %v1769, 4294901760
        %v1771 = vsub.f32 %v1769, %v1770
        %v1772 = vand.u32 %v1771, 4294901760
        %1773 = vmatpush1.msra.mxu0 %v1772
        %1774 = vmatprep.subr.mxu0 0.0
        %v1775 = vand.u32 %v896, 4294901760
        %v1776 = vsub.f32 %v896, %v1775
        %v1777 = vand.u32 %v1776, 4294901760
        %v1778 = vsub.f32 %v1776, %v1777
        %v1779 = vand.u32 %v1778, 4294901760
        %1780 = vmatpush1.msra.mxu0 %v1779
        %1781 = vmatprep.subr.mxu0 0.0
        %v1782 = vand.u32 %v897, 4294901760
        %v1783 = vsub.f32 %v897, %v1782
        %v1784 = vand.u32 %v1783, 4294901760
        %v1785 = vsub.f32 %v1783, %v1784
        %v1786 = vand.u32 %v1785, 4294901760
        %1787 = vmatpush1.msra.mxu0 %v1786
        %1788 = vmatprep.subr.mxu0 0.0
        %v1789 = vand.u32 %v898, 4294901760
        %v1790 = vsub.f32 %v898, %v1789
        %v1791 = vand.u32 %v1790, 4294901760
        %v1792 = vsub.f32 %v1790, %v1791
        %v1793 = vand.u32 %v1792, 4294901760
        %1794 = vmatpush1.msra.mxu0 %v1793
        %1795 = vmatprep.subr.mxu0 0.0
        %v1796 = vand.u32 %v899, 4294901760
        %v1797 = vsub.f32 %v899, %v1796
        %v1798 = vand.u32 %v1797, 4294901760
        %v1799 = vsub.f32 %v1797, %v1798
        %v1800 = vand.u32 %v1799, 4294901760
        %1801 = vmatpush1.msra.mxu0 %v1800
        %1802 = vmatprep.subr.mxu0 0.0
        %v1803 = vand.u32 %v900, 4294901760
        %v1804 = vsub.f32 %v900, %v1803
        %v1805 = vand.u32 %v1804, 4294901760
        %v1806 = vsub.f32 %v1804, %v1805
        %v1807 = vand.u32 %v1806, 4294901760
        %1808 = vmatpush1.msra.mxu0 %v1807
        %1809 = vmatprep.subr.mxu0 0.0
        %v1810 = vand.u32 %v901, 4294901760
        %v1811 = vsub.f32 %v901, %v1810
        %v1812 = vand.u32 %v1811, 4294901760
        %v1813 = vsub.f32 %v1811, %v1812
        %v1814 = vand.u32 %v1813, 4294901760
        %1815 = vmatpush1.msra.mxu0 %v1814
        %1816 = vmatprep.subr.mxu0 0.0
        %1817 = vmatpush1.msra.mxu0 0.0
        %1818 = vmatprep.subr.mxu0 0.0
        %1819 = vmatpush1.msra.mxu0 0.0
        %1820 = vmatprep.subr.mxu0 0.0
        %1821 = vmatpush1.msra.mxu0 0.0
        %1822 = vmatprep.subr.mxu0 0.0
        %1823 = vmatpush1.msra.mxu0 0.0
        %1824 = vmatprep.subr.mxu0 0.0
        %1825 = vmatpush1.msra.mxu0 0.0
        %1826 = vmatprep.subr.mxu0 0.0
        %1827 = vmatpush1.msra.mxu0 0.0
        %1828 = vmatprep.subr.mxu0 0.0
        %1829 = vmatpush1.msra.mxu0 0.0
        %1830 = vmatprep.subr.mxu0 0.0
        %1831 = vmatpush1.msra.mxu0 0.0
        %1832 = vmatprep.subr.mxu0 0.0
        %1833 = vmatpush1.msra.mxu0 0.0
        %1834 = vmatprep.subr.mxu0 0.0
        %1835 = vmatpush1.msra.mxu0 0.0
        %1836 = vmatprep.subr.mxu0 0.0
        %1837 = vmatpush1.msra.mxu0 0.0
        %1838 = vmatprep.subr.mxu0 0.0
        %1839 = vmatpush1.msra.mxu0 0.0
        %1840 = vmatprep.subr.mxu0 0.0
        %1841 = vmatpush1.msra.mxu0 0.0
        %1842 = vmatprep.subr.mxu0 0.0
        %1843 = vmatpush1.msra.mxu0 0.0
        %1844 = vmatprep.subr.mxu0 0.0
        %1845 = vmatpush1.msra.mxu0 0.0
        %1846 = vmatprep.subr.mxu0 0.0
        %1847 = vmatpush1.msra.mxu0 0.0
        %1848 = vmatprep.mubr.f32.mxu0 0.0
        %v1849 = vand.u32 %v878, 4294901760
        %1850 = vmatmul.mubr.f32.gmra.mrb[0].mxu0 %v1849
        %v1851 = vpop.f32.mrb[0].mxu0
        %v1852 = vadd.f32 %v1691, %v1851
        %v1853 = vpop.f32.mrb[0].mxu0
        %1854 = vmatprep.mubr.f32.mxu0 0.0
        %v1855 = vand.u32 %v875, 4294901760
        %1856 = vmatmul.mubr.f32.gmra.mrb[0].mxu0 %v1855
        %v1857 = vpop.f32.mrb[0].mxu0
        %v1858 = vadd.f32 %v1701, %v1857
        %v1859 = vpop.f32.mrb[0].mxu0
        %1860 = vdwg.mxu0
        %1861 = vmatprep.subr.mxu0 0.0
        %v1862 = vand.u32 %v886, 4294901760
        %v1863 = vsub.f32 %v886, %v1862
        %1864 = vmatpush1.msra.mxu0 %v1863
        %1865 = vmatprep.subr.mxu0 0.0
        %v1866 = vand.u32 %v887, 4294901760
        %v1867 = vsub.f32 %v887, %v1866
        %1868 = vmatpush1.msra.mxu0 %v1867
        %1869 = vmatprep.subr.mxu0 0.0
        %v1870 = vand.u32 %v888, 4294901760
        %v1871 = vsub.f32 %v888, %v1870
        %1872 = vmatpush1.msra.mxu0 %v1871
        %1873 = vmatprep.subr.mxu0 0.0
        %v1874 = vand.u32 %v889, 4294901760
        %v1875 = vsub.f32 %v889, %v1874
        %1876 = vmatpush1.msra.mxu0 %v1875
        %1877 = vmatprep.subr.mxu0 0.0
        %v1878 = vand.u32 %v890, 4294901760
        %v1879 = vsub.f32 %v890, %v1878
        %1880 = vmatpush1.msra.mxu0 %v1879
        %1881 = vmatprep.subr.mxu0 0.0
        %v1882 = vand.u32 %v891, 4294901760
        %v1883 = vsub.f32 %v891, %v1882
        %1884 = vmatpush1.msra.mxu0 %v1883
        %1885 = vmatprep.subr.mxu0 0.0
        %v1886 = vand.u32 %v892, 4294901760
        %v1887 = vsub.f32 %v892, %v1886
        %1888 = vmatpush1.msra.mxu0 %v1887
        %1889 = vmatprep.subr.mxu0 0.0
        %v1890 = vand.u32 %v893, 4294901760
        %v1891 = vsub.f32 %v893, %v1890
        %1892 = vmatpush1.msra.mxu0 %v1891
        %1893 = vmatprep.subr.mxu0 0.0
        %v1894 = vand.u32 %v894, 4294901760
        %v1895 = vsub.f32 %v894, %v1894
        %1896 = vmatpush1.msra.mxu0 %v1895
        %1897 = vmatprep.subr.mxu0 0.0
        %v1898 = vand.u32 %v895, 4294901760
        %v1899 = vsub.f32 %v895, %v1898
        %1900 = vmatpush1.msra.mxu0 %v1899
        %1901 = vmatprep.subr.mxu0 0.0
        %v1902 = vand.u32 %v896, 4294901760
        %v1903 = vsub.f32 %v896, %v1902
        %1904 = vmatpush1.msra.mxu0 %v1903
        %1905 = vmatprep.subr.mxu0 0.0
        %v1906 = vand.u32 %v897, 4294901760
        %v1907 = vsub.f32 %v897, %v1906
        %1908 = vmatpush1.msra.mxu0 %v1907
        %1909 = vmatprep.subr.mxu0 0.0
        %v1910 = vand.u32 %v898, 4294901760
        %v1911 = vsub.f32 %v898, %v1910
        %1912 = vmatpush1.msra.mxu0 %v1911
        %1913 = vmatprep.subr.mxu0 0.0
        %v1914 = vand.u32 %v899, 4294901760
        %v1915 = vsub.f32 %v899, %v1914
        %1916 = vmatpush1.msra.mxu0 %v1915
        %1917 = vmatprep.subr.mxu0 0.0
        %v1918 = vand.u32 %v900, 4294901760
        %v1919 = vsub.f32 %v900, %v1918
        %1920 = vmatpush1.msra.mxu0 %v1919
        %1921 = vmatprep.subr.mxu0 0.0
        %v1922 = vand.u32 %v901, 4294901760
        %v1923 = vsub.f32 %v901, %v1922
        %1924 = vmatpush1.msra.mxu0 %v1923
        %1925 = vmatprep.subr.mxu0 0.0
        %1926 = vmatpush1.msra.mxu0 0.0
        %1927 = vmatprep.subr.mxu0 0.0
        %1928 = vmatpush1.msra.mxu0 0.0
        %1929 = vmatprep.subr.mxu0 0.0
        %1930 = vmatpush1.msra.mxu0 0.0
        %1931 = vmatprep.subr.mxu0 0.0
        %1932 = vmatpush1.msra.mxu0 0.0
        %1933 = vmatprep.subr.mxu0 0.0
        %1934 = vmatpush1.msra.mxu0 0.0
        %1935 = vmatprep.subr.mxu0 0.0
        %1936 = vmatpush1.msra.mxu0 0.0
        %1937 = vmatprep.subr.mxu0 0.0
        %1938 = vmatpush1.msra.mxu0 0.0
        %1939 = vmatprep.subr.mxu0 0.0
        %1940 = vmatpush1.msra.mxu0 0.0
        %1941 = vmatprep.subr.mxu0 0.0
        %1942 = vmatpush1.msra.mxu0 0.0
        %1943 = vmatprep.subr.mxu0 0.0
        %1944 = vmatpush1.msra.mxu0 0.0
        %1945 = vmatprep.subr.mxu0 0.0
        %1946 = vmatpush1.msra.mxu0 0.0
        %1947 = vmatprep.subr.mxu0 0.0
        %1948 = vmatpush1.msra.mxu0 0.0
        %1949 = vmatprep.subr.mxu0 0.0
        %1950 = vmatpush1.msra.mxu0 0.0
        %1951 = vmatprep.subr.mxu0 0.0
        %1952 = vmatpush1.msra.mxu0 0.0
        %1953 = vmatprep.subr.mxu0 0.0
        %1954 = vmatpush1.msra.mxu0 0.0
        %1955 = vmatprep.subr.mxu0 0.0
        %1956 = vmatpush1.msra.mxu0 0.0
        %1957 = vmatprep.mubr.f32.mxu0 0.0
        %v1958 = vand.u32 %v878, 4294901760
        %v1959 = vsub.f32 %v878, %v1958
        %1960 = vmatmul.mubr.f32.gmra.mrb[0].mxu0 %v1959
        %v1961 = vpop.f32.mrb[0].mxu0
        %v1962 = vadd.f32 %v1852, %v1961
        %v1963 = vpop.f32.mrb[0].mxu0
        %1964 = vmatprep.mubr.f32.mxu0 0.0
        %v1965 = vand.u32 %v875, 4294901760
        %v1966 = vsub.f32 %v875, %v1965
        %1967 = vmatmul.mubr.f32.gmra.mrb[0].mxu0 %v1966
        %v1968 = vpop.f32.mrb[0].mxu0
        %v1969 = vadd.f32 %v1858, %v1968
        %v1970 = vpop.f32.mrb[0].mxu0
        %1971 = vdwg.mxu0
        %1972 = vmatprep.subr.mxu0 0.0
        %v1973 = vand.u32 %v886, 4294901760
        %1974 = vmatpush1.msra.mxu0 %v1973
        %1975 = vmatprep.subr.mxu0 0.0
        %v1976 = vand.u32 %v887, 4294901760
        %1977 = vmatpush1.msra.mxu0 %v1976
        %1978 = vmatprep.subr.mxu0 0.0
        %v1979 = vand.u32 %v888, 4294901760
        %1980 = vmatpush1.msra.mxu0 %v1979
        %1981 = vmatprep.subr.mxu0 0.0
        %v1982 = vand.u32 %v889, 4294901760
        %1983 = vmatpush1.msra.mxu0 %v1982
        %1984 = vmatprep.subr.mxu0 0.0
        %v1985 = vand.u32 %v890, 4294901760
        %1986 = vmatpush1.msra.mxu0 %v1985
        %1987 = vmatprep.subr.mxu0 0.0
        %v1988 = vand.u32 %v891, 4294901760
        %1989 = vmatpush1.msra.mxu0 %v1988
        %1990 = vmatprep.subr.mxu0 0.0
        %v1991 = vand.u32 %v892, 4294901760
        %1992 = vmatpush1.msra.mxu0 %v1991
        %1993 = vmatprep.subr.mxu0 0.0
        %v1994 = vand.u32 %v893, 4294901760
        %1995 = vmatpush1.msra.mxu0 %v1994
        %1996 = vmatprep.subr.mxu0 0.0
        %v1997 = vand.u32 %v894, 4294901760
        %1998 = vmatpush1.msra.mxu0 %v1997
        %1999 = vmatprep.subr.mxu0 0.0
        %v2000 = vand.u32 %v895, 4294901760
        %2001 = vmatpush1.msra.mxu0 %v2000
        %2002 = vmatprep.subr.mxu0 0.0
        %v2003 = vand.u32 %v896, 4294901760
        %2004 = vmatpush1.msra.mxu0 %v2003
        %2005 = vmatprep.subr.mxu0 0.0
        %v2006 = vand.u32 %v897, 4294901760
        %2007 = vmatpush1.msra.mxu0 %v2006
        %2008 = vmatprep.subr.mxu0 0.0
        %v2009 = vand.u32 %v898, 4294901760
        %2010 = vmatpush1.msra.mxu0 %v2009
        %2011 = vmatprep.subr.mxu0 0.0
        %v2012 = vand.u32 %v899, 4294901760
        %2013 = vmatpush1.msra.mxu0 %v2012
        %2014 = vmatprep.subr.mxu0 0.0
        %v2015 = vand.u32 %v900, 4294901760
        %2016 = vmatpush1.msra.mxu0 %v2015
        %2017 = vmatprep.subr.mxu0 0.0
        %v2018 = vand.u32 %v901, 4294901760
        %2019 = vmatpush1.msra.mxu0 %v2018
        %2020 = vmatprep.subr.mxu0 0.0
        %2021 = vmatpush1.msra.mxu0 0.0
        %2022 = vmatprep.subr.mxu0 0.0
        %2023 = vmatpush1.msra.mxu0 0.0
        %2024 = vmatprep.subr.mxu0 0.0
        %2025 = vmatpush1.msra.mxu0 0.0
        %2026 = vmatprep.subr.mxu0 0.0
        %2027 = vmatpush1.msra.mxu0 0.0
        %2028 = vmatprep.subr.mxu0 0.0
        %2029 = vmatpush1.msra.mxu0 0.0
        %2030 = vmatprep.subr.mxu0 0.0
        %2031 = vmatpush1.msra.mxu0 0.0
        %2032 = vmatprep.subr.mxu0 0.0
        %2033 = vmatpush1.msra.mxu0 0.0
        %2034 = vmatprep.subr.mxu0 0.0
        %2035 = vmatpush1.msra.mxu0 0.0
        %2036 = vmatprep.subr.mxu0 0.0
        %2037 = vmatpush1.msra.mxu0 0.0
        %2038 = vmatprep.subr.mxu0 0.0
        %2039 = vmatpush1.msra.mxu0 0.0
        %2040 = vmatprep.subr.mxu0 0.0
        %2041 = vmatpush1.msra.mxu0 0.0
        %2042 = vmatprep.subr.mxu0 0.0
        %2043 = vmatpush1.msra.mxu0 0.0
        %2044 = vmatprep.subr.mxu0 0.0
        %2045 = vmatpush1.msra.mxu0 0.0
        %2046 = vmatprep.subr.mxu0 0.0
        %2047 = vmatpush1.msra.mxu0 0.0
        %2048 = vmatprep.subr.mxu0 0.0
        %2049 = vmatpush1.msra.mxu0 0.0
        %2050 = vmatprep.subr.mxu0 0.0
        %2051 = vmatpush1.msra.mxu0 0.0
        %2052 = vmatprep.mubr.f32.mxu0 0.0
        %v2053 = vand.u32 %v878, 4294901760
        %v2054 = vsub.f32 %v878, %v2053
        %v2055 = vand.u32 %v2054, 4294901760
        %2056 = vmatmul.mubr.f32.gmra.mrb[0].mxu0 %v2055
        %v2057 = vpop.f32.mrb[0].mxu0
        %v2058 = vadd.f32 %v1962, %v2057
        %v2059 = vpop.f32.mrb[0].mxu0
        %2060 = vmatprep.mubr.f32.mxu0 0.0
        %v2061 = vand.u32 %v875, 4294901760
        %v2062 = vsub.f32 %v875, %v2061
        %v2063 = vand.u32 %v2062, 4294901760
        %2064 = vmatmul.mubr.f32.gmra.mrb[0].mxu0 %v2063
        %v2065 = vpop.f32.mrb[0].mxu0
        %v2066 = vadd.f32 %v1969, %v2065
        %v2067 = vpop.f32.mrb[0].mxu0
        %2068 = vdwg.mxu0
        %2069 = vmatprep.subr.mxu0 0.0
        %v2070 = vand.u32 %v886, 4294901760
        %v2071 = vsub.f32 %v886, %v2070
        %v2072 = vand.u32 %v2071, 4294901760
        %2073 = vmatpush1.msra.mxu0 %v2072
        %2074 = vmatprep.subr.mxu0 0.0
        %v2075 = vand.u32 %v887, 4294901760
        %v2076 = vsub.f32 %v887, %v2075
        %v2077 = vand.u32 %v2076, 4294901760
        %2078 = vmatpush1.msra.mxu0 %v2077
        %2079 = vmatprep.subr.mxu0 0.0
        %v2080 = vand.u32 %v888, 4294901760
        %v2081 = vsub.f32 %v888, %v2080
        %v2082 = vand.u32 %v2081, 4294901760
        %2083 = vmatpush1.msra.mxu0 %v2082
        %2084 = vmatprep.subr.mxu0 0.0
        %v2085 = vand.u32 %v889, 4294901760
        %v2086 = vsub.f32 %v889, %v2085
        %v2087 = vand.u32 %v2086, 4294901760
        %2088 = vmatpush1.msra.mxu0 %v2087
        %2089 = vmatprep.subr.mxu0 0.0
        %v2090 = vand.u32 %v890, 4294901760
        %v2091 = vsub.f32 %v890, %v2090
        %v2092 = vand.u32 %v2091, 4294901760
        %2093 = vmatpush1.msra.mxu0 %v2092
        %2094 = vmatprep.subr.mxu0 0.0
        %v2095 = vand.u32 %v891, 4294901760
        %v2096 = vsub.f32 %v891, %v2095
        %v2097 = vand.u32 %v2096, 4294901760
        %2098 = vmatpush1.msra.mxu0 %v2097
        %2099 = vmatprep.subr.mxu0 0.0
        %v2100 = vand.u32 %v892, 4294901760
        %v2101 = vsub.f32 %v892, %v2100
        %v2102 = vand.u32 %v2101, 4294901760
        %2103 = vmatpush1.msra.mxu0 %v2102
        %2104 = vmatprep.subr.mxu0 0.0
        %v2105 = vand.u32 %v893, 4294901760
        %v2106 = vsub.f32 %v893, %v2105
        %v2107 = vand.u32 %v2106, 4294901760
        %2108 = vmatpush1.msra.mxu0 %v2107
        %2109 = vmatprep.subr.mxu0 0.0
        %v2110 = vand.u32 %v894, 4294901760
        %v2111 = vsub.f32 %v894, %v2110
        %v2112 = vand.u32 %v2111, 4294901760
        %2113 = vmatpush1.msra.mxu0 %v2112
        %2114 = vmatprep.subr.mxu0 0.0
        %v2115 = vand.u32 %v895, 4294901760
        %v2116 = vsub.f32 %v895, %v2115
        %v2117 = vand.u32 %v2116, 4294901760
        %2118 = vmatpush1.msra.mxu0 %v2117
        %2119 = vmatprep.subr.mxu0 0.0
        %v2120 = vand.u32 %v896, 4294901760
        %v2121 = vsub.f32 %v896, %v2120
        %v2122 = vand.u32 %v2121, 4294901760
        %2123 = vmatpush1.msra.mxu0 %v2122
        %2124 = vmatprep.subr.mxu0 0.0
        %v2125 = vand.u32 %v897, 4294901760
        %v2126 = vsub.f32 %v897, %v2125
        %v2127 = vand.u32 %v2126, 4294901760
        %2128 = vmatpush1.msra.mxu0 %v2127
        %2129 = vmatprep.subr.mxu0 0.0
        %v2130 = vand.u32 %v898, 4294901760
        %v2131 = vsub.f32 %v898, %v2130
        %v2132 = vand.u32 %v2131, 4294901760
        %2133 = vmatpush1.msra.mxu0 %v2132
        %2134 = vmatprep.subr.mxu0 0.0
        %v2135 = vand.u32 %v899, 4294901760
        %v2136 = vsub.f32 %v899, %v2135
        %v2137 = vand.u32 %v2136, 4294901760
        %2138 = vmatpush1.msra.mxu0 %v2137
        %2139 = vmatprep.subr.mxu0 0.0
        %v2140 = vand.u32 %v900, 4294901760
        %v2141 = vsub.f32 %v900, %v2140
        %v2142 = vand.u32 %v2141, 4294901760
        %2143 = vmatpush1.msra.mxu0 %v2142
        %2144 = vmatprep.subr.mxu0 0.0
        %v2145 = vand.u32 %v901, 4294901760
        %v2146 = vsub.f32 %v901, %v2145
        %v2147 = vand.u32 %v2146, 4294901760
        %2148 = vmatpush1.msra.mxu0 %v2147
        %2149 = vmatprep.subr.mxu0 0.0
        %2150 = vmatpush1.msra.mxu0 0.0
        %2151 = vmatprep.subr.mxu0 0.0
        %2152 = vmatpush1.msra.mxu0 0.0
        %2153 = vmatprep.subr.mxu0 0.0
        %2154 = vmatpush1.msra.mxu0 0.0
        %2155 = vmatprep.subr.mxu0 0.0
        %2156 = vmatpush1.msra.mxu0 0.0
        %2157 = vmatprep.subr.mxu0 0.0
        %2158 = vmatpush1.msra.mxu0 0.0
        %2159 = vmatprep.subr.mxu0 0.0
        %2160 = vmatpush1.msra.mxu0 0.0
        %2161 = vmatprep.subr.mxu0 0.0
        %2162 = vmatpush1.msra.mxu0 0.0
        %2163 = vmatprep.subr.mxu0 0.0
        %2164 = vmatpush1.msra.mxu0 0.0
        %2165 = vmatprep.subr.mxu0 0.0
        %2166 = vmatpush1.msra.mxu0 0.0
        %2167 = vmatprep.subr.mxu0 0.0
        %2168 = vmatpush1.msra.mxu0 0.0
        %2169 = vmatprep.subr.mxu0 0.0
        %2170 = vmatpush1.msra.mxu0 0.0
        %2171 = vmatprep.subr.mxu0 0.0
        %2172 = vmatpush1.msra.mxu0 0.0
        %2173 = vmatprep.subr.mxu0 0.0
        %2174 = vmatpush1.msra.mxu0 0.0
        %2175 = vmatprep.subr.mxu0 0.0
        %2176 = vmatpush1.msra.mxu0 0.0
        %2177 = vmatprep.subr.mxu0 0.0
        %2178 = vmatpush1.msra.mxu0 0.0
        %2179 = vmatprep.subr.mxu0 0.0
        %2180 = vmatpush1.msra.mxu0 0.0
        %2181 = vmatprep.mubr.f32.mxu0 0.0
        %v2182 = vand.u32 %v878, 4294901760
        %2183 = vmatmul.mubr.f32.gmra.mrb[0].mxu0 %v2182
        %v2184 = vpop.f32.mrb[0].mxu0
        %v2185 = vadd.f32 %v2058, %v2184
        %v2186 = vpop.f32.mrb[0].mxu0
        %2187 = vmatprep.mubr.f32.mxu0 0.0
        %v2188 = vand.u32 %v875, 4294901760
        %2189 = vmatmul.mubr.f32.gmra.mrb[0].mxu0 %v2188
        %v2190 = vpop.f32.mrb[0].mxu0
        %v2191 = vadd.f32 %v2066, %v2190
        %v2192 = vpop.f32.mrb[0].mxu0
        %2193 = vdwg.mxu0
        %2194 = vmatprep.subr.mxu0 0.0
        %v2195 = vand.u32 %v886, 4294901760
        %2196 = vmatpush1.msra.mxu0 %v2195
        %2197 = vmatprep.subr.mxu0 0.0
        %v2198 = vand.u32 %v887, 4294901760
        %2199 = vmatpush1.msra.mxu0 %v2198
        %2200 = vmatprep.subr.mxu0 0.0
        %v2201 = vand.u32 %v888, 4294901760
        %2202 = vmatpush1.msra.mxu0 %v2201
        %2203 = vmatprep.subr.mxu0 0.0
        %v2204 = vand.u32 %v889, 4294901760
        %2205 = vmatpush1.msra.mxu0 %v2204
        %2206 = vmatprep.subr.mxu0 0.0
        %v2207 = vand.u32 %v890, 4294901760
        %2208 = vmatpush1.msra.mxu0 %v2207
        %2209 = vmatprep.subr.mxu0 0.0
        %v2210 = vand.u32 %v891, 4294901760
        %2211 = vmatpush1.msra.mxu0 %v2210
        %2212 = vmatprep.subr.mxu0 0.0
        %v2213 = vand.u32 %v892, 4294901760
        %2214 = vmatpush1.msra.mxu0 %v2213
        %2215 = vmatprep.subr.mxu0 0.0
        %v2216 = vand.u32 %v893, 4294901760
        %2217 = vmatpush1.msra.mxu0 %v2216
        %2218 = vmatprep.subr.mxu0 0.0
        %v2219 = vand.u32 %v894, 4294901760
        %2220 = vmatpush1.msra.mxu0 %v2219
        %2221 = vmatprep.subr.mxu0 0.0
        %v2222 = vand.u32 %v895, 4294901760
        %2223 = vmatpush1.msra.mxu0 %v2222
        %2224 = vmatprep.subr.mxu0 0.0
        %v2225 = vand.u32 %v896, 4294901760
        %2226 = vmatpush1.msra.mxu0 %v2225
        %2227 = vmatprep.subr.mxu0 0.0
        %v2228 = vand.u32 %v897, 4294901760
        %2229 = vmatpush1.msra.mxu0 %v2228
        %2230 = vmatprep.subr.mxu0 0.0
        %v2231 = vand.u32 %v898, 4294901760
        %2232 = vmatpush1.msra.mxu0 %v2231
        %2233 = vmatprep.subr.mxu0 0.0
        %v2234 = vand.u32 %v899, 4294901760
        %2235 = vmatpush1.msra.mxu0 %v2234
        %2236 = vmatprep.subr.mxu0 0.0
        %v2237 = vand.u32 %v900, 4294901760
        %2238 = vmatpush1.msra.mxu0 %v2237
        %2239 = vmatprep.subr.mxu0 0.0
        %v2240 = vand.u32 %v901, 4294901760
        %2241 = vmatpush1.msra.mxu0 %v2240
        %2242 = vmatprep.subr.mxu0 0.0
        %2243 = vmatpush1.msra.mxu0 0.0
        %2244 = vmatprep.subr.mxu0 0.0
        %2245 = vmatpush1.msra.mxu0 0.0
        %2246 = vmatprep.subr.mxu0 0.0
        %2247 = vmatpush1.msra.mxu0 0.0
        %2248 = vmatprep.subr.mxu0 0.0
        %2249 = vmatpush1.msra.mxu0 0.0
        %2250 = vmatprep.subr.mxu0 0.0
        %2251 = vmatpush1.msra.mxu0 0.0
        %2252 = vmatprep.subr.mxu0 0.0
        %2253 = vmatpush1.msra.mxu0 0.0
        %2254 = vmatprep.subr.mxu0 0.0
        %2255 = vmatpush1.msra.mxu0 0.0
        %2256 = vmatprep.subr.mxu0 0.0
        %2257 = vmatpush1.msra.mxu0 0.0
        %2258 = vmatprep.subr.mxu0 0.0
        %2259 = vmatpush1.msra.mxu0 0.0
        %2260 = vmatprep.subr.mxu0 0.0
        %2261 = vmatpush1.msra.mxu0 0.0
        %2262 = vmatprep.subr.mxu0 0.0
        %2263 = vmatpush1.msra.mxu0 0.0
        %2264 = vmatprep.subr.mxu0 0.0
        %2265 = vmatpush1.msra.mxu0 0.0
        %2266 = vmatprep.subr.mxu0 0.0
        %2267 = vmatpush1.msra.mxu0 0.0
        %2268 = vmatprep.subr.mxu0 0.0
        %2269 = vmatpush1.msra.mxu0 0.0
        %2270 = vmatprep.subr.mxu0 0.0
        %2271 = vmatpush1.msra.mxu0 0.0
        %2272 = vmatprep.subr.mxu0 0.0
        %2273 = vmatpush1.msra.mxu0 0.0
        %2274 = vmatprep.mubr.f32.mxu0 0.0
        %v2275 = vand.u32 %v878, 4294901760
        %2276 = vmatmul.mubr.f32.gmra.mrb[0].mxu0 %v2275
        %v2277 = vpop.f32.mrb[0].mxu0
        %v2278 = vadd.f32 %v2185, %v2277
        %v2279 = vpop.f32.mrb[0].mxu0
        %2280 = vmatprep.mubr.f32.mxu0 0.0
        %v2281 = vand.u32 %v875, 4294901760
        %2282 = vmatmul.mubr.f32.gmra.mrb[0].mxu0 %v2281
        %v2283 = vpop.f32.mrb[0].mxu0
        %v2284 = vadd.f32 %v2191, %v2283
        %v2285 = vpop.f32.mrb[0].mxu0
        %2286 = vdwg.mxu0
        %s2287 = scalar_lea.vmem %s3, 256
        %v2288 = vld [vmem:[%s2287] sm:$0xff]
        %v2289 = vld [vmem:[%s2287 + $0x8] sm:$0xff]
        %v2290 = vld [vmem:[%s2287 + $0x10] sm:$0xff]
        %v2291 = vld [vmem:[%s2287 + $0x18] sm:$0xff]
        %v2292 = vld [vmem:[%s2287 + $0x20] sm:$0xff]
        %v2293 = vld [vmem:[%s2287 + $0x28] sm:$0xff]
        %v2294 = vld [vmem:[%s2287 + $0x30] sm:$0xff]
        %v2295 = vld [vmem:[%s2287 + $0x38] sm:$0xff]
        %v2296 = vld [vmem:[%s2287 + $0x40] sm:$0xff]
        %v2297 = vld [vmem:[%s2287 + $0x48] sm:$0xff]
        %v2298 = vld [vmem:[%s2287 + $0x50] sm:$0xff]
        %v2299 = vld [vmem:[%s2287 + $0x58] sm:$0xff]
        %v2300 = vld [vmem:[%s2287 + $0x60] sm:$0xff]
        %v2301 = vld [vmem:[%s2287 + $0x68] sm:$0xff]
        %v2302 = vld [vmem:[%s2287 + $0x70] sm:$0xff]
        %v2303 = vld [vmem:[%s2287 + $0x78] sm:$0xff]
        %2304 = vmatprep.subr.mxu0 0.0
        %v2305 = vand.u32 %v2288, 4294901760
        %2306 = vmatpush1.msra.mxu0 %v2305
        %2307 = vmatprep.subr.mxu0 0.0
        %v2308 = vand.u32 %v2289, 4294901760
        %2309 = vmatpush1.msra.mxu0 %v2308
        %2310 = vmatprep.subr.mxu0 0.0
        %v2311 = vand.u32 %v2290, 4294901760
        %2312 = vmatpush1.msra.mxu0 %v2311
        %2313 = vmatprep.subr.mxu0 0.0
        %v2314 = vand.u32 %v2291, 4294901760
        %2315 = vmatpush1.msra.mxu0 %v2314
        %2316 = vmatprep.subr.mxu0 0.0
        %v2317 = vand.u32 %v2292, 4294901760
        %2318 = vmatpush1.msra.mxu0 %v2317
        %2319 = vmatprep.subr.mxu0 0.0
        %v2320 = vand.u32 %v2293, 4294901760
        %2321 = vmatpush1.msra.mxu0 %v2320
        %2322 = vmatprep.subr.mxu0 0.0
        %v2323 = vand.u32 %v2294, 4294901760
        %2324 = vmatpush1.msra.mxu0 %v2323
        %2325 = vmatprep.subr.mxu0 0.0
        %v2326 = vand.u32 %v2295, 4294901760
        %2327 = vmatpush1.msra.mxu0 %v2326
        %2328 = vmatprep.subr.mxu0 0.0
        %v2329 = vand.u32 %v2296, 4294901760
        %2330 = vmatpush1.msra.mxu0 %v2329
        %2331 = vmatprep.subr.mxu0 0.0
        %v2332 = vand.u32 %v2297, 4294901760
        %2333 = vmatpush1.msra.mxu0 %v2332
        %2334 = vmatprep.subr.mxu0 0.0
        %v2335 = vand.u32 %v2298, 4294901760
        %2336 = vmatpush1.msra.mxu0 %v2335
        %2337 = vmatprep.subr.mxu0 0.0
        %v2338 = vand.u32 %v2299, 4294901760
        %2339 = vmatpush1.msra.mxu0 %v2338
        %2340 = vmatprep.subr.mxu0 0.0
        %v2341 = vand.u32 %v2300, 4294901760
        %2342 = vmatpush1.msra.mxu0 %v2341
        %2343 = vmatprep.subr.mxu0 0.0
        %v2344 = vand.u32 %v2301, 4294901760
        %2345 = vmatpush1.msra.mxu0 %v2344
        %2346 = vmatprep.subr.mxu0 0.0
        %v2347 = vand.u32 %v2302, 4294901760
        %2348 = vmatpush1.msra.mxu0 %v2347
        %2349 = vmatprep.subr.mxu0 0.0
        %v2350 = vand.u32 %v2303, 4294901760
        %2351 = vmatpush1.msra.mxu0 %v2350
        %2352 = vmatprep.subr.mxu0 0.0
        %2353 = vmatpush1.msra.mxu0 0.0
        %2354 = vmatprep.subr.mxu0 0.0
        %2355 = vmatpush1.msra.mxu0 0.0
        %2356 = vmatprep.subr.mxu0 0.0
        %2357 = vmatpush1.msra.mxu0 0.0
        %2358 = vmatprep.subr.mxu0 0.0
        %2359 = vmatpush1.msra.mxu0 0.0
        %2360 = vmatprep.subr.mxu0 0.0
        %2361 = vmatpush1.msra.mxu0 0.0
        %2362 = vmatprep.subr.mxu0 0.0
        %2363 = vmatpush1.msra.mxu0 0.0
        %2364 = vmatprep.subr.mxu0 0.0
        %2365 = vmatpush1.msra.mxu0 0.0
        %2366 = vmatprep.subr.mxu0 0.0
        %2367 = vmatpush1.msra.mxu0 0.0
        %2368 = vmatprep.subr.mxu0 0.0
        %2369 = vmatpush1.msra.mxu0 0.0
        %2370 = vmatprep.subr.mxu0 0.0
        %2371 = vmatpush1.msra.mxu0 0.0
        %2372 = vmatprep.subr.mxu0 0.0
        %2373 = vmatpush1.msra.mxu0 0.0
        %2374 = vmatprep.subr.mxu0 0.0
        %2375 = vmatpush1.msra.mxu0 0.0
        %2376 = vmatprep.subr.mxu0 0.0
        %2377 = vmatpush1.msra.mxu0 0.0
        %2378 = vmatprep.subr.mxu0 0.0
        %2379 = vmatpush1.msra.mxu0 0.0
        %2380 = vmatprep.subr.mxu0 0.0
        %2381 = vmatpush1.msra.mxu0 0.0
        %2382 = vmatprep.subr.mxu0 0.0
        %2383 = vmatpush1.msra.mxu0 0.0
        %2384 = vmatprep.mubr.f32.mxu0 0.0
        %v2385 = vand.u32 %v882, 4294901760
        %v2386 = vsub.f32 %v882, %v2385
        %v2387 = vand.u32 %v2386, 4294901760
        %v2388 = vsub.f32 %v2386, %v2387
        %v2389 = vand.u32 %v2388, 4294901760
        %2390 = vmatmul.mubr.f32.gmra.mrb[0].mxu0 %v2389
        %v2391 = vpop.f32.mrb[0].mxu0
        %v2392 = vadd.f32 0.0, %v2391
        %v2393 = vpop.f32.mrb[0].mxu0
        %2394 = vmatprep.mubr.f32.mxu0 0.0
        %v2395 = vand.u32 %v885, 4294901760
        %v2396 = vsub.f32 %v885, %v2395
        %v2397 = vand.u32 %v2396, 4294901760
        %v2398 = vsub.f32 %v2396, %v2397
        %v2399 = vand.u32 %v2398, 4294901760
        %2400 = vmatmul.mubr.f32.gmra.mrb[0].mxu0 %v2399
        %v2401 = vpop.f32.mrb[0].mxu0
        %v2402 = vadd.f32 0.0, %v2401
        %v2403 = vpop.f32.mrb[0].mxu0
        %2404 = vdwg.mxu0
        %2405 = vmatprep.subr.mxu0 0.0
        %v2406 = vand.u32 %v2288, 4294901760
        %v2407 = vsub.f32 %v2288, %v2406
        %v2408 = vand.u32 %v2407, 4294901760
        %v2409 = vsub.f32 %v2407, %v2408
        %v2410 = vand.u32 %v2409, 4294901760
        %2411 = vmatpush1.msra.mxu0 %v2410
        %2412 = vmatprep.subr.mxu0 0.0
        %v2413 = vand.u32 %v2289, 4294901760
        %v2414 = vsub.f32 %v2289, %v2413
        %v2415 = vand.u32 %v2414, 4294901760
        %v2416 = vsub.f32 %v2414, %v2415
        %v2417 = vand.u32 %v2416, 4294901760
        %2418 = vmatpush1.msra.mxu0 %v2417
        %2419 = vmatprep.subr.mxu0 0.0
        %v2420 = vand.u32 %v2290, 4294901760
        %v2421 = vsub.f32 %v2290, %v2420
        %v2422 = vand.u32 %v2421, 4294901760
        %v2423 = vsub.f32 %v2421, %v2422
        %v2424 = vand.u32 %v2423, 4294901760
        %2425 = vmatpush1.msra.mxu0 %v2424
        %2426 = vmatprep.subr.mxu0 0.0
        %v2427 = vand.u32 %v2291, 4294901760
        %v2428 = vsub.f32 %v2291, %v2427
        %v2429 = vand.u32 %v2428, 4294901760
        %v2430 = vsub.f32 %v2428, %v2429
        %v2431 = vand.u32 %v2430, 4294901760
        %2432 = vmatpush1.msra.mxu0 %v2431
        %2433 = vmatprep.subr.mxu0 0.0
        %v2434 = vand.u32 %v2292, 4294901760
        %v2435 = vsub.f32 %v2292, %v2434
        %v2436 = vand.u32 %v2435, 4294901760
        %v2437 = vsub.f32 %v2435, %v2436
        %v2438 = vand.u32 %v2437, 4294901760
        %2439 = vmatpush1.msra.mxu0 %v2438
        %2440 = vmatprep.subr.mxu0 0.0
        %v2441 = vand.u32 %v2293, 4294901760
        %v2442 = vsub.f32 %v2293, %v2441
        %v2443 = vand.u32 %v2442, 4294901760
        %v2444 = vsub.f32 %v2442, %v2443
        %v2445 = vand.u32 %v2444, 4294901760
        %2446 = vmatpush1.msra.mxu0 %v2445
        %2447 = vmatprep.subr.mxu0 0.0
        %v2448 = vand.u32 %v2294, 4294901760
        %v2449 = vsub.f32 %v2294, %v2448
        %v2450 = vand.u32 %v2449, 4294901760
        %v2451 = vsub.f32 %v2449, %v2450
        %v2452 = vand.u32 %v2451, 4294901760
        %2453 = vmatpush1.msra.mxu0 %v2452
        %2454 = vmatprep.subr.mxu0 0.0
        %v2455 = vand.u32 %v2295, 4294901760
        %v2456 = vsub.f32 %v2295, %v2455
        %v2457 = vand.u32 %v2456, 4294901760
        %v2458 = vsub.f32 %v2456, %v2457
        %v2459 = vand.u32 %v2458, 4294901760
        %2460 = vmatpush1.msra.mxu0 %v2459
        %2461 = vmatprep.subr.mxu0 0.0
        %v2462 = vand.u32 %v2296, 4294901760
        %v2463 = vsub.f32 %v2296, %v2462
        %v2464 = vand.u32 %v2463, 4294901760
        %v2465 = vsub.f32 %v2463, %v2464
        %v2466 = vand.u32 %v2465, 4294901760
        %2467 = vmatpush1.msra.mxu0 %v2466
        %2468 = vmatprep.subr.mxu0 0.0
        %v2469 = vand.u32 %v2297, 4294901760
        %v2470 = vsub.f32 %v2297, %v2469
        %v2471 = vand.u32 %v2470, 4294901760
        %v2472 = vsub.f32 %v2470, %v2471
        %v2473 = vand.u32 %v2472, 4294901760
        %2474 = vmatpush1.msra.mxu0 %v2473
        %2475 = vmatprep.subr.mxu0 0.0
        %v2476 = vand.u32 %v2298, 4294901760
        %v2477 = vsub.f32 %v2298, %v2476
        %v2478 = vand.u32 %v2477, 4294901760
        %v2479 = vsub.f32 %v2477, %v2478
        %v2480 = vand.u32 %v2479, 4294901760
        %2481 = vmatpush1.msra.mxu0 %v2480
        %2482 = vmatprep.subr.mxu0 0.0
        %v2483 = vand.u32 %v2299, 4294901760
        %v2484 = vsub.f32 %v2299, %v2483
        %v2485 = vand.u32 %v2484, 4294901760
        %v2486 = vsub.f32 %v2484, %v2485
        %v2487 = vand.u32 %v2486, 4294901760
        %2488 = vmatpush1.msra.mxu0 %v2487
        %2489 = vmatprep.subr.mxu0 0.0
        %v2490 = vand.u32 %v2300, 4294901760
        %v2491 = vsub.f32 %v2300, %v2490
        %v2492 = vand.u32 %v2491, 4294901760
        %v2493 = vsub.f32 %v2491, %v2492
        %v2494 = vand.u32 %v2493, 4294901760
        %2495 = vmatpush1.msra.mxu0 %v2494
        %2496 = vmatprep.subr.mxu0 0.0
        %v2497 = vand.u32 %v2301, 4294901760
        %v2498 = vsub.f32 %v2301, %v2497
        %v2499 = vand.u32 %v2498, 4294901760
        %v2500 = vsub.f32 %v2498, %v2499
        %v2501 = vand.u32 %v2500, 4294901760
        %2502 = vmatpush1.msra.mxu0 %v2501
        %2503 = vmatprep.subr.mxu0 0.0
        %v2504 = vand.u32 %v2302, 4294901760
        %v2505 = vsub.f32 %v2302, %v2504
        %v2506 = vand.u32 %v2505, 4294901760
        %v2507 = vsub.f32 %v2505, %v2506
        %v2508 = vand.u32 %v2507, 4294901760
        %2509 = vmatpush1.msra.mxu0 %v2508
        %2510 = vmatprep.subr.mxu0 0.0
        %v2511 = vand.u32 %v2303, 4294901760
        %v2512 = vsub.f32 %v2303, %v2511
        %v2513 = vand.u32 %v2512, 4294901760
        %v2514 = vsub.f32 %v2512, %v2513
        %v2515 = vand.u32 %v2514, 4294901760
        %2516 = vmatpush1.msra.mxu0 %v2515
        %2517 = vmatprep.subr.mxu0 0.0
        %2518 = vmatpush1.msra.mxu0 0.0
        %2519 = vmatprep.subr.mxu0 0.0
        %2520 = vmatpush1.msra.mxu0 0.0
        %2521 = vmatprep.subr.mxu0 0.0
        %2522 = vmatpush1.msra.mxu0 0.0
        %2523 = vmatprep.subr.mxu0 0.0
        %2524 = vmatpush1.msra.mxu0 0.0
        %2525 = vmatprep.subr.mxu0 0.0
        %2526 = vmatpush1.msra.mxu0 0.0
        %2527 = vmatprep.subr.mxu0 0.0
        %2528 = vmatpush1.msra.mxu0 0.0
        %2529 = vmatprep.subr.mxu0 0.0
        %2530 = vmatpush1.msra.mxu0 0.0
        %2531 = vmatprep.subr.mxu0 0.0
        %2532 = vmatpush1.msra.mxu0 0.0
        %2533 = vmatprep.subr.mxu0 0.0
        %2534 = vmatpush1.msra.mxu0 0.0
        %2535 = vmatprep.subr.mxu0 0.0
        %2536 = vmatpush1.msra.mxu0 0.0
        %2537 = vmatprep.subr.mxu0 0.0
        %2538 = vmatpush1.msra.mxu0 0.0
        %2539 = vmatprep.subr.mxu0 0.0
        %2540 = vmatpush1.msra.mxu0 0.0
        %2541 = vmatprep.subr.mxu0 0.0
        %2542 = vmatpush1.msra.mxu0 0.0
        %2543 = vmatprep.subr.mxu0 0.0
        %2544 = vmatpush1.msra.mxu0 0.0
        %2545 = vmatprep.subr.mxu0 0.0
        %2546 = vmatpush1.msra.mxu0 0.0
        %2547 = vmatprep.subr.mxu0 0.0
        %2548 = vmatpush1.msra.mxu0 0.0
        %2549 = vmatprep.mubr.f32.mxu0 0.0
        %v2550 = vand.u32 %v882, 4294901760
        %2551 = vmatmul.mubr.f32.gmra.mrb[0].mxu0 %v2550
        %v2552 = vpop.f32.mrb[0].mxu0
        %v2553 = vadd.f32 %v2392, %v2552
        %v2554 = vpop.f32.mrb[0].mxu0
        %2555 = vmatprep.mubr.f32.mxu0 0.0
        %v2556 = vand.u32 %v885, 4294901760
        %2557 = vmatmul.mubr.f32.gmra.mrb[0].mxu0 %v2556
        %v2558 = vpop.f32.mrb[0].mxu0
        %v2559 = vadd.f32 %v2402, %v2558
        %v2560 = vpop.f32.mrb[0].mxu0
        %2561 = vdwg.mxu0
        %2562 = vmatprep.subr.mxu0 0.0
        %v2563 = vand.u32 %v2288, 4294901760
        %v2564 = vsub.f32 %v2288, %v2563
        %2565 = vmatpush1.msra.mxu0 %v2564
        %2566 = vmatprep.subr.mxu0 0.0
        %v2567 = vand.u32 %v2289, 4294901760
        %v2568 = vsub.f32 %v2289, %v2567
        %2569 = vmatpush1.msra.mxu0 %v2568
        %2570 = vmatprep.subr.mxu0 0.0
        %v2571 = vand.u32 %v2290, 4294901760
        %v2572 = vsub.f32 %v2290, %v2571
        %2573 = vmatpush1.msra.mxu0 %v2572
        %2574 = vmatprep.subr.mxu0 0.0
        %v2575 = vand.u32 %v2291, 4294901760
        %v2576 = vsub.f32 %v2291, %v2575
        %2577 = vmatpush1.msra.mxu0 %v2576
        %2578 = vmatprep.subr.mxu0 0.0
        %v2579 = vand.u32 %v2292, 4294901760
        %v2580 = vsub.f32 %v2292, %v2579
        %2581 = vmatpush1.msra.mxu0 %v2580
        %2582 = vmatprep.subr.mxu0 0.0
        %v2583 = vand.u32 %v2293, 4294901760
        %v2584 = vsub.f32 %v2293, %v2583
        %2585 = vmatpush1.msra.mxu0 %v2584
        %2586 = vmatprep.subr.mxu0 0.0
        %v2587 = vand.u32 %v2294, 4294901760
        %v2588 = vsub.f32 %v2294, %v2587
        %2589 = vmatpush1.msra.mxu0 %v2588
        %2590 = vmatprep.subr.mxu0 0.0
        %v2591 = vand.u32 %v2295, 4294901760
        %v2592 = vsub.f32 %v2295, %v2591
        %2593 = vmatpush1.msra.mxu0 %v2592
        %2594 = vmatprep.subr.mxu0 0.0
        %v2595 = vand.u32 %v2296, 4294901760
        %v2596 = vsub.f32 %v2296, %v2595
        %2597 = vmatpush1.msra.mxu0 %v2596
        %2598 = vmatprep.subr.mxu0 0.0
        %v2599 = vand.u32 %v2297, 4294901760
        %v2600 = vsub.f32 %v2297, %v2599
        %2601 = vmatpush1.msra.mxu0 %v2600
        %2602 = vmatprep.subr.mxu0 0.0
        %v2603 = vand.u32 %v2298, 4294901760
        %v2604 = vsub.f32 %v2298, %v2603
        %2605 = vmatpush1.msra.mxu0 %v2604
        %2606 = vmatprep.subr.mxu0 0.0
        %v2607 = vand.u32 %v2299, 4294901760
        %v2608 = vsub.f32 %v2299, %v2607
        %2609 = vmatpush1.msra.mxu0 %v2608
        %2610 = vmatprep.subr.mxu0 0.0
        %v2611 = vand.u32 %v2300, 4294901760
        %v2612 = vsub.f32 %v2300, %v2611
        %2613 = vmatpush1.msra.mxu0 %v2612
        %2614 = vmatprep.subr.mxu0 0.0
        %v2615 = vand.u32 %v2301, 4294901760
        %v2616 = vsub.f32 %v2301, %v2615
        %2617 = vmatpush1.msra.mxu0 %v2616
        %2618 = vmatprep.subr.mxu0 0.0
        %v2619 = vand.u32 %v2302, 4294901760
        %v2620 = vsub.f32 %v2302, %v2619
        %2621 = vmatpush1.msra.mxu0 %v2620
        %2622 = vmatprep.subr.mxu0 0.0
        %v2623 = vand.u32 %v2303, 4294901760
        %v2624 = vsub.f32 %v2303, %v2623
        %2625 = vmatpush1.msra.mxu0 %v2624
        %2626 = vmatprep.subr.mxu0 0.0
        %2627 = vmatpush1.msra.mxu0 0.0
        %2628 = vmatprep.subr.mxu0 0.0
        %2629 = vmatpush1.msra.mxu0 0.0
        %2630 = vmatprep.subr.mxu0 0.0
        %2631 = vmatpush1.msra.mxu0 0.0
        %2632 = vmatprep.subr.mxu0 0.0
        %2633 = vmatpush1.msra.mxu0 0.0
        %2634 = vmatprep.subr.mxu0 0.0
        %2635 = vmatpush1.msra.mxu0 0.0
        %2636 = vmatprep.subr.mxu0 0.0
        %2637 = vmatpush1.msra.mxu0 0.0
        %2638 = vmatprep.subr.mxu0 0.0
        %2639 = vmatpush1.msra.mxu0 0.0
        %2640 = vmatprep.subr.mxu0 0.0
        %2641 = vmatpush1.msra.mxu0 0.0
        %2642 = vmatprep.subr.mxu0 0.0
        %2643 = vmatpush1.msra.mxu0 0.0
        %2644 = vmatprep.subr.mxu0 0.0
        %2645 = vmatpush1.msra.mxu0 0.0
        %2646 = vmatprep.subr.mxu0 0.0
        %2647 = vmatpush1.msra.mxu0 0.0
        %2648 = vmatprep.subr.mxu0 0.0
        %2649 = vmatpush1.msra.mxu0 0.0
        %2650 = vmatprep.subr.mxu0 0.0
        %2651 = vmatpush1.msra.mxu0 0.0
        %2652 = vmatprep.subr.mxu0 0.0
        %2653 = vmatpush1.msra.mxu0 0.0
        %2654 = vmatprep.subr.mxu0 0.0
        %2655 = vmatpush1.msra.mxu0 0.0
        %2656 = vmatprep.subr.mxu0 0.0
        %2657 = vmatpush1.msra.mxu0 0.0
        %2658 = vmatprep.mubr.f32.mxu0 0.0
        %v2659 = vand.u32 %v882, 4294901760
        %v2660 = vsub.f32 %v882, %v2659
        %2661 = vmatmul.mubr.f32.gmra.mrb[0].mxu0 %v2660
        %v2662 = vpop.f32.mrb[0].mxu0
        %v2663 = vadd.f32 %v2553, %v2662
        %v2664 = vpop.f32.mrb[0].mxu0
        %2665 = vmatprep.mubr.f32.mxu0 0.0
        %v2666 = vand.u32 %v885, 4294901760
        %v2667 = vsub.f32 %v885, %v2666
        %2668 = vmatmul.mubr.f32.gmra.mrb[0].mxu0 %v2667
        %v2669 = vpop.f32.mrb[0].mxu0
        %v2670 = vadd.f32 %v2559, %v2669
        %v2671 = vpop.f32.mrb[0].mxu0
        %2672 = vdwg.mxu0
        %2673 = vmatprep.subr.mxu0 0.0
        %v2674 = vand.u32 %v2288, 4294901760
        %2675 = vmatpush1.msra.mxu0 %v2674
        %2676 = vmatprep.subr.mxu0 0.0
        %v2677 = vand.u32 %v2289, 4294901760
        %2678 = vmatpush1.msra.mxu0 %v2677
        %2679 = vmatprep.subr.mxu0 0.0
        %v2680 = vand.u32 %v2290, 4294901760
        %2681 = vmatpush1.msra.mxu0 %v2680
        %2682 = vmatprep.subr.mxu0 0.0
        %v2683 = vand.u32 %v2291, 4294901760
        %2684 = vmatpush1.msra.mxu0 %v2683
        %2685 = vmatprep.subr.mxu0 0.0
        %v2686 = vand.u32 %v2292, 4294901760
        %2687 = vmatpush1.msra.mxu0 %v2686
        %2688 = vmatprep.subr.mxu0 0.0
        %v2689 = vand.u32 %v2293, 4294901760
        %2690 = vmatpush1.msra.mxu0 %v2689
        %2691 = vmatprep.subr.mxu0 0.0
        %v2692 = vand.u32 %v2294, 4294901760
        %2693 = vmatpush1.msra.mxu0 %v2692
        %2694 = vmatprep.subr.mxu0 0.0
        %v2695 = vand.u32 %v2295, 4294901760
        %2696 = vmatpush1.msra.mxu0 %v2695
        %2697 = vmatprep.subr.mxu0 0.0
        %v2698 = vand.u32 %v2296, 4294901760
        %2699 = vmatpush1.msra.mxu0 %v2698
        %2700 = vmatprep.subr.mxu0 0.0
        %v2701 = vand.u32 %v2297, 4294901760
        %2702 = vmatpush1.msra.mxu0 %v2701
        %2703 = vmatprep.subr.mxu0 0.0
        %v2704 = vand.u32 %v2298, 4294901760
        %2705 = vmatpush1.msra.mxu0 %v2704
        %2706 = vmatprep.subr.mxu0 0.0
        %v2707 = vand.u32 %v2299, 4294901760
        %2708 = vmatpush1.msra.mxu0 %v2707
        %2709 = vmatprep.subr.mxu0 0.0
        %v2710 = vand.u32 %v2300, 4294901760
        %2711 = vmatpush1.msra.mxu0 %v2710
        %2712 = vmatprep.subr.mxu0 0.0
        %v2713 = vand.u32 %v2301, 4294901760
        %2714 = vmatpush1.msra.mxu0 %v2713
        %2715 = vmatprep.subr.mxu0 0.0
        %v2716 = vand.u32 %v2302, 4294901760
        %2717 = vmatpush1.msra.mxu0 %v2716
        %2718 = vmatprep.subr.mxu0 0.0
        %v2719 = vand.u32 %v2303, 4294901760
        %2720 = vmatpush1.msra.mxu0 %v2719
        %2721 = vmatprep.subr.mxu0 0.0
        %2722 = vmatpush1.msra.mxu0 0.0
        %2723 = vmatprep.subr.mxu0 0.0
        %2724 = vmatpush1.msra.mxu0 0.0
        %2725 = vmatprep.subr.mxu0 0.0
        %2726 = vmatpush1.msra.mxu0 0.0
        %2727 = vmatprep.subr.mxu0 0.0
        %2728 = vmatpush1.msra.mxu0 0.0
        %2729 = vmatprep.subr.mxu0 0.0
        %2730 = vmatpush1.msra.mxu0 0.0
        %2731 = vmatprep.subr.mxu0 0.0
        %2732 = vmatpush1.msra.mxu0 0.0
        %2733 = vmatprep.subr.mxu0 0.0
        %2734 = vmatpush1.msra.mxu0 0.0
        %2735 = vmatprep.subr.mxu0 0.0
        %2736 = vmatpush1.msra.mxu0 0.0
        %2737 = vmatprep.subr.mxu0 0.0
        %2738 = vmatpush1.msra.mxu0 0.0
        %2739 = vmatprep.subr.mxu0 0.0
        %2740 = vmatpush1.msra.mxu0 0.0
        %2741 = vmatprep.subr.mxu0 0.0
        %2742 = vmatpush1.msra.mxu0 0.0
        %2743 = vmatprep.subr.mxu0 0.0
        %2744 = vmatpush1.msra.mxu0 0.0
        %2745 = vmatprep.subr.mxu0 0.0
        %2746 = vmatpush1.msra.mxu0 0.0
        %2747 = vmatprep.subr.mxu0 0.0
        %2748 = vmatpush1.msra.mxu0 0.0
        %2749 = vmatprep.subr.mxu0 0.0
        %2750 = vmatpush1.msra.mxu0 0.0
        %2751 = vmatprep.subr.mxu0 0.0
        %2752 = vmatpush1.msra.mxu0 0.0
        %2753 = vmatprep.mubr.f32.mxu0 0.0
        %v2754 = vand.u32 %v882, 4294901760
        %v2755 = vsub.f32 %v882, %v2754
        %v2756 = vand.u32 %v2755, 4294901760
        %2757 = vmatmul.mubr.f32.gmra.mrb[0].mxu0 %v2756
        %v2758 = vpop.f32.mrb[0].mxu0
        %v2759 = vadd.f32 %v2663, %v2758
        %v2760 = vpop.f32.mrb[0].mxu0
        %2761 = vmatprep.mubr.f32.mxu0 0.0
        %v2762 = vand.u32 %v885, 4294901760
        %v2763 = vsub.f32 %v885, %v2762
        %v2764 = vand.u32 %v2763, 4294901760
        %2765 = vmatmul.mubr.f32.gmra.mrb[0].mxu0 %v2764
        %v2766 = vpop.f32.mrb[0].mxu0
        %v2767 = vadd.f32 %v2670, %v2766
        %v2768 = vpop.f32.mrb[0].mxu0
        %2769 = vdwg.mxu0
        %2770 = vmatprep.subr.mxu0 0.0
        %v2771 = vand.u32 %v2288, 4294901760
        %v2772 = vsub.f32 %v2288, %v2771
        %v2773 = vand.u32 %v2772, 4294901760
        %2774 = vmatpush1.msra.mxu0 %v2773
        %2775 = vmatprep.subr.mxu0 0.0
        %v2776 = vand.u32 %v2289, 4294901760
        %v2777 = vsub.f32 %v2289, %v2776
        %v2778 = vand.u32 %v2777, 4294901760
        %2779 = vmatpush1.msra.mxu0 %v2778
        %2780 = vmatprep.subr.mxu0 0.0
        %v2781 = vand.u32 %v2290, 4294901760
        %v2782 = vsub.f32 %v2290, %v2781
        %v2783 = vand.u32 %v2782, 4294901760
        %2784 = vmatpush1.msra.mxu0 %v2783
        %2785 = vmatprep.subr.mxu0 0.0
        %v2786 = vand.u32 %v2291, 4294901760
        %v2787 = vsub.f32 %v2291, %v2786
        %v2788 = vand.u32 %v2787, 4294901760
        %2789 = vmatpush1.msra.mxu0 %v2788
        %2790 = vmatprep.subr.mxu0 0.0
        %v2791 = vand.u32 %v2292, 4294901760
        %v2792 = vsub.f32 %v2292, %v2791
        %v2793 = vand.u32 %v2792, 4294901760
        %2794 = vmatpush1.msra.mxu0 %v2793
        %2795 = vmatprep.subr.mxu0 0.0
        %v2796 = vand.u32 %v2293, 4294901760
        %v2797 = vsub.f32 %v2293, %v2796
        %v2798 = vand.u32 %v2797, 4294901760
        %2799 = vmatpush1.msra.mxu0 %v2798
        %2800 = vmatprep.subr.mxu0 0.0
        %v2801 = vand.u32 %v2294, 4294901760
        %v2802 = vsub.f32 %v2294, %v2801
        %v2803 = vand.u32 %v2802, 4294901760
        %2804 = vmatpush1.msra.mxu0 %v2803
        %2805 = vmatprep.subr.mxu0 0.0
        %v2806 = vand.u32 %v2295, 4294901760
        %v2807 = vsub.f32 %v2295, %v2806
        %v2808 = vand.u32 %v2807, 4294901760
        %2809 = vmatpush1.msra.mxu0 %v2808
        %2810 = vmatprep.subr.mxu0 0.0
        %v2811 = vand.u32 %v2296, 4294901760
        %v2812 = vsub.f32 %v2296, %v2811
        %v2813 = vand.u32 %v2812, 4294901760
        %2814 = vmatpush1.msra.mxu0 %v2813
        %2815 = vmatprep.subr.mxu0 0.0
        %v2816 = vand.u32 %v2297, 4294901760
        %v2817 = vsub.f32 %v2297, %v2816
        %v2818 = vand.u32 %v2817, 4294901760
        %2819 = vmatpush1.msra.mxu0 %v2818
        %2820 = vmatprep.subr.mxu0 0.0
        %v2821 = vand.u32 %v2298, 4294901760
        %v2822 = vsub.f32 %v2298, %v2821
        %v2823 = vand.u32 %v2822, 4294901760
        %2824 = vmatpush1.msra.mxu0 %v2823
        %2825 = vmatprep.subr.mxu0 0.0
        %v2826 = vand.u32 %v2299, 4294901760
        %v2827 = vsub.f32 %v2299, %v2826
        %v2828 = vand.u32 %v2827, 4294901760
        %2829 = vmatpush1.msra.mxu0 %v2828
        %2830 = vmatprep.subr.mxu0 0.0
        %v2831 = vand.u32 %v2300, 4294901760
        %v2832 = vsub.f32 %v2300, %v2831
        %v2833 = vand.u32 %v2832, 4294901760
        %2834 = vmatpush1.msra.mxu0 %v2833
        %2835 = vmatprep.subr.mxu0 0.0
        %v2836 = vand.u32 %v2301, 4294901760
        %v2837 = vsub.f32 %v2301, %v2836
        %v2838 = vand.u32 %v2837, 4294901760
        %2839 = vmatpush1.msra.mxu0 %v2838
        %2840 = vmatprep.subr.mxu0 0.0
        %v2841 = vand.u32 %v2302, 4294901760
        %v2842 = vsub.f32 %v2302, %v2841
        %v2843 = vand.u32 %v2842, 4294901760
        %2844 = vmatpush1.msra.mxu0 %v2843
        %2845 = vmatprep.subr.mxu0 0.0
        %v2846 = vand.u32 %v2303, 4294901760
        %v2847 = vsub.f32 %v2303, %v2846
        %v2848 = vand.u32 %v2847, 4294901760
        %2849 = vmatpush1.msra.mxu0 %v2848
        %2850 = vmatprep.subr.mxu0 0.0
        %2851 = vmatpush1.msra.mxu0 0.0
        %2852 = vmatprep.subr.mxu0 0.0
        %2853 = vmatpush1.msra.mxu0 0.0
        %2854 = vmatprep.subr.mxu0 0.0
        %2855 = vmatpush1.msra.mxu0 0.0
        %2856 = vmatprep.subr.mxu0 0.0
        %2857 = vmatpush1.msra.mxu0 0.0
        %2858 = vmatprep.subr.mxu0 0.0
        %2859 = vmatpush1.msra.mxu0 0.0
        %2860 = vmatprep.subr.mxu0 0.0
        %2861 = vmatpush1.msra.mxu0 0.0
        %2862 = vmatprep.subr.mxu0 0.0
        %2863 = vmatpush1.msra.mxu0 0.0
        %2864 = vmatprep.subr.mxu0 0.0
        %2865 = vmatpush1.msra.mxu0 0.0
        %2866 = vmatprep.subr.mxu0 0.0
        %2867 = vmatpush1.msra.mxu0 0.0
        %2868 = vmatprep.subr.mxu0 0.0
        %2869 = vmatpush1.msra.mxu0 0.0
        %2870 = vmatprep.subr.mxu0 0.0
        %2871 = vmatpush1.msra.mxu0 0.0
        %2872 = vmatprep.subr.mxu0 0.0
        %2873 = vmatpush1.msra.mxu0 0.0
        %2874 = vmatprep.subr.mxu0 0.0
        %2875 = vmatpush1.msra.mxu0 0.0
        %2876 = vmatprep.subr.mxu0 0.0
        %2877 = vmatpush1.msra.mxu0 0.0
        %2878 = vmatprep.subr.mxu0 0.0
        %2879 = vmatpush1.msra.mxu0 0.0
        %2880 = vmatprep.subr.mxu0 0.0
        %2881 = vmatpush1.msra.mxu0 0.0
        %2882 = vmatprep.mubr.f32.mxu0 0.0
        %v2883 = vand.u32 %v882, 4294901760
        %2884 = vmatmul.mubr.f32.gmra.mrb[0].mxu0 %v2883
        %v2885 = vpop.f32.mrb[0].mxu0
        %v2886 = vadd.f32 %v2759, %v2885
        %v2887 = vpop.f32.mrb[0].mxu0
        %2888 = vmatprep.mubr.f32.mxu0 0.0
        %v2889 = vand.u32 %v885, 4294901760
        %2890 = vmatmul.mubr.f32.gmra.mrb[0].mxu0 %v2889
        %v2891 = vpop.f32.mrb[0].mxu0
        %v2892 = vadd.f32 %v2767, %v2891
        %v2893 = vpop.f32.mrb[0].mxu0
        %2894 = vdwg.mxu0
        %2895 = vmatprep.subr.mxu0 0.0
        %v2896 = vand.u32 %v2288, 4294901760
        %2897 = vmatpush1.msra.mxu0 %v2896
        %2898 = vmatprep.subr.mxu0 0.0
        %v2899 = vand.u32 %v2289, 4294901760
        %2900 = vmatpush1.msra.mxu0 %v2899
        %2901 = vmatprep.subr.mxu0 0.0
        %v2902 = vand.u32 %v2290, 4294901760
        %2903 = vmatpush1.msra.mxu0 %v2902
        %2904 = vmatprep.subr.mxu0 0.0
        %v2905 = vand.u32 %v2291, 4294901760
        %2906 = vmatpush1.msra.mxu0 %v2905
        %2907 = vmatprep.subr.mxu0 0.0
        %v2908 = vand.u32 %v2292, 4294901760
        %2909 = vmatpush1.msra.mxu0 %v2908
        %2910 = vmatprep.subr.mxu0 0.0
        %v2911 = vand.u32 %v2293, 4294901760
        %2912 = vmatpush1.msra.mxu0 %v2911
        %2913 = vmatprep.subr.mxu0 0.0
        %v2914 = vand.u32 %v2294, 4294901760
        %2915 = vmatpush1.msra.mxu0 %v2914
        %2916 = vmatprep.subr.mxu0 0.0
        %v2917 = vand.u32 %v2295, 4294901760
        %2918 = vmatpush1.msra.mxu0 %v2917
        %2919 = vmatprep.subr.mxu0 0.0
        %v2920 = vand.u32 %v2296, 4294901760
        %2921 = vmatpush1.msra.mxu0 %v2920
        %2922 = vmatprep.subr.mxu0 0.0
        %v2923 = vand.u32 %v2297, 4294901760
        %2924 = vmatpush1.msra.mxu0 %v2923
        %2925 = vmatprep.subr.mxu0 0.0
        %v2926 = vand.u32 %v2298, 4294901760
        %2927 = vmatpush1.msra.mxu0 %v2926
        %2928 = vmatprep.subr.mxu0 0.0
        %v2929 = vand.u32 %v2299, 4294901760
        %2930 = vmatpush1.msra.mxu0 %v2929
        %2931 = vmatprep.subr.mxu0 0.0
        %v2932 = vand.u32 %v2300, 4294901760
        %2933 = vmatpush1.msra.mxu0 %v2932
        %2934 = vmatprep.subr.mxu0 0.0
        %v2935 = vand.u32 %v2301, 4294901760
        %2936 = vmatpush1.msra.mxu0 %v2935
        %2937 = vmatprep.subr.mxu0 0.0
        %v2938 = vand.u32 %v2302, 4294901760
        %2939 = vmatpush1.msra.mxu0 %v2938
        %2940 = vmatprep.subr.mxu0 0.0
        %v2941 = vand.u32 %v2303, 4294901760
        %2942 = vmatpush1.msra.mxu0 %v2941
        %2943 = vmatprep.subr.mxu0 0.0
        %2944 = vmatpush1.msra.mxu0 0.0
        %2945 = vmatprep.subr.mxu0 0.0
        %2946 = vmatpush1.msra.mxu0 0.0
        %2947 = vmatprep.subr.mxu0 0.0
        %2948 = vmatpush1.msra.mxu0 0.0
        %2949 = vmatprep.subr.mxu0 0.0
        %2950 = vmatpush1.msra.mxu0 0.0
        %2951 = vmatprep.subr.mxu0 0.0
        %2952 = vmatpush1.msra.mxu0 0.0
        %2953 = vmatprep.subr.mxu0 0.0
        %2954 = vmatpush1.msra.mxu0 0.0
        %2955 = vmatprep.subr.mxu0 0.0
        %2956 = vmatpush1.msra.mxu0 0.0
        %2957 = vmatprep.subr.mxu0 0.0
        %2958 = vmatpush1.msra.mxu0 0.0
        %2959 = vmatprep.subr.mxu0 0.0
        %2960 = vmatpush1.msra.mxu0 0.0
        %2961 = vmatprep.subr.mxu0 0.0
        %2962 = vmatpush1.msra.mxu0 0.0
        %2963 = vmatprep.subr.mxu0 0.0
        %2964 = vmatpush1.msra.mxu0 0.0
        %2965 = vmatprep.subr.mxu0 0.0
        %2966 = vmatpush1.msra.mxu0 0.0
        %2967 = vmatprep.subr.mxu0 0.0
        %2968 = vmatpush1.msra.mxu0 0.0
        %2969 = vmatprep.subr.mxu0 0.0
        %2970 = vmatpush1.msra.mxu0 0.0
        %2971 = vmatprep.subr.mxu0 0.0
        %2972 = vmatpush1.msra.mxu0 0.0
        %2973 = vmatprep.subr.mxu0 0.0
        %2974 = vmatpush1.msra.mxu0 0.0
        %2975 = vmatprep.mubr.f32.mxu0 0.0
        %v2976 = vand.u32 %v882, 4294901760
        %2977 = vmatmul.mubr.f32.gmra.mrb[0].mxu0 %v2976
        %v2978 = vpop.f32.mrb[0].mxu0
        %v2979 = vadd.f32 %v2886, %v2978
        %v2980 = vpop.f32.mrb[0].mxu0
        %2981 = vmatprep.mubr.f32.mxu0 0.0
        %v2982 = vand.u32 %v885, 4294901760
        %2983 = vmatmul.mubr.f32.gmra.mrb[0].mxu0 %v2982
        %v2984 = vpop.f32.mrb[0].mxu0
        %v2985 = vadd.f32 %v2892, %v2984
        %v2986 = vpop.f32.mrb[0].mxu0
        %2987 = vdwg.mxu0
        %v2988 = vadd.f32 %v2278, %v2979
        %v2989 = vadd.f32 %v2284, %v2985
        %v2990 = vld [vmem:[%s4] sm:$0x1]
        %v2991 = vld [vmem:[%s5] sm:$0x1]
        %v2993 = vlaneseq
        %v2994 = vshrl.u32 %v2993, 7
        %v2995 = vsub.s32 0, %v2994
        %v2996 = vrot.slane %v2990, %v2995
        %v2998 = vmul.f32 %v2988, %v2996
        %v2999 = vmul.f32 %v2989, %v2996
        %v3001 = vlaneseq
        %v3002 = vshrl.u32 %v3001, 7
        %v3003 = vsub.s32 0, %v3002
        %v3004 = vrot.slane %v2991, %v3003
        %v3006 = vadd.f32 %v2998, %v3004
        %v3007 = vadd.f32 %v2999, %v3004
        %v3008 = vmax.f32 %v3006, 0.0
        %v3009 = vmax.f32 %v3007, 0.0
        %v3012 = vrot.slane %v3008, 7
        %v3013 = vrot.slane %v3009, 7
        %v3014 = vsel %vm872, %v3012, %v3013
        %v3017 = vsel %vm872, 0.0, %v3012
        %v3018 = vrot.slane %v3008, 1
        %v3019 = vrot.slane %v3009, 1
        %v3020 = vsel %vm879, %v3018, %v3019
        %v3023 = vsel %vm879, %v3019, 0.0
        %v3024 = vld [vmem:[#allocation2] sm:$0xff]
        %v3025 = vld [vmem:[#allocation2 + $0x8] sm:$0xff]
        %v3026 = vld [vmem:[#allocation2 + $0x10] sm:$0xff]
        %v3027 = vld [vmem:[#allocation2 + $0x18] sm:$0xff]
        %v3028 = vld [vmem:[#allocation2 + $0x20] sm:$0xff]
        %v3029 = vld [vmem:[#allocation2 + $0x28] sm:$0xff]
        %v3030 = vld [vmem:[#allocation2 + $0x30] sm:$0xff]
        %v3031 = vld [vmem:[#allocation2 + $0x38] sm:$0xff]
        %v3032 = vld [vmem:[#allocation2 + $0x40] sm:$0xff]
        %v3033 = vld [vmem:[#allocation2 + $0x48] sm:$0xff]
        %v3034 = vld [vmem:[#allocation2 + $0x50] sm:$0xff]
        %v3035 = vld [vmem:[#allocation2 + $0x58] sm:$0xff]
        %v3036 = vld [vmem:[#allocation2 + $0x60] sm:$0xff]
        %v3037 = vld [vmem:[#allocation2 + $0x68] sm:$0xff]
        %v3038 = vld [vmem:[#allocation2 + $0x70] sm:$0xff]
        %v3039 = vld [vmem:[#allocation2 + $0x78] sm:$0xff]
        %s3040 = scalar_lea.vmem [#allocation2], 128
        %v3041 = vld [vmem:[%s3040] sm:$0xff]
        %v3042 = vld [vmem:[%s3040 + $0x8] sm:$0xff]
        %v3043 = vld [vmem:[%s3040 + $0x10] sm:$0xff]
        %v3044 = vld [vmem:[%s3040 + $0x18] sm:$0xff]
        %v3045 = vld [vmem:[%s3040 + $0x20] sm:$0xff]
        %v3046 = vld [vmem:[%s3040 + $0x28] sm:$0xff]
        %v3047 = vld [vmem:[%s3040 + $0x30] sm:$0xff]
        %v3048 = vld [vmem:[%s3040 + $0x38] sm:$0xff]
        %v3049 = vld [vmem:[%s3040 + $0x40] sm:$0xff]
        %v3050 = vld [vmem:[%s3040 + $0x48] sm:$0xff]
        %v3051 = vld [vmem:[%s3040 + $0x50] sm:$0xff]
        %v3052 = vld [vmem:[%s3040 + $0x58] sm:$0xff]
        %v3053 = vld [vmem:[%s3040 + $0x60] sm:$0xff]
        %v3054 = vld [vmem:[%s3040 + $0x68] sm:$0xff]
        %v3055 = vld [vmem:[%s3040 + $0x70] sm:$0xff]
        %v3056 = vld [vmem:[%s3040 + $0x78] sm:$0xff]
        %3057 = vmatprep.subr.mxu0 0.0
        %v3058 = vand.u32 %v3041, 4294901760
        %3059 = vmatpush1.msra.mxu0 %v3058
        %3060 = vmatprep.subr.mxu0 0.0
        %v3061 = vand.u32 %v3042, 4294901760
        %3062 = vmatpush1.msra.mxu0 %v3061
        %3063 = vmatprep.subr.mxu0 0.0
        %v3064 = vand.u32 %v3043, 4294901760
        %3065 = vmatpush1.msra.mxu0 %v3064
        %3066 = vmatprep.subr.mxu0 0.0
        %v3067 = vand.u32 %v3044, 4294901760
        %3068 = vmatpush1.msra.mxu0 %v3067
        %3069 = vmatprep.subr.mxu0 0.0
        %v3070 = vand.u32 %v3045, 4294901760
        %3071 = vmatpush1.msra.mxu0 %v3070
        %3072 = vmatprep.subr.mxu0 0.0
        %v3073 = vand.u32 %v3046, 4294901760
        %3074 = vmatpush1.msra.mxu0 %v3073
        %3075 = vmatprep.subr.mxu0 0.0
        %v3076 = vand.u32 %v3047, 4294901760
        %3077 = vmatpush1.msra.mxu0 %v3076
        %3078 = vmatprep.subr.mxu0 0.0
        %v3079 = vand.u32 %v3048, 4294901760
        %3080 = vmatpush1.msra.mxu0 %v3079
        %3081 = vmatprep.subr.mxu0 0.0
        %v3082 = vand.u32 %v3049, 4294901760
        %3083 = vmatpush1.msra.mxu0 %v3082
        %3084 = vmatprep.subr.mxu0 0.0
        %v3085 = vand.u32 %v3050, 4294901760
        %3086 = vmatpush1.msra.mxu0 %v3085
        %3087 = vmatprep.subr.mxu0 0.0
        %v3088 = vand.u32 %v3051, 4294901760
        %3089 = vmatpush1.msra.mxu0 %v3088
        %3090 = vmatprep.subr.mxu0 0.0
        %v3091 = vand.u32 %v3052, 4294901760
        %3092 = vmatpush1.msra.mxu0 %v3091
        %3093 = vmatprep.subr.mxu0 0.0
        %v3094 = vand.u32 %v3053, 4294901760
        %3095 = vmatpush1.msra.mxu0 %v3094
        %3096 = vmatprep.subr.mxu0 0.0
        %v3097 = vand.u32 %v3054, 4294901760
        %3098 = vmatpush1.msra.mxu0 %v3097
        %3099 = vmatprep.subr.mxu0 0.0
        %v3100 = vand.u32 %v3055, 4294901760
        %3101 = vmatpush1.msra.mxu0 %v3100
        %3102 = vmatprep.subr.mxu0 0.0
        %v3103 = vand.u32 %v3056, 4294901760
        %3104 = vmatpush1.msra.mxu0 %v3103
        %3105 = vmatprep.subr.mxu0 0.0
        %3106 = vmatpush1.msra.mxu0 0.0
        %3107 = vmatprep.subr.mxu0 0.0
        %3108 = vmatpush1.msra.mxu0 0.0
        %3109 = vmatprep.subr.mxu0 0.0
        %3110 = vmatpush1.msra.mxu0 0.0
        %3111 = vmatprep.subr.mxu0 0.0
        %3112 = vmatpush1.msra.mxu0 0.0
        %3113 = vmatprep.subr.mxu0 0.0
        %3114 = vmatpush1.msra.mxu0 0.0
        %3115 = vmatprep.subr.mxu0 0.0
        %3116 = vmatpush1.msra.mxu0 0.0
        %3117 = vmatprep.subr.mxu0 0.0
        %3118 = vmatpush1.msra.mxu0 0.0
        %3119 = vmatprep.subr.mxu0 0.0
        %3120 = vmatpush1.msra.mxu0 0.0
        %3121 = vmatprep.subr.mxu0 0.0
        %3122 = vmatpush1.msra.mxu0 0.0
        %3123 = vmatprep.subr.mxu0 0.0
        %3124 = vmatpush1.msra.mxu0 0.0
        %3125 = vmatprep.subr.mxu0 0.0
        %3126 = vmatpush1.msra.mxu0 0.0
        %3127 = vmatprep.subr.mxu0 0.0
        %3128 = vmatpush1.msra.mxu0 0.0
        %3129 = vmatprep.subr.mxu0 0.0
        %3130 = vmatpush1.msra.mxu0 0.0
        %3131 = vmatprep.subr.mxu0 0.0
        %3132 = vmatpush1.msra.mxu0 0.0
        %3133 = vmatprep.subr.mxu0 0.0
        %3134 = vmatpush1.msra.mxu0 0.0
        %3135 = vmatprep.subr.mxu0 0.0
        %3136 = vmatpush1.msra.mxu0 0.0
        %3137 = vmatprep.mubr.f32.mxu0 0.0
        %v3138 = vand.u32 %v3008, 4294901760
        %v3139 = vsub.f32 %v3008, %v3138
        %v3140 = vand.u32 %v3139, 4294901760
        %v3141 = vsub.f32 %v3139, %v3140
        %v3142 = vand.u32 %v3141, 4294901760
        %3143 = vmatmul.mubr.f32.gmra.mrb[0].mxu0 %v3142
        %v3144 = vpop.f32.mrb[0].mxu0
        %v3145 = vadd.f32 0.0, %v3144
        %v3146 = vpop.f32.mrb[0].mxu0
        %3147 = vmatprep.mubr.f32.mxu0 0.0
        %v3148 = vand.u32 %v3009, 4294901760
        %v3149 = vsub.f32 %v3009, %v3148
        %v3150 = vand.u32 %v3149, 4294901760
        %v3151 = vsub.f32 %v3149, %v3150
        %v3152 = vand.u32 %v3151, 4294901760
        %3153 = vmatmul.mubr.f32.gmra.mrb[0].mxu0 %v3152
        %v3154 = vpop.f32.mrb[0].mxu0
        %v3155 = vadd.f32 0.0, %v3154
        %v3156 = vpop.f32.mrb[0].mxu0
        %3157 = vdwg.mxu0
        %3158 = vmatprep.subr.mxu0 0.0
        %v3159 = vand.u32 %v3041, 4294901760
        %v3160 = vsub.f32 %v3041, %v3159
        %v3161 = vand.u32 %v3160, 4294901760
        %v3162 = vsub.f32 %v3160, %v3161
        %v3163 = vand.u32 %v3162, 4294901760
        %3164 = vmatpush1.msra.mxu0 %v3163
        %3165 = vmatprep.subr.mxu0 0.0
        %v3166 = vand.u32 %v3042, 4294901760
        %v3167 = vsub.f32 %v3042, %v3166
        %v3168 = vand.u32 %v3167, 4294901760
        %v3169 = vsub.f32 %v3167, %v3168
        %v3170 = vand.u32 %v3169, 4294901760
        %3171 = vmatpush1.msra.mxu0 %v3170
        %3172 = vmatprep.subr.mxu0 0.0
        %v3173 = vand.u32 %v3043, 4294901760
        %v3174 = vsub.f32 %v3043, %v3173
        %v3175 = vand.u32 %v3174, 4294901760
        %v3176 = vsub.f32 %v3174, %v3175
        %v3177 = vand.u32 %v3176, 4294901760
        %3178 = vmatpush1.msra.mxu0 %v3177
        %3179 = vmatprep.subr.mxu0 0.0
        %v3180 = vand.u32 %v3044, 4294901760
        %v3181 = vsub.f32 %v3044, %v3180
        %v3182 = vand.u32 %v3181, 4294901760
        %v3183 = vsub.f32 %v3181, %v3182
        %v3184 = vand.u32 %v3183, 4294901760
        %3185 = vmatpush1.msra.mxu0 %v3184
        %3186 = vmatprep.subr.mxu0 0.0
        %v3187 = vand.u32 %v3045, 4294901760
        %v3188 = vsub.f32 %v3045, %v3187
        %v3189 = vand.u32 %v3188, 4294901760
        %v3190 = vsub.f32 %v3188, %v3189
        %v3191 = vand.u32 %v3190, 4294901760
        %3192 = vmatpush1.msra.mxu0 %v3191
        %3193 = vmatprep.subr.mxu0 0.0
        %v3194 = vand.u32 %v3046, 4294901760
        %v3195 = vsub.f32 %v3046, %v3194
        %v3196 = vand.u32 %v3195, 4294901760
        %v3197 = vsub.f32 %v3195, %v3196
        %v3198 = vand.u32 %v3197, 4294901760
        %3199 = vmatpush1.msra.mxu0 %v3198
        %3200 = vmatprep.subr.mxu0 0.0
        %v3201 = vand.u32 %v3047, 4294901760
        %v3202 = vsub.f32 %v3047, %v3201
        %v3203 = vand.u32 %v3202, 4294901760
        %v3204 = vsub.f32 %v3202, %v3203
        %v3205 = vand.u32 %v3204, 4294901760
        %3206 = vmatpush1.msra.mxu0 %v3205
        %3207 = vmatprep.subr.mxu0 0.0
        %v3208 = vand.u32 %v3048, 4294901760
        %v3209 = vsub.f32 %v3048, %v3208
        %v3210 = vand.u32 %v3209, 4294901760
        %v3211 = vsub.f32 %v3209, %v3210
        %v3212 = vand.u32 %v3211, 4294901760
        %3213 = vmatpush1.msra.mxu0 %v3212
        %3214 = vmatprep.subr.mxu0 0.0
        %v3215 = vand.u32 %v3049, 4294901760
        %v3216 = vsub.f32 %v3049, %v3215
        %v3217 = vand.u32 %v3216, 4294901760
        %v3218 = vsub.f32 %v3216, %v3217
        %v3219 = vand.u32 %v3218, 4294901760
        %3220 = vmatpush1.msra.mxu0 %v3219
        %3221 = vmatprep.subr.mxu0 0.0
        %v3222 = vand.u32 %v3050, 4294901760
        %v3223 = vsub.f32 %v3050, %v3222
        %v3224 = vand.u32 %v3223, 4294901760
        %v3225 = vsub.f32 %v3223, %v3224
        %v3226 = vand.u32 %v3225, 4294901760
        %3227 = vmatpush1.msra.mxu0 %v3226
        %3228 = vmatprep.subr.mxu0 0.0
        %v3229 = vand.u32 %v3051, 4294901760
        %v3230 = vsub.f32 %v3051, %v3229
        %v3231 = vand.u32 %v3230, 4294901760
        %v3232 = vsub.f32 %v3230, %v3231
        %v3233 = vand.u32 %v3232, 4294901760
        %3234 = vmatpush1.msra.mxu0 %v3233
        %3235 = vmatprep.subr.mxu0 0.0
        %v3236 = vand.u32 %v3052, 4294901760
        %v3237 = vsub.f32 %v3052, %v3236
        %v3238 = vand.u32 %v3237, 4294901760
        %v3239 = vsub.f32 %v3237, %v3238
        %v3240 = vand.u32 %v3239, 4294901760
        %3241 = vmatpush1.msra.mxu0 %v3240
        %3242 = vmatprep.subr.mxu0 0.0
        %v3243 = vand.u32 %v3053, 4294901760
        %v3244 = vsub.f32 %v3053, %v3243
        %v3245 = vand.u32 %v3244, 4294901760
        %v3246 = vsub.f32 %v3244, %v3245
        %v3247 = vand.u32 %v3246, 4294901760
        %3248 = vmatpush1.msra.mxu0 %v3247
        %3249 = vmatprep.subr.mxu0 0.0
        %v3250 = vand.u32 %v3054, 4294901760
        %v3251 = vsub.f32 %v3054, %v3250
        %v3252 = vand.u32 %v3251, 4294901760
        %v3253 = vsub.f32 %v3251, %v3252
        %v3254 = vand.u32 %v3253, 4294901760
        %3255 = vmatpush1.msra.mxu0 %v3254
        %3256 = vmatprep.subr.mxu0 0.0
        %v3257 = vand.u32 %v3055, 4294901760
        %v3258 = vsub.f32 %v3055, %v3257
        %v3259 = vand.u32 %v3258, 4294901760
        %v3260 = vsub.f32 %v3258, %v3259
        %v3261 = vand.u32 %v3260, 4294901760
        %3262 = vmatpush1.msra.mxu0 %v3261
        %3263 = vmatprep.subr.mxu0 0.0
        %v3264 = vand.u32 %v3056, 4294901760
        %v3265 = vsub.f32 %v3056, %v3264
        %v3266 = vand.u32 %v3265, 4294901760
        %v3267 = vsub.f32 %v3265, %v3266
        %v3268 = vand.u32 %v3267, 4294901760
        %3269 = vmatpush1.msra.mxu0 %v3268
        %3270 = vmatprep.subr.mxu0 0.0
        %3271 = vmatpush1.msra.mxu0 0.0
        %3272 = vmatprep.subr.mxu0 0.0
        %3273 = vmatpush1.msra.mxu0 0.0
        %3274 = vmatprep.subr.mxu0 0.0
        %3275 = vmatpush1.msra.mxu0 0.0
        %3276 = vmatprep.subr.mxu0 0.0
        %3277 = vmatpush1.msra.mxu0 0.0
        %3278 = vmatprep.subr.mxu0 0.0
        %3279 = vmatpush1.msra.mxu0 0.0
        %3280 = vmatprep.subr.mxu0 0.0
        %3281 = vmatpush1.msra.mxu0 0.0
        %3282 = vmatprep.subr.mxu0 0.0
        %3283 = vmatpush1.msra.mxu0 0.0
        %3284 = vmatprep.subr.mxu0 0.0
        %3285 = vmatpush1.msra.mxu0 0.0
        %3286 = vmatprep.subr.mxu0 0.0
        %3287 = vmatpush1.msra.mxu0 0.0
        %3288 = vmatprep.subr.mxu0 0.0
        %3289 = vmatpush1.msra.mxu0 0.0
        %3290 = vmatprep.subr.mxu0 0.0
        %3291 = vmatpush1.msra.mxu0 0.0
        %3292 = vmatprep.subr.mxu0 0.0
        %3293 = vmatpush1.msra.mxu0 0.0
        %3294 = vmatprep.subr.mxu0 0.0
        %3295 = vmatpush1.msra.mxu0 0.0
        %3296 = vmatprep.subr.mxu0 0.0
        %3297 = vmatpush1.msra.mxu0 0.0
        %3298 = vmatprep.subr.mxu0 0.0
        %3299 = vmatpush1.msra.mxu0 0.0
        %3300 = vmatprep.subr.mxu0 0.0
        %3301 = vmatpush1.msra.mxu0 0.0
        %3302 = vmatprep.mubr.f32.mxu0 0.0
        %v3303 = vand.u32 %v3008, 4294901760
        %3304 = vmatmul.mubr.f32.gmra.mrb[0].mxu0 %v3303
        %v3305 = vpop.f32.mrb[0].mxu0
        %v3306 = vadd.f32 %v3145, %v3305
        %v3307 = vpop.f32.mrb[0].mxu0
        %3308 = vmatprep.mubr.f32.mxu0 0.0
        %v3309 = vand.u32 %v3009, 4294901760
        %3310 = vmatmul.mubr.f32.gmra.mrb[0].mxu0 %v3309
        %v3311 = vpop.f32.mrb[0].mxu0
        %v3312 = vadd.f32 %v3155, %v3311
        %v3313 = vpop.f32.mrb[0].mxu0
        %3314 = vdwg.mxu0
        %3315 = vmatprep.subr.mxu0 0.0
        %v3316 = vand.u32 %v3041, 4294901760
        %v3317 = vsub.f32 %v3041, %v3316
        %3318 = vmatpush1.msra.mxu0 %v3317
        %3319 = vmatprep.subr.mxu0 0.0
        %v3320 = vand.u32 %v3042, 4294901760
        %v3321 = vsub.f32 %v3042, %v3320
        %3322 = vmatpush1.msra.mxu0 %v3321
        %3323 = vmatprep.subr.mxu0 0.0
        %v3324 = vand.u32 %v3043, 4294901760
        %v3325 = vsub.f32 %v3043, %v3324
        %3326 = vmatpush1.msra.mxu0 %v3325
        %3327 = vmatprep.subr.mxu0 0.0
        %v3328 = vand.u32 %v3044, 4294901760
        %v3329 = vsub.f32 %v3044, %v3328
        %3330 = vmatpush1.msra.mxu0 %v3329
        %3331 = vmatprep.subr.mxu0 0.0
        %v3332 = vand.u32 %v3045, 4294901760
        %v3333 = vsub.f32 %v3045, %v3332
        %3334 = vmatpush1.msra.mxu0 %v3333
        %3335 = vmatprep.subr.mxu0 0.0
        %v3336 = vand.u32 %v3046, 4294901760
        %v3337 = vsub.f32 %v3046, %v3336
        %3338 = vmatpush1.msra.mxu0 %v3337
        %3339 = vmatprep.subr.mxu0 0.0
        %v3340 = vand.u32 %v3047, 4294901760
        %v3341 = vsub.f32 %v3047, %v3340
        %3342 = vmatpush1.msra.mxu0 %v3341
        %3343 = vmatprep.subr.mxu0 0.0
        %v3344 = vand.u32 %v3048, 4294901760
        %v3345 = vsub.f32 %v3048, %v3344
        %3346 = vmatpush1.msra.mxu0 %v3345
        %3347 = vmatprep.subr.mxu0 0.0
        %v3348 = vand.u32 %v3049, 4294901760
        %v3349 = vsub.f32 %v3049, %v3348
        %3350 = vmatpush1.msra.mxu0 %v3349
        %3351 = vmatprep.subr.mxu0 0.0
        %v3352 = vand.u32 %v3050, 4294901760
        %v3353 = vsub.f32 %v3050, %v3352
        %3354 = vmatpush1.msra.mxu0 %v3353
        %3355 = vmatprep.subr.mxu0 0.0
        %v3356 = vand.u32 %v3051, 4294901760
        %v3357 = vsub.f32 %v3051, %v3356
        %3358 = vmatpush1.msra.mxu0 %v3357
        %3359 = vmatprep.subr.mxu0 0.0
        %v3360 = vand.u32 %v3052, 4294901760
        %v3361 = vsub.f32 %v3052, %v3360
        %3362 = vmatpush1.msra.mxu0 %v3361
        %3363 = vmatprep.subr.mxu0 0.0
        %v3364 = vand.u32 %v3053, 4294901760
        %v3365 = vsub.f32 %v3053, %v3364
        %3366 = vmatpush1.msra.mxu0 %v3365
        %3367 = vmatprep.subr.mxu0 0.0
        %v3368 = vand.u32 %v3054, 4294901760
        %v3369 = vsub.f32 %v3054, %v3368
        %3370 = vmatpush1.msra.mxu0 %v3369
        %3371 = vmatprep.subr.mxu0 0.0
        %v3372 = vand.u32 %v3055, 4294901760
        %v3373 = vsub.f32 %v3055, %v3372
        %3374 = vmatpush1.msra.mxu0 %v3373
        %3375 = vmatprep.subr.mxu0 0.0
        %v3376 = vand.u32 %v3056, 4294901760
        %v3377 = vsub.f32 %v3056, %v3376
        %3378 = vmatpush1.msra.mxu0 %v3377
        %3379 = vmatprep.subr.mxu0 0.0
        %3380 = vmatpush1.msra.mxu0 0.0
        %3381 = vmatprep.subr.mxu0 0.0
        %3382 = vmatpush1.msra.mxu0 0.0
        %3383 = vmatprep.subr.mxu0 0.0
        %3384 = vmatpush1.msra.mxu0 0.0
        %3385 = vmatprep.subr.mxu0 0.0
        %3386 = vmatpush1.msra.mxu0 0.0
        %3387 = vmatprep.subr.mxu0 0.0
        %3388 = vmatpush1.msra.mxu0 0.0
        %3389 = vmatprep.subr.mxu0 0.0
        %3390 = vmatpush1.msra.mxu0 0.0
        %3391 = vmatprep.subr.mxu0 0.0
        %3392 = vmatpush1.msra.mxu0 0.0
        %3393 = vmatprep.subr.mxu0 0.0
        %3394 = vmatpush1.msra.mxu0 0.0
        %3395 = vmatprep.subr.mxu0 0.0
        %3396 = vmatpush1.msra.mxu0 0.0
        %3397 = vmatprep.subr.mxu0 0.0
        %3398 = vmatpush1.msra.mxu0 0.0
        %3399 = vmatprep.subr.mxu0 0.0
        %3400 = vmatpush1.msra.mxu0 0.0
        %3401 = vmatprep.subr.mxu0 0.0
        %3402 = vmatpush1.msra.mxu0 0.0
        %3403 = vmatprep.subr.mxu0 0.0
        %3404 = vmatpush1.msra.mxu0 0.0
        %3405 = vmatprep.subr.mxu0 0.0
        %3406 = vmatpush1.msra.mxu0 0.0
        %3407 = vmatprep.subr.mxu0 0.0
        %3408 = vmatpush1.msra.mxu0 0.0
        %3409 = vmatprep.subr.mxu0 0.0
        %3410 = vmatpush1.msra.mxu0 0.0
        %3411 = vmatprep.mubr.f32.mxu0 0.0
        %v3412 = vand.u32 %v3008, 4294901760
        %v3413 = vsub.f32 %v3008, %v3412
        %3414 = vmatmul.mubr.f32.gmra.mrb[0].mxu0 %v3413
        %v3415 = vpop.f32.mrb[0].mxu0
        %v3416 = vadd.f32 %v3306, %v3415
        %v3417 = vpop.f32.mrb[0].mxu0
        %3418 = vmatprep.mubr.f32.mxu0 0.0
        %v3419 = vand.u32 %v3009, 4294901760
        %v3420 = vsub.f32 %v3009, %v3419
        %3421 = vmatmul.mubr.f32.gmra.mrb[0].mxu0 %v3420
        %v3422 = vpop.f32.mrb[0].mxu0
        %v3423 = vadd.f32 %v3312, %v3422
        %v3424 = vpop.f32.mrb[0].mxu0
        %3425 = vdwg.mxu0
        %3426 = vmatprep.subr.mxu0 0.0
        %v3427 = vand.u32 %v3041, 4294901760
        %3428 = vmatpush1.msra.mxu0 %v3427
        %3429 = vmatprep.subr.mxu0 0.0
        %v3430 = vand.u32 %v3042, 4294901760
        %3431 = vmatpush1.msra.mxu0 %v3430
        %3432 = vmatprep.subr.mxu0 0.0
        %v3433 = vand.u32 %v3043, 4294901760
        %3434 = vmatpush1.msra.mxu0 %v3433
        %3435 = vmatprep.subr.mxu0 0.0
        %v3436 = vand.u32 %v3044, 4294901760
        %3437 = vmatpush1.msra.mxu0 %v3436
        %3438 = vmatprep.subr.mxu0 0.0
        %v3439 = vand.u32 %v3045, 4294901760
        %3440 = vmatpush1.msra.mxu0 %v3439
        %3441 = vmatprep.subr.mxu0 0.0
        %v3442 = vand.u32 %v3046, 4294901760
        %3443 = vmatpush1.msra.mxu0 %v3442
        %3444 = vmatprep.subr.mxu0 0.0
        %v3445 = vand.u32 %v3047, 4294901760
        %3446 = vmatpush1.msra.mxu0 %v3445
        %3447 = vmatprep.subr.mxu0 0.0
        %v3448 = vand.u32 %v3048, 4294901760
        %3449 = vmatpush1.msra.mxu0 %v3448
        %3450 = vmatprep.subr.mxu0 0.0
        %v3451 = vand.u32 %v3049, 4294901760
        %3452 = vmatpush1.msra.mxu0 %v3451
        %3453 = vmatprep.subr.mxu0 0.0
        %v3454 = vand.u32 %v3050, 4294901760
        %3455 = vmatpush1.msra.mxu0 %v3454
        %3456 = vmatprep.subr.mxu0 0.0
        %v3457 = vand.u32 %v3051, 4294901760
        %3458 = vmatpush1.msra.mxu0 %v3457
        %3459 = vmatprep.subr.mxu0 0.0
        %v3460 = vand.u32 %v3052, 4294901760
        %3461 = vmatpush1.msra.mxu0 %v3460
        %3462 = vmatprep.subr.mxu0 0.0
        %v3463 = vand.u32 %v3053, 4294901760
        %3464 = vmatpush1.msra.mxu0 %v3463
        %3465 = vmatprep.subr.mxu0 0.0
        %v3466 = vand.u32 %v3054, 4294901760
        %3467 = vmatpush1.msra.mxu0 %v3466
        %3468 = vmatprep.subr.mxu0 0.0
        %v3469 = vand.u32 %v3055, 4294901760
        %3470 = vmatpush1.msra.mxu0 %v3469
        %3471 = vmatprep.subr.mxu0 0.0
        %v3472 = vand.u32 %v3056, 4294901760
        %3473 = vmatpush1.msra.mxu0 %v3472
        %3474 = vmatprep.subr.mxu0 0.0
        %3475 = vmatpush1.msra.mxu0 0.0
        %3476 = vmatprep.subr.mxu0 0.0
        %3477 = vmatpush1.msra.mxu0 0.0
        %3478 = vmatprep.subr.mxu0 0.0
        %3479 = vmatpush1.msra.mxu0 0.0
        %3480 = vmatprep.subr.mxu0 0.0
        %3481 = vmatpush1.msra.mxu0 0.0
        %3482 = vmatprep.subr.mxu0 0.0
        %3483 = vmatpush1.msra.mxu0 0.0
        %3484 = vmatprep.subr.mxu0 0.0
        %3485 = vmatpush1.msra.mxu0 0.0
        %3486 = vmatprep.subr.mxu0 0.0
        %3487 = vmatpush1.msra.mxu0 0.0
        %3488 = vmatprep.subr.mxu0 0.0
        %3489 = vmatpush1.msra.mxu0 0.0
        %3490 = vmatprep.subr.mxu0 0.0
        %3491 = vmatpush1.msra.mxu0 0.0
        %3492 = vmatprep.subr.mxu0 0.0
        %3493 = vmatpush1.msra.mxu0 0.0
        %3494 = vmatprep.subr.mxu0 0.0
        %3495 = vmatpush1.msra.mxu0 0.0
        %3496 = vmatprep.subr.mxu0 0.0
        %3497 = vmatpush1.msra.mxu0 0.0
        %3498 = vmatprep.subr.mxu0 0.0
        %3499 = vmatpush1.msra.mxu0 0.0
        %3500 = vmatprep.subr.mxu0 0.0
        %3501 = vmatpush1.msra.mxu0 0.0
        %3502 = vmatprep.subr.mxu0 0.0
        %3503 = vmatpush1.msra.mxu0 0.0
        %3504 = vmatprep.subr.mxu0 0.0
        %3505 = vmatpush1.msra.mxu0 0.0
        %3506 = vmatprep.mubr.f32.mxu0 0.0
        %v3507 = vand.u32 %v3008, 4294901760
        %v3508 = vsub.f32 %v3008, %v3507
        %v3509 = vand.u32 %v3508, 4294901760
        %3510 = vmatmul.mubr.f32.gmra.mrb[0].mxu0 %v3509
        %v3511 = vpop.f32.mrb[0].mxu0
        %v3512 = vadd.f32 %v3416, %v3511
        %v3513 = vpop.f32.mrb[0].mxu0
        %3514 = vmatprep.mubr.f32.mxu0 0.0
        %v3515 = vand.u32 %v3009, 4294901760
        %v3516 = vsub.f32 %v3009, %v3515
        %v3517 = vand.u32 %v3516, 4294901760
        %3518 = vmatmul.mubr.f32.gmra.mrb[0].mxu0 %v3517
        %v3519 = vpop.f32.mrb[0].mxu0
        %v3520 = vadd.f32 %v3423, %v3519
        %v3521 = vpop.f32.mrb[0].mxu0
        %3522 = vdwg.mxu0
        %3523 = vmatprep.subr.mxu0 0.0
        %v3524 = vand.u32 %v3041, 4294901760
        %v3525 = vsub.f32 %v3041, %v3524
        %v3526 = vand.u32 %v3525, 4294901760
        %3527 = vmatpush1.msra.mxu0 %v3526
        %3528 = vmatprep.subr.mxu0 0.0
        %v3529 = vand.u32 %v3042, 4294901760
        %v3530 = vsub.f32 %v3042, %v3529
        %v3531 = vand.u32 %v3530, 4294901760
        %3532 = vmatpush1.msra.mxu0 %v3531
        %3533 = vmatprep.subr.mxu0 0.0
        %v3534 = vand.u32 %v3043, 4294901760
        %v3535 = vsub.f32 %v3043, %v3534
        %v3536 = vand.u32 %v3535, 4294901760
        %3537 = vmatpush1.msra.mxu0 %v3536
        %3538 = vmatprep.subr.mxu0 0.0
        %v3539 = vand.u32 %v3044, 4294901760
        %v3540 = vsub.f32 %v3044, %v3539
        %v3541 = vand.u32 %v3540, 4294901760
        %3542 = vmatpush1.msra.mxu0 %v3541
        %3543 = vmatprep.subr.mxu0 0.0
        %v3544 = vand.u32 %v3045, 4294901760
        %v3545 = vsub.f32 %v3045, %v3544
        %v3546 = vand.u32 %v3545, 4294901760
        %3547 = vmatpush1.msra.mxu0 %v3546
        %3548 = vmatprep.subr.mxu0 0.0
        %v3549 = vand.u32 %v3046, 4294901760
        %v3550 = vsub.f32 %v3046, %v3549
        %v3551 = vand.u32 %v3550, 4294901760
        %3552 = vmatpush1.msra.mxu0 %v3551
        %3553 = vmatprep.subr.mxu0 0.0
        %v3554 = vand.u32 %v3047, 4294901760
        %v3555 = vsub.f32 %v3047, %v3554
        %v3556 = vand.u32 %v3555, 4294901760
        %3557 = vmatpush1.msra.mxu0 %v3556
        %3558 = vmatprep.subr.mxu0 0.0
        %v3559 = vand.u32 %v3048, 4294901760
        %v3560 = vsub.f32 %v3048, %v3559
        %v3561 = vand.u32 %v3560, 4294901760
        %3562 = vmatpush1.msra.mxu0 %v3561
        %3563 = vmatprep.subr.mxu0 0.0
        %v3564 = vand.u32 %v3049, 4294901760
        %v3565 = vsub.f32 %v3049, %v3564
        %v3566 = vand.u32 %v3565, 4294901760
        %3567 = vmatpush1.msra.mxu0 %v3566
        %3568 = vmatprep.subr.mxu0 0.0
        %v3569 = vand.u32 %v3050, 4294901760
        %v3570 = vsub.f32 %v3050, %v3569
        %v3571 = vand.u32 %v3570, 4294901760
        %3572 = vmatpush1.msra.mxu0 %v3571
        %3573 = vmatprep.subr.mxu0 0.0
        %v3574 = vand.u32 %v3051, 4294901760
        %v3575 = vsub.f32 %v3051, %v3574
        %v3576 = vand.u32 %v3575, 4294901760
        %3577 = vmatpush1.msra.mxu0 %v3576
        %3578 = vmatprep.subr.mxu0 0.0
        %v3579 = vand.u32 %v3052, 4294901760
        %v3580 = vsub.f32 %v3052, %v3579
        %v3581 = vand.u32 %v3580, 4294901760
        %3582 = vmatpush1.msra.mxu0 %v3581
        %3583 = vmatprep.subr.mxu0 0.0
        %v3584 = vand.u32 %v3053, 4294901760
        %v3585 = vsub.f32 %v3053, %v3584
        %v3586 = vand.u32 %v3585, 4294901760
        %3587 = vmatpush1.msra.mxu0 %v3586
        %3588 = vmatprep.subr.mxu0 0.0
        %v3589 = vand.u32 %v3054, 4294901760
        %v3590 = vsub.f32 %v3054, %v3589
        %v3591 = vand.u32 %v3590, 4294901760
        %3592 = vmatpush1.msra.mxu0 %v3591
        %3593 = vmatprep.subr.mxu0 0.0
        %v3594 = vand.u32 %v3055, 4294901760
        %v3595 = vsub.f32 %v3055, %v3594
        %v3596 = vand.u32 %v3595, 4294901760
        %3597 = vmatpush1.msra.mxu0 %v3596
        %3598 = vmatprep.subr.mxu0 0.0
        %v3599 = vand.u32 %v3056, 4294901760
        %v3600 = vsub.f32 %v3056, %v3599
        %v3601 = vand.u32 %v3600, 4294901760
        %3602 = vmatpush1.msra.mxu0 %v3601
        %3603 = vmatprep.subr.mxu0 0.0
        %3604 = vmatpush1.msra.mxu0 0.0
        %3605 = vmatprep.subr.mxu0 0.0
        %3606 = vmatpush1.msra.mxu0 0.0
        %3607 = vmatprep.subr.mxu0 0.0
        %3608 = vmatpush1.msra.mxu0 0.0
        %3609 = vmatprep.subr.mxu0 0.0
        %3610 = vmatpush1.msra.mxu0 0.0
        %3611 = vmatprep.subr.mxu0 0.0
        %3612 = vmatpush1.msra.mxu0 0.0
        %3613 = vmatprep.subr.mxu0 0.0
        %3614 = vmatpush1.msra.mxu0 0.0
        %3615 = vmatprep.subr.mxu0 0.0
        %3616 = vmatpush1.msra.mxu0 0.0
        %3617 = vmatprep.subr.mxu0 0.0
        %3618 = vmatpush1.msra.mxu0 0.0
        %3619 = vmatprep.subr.mxu0 0.0
        %3620 = vmatpush1.msra.mxu0 0.0
        %3621 = vmatprep.subr.mxu0 0.0
        %3622 = vmatpush1.msra.mxu0 0.0
        %3623 = vmatprep.subr.mxu0 0.0
        %3624 = vmatpush1.msra.mxu0 0.0
        %3625 = vmatprep.subr.mxu0 0.0
        %3626 = vmatpush1.msra.mxu0 0.0
        %3627 = vmatprep.subr.mxu0 0.0
        %3628 = vmatpush1.msra.mxu0 0.0
        %3629 = vmatprep.subr.mxu0 0.0
        %3630 = vmatpush1.msra.mxu0 0.0
        %3631 = vmatprep.subr.mxu0 0.0
        %3632 = vmatpush1.msra.mxu0 0.0
        %3633 = vmatprep.subr.mxu0 0.0
        %3634 = vmatpush1.msra.mxu0 0.0
        %3635 = vmatprep.mubr.f32.mxu0 0.0
        %v3636 = vand.u32 %v3008, 4294901760
        %3637 = vmatmul.mubr.f32.gmra.mrb[0].mxu0 %v3636
        %v3638 = vpop.f32.mrb[0].mxu0
        %v3639 = vadd.f32 %v3512, %v3638
        %v3640 = vpop.f32.mrb[0].mxu0
        %3641 = vmatprep.mubr.f32.mxu0 0.0
        %v3642 = vand.u32 %v3009, 4294901760
        %3643 = vmatmul.mubr.f32.gmra.mrb[0].mxu0 %v3642
        %v3644 = vpop.f32.mrb[0].mxu0
        %v3645 = vadd.f32 %v3520, %v3644
        %v3646 = vpop.f32.mrb[0].mxu0
        %3647 = vdwg.mxu0
        %3648 = vmatprep.subr.mxu0 0.0
        %v3649 = vand.u32 %v3041, 4294901760
        %3650 = vmatpush1.msra.mxu0 %v3649
        %3651 = vmatprep.subr.mxu0 0.0
        %v3652 = vand.u32 %v3042, 4294901760
        %3653 = vmatpush1.msra.mxu0 %v3652
        %3654 = vmatprep.subr.mxu0 0.0
        %v3655 = vand.u32 %v3043, 4294901760
        %3656 = vmatpush1.msra.mxu0 %v3655
        %3657 = vmatprep.subr.mxu0 0.0
        %v3658 = vand.u32 %v3044, 4294901760
        %3659 = vmatpush1.msra.mxu0 %v3658
        %3660 = vmatprep.subr.mxu0 0.0
        %v3661 = vand.u32 %v3045, 4294901760
        %3662 = vmatpush1.msra.mxu0 %v3661
        %3663 = vmatprep.subr.mxu0 0.0
        %v3664 = vand.u32 %v3046, 4294901760
        %3665 = vmatpush1.msra.mxu0 %v3664
        %3666 = vmatprep.subr.mxu0 0.0
        %v3667 = vand.u32 %v3047, 4294901760
        %3668 = vmatpush1.msra.mxu0 %v3667
        %3669 = vmatprep.subr.mxu0 0.0
        %v3670 = vand.u32 %v3048, 4294901760
        %3671 = vmatpush1.msra.mxu0 %v3670
        %3672 = vmatprep.subr.mxu0 0.0
        %v3673 = vand.u32 %v3049, 4294901760
        %3674 = vmatpush1.msra.mxu0 %v3673
        %3675 = vmatprep.subr.mxu0 0.0
        %v3676 = vand.u32 %v3050, 4294901760
        %3677 = vmatpush1.msra.mxu0 %v3676
        %3678 = vmatprep.subr.mxu0 0.0
        %v3679 = vand.u32 %v3051, 4294901760
        %3680 = vmatpush1.msra.mxu0 %v3679
        %3681 = vmatprep.subr.mxu0 0.0
        %v3682 = vand.u32 %v3052, 4294901760
        %3683 = vmatpush1.msra.mxu0 %v3682
        %3684 = vmatprep.subr.mxu0 0.0
        %v3685 = vand.u32 %v3053, 4294901760
        %3686 = vmatpush1.msra.mxu0 %v3685
        %3687 = vmatprep.subr.mxu0 0.0
        %v3688 = vand.u32 %v3054, 4294901760
        %3689 = vmatpush1.msra.mxu0 %v3688
        %3690 = vmatprep.subr.mxu0 0.0
        %v3691 = vand.u32 %v3055, 4294901760
        %3692 = vmatpush1.msra.mxu0 %v3691
        %3693 = vmatprep.subr.mxu0 0.0
        %v3694 = vand.u32 %v3056, 4294901760
        %3695 = vmatpush1.msra.mxu0 %v3694
        %3696 = vmatprep.subr.mxu0 0.0
        %3697 = vmatpush1.msra.mxu0 0.0
        %3698 = vmatprep.subr.mxu0 0.0
        %3699 = vmatpush1.msra.mxu0 0.0
        %3700 = vmatprep.subr.mxu0 0.0
        %3701 = vmatpush1.msra.mxu0 0.0
        %3702 = vmatprep.subr.mxu0 0.0
        %3703 = vmatpush1.msra.mxu0 0.0
        %3704 = vmatprep.subr.mxu0 0.0
        %3705 = vmatpush1.msra.mxu0 0.0
        %3706 = vmatprep.subr.mxu0 0.0
        %3707 = vmatpush1.msra.mxu0 0.0
        %3708 = vmatprep.subr.mxu0 0.0
        %3709 = vmatpush1.msra.mxu0 0.0
        %3710 = vmatprep.subr.mxu0 0.0
        %3711 = vmatpush1.msra.mxu0 0.0
        %3712 = vmatprep.subr.mxu0 0.0
        %3713 = vmatpush1.msra.mxu0 0.0
        %3714 = vmatprep.subr.mxu0 0.0
        %3715 = vmatpush1.msra.mxu0 0.0
        %3716 = vmatprep.subr.mxu0 0.0
        %3717 = vmatpush1.msra.mxu0 0.0
        %3718 = vmatprep.subr.mxu0 0.0
        %3719 = vmatpush1.msra.mxu0 0.0
        %3720 = vmatprep.subr.mxu0 0.0
        %3721 = vmatpush1.msra.mxu0 0.0
        %3722 = vmatprep.subr.mxu0 0.0
        %3723 = vmatpush1.msra.mxu0 0.0
        %3724 = vmatprep.subr.mxu0 0.0
        %3725 = vmatpush1.msra.mxu0 0.0
        %3726 = vmatprep.subr.mxu0 0.0
        %3727 = vmatpush1.msra.mxu0 0.0
        %3728 = vmatprep.mubr.f32.mxu0 0.0
        %v3729 = vand.u32 %v3008, 4294901760
        %3730 = vmatmul.mubr.f32.gmra.mrb[0].mxu0 %v3729
        %v3731 = vpop.f32.mrb[0].mxu0
        %v3732 = vadd.f32 %v3639, %v3731
        %v3733 = vpop.f32.mrb[0].mxu0
        %3734 = vmatprep.mubr.f32.mxu0 0.0
        %v3735 = vand.u32 %v3009, 4294901760
        %3736 = vmatmul.mubr.f32.gmra.mrb[0].mxu0 %v3735
        %v3737 = vpop.f32.mrb[0].mxu0
        %v3738 = vadd.f32 %v3645, %v3737
        %v3739 = vpop.f32.mrb[0].mxu0
        %3740 = vdwg.mxu0
        %3741 = vmatprep.subr.mxu0 0.0
        %v3742 = vand.u32 %v3024, 4294901760
        %3743 = vmatpush1.msra.mxu0 %v3742
        %3744 = vmatprep.subr.mxu0 0.0
        %v3745 = vand.u32 %v3025, 4294901760
        %3746 = vmatpush1.msra.mxu0 %v3745
        %3747 = vmatprep.subr.mxu0 0.0
        %v3748 = vand.u32 %v3026, 4294901760
        %3749 = vmatpush1.msra.mxu0 %v3748
        %3750 = vmatprep.subr.mxu0 0.0
        %v3751 = vand.u32 %v3027, 4294901760
        %3752 = vmatpush1.msra.mxu0 %v3751
        %3753 = vmatprep.subr.mxu0 0.0
        %v3754 = vand.u32 %v3028, 4294901760
        %3755 = vmatpush1.msra.mxu0 %v3754
        %3756 = vmatprep.subr.mxu0 0.0
        %v3757 = vand.u32 %v3029, 4294901760
        %3758 = vmatpush1.msra.mxu0 %v3757
        %3759 = vmatprep.subr.mxu0 0.0
        %v3760 = vand.u32 %v3030, 4294901760
        %3761 = vmatpush1.msra.mxu0 %v3760
        %3762 = vmatprep.subr.mxu0 0.0
        %v3763 = vand.u32 %v3031, 4294901760
        %3764 = vmatpush1.msra.mxu0 %v3763
        %3765 = vmatprep.subr.mxu0 0.0
        %v3766 = vand.u32 %v3032, 4294901760
        %3767 = vmatpush1.msra.mxu0 %v3766
        %3768 = vmatprep.subr.mxu0 0.0
        %v3769 = vand.u32 %v3033, 4294901760
        %3770 = vmatpush1.msra.mxu0 %v3769
        %3771 = vmatprep.subr.mxu0 0.0
        %v3772 = vand.u32 %v3034, 4294901760
        %3773 = vmatpush1.msra.mxu0 %v3772
        %3774 = vmatprep.subr.mxu0 0.0
        %v3775 = vand.u32 %v3035, 4294901760
        %3776 = vmatpush1.msra.mxu0 %v3775
        %3777 = vmatprep.subr.mxu0 0.0
        %v3778 = vand.u32 %v3036, 4294901760
        %3779 = vmatpush1.msra.mxu0 %v3778
        %3780 = vmatprep.subr.mxu0 0.0
        %v3781 = vand.u32 %v3037, 4294901760
        %3782 = vmatpush1.msra.mxu0 %v3781
        %3783 = vmatprep.subr.mxu0 0.0
        %v3784 = vand.u32 %v3038, 4294901760
        %3785 = vmatpush1.msra.mxu0 %v3784
        %3786 = vmatprep.subr.mxu0 0.0
        %v3787 = vand.u32 %v3039, 4294901760
        %3788 = vmatpush1.msra.mxu0 %v3787
        %3789 = vmatprep.subr.mxu0 0.0
        %3790 = vmatpush1.msra.mxu0 0.0
        %3791 = vmatprep.subr.mxu0 0.0
        %3792 = vmatpush1.msra.mxu0 0.0
        %3793 = vmatprep.subr.mxu0 0.0
        %3794 = vmatpush1.msra.mxu0 0.0
        %3795 = vmatprep.subr.mxu0 0.0
        %3796 = vmatpush1.msra.mxu0 0.0
        %3797 = vmatprep.subr.mxu0 0.0
        %3798 = vmatpush1.msra.mxu0 0.0
        %3799 = vmatprep.subr.mxu0 0.0
        %3800 = vmatpush1.msra.mxu0 0.0
        %3801 = vmatprep.subr.mxu0 0.0
        %3802 = vmatpush1.msra.mxu0 0.0
        %3803 = vmatprep.subr.mxu0 0.0
        %3804 = vmatpush1.msra.mxu0 0.0
        %3805 = vmatprep.subr.mxu0 0.0
        %3806 = vmatpush1.msra.mxu0 0.0
        %3807 = vmatprep.subr.mxu0 0.0
        %3808 = vmatpush1.msra.mxu0 0.0
        %3809 = vmatprep.subr.mxu0 0.0
        %3810 = vmatpush1.msra.mxu0 0.0
        %3811 = vmatprep.subr.mxu0 0.0
        %3812 = vmatpush1.msra.mxu0 0.0
        %3813 = vmatprep.subr.mxu0 0.0
        %3814 = vmatpush1.msra.mxu0 0.0
        %3815 = vmatprep.subr.mxu0 0.0
        %3816 = vmatpush1.msra.mxu0 0.0
        %3817 = vmatprep.subr.mxu0 0.0
        %3818 = vmatpush1.msra.mxu0 0.0
        %3819 = vmatprep.subr.mxu0 0.0
        %3820 = vmatpush1.msra.mxu0 0.0
        %3821 = vmatprep.mubr.f32.mxu0 0.0
        %v3822 = vand.u32 %v3017, 4294901760
        %v3823 = vsub.f32 %v3017, %v3822
        %v3824 = vand.u32 %v3823, 4294901760
        %v3825 = vsub.f32 %v3823, %v3824
        %v3826 = vand.u32 %v3825, 4294901760
        %3827 = vmatmul.mubr.f32.gmra.mrb[0].mxu0 %v3826
        %v3828 = vpop.f32.mrb[0].mxu0
        %v3829 = vadd.f32 %v3732, %v3828
        %v3830 = vpop.f32.mrb[0].mxu0
        %3831 = vmatprep.mubr.f32.mxu0 0.0
        %v3832 = vand.u32 %v3014, 4294901760
        %v3833 = vsub.f32 %v3014, %v3832
        %v3834 = vand.u32 %v3833, 4294901760
        %v3835 = vsub.f32 %v3833, %v3834
        %v3836 = vand.u32 %v3835, 4294901760
        %3837 = vmatmul.mubr.f32.gmra.mrb[0].mxu0 %v3836
        %v3838 = vpop.f32.mrb[0].mxu0
        %v3839 = vadd.f32 %v3738, %v3838
        %v3840 = vpop.f32.mrb[0].mxu0
        %3841 = vdwg.mxu0
        %3842 = vmatprep.subr.mxu0 0.0
        %v3843 = vand.u32 %v3024, 4294901760
        %v3844 = vsub.f32 %v3024, %v3843
        %v3845 = vand.u32 %v3844, 4294901760
        %v3846 = vsub.f32 %v3844, %v3845
        %v3847 = vand.u32 %v3846, 4294901760
        %3848 = vmatpush1.msra.mxu0 %v3847
        %3849 = vmatprep.subr.mxu0 0.0
        %v3850 = vand.u32 %v3025, 4294901760
        %v3851 = vsub.f32 %v3025, %v3850
        %v3852 = vand.u32 %v3851, 4294901760
        %v3853 = vsub.f32 %v3851, %v3852
        %v3854 = vand.u32 %v3853, 4294901760
        %3855 = vmatpush1.msra.mxu0 %v3854
        %3856 = vmatprep.subr.mxu0 0.0
        %v3857 = vand.u32 %v3026, 4294901760
        %v3858 = vsub.f32 %v3026, %v3857
        %v3859 = vand.u32 %v3858, 4294901760
        %v3860 = vsub.f32 %v3858, %v3859
        %v3861 = vand.u32 %v3860, 4294901760
        %3862 = vmatpush1.msra.mxu0 %v3861
        %3863 = vmatprep.subr.mxu0 0.0
        %v3864 = vand.u32 %v3027, 4294901760
        %v3865 = vsub.f32 %v3027, %v3864
        %v3866 = vand.u32 %v3865, 4294901760
        %v3867 = vsub.f32 %v3865, %v3866
        %v3868 = vand.u32 %v3867, 4294901760
        %3869 = vmatpush1.msra.mxu0 %v3868
        %3870 = vmatprep.subr.mxu0 0.0
        %v3871 = vand.u32 %v3028, 4294901760
        %v3872 = vsub.f32 %v3028, %v3871
        %v3873 = vand.u32 %v3872, 4294901760
        %v3874 = vsub.f32 %v3872, %v3873
        %v3875 = vand.u32 %v3874, 4294901760
        %3876 = vmatpush1.msra.mxu0 %v3875
        %3877 = vmatprep.subr.mxu0 0.0
        %v3878 = vand.u32 %v3029, 4294901760
        %v3879 = vsub.f32 %v3029, %v3878
        %v3880 = vand.u32 %v3879, 4294901760
        %v3881 = vsub.f32 %v3879, %v3880
        %v3882 = vand.u32 %v3881, 4294901760
        %3883 = vmatpush1.msra.mxu0 %v3882
        %3884 = vmatprep.subr.mxu0 0.0
        %v3885 = vand.u32 %v3030, 4294901760
        %v3886 = vsub.f32 %v3030, %v3885
        %v3887 = vand.u32 %v3886, 4294901760
        %v3888 = vsub.f32 %v3886, %v3887
        %v3889 = vand.u32 %v3888, 4294901760
        %3890 = vmatpush1.msra.mxu0 %v3889
        %3891 = vmatprep.subr.mxu0 0.0
        %v3892 = vand.u32 %v3031, 4294901760
        %v3893 = vsub.f32 %v3031, %v3892
        %v3894 = vand.u32 %v3893, 4294901760
        %v3895 = vsub.f32 %v3893, %v3894
        %v3896 = vand.u32 %v3895, 4294901760
        %3897 = vmatpush1.msra.mxu0 %v3896
        %3898 = vmatprep.subr.mxu0 0.0
        %v3899 = vand.u32 %v3032, 4294901760
        %v3900 = vsub.f32 %v3032, %v3899
        %v3901 = vand.u32 %v3900, 4294901760
        %v3902 = vsub.f32 %v3900, %v3901
        %v3903 = vand.u32 %v3902, 4294901760
        %3904 = vmatpush1.msra.mxu0 %v3903
        %3905 = vmatprep.subr.mxu0 0.0
        %v3906 = vand.u32 %v3033, 4294901760
        %v3907 = vsub.f32 %v3033, %v3906
        %v3908 = vand.u32 %v3907, 4294901760
        %v3909 = vsub.f32 %v3907, %v3908
        %v3910 = vand.u32 %v3909, 4294901760
        %3911 = vmatpush1.msra.mxu0 %v3910
        %3912 = vmatprep.subr.mxu0 0.0
        %v3913 = vand.u32 %v3034, 4294901760
        %v3914 = vsub.f32 %v3034, %v3913
        %v3915 = vand.u32 %v3914, 4294901760
        %v3916 = vsub.f32 %v3914, %v3915
        %v3917 = vand.u32 %v3916, 4294901760
        %3918 = vmatpush1.msra.mxu0 %v3917
        %3919 = vmatprep.subr.mxu0 0.0
        %v3920 = vand.u32 %v3035, 4294901760
        %v3921 = vsub.f32 %v3035, %v3920
        %v3922 = vand.u32 %v3921, 4294901760
        %v3923 = vsub.f32 %v3921, %v3922
        %v3924 = vand.u32 %v3923, 4294901760
        %3925 = vmatpush1.msra.mxu0 %v3924
        %3926 = vmatprep.subr.mxu0 0.0
        %v3927 = vand.u32 %v3036, 4294901760
        %v3928 = vsub.f32 %v3036, %v3927
        %v3929 = vand.u32 %v3928, 4294901760
        %v3930 = vsub.f32 %v3928, %v3929
        %v3931 = vand.u32 %v3930, 4294901760
        %3932 = vmatpush1.msra.mxu0 %v3931
        %3933 = vmatprep.subr.mxu0 0.0
        %v3934 = vand.u32 %v3037, 4294901760
        %v3935 = vsub.f32 %v3037, %v3934
        %v3936 = vand.u32 %v3935, 4294901760
        %v3937 = vsub.f32 %v3935, %v3936
        %v3938 = vand.u32 %v3937, 4294901760
        %3939 = vmatpush1.msra.mxu0 %v3938
        %3940 = vmatprep.subr.mxu0 0.0
        %v3941 = vand.u32 %v3038, 4294901760
        %v3942 = vsub.f32 %v3038, %v3941
        %v3943 = vand.u32 %v3942, 4294901760
        %v3944 = vsub.f32 %v3942, %v3943
        %v3945 = vand.u32 %v3944, 4294901760
        %3946 = vmatpush1.msra.mxu0 %v3945
        %3947 = vmatprep.subr.mxu0 0.0
        %v3948 = vand.u32 %v3039, 4294901760
        %v3949 = vsub.f32 %v3039, %v3948
        %v3950 = vand.u32 %v3949, 4294901760
        %v3951 = vsub.f32 %v3949, %v3950
        %v3952 = vand.u32 %v3951, 4294901760
        %3953 = vmatpush1.msra.mxu0 %v3952
        %3954 = vmatprep.subr.mxu0 0.0
        %3955 = vmatpush1.msra.mxu0 0.0
        %3956 = vmatprep.subr.mxu0 0.0
        %3957 = vmatpush1.msra.mxu0 0.0
        %3958 = vmatprep.subr.mxu0 0.0
        %3959 = vmatpush1.msra.mxu0 0.0
        %3960 = vmatprep.subr.mxu0 0.0
        %3961 = vmatpush1.msra.mxu0 0.0
        %3962 = vmatprep.subr.mxu0 0.0
        %3963 = vmatpush1.msra.mxu0 0.0
        %3964 = vmatprep.subr.mxu0 0.0
        %3965 = vmatpush1.msra.mxu0 0.0
        %3966 = vmatprep.subr.mxu0 0.0
        %3967 = vmatpush1.msra.mxu0 0.0
        %3968 = vmatprep.subr.mxu0 0.0
        %3969 = vmatpush1.msra.mxu0 0.0
        %3970 = vmatprep.subr.mxu0 0.0
        %3971 = vmatpush1.msra.mxu0 0.0
        %3972 = vmatprep.subr.mxu0 0.0
        %3973 = vmatpush1.msra.mxu0 0.0
        %3974 = vmatprep.subr.mxu0 0.0
        %3975 = vmatpush1.msra.mxu0 0.0
        %3976 = vmatprep.subr.mxu0 0.0
        %3977 = vmatpush1.msra.mxu0 0.0
        %3978 = vmatprep.subr.mxu0 0.0
        %3979 = vmatpush1.msra.mxu0 0.0
        %3980 = vmatprep.subr.mxu0 0.0
        %3981 = vmatpush1.msra.mxu0 0.0
        %3982 = vmatprep.subr.mxu0 0.0
        %3983 = vmatpush1.msra.mxu0 0.0
        %3984 = vmatprep.subr.mxu0 0.0
        %3985 = vmatpush1.msra.mxu0 0.0
        %3986 = vmatprep.mubr.f32.mxu0 0.0
        %v3987 = vand.u32 %v3017, 4294901760
        %3988 = vmatmul.mubr.f32.gmra.mrb[0].mxu0 %v3987
        %v3989 = vpop.f32.mrb[0].mxu0
        %v3990 = vadd.f32 %v3829, %v3989
        %v3991 = vpop.f32.mrb[0].mxu0
        %3992 = vmatprep.mubr.f32.mxu0 0.0
        %v3993 = vand.u32 %v3014, 4294901760
        %3994 = vmatmul.mubr.f32.gmra.mrb[0].mxu0 %v3993
        %v3995 = vpop.f32.mrb[0].mxu0
        %v3996 = vadd.f32 %v3839, %v3995
        %v3997 = vpop.f32.mrb[0].mxu0
        %3998 = vdwg.mxu0
        %3999 = vmatprep.subr.mxu0 0.0
        %v4000 = vand.u32 %v3024, 4294901760
        %v4001 = vsub.f32 %v3024, %v4000
        %4002 = vmatpush1.msra.mxu0 %v4001
        %4003 = vmatprep.subr.mxu0 0.0
        %v4004 = vand.u32 %v3025, 4294901760
        %v4005 = vsub.f32 %v3025, %v4004
        %4006 = vmatpush1.msra.mxu0 %v4005
        %4007 = vmatprep.subr.mxu0 0.0
        %v4008 = vand.u32 %v3026, 4294901760
        %v4009 = vsub.f32 %v3026, %v4008
        %4010 = vmatpush1.msra.mxu0 %v4009
        %4011 = vmatprep.subr.mxu0 0.0
        %v4012 = vand.u32 %v3027, 4294901760
        %v4013 = vsub.f32 %v3027, %v4012
        %4014 = vmatpush1.msra.mxu0 %v4013
        %4015 = vmatprep.subr.mxu0 0.0
        %v4016 = vand.u32 %v3028, 4294901760
        %v4017 = vsub.f32 %v3028, %v4016
        %4018 = vmatpush1.msra.mxu0 %v4017
        %4019 = vmatprep.subr.mxu0 0.0
        %v4020 = vand.u32 %v3029, 4294901760
        %v4021 = vsub.f32 %v3029, %v4020
        %4022 = vmatpush1.msra.mxu0 %v4021
        %4023 = vmatprep.subr.mxu0 0.0
        %v4024 = vand.u32 %v3030, 4294901760
        %v4025 = vsub.f32 %v3030, %v4024
        %4026 = vmatpush1.msra.mxu0 %v4025
        %4027 = vmatprep.subr.mxu0 0.0
        %v4028 = vand.u32 %v3031, 4294901760
        %v4029 = vsub.f32 %v3031, %v4028
        %4030 = vmatpush1.msra.mxu0 %v4029
        %4031 = vmatprep.subr.mxu0 0.0
        %v4032 = vand.u32 %v3032, 4294901760
        %v4033 = vsub.f32 %v3032, %v4032
        %4034 = vmatpush1.msra.mxu0 %v4033
        %4035 = vmatprep.subr.mxu0 0.0
        %v4036 = vand.u32 %v3033, 4294901760
        %v4037 = vsub.f32 %v3033, %v4036
        %4038 = vmatpush1.msra.mxu0 %v4037
        %4039 = vmatprep.subr.mxu0 0.0
        %v4040 = vand.u32 %v3034, 4294901760
        %v4041 = vsub.f32 %v3034, %v4040
        %4042 = vmatpush1.msra.mxu0 %v4041
        %4043 = vmatprep.subr.mxu0 0.0
        %v4044 = vand.u32 %v3035, 4294901760
        %v4045 = vsub.f32 %v3035, %v4044
        %4046 = vmatpush1.msra.mxu0 %v4045
        %4047 = vmatprep.subr.mxu0 0.0
        %v4048 = vand.u32 %v3036, 4294901760
        %v4049 = vsub.f32 %v3036, %v4048
        %4050 = vmatpush1.msra.mxu0 %v4049
        %4051 = vmatprep.subr.mxu0 0.0
        %v4052 = vand.u32 %v3037, 4294901760
        %v4053 = vsub.f32 %v3037, %v4052
        %4054 = vmatpush1.msra.mxu0 %v4053
        %4055 = vmatprep.subr.mxu0 0.0
        %v4056 = vand.u32 %v3038, 4294901760
        %v4057 = vsub.f32 %v3038, %v4056
        %4058 = vmatpush1.msra.mxu0 %v4057
        %4059 = vmatprep.subr.mxu0 0.0
        %v4060 = vand.u32 %v3039, 4294901760
        %v4061 = vsub.f32 %v3039, %v4060
        %4062 = vmatpush1.msra.mxu0 %v4061
        %4063 = vmatprep.subr.mxu0 0.0
        %4064 = vmatpush1.msra.mxu0 0.0
        %4065 = vmatprep.subr.mxu0 0.0
        %4066 = vmatpush1.msra.mxu0 0.0
        %4067 = vmatprep.subr.mxu0 0.0
        %4068 = vmatpush1.msra.mxu0 0.0
        %4069 = vmatprep.subr.mxu0 0.0
        %4070 = vmatpush1.msra.mxu0 0.0
        %4071 = vmatprep.subr.mxu0 0.0
        %4072 = vmatpush1.msra.mxu0 0.0
        %4073 = vmatprep.subr.mxu0 0.0
        %4074 = vmatpush1.msra.mxu0 0.0
        %4075 = vmatprep.subr.mxu0 0.0
        %4076 = vmatpush1.msra.mxu0 0.0
        %4077 = vmatprep.subr.mxu0 0.0
        %4078 = vmatpush1.msra.mxu0 0.0
        %4079 = vmatprep.subr.mxu0 0.0
        %4080 = vmatpush1.msra.mxu0 0.0
        %4081 = vmatprep.subr.mxu0 0.0
        %4082 = vmatpush1.msra.mxu0 0.0
        %4083 = vmatprep.subr.mxu0 0.0
        %4084 = vmatpush1.msra.mxu0 0.0
        %4085 = vmatprep.subr.mxu0 0.0
        %4086 = vmatpush1.msra.mxu0 0.0
        %4087 = vmatprep.subr.mxu0 0.0
        %4088 = vmatpush1.msra.mxu0 0.0
        %4089 = vmatprep.subr.mxu0 0.0
        %4090 = vmatpush1.msra.mxu0 0.0
        %4091 = vmatprep.subr.mxu0 0.0
        %4092 = vmatpush1.msra.mxu0 0.0
        %4093 = vmatprep.subr.mxu0 0.0
        %4094 = vmatpush1.msra.mxu0 0.0
        %4095 = vmatprep.mubr.f32.mxu0 0.0
        %v4096 = vand.u32 %v3017, 4294901760
        %v4097 = vsub.f32 %v3017, %v4096
        %4098 = vmatmul.mubr.f32.gmra.mrb[0].mxu0 %v4097
        %v4099 = vpop.f32.mrb[0].mxu0
        %v4100 = vadd.f32 %v3990, %v4099
        %v4101 = vpop.f32.mrb[0].mxu0
        %4102 = vmatprep.mubr.f32.mxu0 0.0
        %v4103 = vand.u32 %v3014, 4294901760
        %v4104 = vsub.f32 %v3014, %v4103
        %4105 = vmatmul.mubr.f32.gmra.mrb[0].mxu0 %v4104
        %v4106 = vpop.f32.mrb[0].mxu0
        %v4107 = vadd.f32 %v3996, %v4106
        %v4108 = vpop.f32.mrb[0].mxu0
        %4109 = vdwg.mxu0
        %4110 = vmatprep.subr.mxu0 0.0
        %v4111 = vand.u32 %v3024, 4294901760
        %4112 = vmatpush1.msra.mxu0 %v4111
        %4113 = vmatprep.subr.mxu0 0.0
        %v4114 = vand.u32 %v3025, 4294901760
        %4115 = vmatpush1.msra.mxu0 %v4114
        %4116 = vmatprep.subr.mxu0 0.0
        %v4117 = vand.u32 %v3026, 4294901760
        %4118 = vmatpush1.msra.mxu0 %v4117
        %4119 = vmatprep.subr.mxu0 0.0
        %v4120 = vand.u32 %v3027, 4294901760
        %4121 = vmatpush1.msra.mxu0 %v4120
        %4122 = vmatprep.subr.mxu0 0.0
        %v4123 = vand.u32 %v3028, 4294901760
        %4124 = vmatpush1.msra.mxu0 %v4123
        %4125 = vmatprep.subr.mxu0 0.0
        %v4126 = vand.u32 %v3029, 4294901760
        %4127 = vmatpush1.msra.mxu0 %v4126
        %4128 = vmatprep.subr.mxu0 0.0
        %v4129 = vand.u32 %v3030, 4294901760
        %4130 = vmatpush1.msra.mxu0 %v4129
        %4131 = vmatprep.subr.mxu0 0.0
        %v4132 = vand.u32 %v3031, 4294901760
        %4133 = vmatpush1.msra.mxu0 %v4132
        %4134 = vmatprep.subr.mxu0 0.0
        %v4135 = vand.u32 %v3032, 4294901760
        %4136 = vmatpush1.msra.mxu0 %v4135
        %4137 = vmatprep.subr.mxu0 0.0
        %v4138 = vand.u32 %v3033, 4294901760
        %4139 = vmatpush1.msra.mxu0 %v4138
        %4140 = vmatprep.subr.mxu0 0.0
        %v4141 = vand.u32 %v3034, 4294901760
        %4142 = vmatpush1.msra.mxu0 %v4141
        %4143 = vmatprep.subr.mxu0 0.0
        %v4144 = vand.u32 %v3035, 4294901760
        %4145 = vmatpush1.msra.mxu0 %v4144
        %4146 = vmatprep.subr.mxu0 0.0
        %v4147 = vand.u32 %v3036, 4294901760
        %4148 = vmatpush1.msra.mxu0 %v4147
        %4149 = vmatprep.subr.mxu0 0.0
        %v4150 = vand.u32 %v3037, 4294901760
        %4151 = vmatpush1.msra.mxu0 %v4150
        %4152 = vmatprep.subr.mxu0 0.0
        %v4153 = vand.u32 %v3038, 4294901760
        %4154 = vmatpush1.msra.mxu0 %v4153
        %4155 = vmatprep.subr.mxu0 0.0
        %v4156 = vand.u32 %v3039, 4294901760
        %4157 = vmatpush1.msra.mxu0 %v4156
        %4158 = vmatprep.subr.mxu0 0.0
        %4159 = vmatpush1.msra.mxu0 0.0
        %4160 = vmatprep.subr.mxu0 0.0
        %4161 = vmatpush1.msra.mxu0 0.0
        %4162 = vmatprep.subr.mxu0 0.0
        %4163 = vmatpush1.msra.mxu0 0.0
        %4164 = vmatprep.subr.mxu0 0.0
        %4165 = vmatpush1.msra.mxu0 0.0
        %4166 = vmatprep.subr.mxu0 0.0
        %4167 = vmatpush1.msra.mxu0 0.0
        %4168 = vmatprep.subr.mxu0 0.0
        %4169 = vmatpush1.msra.mxu0 0.0
        %4170 = vmatprep.subr.mxu0 0.0
        %4171 = vmatpush1.msra.mxu0 0.0
        %4172 = vmatprep.subr.mxu0 0.0
        %4173 = vmatpush1.msra.mxu0 0.0
        %4174 = vmatprep.subr.mxu0 0.0
        %4175 = vmatpush1.msra.mxu0 0.0
        %4176 = vmatprep.subr.mxu0 0.0
        %4177 = vmatpush1.msra.mxu0 0.0
        %4178 = vmatprep.subr.mxu0 0.0
        %4179 = vmatpush1.msra.mxu0 0.0
        %4180 = vmatprep.subr.mxu0 0.0
        %4181 = vmatpush1.msra.mxu0 0.0
        %4182 = vmatprep.subr.mxu0 0.0
        %4183 = vmatpush1.msra.mxu0 0.0
        %4184 = vmatprep.subr.mxu0 0.0
        %4185 = vmatpush1.msra.mxu0 0.0
        %4186 = vmatprep.subr.mxu0 0.0
        %4187 = vmatpush1.msra.mxu0 0.0
        %4188 = vmatprep.subr.mxu0 0.0
        %4189 = vmatpush1.msra.mxu0 0.0
        %4190 = vmatprep.mubr.f32.mxu0 0.0
        %v4191 = vand.u32 %v3017, 4294901760
        %v4192 = vsub.f32 %v3017, %v4191
        %v4193 = vand.u32 %v4192, 4294901760
        %4194 = vmatmul.mubr.f32.gmra.mrb[0].mxu0 %v4193
        %v4195 = vpop.f32.mrb[0].mxu0
        %v4196 = vadd.f32 %v4100, %v4195
        %v4197 = vpop.f32.mrb[0].mxu0
        %4198 = vmatprep.mubr.f32.mxu0 0.0
        %v4199 = vand.u32 %v3014, 4294901760
        %v4200 = vsub.f32 %v3014, %v4199
        %v4201 = vand.u32 %v4200, 4294901760
        %4202 = vmatmul.mubr.f32.gmra.mrb[0].mxu0 %v4201
        %v4203 = vpop.f32.mrb[0].mxu0
        %v4204 = vadd.f32 %v4107, %v4203
        %v4205 = vpop.f32.mrb[0].mxu0
        %4206 = vdwg.mxu0
        %4207 = vmatprep.subr.mxu0 0.0
        %v4208 = vand.u32 %v3024, 4294901760
        %v4209 = vsub.f32 %v3024, %v4208
        %v4210 = vand.u32 %v4209, 4294901760
        %4211 = vmatpush1.msra.mxu0 %v4210
        %4212 = vmatprep.subr.mxu0 0.0
        %v4213 = vand.u32 %v3025, 4294901760
        %v4214 = vsub.f32 %v3025, %v4213
        %v4215 = vand.u32 %v4214, 4294901760
        %4216 = vmatpush1.msra.mxu0 %v4215
        %4217 = vmatprep.subr.mxu0 0.0
        %v4218 = vand.u32 %v3026, 4294901760
        %v4219 = vsub.f32 %v3026, %v4218
        %v4220 = vand.u32 %v4219, 4294901760
        %4221 = vmatpush1.msra.mxu0 %v4220
        %4222 = vmatprep.subr.mxu0 0.0
        %v4223 = vand.u32 %v3027, 4294901760
        %v4224 = vsub.f32 %v3027, %v4223
        %v4225 = vand.u32 %v4224, 4294901760
        %4226 = vmatpush1.msra.mxu0 %v4225
        %4227 = vmatprep.subr.mxu0 0.0
        %v4228 = vand.u32 %v3028, 4294901760
        %v4229 = vsub.f32 %v3028, %v4228
        %v4230 = vand.u32 %v4229, 4294901760
        %4231 = vmatpush1.msra.mxu0 %v4230
        %4232 = vmatprep.subr.mxu0 0.0
        %v4233 = vand.u32 %v3029, 4294901760
        %v4234 = vsub.f32 %v3029, %v4233
        %v4235 = vand.u32 %v4234, 4294901760
        %4236 = vmatpush1.msra.mxu0 %v4235
        %4237 = vmatprep.subr.mxu0 0.0
        %v4238 = vand.u32 %v3030, 4294901760
        %v4239 = vsub.f32 %v3030, %v4238
        %v4240 = vand.u32 %v4239, 4294901760
        %4241 = vmatpush1.msra.mxu0 %v4240
        %4242 = vmatprep.subr.mxu0 0.0
        %v4243 = vand.u32 %v3031, 4294901760
        %v4244 = vsub.f32 %v3031, %v4243
        %v4245 = vand.u32 %v4244, 4294901760
        %4246 = vmatpush1.msra.mxu0 %v4245
        %4247 = vmatprep.subr.mxu0 0.0
        %v4248 = vand.u32 %v3032, 4294901760
        %v4249 = vsub.f32 %v3032, %v4248
        %v4250 = vand.u32 %v4249, 4294901760
        %4251 = vmatpush1.msra.mxu0 %v4250
        %4252 = vmatprep.subr.mxu0 0.0
        %v4253 = vand.u32 %v3033, 4294901760
        %v4254 = vsub.f32 %v3033, %v4253
        %v4255 = vand.u32 %v4254, 4294901760
        %4256 = vmatpush1.msra.mxu0 %v4255
        %4257 = vmatprep.subr.mxu0 0.0
        %v4258 = vand.u32 %v3034, 4294901760
        %v4259 = vsub.f32 %v3034, %v4258
        %v4260 = vand.u32 %v4259, 4294901760
        %4261 = vmatpush1.msra.mxu0 %v4260
        %4262 = vmatprep.subr.mxu0 0.0
        %v4263 = vand.u32 %v3035, 4294901760
        %v4264 = vsub.f32 %v3035, %v4263
        %v4265 = vand.u32 %v4264, 4294901760
        %4266 = vmatpush1.msra.mxu0 %v4265
        %4267 = vmatprep.subr.mxu0 0.0
        %v4268 = vand.u32 %v3036, 4294901760
        %v4269 = vsub.f32 %v3036, %v4268
        %v4270 = vand.u32 %v4269, 4294901760
        %4271 = vmatpush1.msra.mxu0 %v4270
        %4272 = vmatprep.subr.mxu0 0.0
        %v4273 = vand.u32 %v3037, 4294901760
        %v4274 = vsub.f32 %v3037, %v4273
        %v4275 = vand.u32 %v4274, 4294901760
        %4276 = vmatpush1.msra.mxu0 %v4275
        %4277 = vmatprep.subr.mxu0 0.0
        %v4278 = vand.u32 %v3038, 4294901760
        %v4279 = vsub.f32 %v3038, %v4278
        %v4280 = vand.u32 %v4279, 4294901760
        %4281 = vmatpush1.msra.mxu0 %v4280
        %4282 = vmatprep.subr.mxu0 0.0
        %v4283 = vand.u32 %v3039, 4294901760
        %v4284 = vsub.f32 %v3039, %v4283
        %v4285 = vand.u32 %v4284, 4294901760
        %4286 = vmatpush1.msra.mxu0 %v4285
        %4287 = vmatprep.subr.mxu0 0.0
        %4288 = vmatpush1.msra.mxu0 0.0
        %4289 = vmatprep.subr.mxu0 0.0
        %4290 = vmatpush1.msra.mxu0 0.0
        %4291 = vmatprep.subr.mxu0 0.0
        %4292 = vmatpush1.msra.mxu0 0.0
        %4293 = vmatprep.subr.mxu0 0.0
        %4294 = vmatpush1.msra.mxu0 0.0
        %4295 = vmatprep.subr.mxu0 0.0
        %4296 = vmatpush1.msra.mxu0 0.0
        %4297 = vmatprep.subr.mxu0 0.0
        %4298 = vmatpush1.msra.mxu0 0.0
        %4299 = vmatprep.subr.mxu0 0.0
        %4300 = vmatpush1.msra.mxu0 0.0
        %4301 = vmatprep.subr.mxu0 0.0
        %4302 = vmatpush1.msra.mxu0 0.0
        %4303 = vmatprep.subr.mxu0 0.0
        %4304 = vmatpush1.msra.mxu0 0.0
        %4305 = vmatprep.subr.mxu0 0.0
        %4306 = vmatpush1.msra.mxu0 0.0
        %4307 = vmatprep.subr.mxu0 0.0
        %4308 = vmatpush1.msra.mxu0 0.0
        %4309 = vmatprep.subr.mxu0 0.0
        %4310 = vmatpush1.msra.mxu0 0.0
        %4311 = vmatprep.subr.mxu0 0.0
        %4312 = vmatpush1.msra.mxu0 0.0
        %4313 = vmatprep.subr.mxu0 0.0
        %4314 = vmatpush1.msra.mxu0 0.0
        %4315 = vmatprep.subr.mxu0 0.0
        %4316 = vmatpush1.msra.mxu0 0.0
        %4317 = vmatprep.subr.mxu0 0.0
        %4318 = vmatpush1.msra.mxu0 0.0
        %4319 = vmatprep.mubr.f32.mxu0 0.0
        %v4320 = vand.u32 %v3017, 4294901760
        %4321 = vmatmul.mubr.f32.gmra.mrb[0].mxu0 %v4320
        %v4322 = vpop.f32.mrb[0].mxu0
        %v4323 = vadd.f32 %v4196, %v4322
        %v4324 = vpop.f32.mrb[0].mxu0
        %4325 = vmatprep.mubr.f32.mxu0 0.0
        %v4326 = vand.u32 %v3014, 4294901760
        %4327 = vmatmul.mubr.f32.gmra.mrb[0].mxu0 %v4326
        %v4328 = vpop.f32.mrb[0].mxu0
        %v4329 = vadd.f32 %v4204, %v4328
        %v4330 = vpop.f32.mrb[0].mxu0
        %4331 = vdwg.mxu0
        %4332 = vmatprep.subr.mxu0 0.0
        %v4333 = vand.u32 %v3024, 4294901760
        %4334 = vmatpush1.msra.mxu0 %v4333
        %4335 = vmatprep.subr.mxu0 0.0
        %v4336 = vand.u32 %v3025, 4294901760
        %4337 = vmatpush1.msra.mxu0 %v4336
        %4338 = vmatprep.subr.mxu0 0.0
        %v4339 = vand.u32 %v3026, 4294901760
        %4340 = vmatpush1.msra.mxu0 %v4339
        %4341 = vmatprep.subr.mxu0 0.0
        %v4342 = vand.u32 %v3027, 4294901760
        %4343 = vmatpush1.msra.mxu0 %v4342
        %4344 = vmatprep.subr.mxu0 0.0
        %v4345 = vand.u32 %v3028, 4294901760
        %4346 = vmatpush1.msra.mxu0 %v4345
        %4347 = vmatprep.subr.mxu0 0.0
        %v4348 = vand.u32 %v3029, 4294901760
        %4349 = vmatpush1.msra.mxu0 %v4348
        %4350 = vmatprep.subr.mxu0 0.0
        %v4351 = vand.u32 %v3030, 4294901760
        %4352 = vmatpush1.msra.mxu0 %v4351
        %4353 = vmatprep.subr.mxu0 0.0
        %v4354 = vand.u32 %v3031, 4294901760
        %4355 = vmatpush1.msra.mxu0 %v4354
        %4356 = vmatprep.subr.mxu0 0.0
        %v4357 = vand.u32 %v3032, 4294901760
        %4358 = vmatpush1.msra.mxu0 %v4357
        %4359 = vmatprep.subr.mxu0 0.0
        %v4360 = vand.u32 %v3033, 4294901760
        %4361 = vmatpush1.msra.mxu0 %v4360
        %4362 = vmatprep.subr.mxu0 0.0
        %v4363 = vand.u32 %v3034, 4294901760
        %4364 = vmatpush1.msra.mxu0 %v4363
        %4365 = vmatprep.subr.mxu0 0.0
        %v4366 = vand.u32 %v3035, 4294901760
        %4367 = vmatpush1.msra.mxu0 %v4366
        %4368 = vmatprep.subr.mxu0 0.0
        %v4369 = vand.u32 %v3036, 4294901760
        %4370 = vmatpush1.msra.mxu0 %v4369
        %4371 = vmatprep.subr.mxu0 0.0
        %v4372 = vand.u32 %v3037, 4294901760
        %4373 = vmatpush1.msra.mxu0 %v4372
        %4374 = vmatprep.subr.mxu0 0.0
        %v4375 = vand.u32 %v3038, 4294901760
        %4376 = vmatpush1.msra.mxu0 %v4375
        %4377 = vmatprep.subr.mxu0 0.0
        %v4378 = vand.u32 %v3039, 4294901760
        %4379 = vmatpush1.msra.mxu0 %v4378
        %4380 = vmatprep.subr.mxu0 0.0
        %4381 = vmatpush1.msra.mxu0 0.0
        %4382 = vmatprep.subr.mxu0 0.0
        %4383 = vmatpush1.msra.mxu0 0.0
        %4384 = vmatprep.subr.mxu0 0.0
        %4385 = vmatpush1.msra.mxu0 0.0
        %4386 = vmatprep.subr.mxu0 0.0
        %4387 = vmatpush1.msra.mxu0 0.0
        %4388 = vmatprep.subr.mxu0 0.0
        %4389 = vmatpush1.msra.mxu0 0.0
        %4390 = vmatprep.subr.mxu0 0.0
        %4391 = vmatpush1.msra.mxu0 0.0
        %4392 = vmatprep.subr.mxu0 0.0
        %4393 = vmatpush1.msra.mxu0 0.0
        %4394 = vmatprep.subr.mxu0 0.0
        %4395 = vmatpush1.msra.mxu0 0.0
        %4396 = vmatprep.subr.mxu0 0.0
        %4397 = vmatpush1.msra.mxu0 0.0
        %4398 = vmatprep.subr.mxu0 0.0
        %4399 = vmatpush1.msra.mxu0 0.0
        %4400 = vmatprep.subr.mxu0 0.0
        %4401 = vmatpush1.msra.mxu0 0.0
        %4402 = vmatprep.subr.mxu0 0.0
        %4403 = vmatpush1.msra.mxu0 0.0
        %4404 = vmatprep.subr.mxu0 0.0
        %4405 = vmatpush1.msra.mxu0 0.0
        %4406 = vmatprep.subr.mxu0 0.0
        %4407 = vmatpush1.msra.mxu0 0.0
        %4408 = vmatprep.subr.mxu0 0.0
        %4409 = vmatpush1.msra.mxu0 0.0
        %4410 = vmatprep.subr.mxu0 0.0
        %4411 = vmatpush1.msra.mxu0 0.0
        %4412 = vmatprep.mubr.f32.mxu0 0.0
        %v4413 = vand.u32 %v3017, 4294901760
        %4414 = vmatmul.mubr.f32.gmra.mrb[0].mxu0 %v4413
        %v4415 = vpop.f32.mrb[0].mxu0
        %v4416 = vadd.f32 %v4323, %v4415
        %v4417 = vpop.f32.mrb[0].mxu0
        %4418 = vmatprep.mubr.f32.mxu0 0.0
        %v4419 = vand.u32 %v3014, 4294901760
        %4420 = vmatmul.mubr.f32.gmra.mrb[0].mxu0 %v4419
        %v4421 = vpop.f32.mrb[0].mxu0
        %v4422 = vadd.f32 %v4329, %v4421
        %v4423 = vpop.f32.mrb[0].mxu0
        %4424 = vdwg.mxu0
        %s4425 = scalar_lea.vmem [#allocation2], 256
        %v4426 = vld [vmem:[%s4425] sm:$0xff]
        %v4427 = vld [vmem:[%s4425 + $0x8] sm:$0xff]
        %v4428 = vld [vmem:[%s4425 + $0x10] sm:$0xff]
        %v4429 = vld [vmem:[%s4425 + $0x18] sm:$0xff]
        %v4430 = vld [vmem:[%s4425 + $0x20] sm:$0xff]
        %v4431 = vld [vmem:[%s4425 + $0x28] sm:$0xff]
        %v4432 = vld [vmem:[%s4425 + $0x30] sm:$0xff]
        %v4433 = vld [vmem:[%s4425 + $0x38] sm:$0xff]
        %v4434 = vld [vmem:[%s4425 + $0x40] sm:$0xff]
        %v4435 = vld [vmem:[%s4425 + $0x48] sm:$0xff]
        %v4436 = vld [vmem:[%s4425 + $0x50] sm:$0xff]
        %v4437 = vld [vmem:[%s4425 + $0x58] sm:$0xff]
        %v4438 = vld [vmem:[%s4425 + $0x60] sm:$0xff]
        %v4439 = vld [vmem:[%s4425 + $0x68] sm:$0xff]
        %v4440 = vld [vmem:[%s4425 + $0x70] sm:$0xff]
        %v4441 = vld [vmem:[%s4425 + $0x78] sm:$0xff]
        %4442 = vmatprep.subr.mxu0 0.0
        %v4443 = vand.u32 %v4426, 4294901760
        %4444 = vmatpush1.msra.mxu0 %v4443
        %4445 = vmatprep.subr.mxu0 0.0
        %v4446 = vand.u32 %v4427, 4294901760
        %4447 = vmatpush1.msra.mxu0 %v4446
        %4448 = vmatprep.subr.mxu0 0.0
        %v4449 = vand.u32 %v4428, 4294901760
        %4450 = vmatpush1.msra.mxu0 %v4449
        %4451 = vmatprep.subr.mxu0 0.0
        %v4452 = vand.u32 %v4429, 4294901760
        %4453 = vmatpush1.msra.mxu0 %v4452
        %4454 = vmatprep.subr.mxu0 0.0
        %v4455 = vand.u32 %v4430, 4294901760
        %4456 = vmatpush1.msra.mxu0 %v4455
        %4457 = vmatprep.subr.mxu0 0.0
        %v4458 = vand.u32 %v4431, 4294901760
        %4459 = vmatpush1.msra.mxu0 %v4458
        %4460 = vmatprep.subr.mxu0 0.0
        %v4461 = vand.u32 %v4432, 4294901760
        %4462 = vmatpush1.msra.mxu0 %v4461
        %4463 = vmatprep.subr.mxu0 0.0
        %v4464 = vand.u32 %v4433, 4294901760
        %4465 = vmatpush1.msra.mxu0 %v4464
        %4466 = vmatprep.subr.mxu0 0.0
        %v4467 = vand.u32 %v4434, 4294901760
        %4468 = vmatpush1.msra.mxu0 %v4467
        %4469 = vmatprep.subr.mxu0 0.0
        %v4470 = vand.u32 %v4435, 4294901760
        %4471 = vmatpush1.msra.mxu0 %v4470
        %4472 = vmatprep.subr.mxu0 0.0
        %v4473 = vand.u32 %v4436, 4294901760
        %4474 = vmatpush1.msra.mxu0 %v4473
        %4475 = vmatprep.subr.mxu0 0.0
        %v4476 = vand.u32 %v4437, 4294901760
        %4477 = vmatpush1.msra.mxu0 %v4476
        %4478 = vmatprep.subr.mxu0 0.0
        %v4479 = vand.u32 %v4438, 4294901760
        %4480 = vmatpush1.msra.mxu0 %v4479
        %4481 = vmatprep.subr.mxu0 0.0
        %v4482 = vand.u32 %v4439, 4294901760
        %4483 = vmatpush1.msra.mxu0 %v4482
        %4484 = vmatprep.subr.mxu0 0.0
        %v4485 = vand.u32 %v4440, 4294901760
        %4486 = vmatpush1.msra.mxu0 %v4485
        %4487 = vmatprep.subr.mxu0 0.0
        %v4488 = vand.u32 %v4441, 4294901760
        %4489 = vmatpush1.msra.mxu0 %v4488
        %4490 = vmatprep.subr.mxu0 0.0
        %4491 = vmatpush1.msra.mxu0 0.0
        %4492 = vmatprep.subr.mxu0 0.0
        %4493 = vmatpush1.msra.mxu0 0.0
        %4494 = vmatprep.subr.mxu0 0.0
        %4495 = vmatpush1.msra.mxu0 0.0
        %4496 = vmatprep.subr.mxu0 0.0
        %4497 = vmatpush1.msra.mxu0 0.0
        %4498 = vmatprep.subr.mxu0 0.0
        %4499 = vmatpush1.msra.mxu0 0.0
        %4500 = vmatprep.subr.mxu0 0.0
        %4501 = vmatpush1.msra.mxu0 0.0
        %4502 = vmatprep.subr.mxu0 0.0
        %4503 = vmatpush1.msra.mxu0 0.0
        %4504 = vmatprep.subr.mxu0 0.0
        %4505 = vmatpush1.msra.mxu0 0.0
        %4506 = vmatprep.subr.mxu0 0.0
        %4507 = vmatpush1.msra.mxu0 0.0
        %4508 = vmatprep.subr.mxu0 0.0
        %4509 = vmatpush1.msra.mxu0 0.0
        %4510 = vmatprep.subr.mxu0 0.0
        %4511 = vmatpush1.msra.mxu0 0.0
        %4512 = vmatprep.subr.mxu0 0.0
        %4513 = vmatpush1.msra.mxu0 0.0
        %4514 = vmatprep.subr.mxu0 0.0
        %4515 = vmatpush1.msra.mxu0 0.0
        %4516 = vmatprep.subr.mxu0 0.0
        %4517 = vmatpush1.msra.mxu0 0.0
        %4518 = vmatprep.subr.mxu0 0.0
        %4519 = vmatpush1.msra.mxu0 0.0
        %4520 = vmatprep.subr.mxu0 0.0
        %4521 = vmatpush1.msra.mxu0 0.0
        %4522 = vmatprep.mubr.f32.mxu0 0.0
        %v4523 = vand.u32 %v3020, 4294901760
        %v4524 = vsub.f32 %v3020, %v4523
        %v4525 = vand.u32 %v4524, 4294901760
        %v4526 = vsub.f32 %v4524, %v4525
        %v4527 = vand.u32 %v4526, 4294901760
        %4528 = vmatmul.mubr.f32.gmra.mrb[0].mxu0 %v4527
        %v4529 = vpop.f32.mrb[0].mxu0
        %v4530 = vadd.f32 0.0, %v4529
        %v4531 = vpop.f32.mrb[0].mxu0
        %4532 = vmatprep.mubr.f32.mxu0 0.0
        %v4533 = vand.u32 %v3023, 4294901760
        %v4534 = vsub.f32 %v3023, %v4533
        %v4535 = vand.u32 %v4534, 4294901760
        %v4536 = vsub.f32 %v4534, %v4535
        %v4537 = vand.u32 %v4536, 4294901760
        %4538 = vmatmul.mubr.f32.gmra.mrb[0].mxu0 %v4537
        %v4539 = vpop.f32.mrb[0].mxu0
        %v4540 = vadd.f32 0.0, %v4539
        %v4541 = vpop.f32.mrb[0].mxu0
        %4542 = vdwg.mxu0
        %4543 = vmatprep.subr.mxu0 0.0
        %v4544 = vand.u32 %v4426, 4294901760
        %v4545 = vsub.f32 %v4426, %v4544
        %v4546 = vand.u32 %v4545, 4294901760
        %v4547 = vsub.f32 %v4545, %v4546
        %v4548 = vand.u32 %v4547, 4294901760
        %4549 = vmatpush1.msra.mxu0 %v4548
        %4550 = vmatprep.subr.mxu0 0.0
        %v4551 = vand.u32 %v4427, 4294901760
        %v4552 = vsub.f32 %v4427, %v4551
        %v4553 = vand.u32 %v4552, 4294901760
        %v4554 = vsub.f32 %v4552, %v4553
        %v4555 = vand.u32 %v4554, 4294901760
        %4556 = vmatpush1.msra.mxu0 %v4555
        %4557 = vmatprep.subr.mxu0 0.0
        %v4558 = vand.u32 %v4428, 4294901760
        %v4559 = vsub.f32 %v4428, %v4558
        %v4560 = vand.u32 %v4559, 4294901760
        %v4561 = vsub.f32 %v4559, %v4560
        %v4562 = vand.u32 %v4561, 4294901760
        %4563 = vmatpush1.msra.mxu0 %v4562
        %4564 = vmatprep.subr.mxu0 0.0
        %v4565 = vand.u32 %v4429, 4294901760
        %v4566 = vsub.f32 %v4429, %v4565
        %v4567 = vand.u32 %v4566, 4294901760
        %v4568 = vsub.f32 %v4566, %v4567
        %v4569 = vand.u32 %v4568, 4294901760
        %4570 = vmatpush1.msra.mxu0 %v4569
        %4571 = vmatprep.subr.mxu0 0.0
        %v4572 = vand.u32 %v4430, 4294901760
        %v4573 = vsub.f32 %v4430, %v4572
        %v4574 = vand.u32 %v4573, 4294901760
        %v4575 = vsub.f32 %v4573, %v4574
        %v4576 = vand.u32 %v4575, 4294901760
        %4577 = vmatpush1.msra.mxu0 %v4576
        %4578 = vmatprep.subr.mxu0 0.0
        %v4579 = vand.u32 %v4431, 4294901760
        %v4580 = vsub.f32 %v4431, %v4579
        %v4581 = vand.u32 %v4580, 4294901760
        %v4582 = vsub.f32 %v4580, %v4581
        %v4583 = vand.u32 %v4582, 4294901760
        %4584 = vmatpush1.msra.mxu0 %v4583
        %4585 = vmatprep.subr.mxu0 0.0
        %v4586 = vand.u32 %v4432, 4294901760
        %v4587 = vsub.f32 %v4432, %v4586
        %v4588 = vand.u32 %v4587, 4294901760
        %v4589 = vsub.f32 %v4587, %v4588
        %v4590 = vand.u32 %v4589, 4294901760
        %4591 = vmatpush1.msra.mxu0 %v4590
        %4592 = vmatprep.subr.mxu0 0.0
        %v4593 = vand.u32 %v4433, 4294901760
        %v4594 = vsub.f32 %v4433, %v4593
        %v4595 = vand.u32 %v4594, 4294901760
        %v4596 = vsub.f32 %v4594, %v4595
        %v4597 = vand.u32 %v4596, 4294901760
        %4598 = vmatpush1.msra.mxu0 %v4597
        %4599 = vmatprep.subr.mxu0 0.0
        %v4600 = vand.u32 %v4434, 4294901760
        %v4601 = vsub.f32 %v4434, %v4600
        %v4602 = vand.u32 %v4601, 4294901760
        %v4603 = vsub.f32 %v4601, %v4602
        %v4604 = vand.u32 %v4603, 4294901760
        %4605 = vmatpush1.msra.mxu0 %v4604
        %4606 = vmatprep.subr.mxu0 0.0
        %v4607 = vand.u32 %v4435, 4294901760
        %v4608 = vsub.f32 %v4435, %v4607
        %v4609 = vand.u32 %v4608, 4294901760
        %v4610 = vsub.f32 %v4608, %v4609
        %v4611 = vand.u32 %v4610, 4294901760
        %4612 = vmatpush1.msra.mxu0 %v4611
        %4613 = vmatprep.subr.mxu0 0.0
        %v4614 = vand.u32 %v4436, 4294901760
        %v4615 = vsub.f32 %v4436, %v4614
        %v4616 = vand.u32 %v4615, 4294901760
        %v4617 = vsub.f32 %v4615, %v4616
        %v4618 = vand.u32 %v4617, 4294901760
        %4619 = vmatpush1.msra.mxu0 %v4618
        %4620 = vmatprep.subr.mxu0 0.0
        %v4621 = vand.u32 %v4437, 4294901760
        %v4622 = vsub.f32 %v4437, %v4621
        %v4623 = vand.u32 %v4622, 4294901760
        %v4624 = vsub.f32 %v4622, %v4623
        %v4625 = vand.u32 %v4624, 4294901760
        %4626 = vmatpush1.msra.mxu0 %v4625
        %4627 = vmatprep.subr.mxu0 0.0
        %v4628 = vand.u32 %v4438, 4294901760
        %v4629 = vsub.f32 %v4438, %v4628
        %v4630 = vand.u32 %v4629, 4294901760
        %v4631 = vsub.f32 %v4629, %v4630
        %v4632 = vand.u32 %v4631, 4294901760
        %4633 = vmatpush1.msra.mxu0 %v4632
        %4634 = vmatprep.subr.mxu0 0.0
        %v4635 = vand.u32 %v4439, 4294901760
        %v4636 = vsub.f32 %v4439, %v4635
        %v4637 = vand.u32 %v4636, 4294901760
        %v4638 = vsub.f32 %v4636, %v4637
        %v4639 = vand.u32 %v4638, 4294901760
        %4640 = vmatpush1.msra.mxu0 %v4639
        %4641 = vmatprep.subr.mxu0 0.0
        %v4642 = vand.u32 %v4440, 4294901760
        %v4643 = vsub.f32 %v4440, %v4642
        %v4644 = vand.u32 %v4643, 4294901760
        %v4645 = vsub.f32 %v4643, %v4644
        %v4646 = vand.u32 %v4645, 4294901760
        %4647 = vmatpush1.msra.mxu0 %v4646
        %4648 = vmatprep.subr.mxu0 0.0
        %v4649 = vand.u32 %v4441, 4294901760
        %v4650 = vsub.f32 %v4441, %v4649
        %v4651 = vand.u32 %v4650, 4294901760
        %v4652 = vsub.f32 %v4650, %v4651
        %v4653 = vand.u32 %v4652, 4294901760
        %4654 = vmatpush1.msra.mxu0 %v4653
        %4655 = vmatprep.subr.mxu0 0.0
        %4656 = vmatpush1.msra.mxu0 0.0
        %4657 = vmatprep.subr.mxu0 0.0
        %4658 = vmatpush1.msra.mxu0 0.0
        %4659 = vmatprep.subr.mxu0 0.0
        %4660 = vmatpush1.msra.mxu0 0.0
        %4661 = vmatprep.subr.mxu0 0.0
        %4662 = vmatpush1.msra.mxu0 0.0
        %4663 = vmatprep.subr.mxu0 0.0
        %4664 = vmatpush1.msra.mxu0 0.0
        %4665 = vmatprep.subr.mxu0 0.0
        %4666 = vmatpush1.msra.mxu0 0.0
        %4667 = vmatprep.subr.mxu0 0.0
        %4668 = vmatpush1.msra.mxu0 0.0
        %4669 = vmatprep.subr.mxu0 0.0
        %4670 = vmatpush1.msra.mxu0 0.0
        %4671 = vmatprep.subr.mxu0 0.0
        %4672 = vmatpush1.msra.mxu0 0.0
        %4673 = vmatprep.subr.mxu0 0.0
        %4674 = vmatpush1.msra.mxu0 0.0
        %4675 = vmatprep.subr.mxu0 0.0
        %4676 = vmatpush1.msra.mxu0 0.0
        %4677 = vmatprep.subr.mxu0 0.0
        %4678 = vmatpush1.msra.mxu0 0.0
        %4679 = vmatprep.subr.mxu0 0.0
        %4680 = vmatpush1.msra.mxu0 0.0
        %4681 = vmatprep.subr.mxu0 0.0
        %4682 = vmatpush1.msra.mxu0 0.0
        %4683 = vmatprep.subr.mxu0 0.0
        %4684 = vmatpush1.msra.mxu0 0.0
        %4685 = vmatprep.subr.mxu0 0.0
        %4686 = vmatpush1.msra.mxu0 0.0
        %4687 = vmatprep.mubr.f32.mxu0 0.0
        %v4688 = vand.u32 %v3020, 4294901760
        %4689 = vmatmul.mubr.f32.gmra.mrb[0].mxu0 %v4688
        %v4690 = vpop.f32.mrb[0].mxu0
        %v4691 = vadd.f32 %v4530, %v4690
        %v4692 = vpop.f32.mrb[0].mxu0
        %4693 = vmatprep.mubr.f32.mxu0 0.0
        %v4694 = vand.u32 %v3023, 4294901760
        %4695 = vmatmul.mubr.f32.gmra.mrb[0].mxu0 %v4694
        %v4696 = vpop.f32.mrb[0].mxu0
        %v4697 = vadd.f32 %v4540, %v4696
        %v4698 = vpop.f32.mrb[0].mxu0
        %4699 = vdwg.mxu0
        %4700 = vmatprep.subr.mxu0 0.0
        %v4701 = vand.u32 %v4426, 4294901760
        %v4702 = vsub.f32 %v4426, %v4701
        %4703 = vmatpush1.msra.mxu0 %v4702
        %4704 = vmatprep.subr.mxu0 0.0
        %v4705 = vand.u32 %v4427, 4294901760
        %v4706 = vsub.f32 %v4427, %v4705
        %4707 = vmatpush1.msra.mxu0 %v4706
        %4708 = vmatprep.subr.mxu0 0.0
        %v4709 = vand.u32 %v4428, 4294901760
        %v4710 = vsub.f32 %v4428, %v4709
        %4711 = vmatpush1.msra.mxu0 %v4710
        %4712 = vmatprep.subr.mxu0 0.0
        %v4713 = vand.u32 %v4429, 4294901760
        %v4714 = vsub.f32 %v4429, %v4713
        %4715 = vmatpush1.msra.mxu0 %v4714
        %4716 = vmatprep.subr.mxu0 0.0
        %v4717 = vand.u32 %v4430, 4294901760
        %v4718 = vsub.f32 %v4430, %v4717
        %4719 = vmatpush1.msra.mxu0 %v4718
        %4720 = vmatprep.subr.mxu0 0.0
        %v4721 = vand.u32 %v4431, 4294901760
        %v4722 = vsub.f32 %v4431, %v4721
        %4723 = vmatpush1.msra.mxu0 %v4722
        %4724 = vmatprep.subr.mxu0 0.0
        %v4725 = vand.u32 %v4432, 4294901760
        %v4726 = vsub.f32 %v4432, %v4725
        %4727 = vmatpush1.msra.mxu0 %v4726
        %4728 = vmatprep.subr.mxu0 0.0
        %v4729 = vand.u32 %v4433, 4294901760
        %v4730 = vsub.f32 %v4433, %v4729
        %4731 = vmatpush1.msra.mxu0 %v4730
        %4732 = vmatprep.subr.mxu0 0.0
        %v4733 = vand.u32 %v4434, 4294901760
        %v4734 = vsub.f32 %v4434, %v4733
        %4735 = vmatpush1.msra.mxu0 %v4734
        %4736 = vmatprep.subr.mxu0 0.0
        %v4737 = vand.u32 %v4435, 4294901760
        %v4738 = vsub.f32 %v4435, %v4737
        %4739 = vmatpush1.msra.mxu0 %v4738
        %4740 = vmatprep.subr.mxu0 0.0
        %v4741 = vand.u32 %v4436, 4294901760
        %v4742 = vsub.f32 %v4436, %v4741
        %4743 = vmatpush1.msra.mxu0 %v4742
        %4744 = vmatprep.subr.mxu0 0.0
        %v4745 = vand.u32 %v4437, 4294901760
        %v4746 = vsub.f32 %v4437, %v4745
        %4747 = vmatpush1.msra.mxu0 %v4746
        %4748 = vmatprep.subr.mxu0 0.0
        %v4749 = vand.u32 %v4438, 4294901760
        %v4750 = vsub.f32 %v4438, %v4749
        %4751 = vmatpush1.msra.mxu0 %v4750
        %4752 = vmatprep.subr.mxu0 0.0
        %v4753 = vand.u32 %v4439, 4294901760
        %v4754 = vsub.f32 %v4439, %v4753
        %4755 = vmatpush1.msra.mxu0 %v4754
        %4756 = vmatprep.subr.mxu0 0.0
        %v4757 = vand.u32 %v4440, 4294901760
        %v4758 = vsub.f32 %v4440, %v4757
        %4759 = vmatpush1.msra.mxu0 %v4758
        %4760 = vmatprep.subr.mxu0 0.0
        %v4761 = vand.u32 %v4441, 4294901760
        %v4762 = vsub.f32 %v4441, %v4761
        %4763 = vmatpush1.msra.mxu0 %v4762
        %4764 = vmatprep.subr.mxu0 0.0
        %4765 = vmatpush1.msra.mxu0 0.0
        %4766 = vmatprep.subr.mxu0 0.0
        %4767 = vmatpush1.msra.mxu0 0.0
        %4768 = vmatprep.subr.mxu0 0.0
        %4769 = vmatpush1.msra.mxu0 0.0
        %4770 = vmatprep.subr.mxu0 0.0
        %4771 = vmatpush1.msra.mxu0 0.0
        %4772 = vmatprep.subr.mxu0 0.0
        %4773 = vmatpush1.msra.mxu0 0.0
        %4774 = vmatprep.subr.mxu0 0.0
        %4775 = vmatpush1.msra.mxu0 0.0
        %4776 = vmatprep.subr.mxu0 0.0
        %4777 = vmatpush1.msra.mxu0 0.0
        %4778 = vmatprep.subr.mxu0 0.0
        %4779 = vmatpush1.msra.mxu0 0.0
        %4780 = vmatprep.subr.mxu0 0.0
        %4781 = vmatpush1.msra.mxu0 0.0
        %4782 = vmatprep.subr.mxu0 0.0
        %4783 = vmatpush1.msra.mxu0 0.0
        %4784 = vmatprep.subr.mxu0 0.0
        %4785 = vmatpush1.msra.mxu0 0.0
        %4786 = vmatprep.subr.mxu0 0.0
        %4787 = vmatpush1.msra.mxu0 0.0
        %4788 = vmatprep.subr.mxu0 0.0
        %4789 = vmatpush1.msra.mxu0 0.0
        %4790 = vmatprep.subr.mxu0 0.0
        %4791 = vmatpush1.msra.mxu0 0.0
        %4792 = vmatprep.subr.mxu0 0.0
        %4793 = vmatpush1.msra.mxu0 0.0
        %4794 = vmatprep.subr.mxu0 0.0
        %4795 = vmatpush1.msra.mxu0 0.0
        %4796 = vmatprep.mubr.f32.mxu0 0.0
        %v4797 = vand.u32 %v3020, 4294901760
        %v4798 = vsub.f32 %v3020, %v4797
        %4799 = vmatmul.mubr.f32.gmra.mrb[0].mxu0 %v4798
        %v4800 = vpop.f32.mrb[0].mxu0
        %v4801 = vadd.f32 %v4691, %v4800
        %v4802 = vpop.f32.mrb[0].mxu0
        %4803 = vmatprep.mubr.f32.mxu0 0.0
        %v4804 = vand.u32 %v3023, 4294901760
        %v4805 = vsub.f32 %v3023, %v4804
        %4806 = vmatmul.mubr.f32.gmra.mrb[0].mxu0 %v4805
        %v4807 = vpop.f32.mrb[0].mxu0
        %v4808 = vadd.f32 %v4697, %v4807
        %v4809 = vpop.f32.mrb[0].mxu0
        %4810 = vdwg.mxu0
        %4811 = vmatprep.subr.mxu0 0.0
        %v4812 = vand.u32 %v4426, 4294901760
        %4813 = vmatpush1.msra.mxu0 %v4812
        %4814 = vmatprep.subr.mxu0 0.0
        %v4815 = vand.u32 %v4427, 4294901760
        %4816 = vmatpush1.msra.mxu0 %v4815
        %4817 = vmatprep.subr.mxu0 0.0
        %v4818 = vand.u32 %v4428, 4294901760
        %4819 = vmatpush1.msra.mxu0 %v4818
        %4820 = vmatprep.subr.mxu0 0.0
        %v4821 = vand.u32 %v4429, 4294901760
        %4822 = vmatpush1.msra.mxu0 %v4821
        %4823 = vmatprep.subr.mxu0 0.0
        %v4824 = vand.u32 %v4430, 4294901760
        %4825 = vmatpush1.msra.mxu0 %v4824
        %4826 = vmatprep.subr.mxu0 0.0
        %v4827 = vand.u32 %v4431, 4294901760
        %4828 = vmatpush1.msra.mxu0 %v4827
        %4829 = vmatprep.subr.mxu0 0.0
        %v4830 = vand.u32 %v4432, 4294901760
        %4831 = vmatpush1.msra.mxu0 %v4830
        %4832 = vmatprep.subr.mxu0 0.0
        %v4833 = vand.u32 %v4433, 4294901760
        %4834 = vmatpush1.msra.mxu0 %v4833
        %4835 = vmatprep.subr.mxu0 0.0
        %v4836 = vand.u32 %v4434, 4294901760
        %4837 = vmatpush1.msra.mxu0 %v4836
        %4838 = vmatprep.subr.mxu0 0.0
        %v4839 = vand.u32 %v4435, 4294901760
        %4840 = vmatpush1.msra.mxu0 %v4839
        %4841 = vmatprep.subr.mxu0 0.0
        %v4842 = vand.u32 %v4436, 4294901760
        %4843 = vmatpush1.msra.mxu0 %v4842
        %4844 = vmatprep.subr.mxu0 0.0
        %v4845 = vand.u32 %v4437, 4294901760
        %4846 = vmatpush1.msra.mxu0 %v4845
        %4847 = vmatprep.subr.mxu0 0.0
        %v4848 = vand.u32 %v4438, 4294901760
        %4849 = vmatpush1.msra.mxu0 %v4848
        %4850 = vmatprep.subr.mxu0 0.0
        %v4851 = vand.u32 %v4439, 4294901760
        %4852 = vmatpush1.msra.mxu0 %v4851
        %4853 = vmatprep.subr.mxu0 0.0
        %v4854 = vand.u32 %v4440, 4294901760
        %4855 = vmatpush1.msra.mxu0 %v4854
        %4856 = vmatprep.subr.mxu0 0.0
        %v4857 = vand.u32 %v4441, 4294901760
        %4858 = vmatpush1.msra.mxu0 %v4857
        %4859 = vmatprep.subr.mxu0 0.0
        %4860 = vmatpush1.msra.mxu0 0.0
        %4861 = vmatprep.subr.mxu0 0.0
        %4862 = vmatpush1.msra.mxu0 0.0
        %4863 = vmatprep.subr.mxu0 0.0
        %4864 = vmatpush1.msra.mxu0 0.0
        %4865 = vmatprep.subr.mxu0 0.0
        %4866 = vmatpush1.msra.mxu0 0.0
        %4867 = vmatprep.subr.mxu0 0.0
        %4868 = vmatpush1.msra.mxu0 0.0
        %4869 = vmatprep.subr.mxu0 0.0
        %4870 = vmatpush1.msra.mxu0 0.0
        %4871 = vmatprep.subr.mxu0 0.0
        %4872 = vmatpush1.msra.mxu0 0.0
        %4873 = vmatprep.subr.mxu0 0.0
        %4874 = vmatpush1.msra.mxu0 0.0
        %4875 = vmatprep.subr.mxu0 0.0
        %4876 = vmatpush1.msra.mxu0 0.0
        %4877 = vmatprep.subr.mxu0 0.0
        %4878 = vmatpush1.msra.mxu0 0.0
        %4879 = vmatprep.subr.mxu0 0.0
        %4880 = vmatpush1.msra.mxu0 0.0
        %4881 = vmatprep.subr.mxu0 0.0
        %4882 = vmatpush1.msra.mxu0 0.0
        %4883 = vmatprep.subr.mxu0 0.0
        %4884 = vmatpush1.msra.mxu0 0.0
        %4885 = vmatprep.subr.mxu0 0.0
        %4886 = vmatpush1.msra.mxu0 0.0
        %4887 = vmatprep.subr.mxu0 0.0
        %4888 = vmatpush1.msra.mxu0 0.0
        %4889 = vmatprep.subr.mxu0 0.0
        %4890 = vmatpush1.msra.mxu0 0.0
        %4891 = vmatprep.mubr.f32.mxu0 0.0
        %v4892 = vand.u32 %v3020, 4294901760
        %v4893 = vsub.f32 %v3020, %v4892
        %v4894 = vand.u32 %v4893, 4294901760
        %4895 = vmatmul.mubr.f32.gmra.mrb[0].mxu0 %v4894
        %v4896 = vpop.f32.mrb[0].mxu0
        %v4897 = vadd.f32 %v4801, %v4896
        %v4898 = vpop.f32.mrb[0].mxu0
        %4899 = vmatprep.mubr.f32.mxu0 0.0
        %v4900 = vand.u32 %v3023, 4294901760
        %v4901 = vsub.f32 %v3023, %v4900
        %v4902 = vand.u32 %v4901, 4294901760
        %4903 = vmatmul.mubr.f32.gmra.mrb[0].mxu0 %v4902
        %v4904 = vpop.f32.mrb[0].mxu0
        %v4905 = vadd.f32 %v4808, %v4904
        %v4906 = vpop.f32.mrb[0].mxu0
        %4907 = vdwg.mxu0
        %4908 = vmatprep.subr.mxu0 0.0
        %v4909 = vand.u32 %v4426, 4294901760
        %v4910 = vsub.f32 %v4426, %v4909
        %v4911 = vand.u32 %v4910, 4294901760
        %4912 = vmatpush1.msra.mxu0 %v4911
        %4913 = vmatprep.subr.mxu0 0.0
        %v4914 = vand.u32 %v4427, 4294901760
        %v4915 = vsub.f32 %v4427, %v4914
        %v4916 = vand.u32 %v4915, 4294901760
        %4917 = vmatpush1.msra.mxu0 %v4916
        %4918 = vmatprep.subr.mxu0 0.0
        %v4919 = vand.u32 %v4428, 4294901760
        %v4920 = vsub.f32 %v4428, %v4919
        %v4921 = vand.u32 %v4920, 4294901760
        %4922 = vmatpush1.msra.mxu0 %v4921
        %4923 = vmatprep.subr.mxu0 0.0
        %v4924 = vand.u32 %v4429, 4294901760
        %v4925 = vsub.f32 %v4429, %v4924
        %v4926 = vand.u32 %v4925, 4294901760
        %4927 = vmatpush1.msra.mxu0 %v4926
        %4928 = vmatprep.subr.mxu0 0.0
        %v4929 = vand.u32 %v4430, 4294901760
        %v4930 = vsub.f32 %v4430, %v4929
        %v4931 = vand.u32 %v4930, 4294901760
        %4932 = vmatpush1.msra.mxu0 %v4931
        %4933 = vmatprep.subr.mxu0 0.0
        %v4934 = vand.u32 %v4431, 4294901760
        %v4935 = vsub.f32 %v4431, %v4934
        %v4936 = vand.u32 %v4935, 4294901760
        %4937 = vmatpush1.msra.mxu0 %v4936
        %4938 = vmatprep.subr.mxu0 0.0
        %v4939 = vand.u32 %v4432, 4294901760
        %v4940 = vsub.f32 %v4432, %v4939
        %v4941 = vand.u32 %v4940, 4294901760
        %4942 = vmatpush1.msra.mxu0 %v4941
        %4943 = vmatprep.subr.mxu0 0.0
        %v4944 = vand.u32 %v4433, 4294901760
        %v4945 = vsub.f32 %v4433, %v4944
        %v4946 = vand.u32 %v4945, 4294901760
        %4947 = vmatpush1.msra.mxu0 %v4946
        %4948 = vmatprep.subr.mxu0 0.0
        %v4949 = vand.u32 %v4434, 4294901760
        %v4950 = vsub.f32 %v4434, %v4949
        %v4951 = vand.u32 %v4950, 4294901760
        %4952 = vmatpush1.msra.mxu0 %v4951
        %4953 = vmatprep.subr.mxu0 0.0
        %v4954 = vand.u32 %v4435, 4294901760
        %v4955 = vsub.f32 %v4435, %v4954
        %v4956 = vand.u32 %v4955, 4294901760
        %4957 = vmatpush1.msra.mxu0 %v4956
        %4958 = vmatprep.subr.mxu0 0.0
        %v4959 = vand.u32 %v4436, 4294901760
        %v4960 = vsub.f32 %v4436, %v4959
        %v4961 = vand.u32 %v4960, 4294901760
        %4962 = vmatpush1.msra.mxu0 %v4961
        %4963 = vmatprep.subr.mxu0 0.0
        %v4964 = vand.u32 %v4437, 4294901760
        %v4965 = vsub.f32 %v4437, %v4964
        %v4966 = vand.u32 %v4965, 4294901760
        %4967 = vmatpush1.msra.mxu0 %v4966
        %4968 = vmatprep.subr.mxu0 0.0
        %v4969 = vand.u32 %v4438, 4294901760
        %v4970 = vsub.f32 %v4438, %v4969
        %v4971 = vand.u32 %v4970, 4294901760
        %4972 = vmatpush1.msra.mxu0 %v4971
        %4973 = vmatprep.subr.mxu0 0.0
        %v4974 = vand.u32 %v4439, 4294901760
        %v4975 = vsub.f32 %v4439, %v4974
        %v4976 = vand.u32 %v4975, 4294901760
        %4977 = vmatpush1.msra.mxu0 %v4976
        %4978 = vmatprep.subr.mxu0 0.0
        %v4979 = vand.u32 %v4440, 4294901760
        %v4980 = vsub.f32 %v4440, %v4979
        %v4981 = vand.u32 %v4980, 4294901760
        %4982 = vmatpush1.msra.mxu0 %v4981
        %4983 = vmatprep.subr.mxu0 0.0
        %v4984 = vand.u32 %v4441, 4294901760
        %v4985 = vsub.f32 %v4441, %v4984
        %v4986 = vand.u32 %v4985, 4294901760
        %4987 = vmatpush1.msra.mxu0 %v4986
        %4988 = vmatprep.subr.mxu0 0.0
        %4989 = vmatpush1.msra.mxu0 0.0
        %4990 = vmatprep.subr.mxu0 0.0
        %4991 = vmatpush1.msra.mxu0 0.0
        %4992 = vmatprep.subr.mxu0 0.0
        %4993 = vmatpush1.msra.mxu0 0.0
        %4994 = vmatprep.subr.mxu0 0.0
        %4995 = vmatpush1.msra.mxu0 0.0
        %4996 = vmatprep.subr.mxu0 0.0
        %4997 = vmatpush1.msra.mxu0 0.0
        %4998 = vmatprep.subr.mxu0 0.0
        %4999 = vmatpush1.msra.mxu0 0.0
        %5000 = vmatprep.subr.mxu0 0.0
        %5001 = vmatpush1.msra.mxu0 0.0
        %5002 = vmatprep.subr.mxu0 0.0
        %5003 = vmatpush1.msra.mxu0 0.0
        %5004 = vmatprep.subr.mxu0 0.0
        %5005 = vmatpush1.msra.mxu0 0.0
        %5006 = vmatprep.subr.mxu0 0.0
        %5007 = vmatpush1.msra.mxu0 0.0
        %5008 = vmatprep.subr.mxu0 0.0
        %5009 = vmatpush1.msra.mxu0 0.0
        %5010 = vmatprep.subr.mxu0 0.0
        %5011 = vmatpush1.msra.mxu0 0.0
        %5012 = vmatprep.subr.mxu0 0.0
        %5013 = vmatpush1.msra.mxu0 0.0
        %5014 = vmatprep.subr.mxu0 0.0
        %5015 = vmatpush1.msra.mxu0 0.0
        %5016 = vmatprep.subr.mxu0 0.0
        %5017 = vmatpush1.msra.mxu0 0.0
        %5018 = vmatprep.subr.mxu0 0.0
        %5019 = vmatpush1.msra.mxu0 0.0
        %5020 = vmatprep.mubr.f32.mxu0 0.0
        %v5021 = vand.u32 %v3020, 4294901760
        %5022 = vmatmul.mubr.f32.gmra.mrb[0].mxu0 %v5021
        %v5023 = vpop.f32.mrb[0].mxu0
        %v5024 = vadd.f32 %v4897, %v5023
        %v5025 = vpop.f32.mrb[0].mxu0
        %5026 = vmatprep.mubr.f32.mxu0 0.0
        %v5027 = vand.u32 %v3023, 4294901760
        %5028 = vmatmul.mubr.f32.gmra.mrb[0].mxu0 %v5027
        %v5029 = vpop.f32.mrb[0].mxu0
        %v5030 = vadd.f32 %v4905, %v5029
        %v5031 = vpop.f32.mrb[0].mxu0
        %5032 = vdwg.mxu0
        %5033 = vmatprep.subr.mxu0 0.0
        %v5034 = vand.u32 %v4426, 4294901760
        %5035 = vmatpush1.msra.mxu0 %v5034
        %5036 = vmatprep.subr.mxu0 0.0
        %v5037 = vand.u32 %v4427, 4294901760
        %5038 = vmatpush1.msra.mxu0 %v5037
        %5039 = vmatprep.subr.mxu0 0.0
        %v5040 = vand.u32 %v4428, 4294901760
        %5041 = vmatpush1.msra.mxu0 %v5040
        %5042 = vmatprep.subr.mxu0 0.0
        %v5043 = vand.u32 %v4429, 4294901760
        %5044 = vmatpush1.msra.mxu0 %v5043
        %5045 = vmatprep.subr.mxu0 0.0
        %v5046 = vand.u32 %v4430, 4294901760
        %5047 = vmatpush1.msra.mxu0 %v5046
        %5048 = vmatprep.subr.mxu0 0.0
        %v5049 = vand.u32 %v4431, 4294901760
        %5050 = vmatpush1.msra.mxu0 %v5049
        %5051 = vmatprep.subr.mxu0 0.0
        %v5052 = vand.u32 %v4432, 4294901760
        %5053 = vmatpush1.msra.mxu0 %v5052
        %5054 = vmatprep.subr.mxu0 0.0
        %v5055 = vand.u32 %v4433, 4294901760
        %5056 = vmatpush1.msra.mxu0 %v5055
        %5057 = vmatprep.subr.mxu0 0.0
        %v5058 = vand.u32 %v4434, 4294901760
        %5059 = vmatpush1.msra.mxu0 %v5058
        %5060 = vmatprep.subr.mxu0 0.0
        %v5061 = vand.u32 %v4435, 4294901760
        %5062 = vmatpush1.msra.mxu0 %v5061
        %5063 = vmatprep.subr.mxu0 0.0
        %v5064 = vand.u32 %v4436, 4294901760
        %5065 = vmatpush1.msra.mxu0 %v5064
        %5066 = vmatprep.subr.mxu0 0.0
        %v5067 = vand.u32 %v4437, 4294901760
        %5068 = vmatpush1.msra.mxu0 %v5067
        %5069 = vmatprep.subr.mxu0 0.0
        %v5070 = vand.u32 %v4438, 4294901760
        %5071 = vmatpush1.msra.mxu0 %v5070
        %5072 = vmatprep.subr.mxu0 0.0
        %v5073 = vand.u32 %v4439, 4294901760
        %5074 = vmatpush1.msra.mxu0 %v5073
        %5075 = vmatprep.subr.mxu0 0.0
        %v5076 = vand.u32 %v4440, 4294901760
        %5077 = vmatpush1.msra.mxu0 %v5076
        %5078 = vmatprep.subr.mxu0 0.0
        %v5079 = vand.u32 %v4441, 4294901760
        %5080 = vmatpush1.msra.mxu0 %v5079
        %5081 = vmatprep.subr.mxu0 0.0
        %5082 = vmatpush1.msra.mxu0 0.0
        %5083 = vmatprep.subr.mxu0 0.0
        %5084 = vmatpush1.msra.mxu0 0.0
        %5085 = vmatprep.subr.mxu0 0.0
        %5086 = vmatpush1.msra.mxu0 0.0
        %5087 = vmatprep.subr.mxu0 0.0
        %5088 = vmatpush1.msra.mxu0 0.0
        %5089 = vmatprep.subr.mxu0 0.0
        %5090 = vmatpush1.msra.mxu0 0.0
        %5091 = vmatprep.subr.mxu0 0.0
        %5092 = vmatpush1.msra.mxu0 0.0
        %5093 = vmatprep.subr.mxu0 0.0
        %5094 = vmatpush1.msra.mxu0 0.0
        %5095 = vmatprep.subr.mxu0 0.0
        %5096 = vmatpush1.msra.mxu0 0.0
        %5097 = vmatprep.subr.mxu0 0.0
        %5098 = vmatpush1.msra.mxu0 0.0
        %5099 = vmatprep.subr.mxu0 0.0
        %5100 = vmatpush1.msra.mxu0 0.0
        %5101 = vmatprep.subr.mxu0 0.0
        %5102 = vmatpush1.msra.mxu0 0.0
        %5103 = vmatprep.subr.mxu0 0.0
        %5104 = vmatpush1.msra.mxu0 0.0
        %5105 = vmatprep.subr.mxu0 0.0
        %5106 = vmatpush1.msra.mxu0 0.0
        %5107 = vmatprep.subr.mxu0 0.0
        %5108 = vmatpush1.msra.mxu0 0.0
        %5109 = vmatprep.subr.mxu0 0.0
        %5110 = vmatpush1.msra.mxu0 0.0
        %5111 = vmatprep.subr.mxu0 0.0
        %5112 = vmatpush1.msra.mxu0 0.0
        %5113 = vmatprep.mubr.f32.mxu0 0.0
        %v5114 = vand.u32 %v3020, 4294901760
        %5115 = vmatmul.mubr.f32.gmra.mrb[0].mxu0 %v5114
        %v5116 = vpop.f32.mrb[0].mxu0
        %v5117 = vadd.f32 %v5024, %v5116
        %v5118 = vpop.f32.mrb[0].mxu0
        %5119 = vmatprep.mubr.f32.mxu0 0.0
        %v5120 = vand.u32 %v3023, 4294901760
        %5121 = vmatmul.mubr.f32.gmra.mrb[0].mxu0 %v5120
        %v5122 = vpop.f32.mrb[0].mxu0
        %v5123 = vadd.f32 %v5030, %v5122
        %v5124 = vpop.f32.mrb[0].mxu0
        %5125 = vdwg.mxu0
        %v5126 = vadd.f32 %v4416, %v5117
        %v5127 = vadd.f32 %v4422, %v5123
        %v5128 = vld [vmem:[%s7] sm:$0x1]
        %v5130 = vlaneseq
        %v5131 = vshrl.u32 %v5130, 7
        %v5132 = vsub.s32 0, %v5131
        %v5133 = vrot.slane %v5128, %v5132
        %v5135 = vadd.f32 %v5126, %v5133
        %v5136 = vadd.f32 %v5127, %v5133
        %v5137 = vadd.f32 %v861, %v5135
        %v5138 = vadd.f32 %v867, %v5136
        %v5139 = vmax.f32 %v5137, 0.0
        %v5140 = vmax.f32 %v5138, 0.0
        %5141 = vst [vmem:[%s358] sm:$0xff] %v5139
        %5142 = vst [vmem:[%s358 + $0x8] sm:$0xff] %v5140
        %s5143 = smul.u32 2, %s25
        %p5144 = scmp.lt.s32.totalorder %s24, 1
        %s5145 = scalar_select %p5144, %s24, 1
        %p5146 = scmp.lt.s32.totalorder %s5143, 1
        %s5147 = scalar_select %p5146, %s5143, 1
        %s5148 = smul.addr %s5145, 2
        %s5149 = sadd.s32 %s5147, %s5148
        %s5150 = smul.addr %s5149, 8
        %s5151 = scalar_lea.vmem %s8, %s5150
        // Predicated region
        $region57: #{_lambda_.3} parent=51 // pred_check
          %p5152 = pneg %p227
        $region58: #{_lambda_.3} parent=51 // pred_check_branch
          %5154 = sbr.rel (%p5152) target = $region60
        $region59: #{_lambda_.3} parent=51 // pred_region
          %s5155 = smul.u32 2, %s25
        $region60: #{_lambda_.3} parent=51 // pred_fallthru
          _
      $region52: #{_lambda_.3} parent=5 // pred_fallthru
        _
      %p5156 = scmp.le.s32.totalorder 2, %s15
      // Predicated region
      $region61: #{_lambda_.3} parent=5 // pred_check
        %p5157 = pneg %p5156
      $region62: #{_lambda_.3} parent=5 // pred_check_branch
        %5159 = sbr.rel (%p5157) target = $region64
      $region63: #{_lambda_.3} parent=5 // pred_region
        %s5160 = ssub.s32 %s15, 2
        // Predicated region
        $region65: #{_lambda_.3} parent=63 // pred_check
          %p5161 = pneg %p233
        $region66: #{_lambda_.3} parent=63 // pred_check_branch
          %5163 = sbr.rel (%p5161) target = $region68
        $region67: #{_lambda_.3} parent=63 // pred_region
          %s5164 = smul.u32 2, %s27
          %p5165 = scmp.lt.s32.totalorder %s26, 1
          %s5166 = scalar_select %p5165, %s26, 1
          %p5167 = scmp.lt.s32.totalorder %s5164, 1
          %s5168 = scalar_select %p5167, %s5164, 1
          %s5169 = smul.addr %s5166, 2
          %s5170 = sadd.s32 %s5168, %s5169
          %s5171 = smul.addr %s5170, 8
          %s5172 = scalar_lea.vmem %s8, %s5171
        $region68: #{_lambda_.3} parent=63 // pred_fallthru
          _
      $region64: #{_lambda_.3} parent=5 // pred_fallthru
        _
    $region6: #{_lambda_.3} parent=1 // loop_footer
      %s19 = sadd.s32 1, %s15
    $region7: #{_lambda_.3} parent=1 // loop_footer_branch
      %14 = sbr.rel target = $region3
    $region8: #{_lambda_.3} parent=1 // loop_exit
      _
    %5173 = vsyncpa [#allocation3], 1
    %s5174 = scalar_lea.sflag [#allocation3], 1
    %5175 = vsyncpa %s5174, 1

</llo_original>
